<compile_context>
chip_gen: v7x
topology: tpu7x:2x2x1
jax: 0.10.0
libtpu: 0.0.40
codegen_flags: <defaults>
</compile_context>

<pallas_src>
import jax
import jax.numpy as jnp
from jax.experimental import pallas as pl
from jax.experimental.pallas import tpu as pltpu

BN_EPS = 1e-5


# ----------------------------------------------------------------------------
# static geometry for the channel-major, flattened zero-padded layout
# ----------------------------------------------------------------------------
def _round_up(x, m):
    return (x + m - 1) // m * m


def _geom(D, H, W):
    plane = (H + 2) * (W + 2)
    P = (D + 2) * plane                    # padded voxels per channel
    Mp = D * plane                         # matmul output columns ("m" layout)
    Lm = _round_up(Mp, 128)                # stored lane width of conv outputs
    shift = plane + (W + 2) + 1            # m-index -> padded-flat index offset
    max_off = 2 * plane + 2 * (W + 2) + 2  # largest 3x3x3 tap offset
    Ppad = _round_up(max(P, Mp + max_off, shift + Lm), 128)
    XL = _round_up(Mp, 256)                # im2col lane width (MXU friendly)
    return dict(plane=plane, P=P, Mp=Mp, Lm=Lm, shift=shift, Ppad=Ppad, XL=XL)


def _valid_mask(D, H, W, Mp, Lm):
    """(1, Lm) f32: 1 where the m-index is a real (non-rim) output voxel."""
    m = jnp.arange(Lm)
    zw = m % (W + 2)
    zh = (m // (W + 2)) % (H + 2)
    valid = (m < Mp) & (zh < H) & (zw < W)
    return valid.astype(jnp.float32).reshape(1, Lm)


# ----------------------------------------------------------------------------
# in-kernel helpers (shared by both conv layers)
# ----------------------------------------------------------------------------
def _fill_xcol(xcol_ref, src_refs, *, H, W, Mp):
    """Lane-dense im2col into a VMEM scratch.

    xcol row k = tap*Ctot + cin  <-  src[cin, off_tap : off_tap + Mp].
    Each 3x3x3 tap of one input is a single contiguous lane slice of the
    flattened padded layout, so the fill is 27 block copies per input
    (no lane concatenate, no per-channel loops).
    """
    plane = (H + 2) * (W + 2)
    row = 0
    for kd in range(3):
        for kh in range(3):
            for kw in range(3):
                off = kd * plane + kh * (W + 2) + kw
                for src in src_refs:              # concat order == K order
                    c = src.shape[0]
                    xcol_ref[row:row + c, :Mp] = src[:, off:off + Mp]
                    row += c
    kpad, xl = xcol_ref.shape
    if row < kpad:
        # zero K-padding rows so stale VMEM can never pollute valid columns.
        xcol_ref[row:kpad, :] = jnp.zeros((kpad - row, xl), xcol_ref.dtype)


def _conv_core(src_refs, w_ref, b_ref, m_ref, y_ref, st_ref, xcol_ref,
               *, H, W, Mp):
    """3x3x3 conv (+bias) as ONE lane-dense MXU matmul + BN partial stats."""
    _fill_xcol(xcol_ref, src_refs, H=H, W=W, Mp=Mp)
    # (Cout, Kpad) @ (Kpad, XL) -> (Cout, XL) f32; spatial dim in lanes.
    acc = jnp.dot(w_ref[...], xcol_ref[...], preferred_element_type=jnp.float32)
    Lm = y_ref.shape[-1]
    valid = m_ref[...] > 0.0                                    # (1, Lm)
    y = jnp.where(valid, acc[:, :Lm] + b_ref[...], 0.0)         # (Cout, Lm) f32
    # per-batch BN partials: lane reduction (XLU) -> (Cout, 1) each.
    st_ref[0, :, 0:1] = jnp.sum(y, axis=1, keepdims=True)
    st_ref[0, :, 1:2] = jnp.sum(y * y, axis=1, keepdims=True)
    y_ref[0] = y.astype(y_ref.dtype)                            # lane-dense store


# ----------------------------------------------------------------------------
# pallas_call wrappers
# ----------------------------------------------------------------------------
def _compiler_params():
    return pltpu.CompilerParams(dimension_semantics=("parallel",))


def _conv_concat_layer(x2p, x1p, w, b, mask, *, H, W, Mp, Lm, XL):
    """conv1 over cat([x2, x1_up], channel); grid over batch elements."""
    N, C2, Ppad = x2p.shape
    C1 = x1p.shape[1]
    Cout, Kpad = w.shape

    def kernel(x2_ref, x1_ref, w_ref, b_ref, m_ref, y_ref, st_ref, xcol_ref):
        _conv_core([x2_ref.at[0], x1_ref.at[0]], w_ref, b_ref, m_ref,
                   y_ref, st_ref, xcol_ref, H=H, W=W, Mp=Mp)

    return pl.pallas_call(
        kernel,
        grid=(N,),
        in_specs=[
            pl.BlockSpec((1, C2, Ppad), lambda n: (n, 0, 0)),
            pl.BlockSpec((1, C1, Ppad), lambda n: (n, 0, 0)),
            pl.BlockSpec((Cout, Kpad), lambda n: (0, 0)),
            pl.BlockSpec((Cout, 1), lambda n: (0, 0)),
            pl.BlockSpec((1, Lm), lambda n: (0, 0)),
        ],
        out_specs=(
            pl.BlockSpec((1, Cout, Lm), lambda n: (n, 0, 0)),
            pl.BlockSpec((1, Cout, 2), lambda n: (n, 0, 0)),
        ),
        out_shape=(
            jax.ShapeDtypeStruct((N, Cout, Lm), jnp.bfloat16),
            jax.ShapeDtypeStruct((N, Cout, 2), jnp.float32),
        ),
        scratch_shapes=[pltpu.VMEM((Kpad, XL), jnp.bfloat16)],
        compiler_params=_compiler_params(),
    )(x2p, x1p, w, b, mask)


def _conv_affine_layer(y1, scale, shiftv, w, b, mask,
                       *, H, W, Mp, Lm, shift, Ppad, XL):
    """conv2 with the previous layer's BN + ReLU folded into the input load."""
    N, Cmid, _ = y1.shape
    Cout, Kpad = w.shape

    def kernel(y1_ref, s_ref, t_ref, w_ref, b_ref, m_ref, y_ref, st_ref,
               slab_ref, xcol_ref):
        v = y1_ref[0].astype(jnp.float32)                      # (Cmid, Lm)
        v = jnp.maximum(v * s_ref[...] + t_ref[...], 0.0)      # BN1 + ReLU
        v = jnp.where(m_ref[...] > 0.0, v, 0.0)                # keep rim == 0
        slab_ref[...] = jnp.zeros(slab_ref.shape, slab_ref.dtype)
        slab_ref[:, shift:shift + Lm] = v.astype(slab_ref.dtype)  # padded layout
        _conv_core([slab_ref], w_ref, b_ref, m_ref, y_ref, st_ref,
                   xcol_ref, H=H, W=W, Mp=Mp)

    return pl.pallas_call(
        kernel,
        grid=(N,),
        in_specs=[
            pl.BlockSpec((1, Cmid, Lm), lambda n: (n, 0, 0)),
            pl.BlockSpec((Cmid, 1), lambda n: (0, 0)),
            pl.BlockSpec((Cmid, 1), lambda n: (0, 0)),
            pl.BlockSpec((Cout, Kpad), lambda n: (0, 0)),
            pl.BlockSpec((Cout, 1), lambda n: (0, 0)),
            pl.BlockSpec((1, Lm), lambda n: (0, 0)),
        ],
        out_specs=(
            pl.BlockSpec((1, Cout, Lm), lambda n: (n, 0, 0)),
            pl.BlockSpec((1, Cout, 2), lambda n: (n, 0, 0)),
        ),
        out_shape=(
            jax.ShapeDtypeStruct((N, Cout, Lm), jnp.float32),
            jax.ShapeDtypeStruct((N, Cout, 2), jnp.float32),
        ),
        scratch_shapes=[pltpu.VMEM((Cmid, Ppad), jnp.bfloat16),
                        pltpu.VMEM((Kpad, XL), jnp.bfloat16)],
        compiler_params=_compiler_params(),
    )(y1, scale, shiftv, w, b, mask)


def _bn_fold(stats, gamma, beta, count):
    """Training-mode BatchNorm (biased variance, eps=1e-5) -> (scale, shift).

    NOTE: E[x^2]-E[x]^2 in f32 can cancel for large-magnitude activations; the
    clamp keeps variance non-negative (documented trade-off at these sizes).
    """
    s = jnp.sum(stats, axis=0)                       # (C, 2) f32
    mean = s[:, 0] / count
    var = jnp.maximum(s[:, 1] / count - mean * mean, 0.0)
    scale = gamma / jnp.sqrt(var + BN_EPS)
    shiftv = beta - mean * scale
    return (scale.reshape(-1, 1).astype(jnp.float32),
            shiftv.reshape(-1, 1).astype(jnp.float32))


# ----------------------------------------------------------------------------
# glue: trilinear 2x upsample (align_corners=True), quirky pad, layout packing
# ----------------------------------------------------------------------------
def trilinear_upsample_2x_align_corners(x, axes):
    """2x linear upsample with align_corners=True along `axes` (separable)."""
    # TODO(synk): stays in plain XLA; fusing it into conv1's input packing is
    # possible but not worth it at UNet-decoder sizes.
    def interp_axis(x, axis):
        L = x.shape[axis]
        out = 2 * L
        if L == 1:
            return jnp.repeat(x, 2, axis=axis)
        pos = jnp.arange(out, dtype=jnp.float32) * (L - 1) / (out - 1)
        lo = jnp.clip(jnp.floor(pos).astype(jnp.int32), 0, L - 1)
        hi = jnp.clip(lo + 1, 0, L - 1)
        w = pos - lo.astype(jnp.float32)
        xl = jnp.take(x, lo, axis=axis)
        xh = jnp.take(x, hi, axis=axis)
        wshape = [1] * x.ndim
        wshape[axis] = out
        w = w.reshape(wshape)
        return xl * (1.0 - w) + xh * w

    for ax in axes:
        x = interp_axis(x, ax)
    return x


def _pack_padded_flat(x, Ppad):
    """NCDHW f32 -> (N, C, Ppad) bf16: zero-pad 1 voxel per spatial side,
    flatten (D+2, H+2, W+2), zero-pad lanes to Ppad (channel-major layout)."""
    N, C, D, H, W = x.shape
    xp = jnp.pad(x, ((0, 0), (0, 0), (1, 1), (1, 1), (1, 1)))
    xp = xp.reshape(N, C, (D + 2) * (H + 2) * (W + 2))
    xp = jnp.pad(xp, ((0, 0), (0, 0), (0, Ppad - xp.shape[-1])))
    return xp.astype(jnp.bfloat16)


@jax.jit
def up_forward(x1, x2, params):
    """Pallas implementation of Up.forward. x1, x2, result are NCDHW f32."""
    x1u = trilinear_upsample_2x_align_corners(x1, axes=(2, 3, 4))

    # Exact reproduction of the module's quirky F.pad: diffY comes from the D
    # dims but pads H, diffX comes from the H dims and pads W.
    diffY = x2.shape[2] - x1u.shape[2]
    diffX = x2.shape[3] - x1u.shape[3]
    x1u = jnp.pad(x1u, ((0, 0), (0, 0), (0, 0),
                        (diffY // 2, diffY - diffY // 2),
                        (diffX // 2, diffX - diffX // 2)))
    assert x1u.shape[2:] == x2.shape[2:], "Up: spatial shapes must match"

    N, C2, D, H, W = x2.shape
    C1 = x1u.shape[1]
    g = _geom(D, H, W)
    Cmid, Kpad1 = params['w1m'].shape
    Cout = params['w2m'].shape[0]
    count = N * D * H * W

    # TODO(synk): depth-tile the volume (overlapping windows) once a whole
    # padded volume no longer fits VMEM; at these sizes one tile per batch
    # element minimizes the ~0.35us/step fixed overhead.
    vmem_bytes = (2 * 2 * (C1 + C2) * g['Ppad']          # bf16 inputs, dbl-buffered
                  + 2 * Kpad1 * g['XL']                  # bf16 im2col scratch
                  + 2 * 4 * max(Cmid, Cout) * g['Lm'])   # f32 outputs, dbl-buffered
    assert vmem_bytes < 32 * 1024 * 1024, "volume too large for single-tile Up kernel"

    mask = _valid_mask(D, H, W, g['Mp'], g['Lm'])
    x2p = _pack_padded_flat(x2, g['Ppad'])
    x1p = _pack_padded_flat(x1u, g['Ppad'])

    # conv1 (+bias) with in-kernel channel concat; per-batch BN partials.
    y1, st1 = _conv_concat_layer(
        x2p, x1p, params['w1m'], params['b1c'], mask,
        H=H, W=W, Mp=g['Mp'], Lm=g['Lm'], XL=g['XL'])
    s1, t1 = _bn_fold(st1, params['g1'], params['beta1'], count)

    # conv2: BN1 + ReLU folded into the input load; its own BN partials.
    # NOTE: BN1 stats come from f32 pre-downcast conv outputs but are applied
    # to the bf16-rounded stored y1 (small, documented mismatch).
    y2, st2 = _conv_affine_layer(
        y1, s1, t1, params['w2m'], params['b2c'], mask,
        H=H, W=W, Mp=g['Mp'], Lm=g['Lm'], shift=g['shift'],
        Ppad=g['Ppad'], XL=g['XL'])
    s2, t2 = _bn_fold(st2, params['g2'], params['beta2'], count)

    # BN2 + ReLU + NCDHW restore: one small fused XLA op.  The channel-major
    # layout means no transpose is needed - just slice + reshape.
    y2v = y2[:, :, :g['Mp']].reshape(N, Cout, D, H + 2, W + 2)[:, :, :, :H, :W]
    return jnp.maximum(y2v * s2.reshape(1, Cout, 1, 1, 1)
                       + t2.reshape(1, Cout, 1, 1, 1), 0.0)


# ----------------------------------------------------------------------------
# pure-JAX reference (lax.conv, f32) for correctness checking
# ----------------------------------------------------------------------------
def _ref_conv_bn_relu(x, w, b, g, beta):
    y = jax.lax.conv_general_dilated(
        x, w, window_strides=(1, 1, 1),
        padding=((1, 1), (1, 1), (1, 1)),
        dimension_numbers=('NCDHW', 'OIDHW', 'NCDHW'))
    y = y + b.reshape(1, -1, 1, 1, 1)
    mu = jnp.mean(y, axis=(0, 2, 3, 4), keepdims=True)
    var = jnp.mean((y - mu) ** 2, axis=(0, 2, 3, 4), keepdims=True)
    y = (y - mu) / jnp.sqrt(var + BN_EPS)
    y = y * g.reshape(1, -1, 1, 1, 1) + beta.reshape(1, -1, 1, 1, 1)
    return jnp.maximum(y, 0.0)


def up_forward_reference(x1, x2, params):
    x1u = trilinear_upsample_2x_align_corners(x1, axes=(2, 3, 4))
    diffY = x2.shape[2] - x1u.shape[2]
    diffX = x2.shape[3] - x1u.shape[3]
    x1u = jnp.pad(x1u, ((0, 0), (0, 0), (0, 0),
                        (diffY // 2, diffY - diffY // 2),
                        (diffX // 2, diffX - diffX // 2)))
    x = jnp.concatenate([x2, x1u], axis=1)
    y = _ref_conv_bn_relu(x, params['w1'], params['b1'],
                          params['g1'], params['beta1'])
    y = _ref_conv_bn_relu(y, params['w2'], params['b2'],
                          params['g2'], params['beta2'])
    return y


# ----------------------------------------------------------------------------
def make_params(key, in_channel, out_channel):
    mid = in_channel // 2
    ks = jax.random.split(key, 8)
    w1 = 0.1 * jax.random.normal(ks[0], (mid, in_channel, 3, 3, 3), jnp.float32)
    b1 = 0.1 * jax.random.normal(ks[1], (mid,), jnp.float32)
    g1 = 1.0 + 0.1 * jax.random.normal(ks[2], (mid,), jnp.float32)
    beta1 = 0.1 * jax.random.normal(ks[3], (mid,), jnp.float32)
    w2 = 0.1 * jax.random.normal(ks[4], (out_channel, mid, 3, 3, 3), jnp.float32)
    b2 = 0.1 * jax.random.normal(ks[5], (out_channel,), jnp.float32)
    g2 = 1.0 + 0.1 * jax.random.normal(ks[6], (out_channel,), jnp.float32)
    beta2 = 0.1 * jax.random.normal(ks[7], (out_channel,), jnp.float32)

    def flip_pack(w):
        # (Cout, Cin, kd, kh, kw) -> (Cout, Kpad): K ordered tap-major with
        # channel fastest (matches the xcol row order), zero-padded K.
        cout, cin = w.shape[0], w.shape[1]
        k = 27 * cin
        kpad = _round_up(k, 128)
        wm = jnp.transpose(w, (0, 2, 3, 4, 1)).reshape(cout, k)
        wm = jnp.pad(wm, ((0, 0), (0, kpad - k)))
        return wm.astype(jnp.bfloat16)

    return dict(w1=w1, b1=b1, g1=g1, beta1=beta1,
                w2=w2, b2=b2, g2=g2, beta2=beta2,
                w1m=flip_pack(w1), w2m=flip_pack(w2),
                b1c=b1.reshape(-1, 1).astype(jnp.float32),
                b2c=b2.reshape(-1, 1).astype(jnp.float32))


if __name__ == "__main__":
    key = jax.random.PRNGKey(0)
    k_x1, k_x2, k_p = jax.random.split(key, 3)

    # Small UNet-style shapes: x1 is the deeper (coarser) feature map.
    N, C1, C2, Dsm = 2, 4, 4, 4
    in_channel = C1 + C2            # 8
    out_channel = 4

    x1 = jax.random.normal(k_x1, (N, C1, Dsm, Dsm, Dsm), jnp.float32)
    x2 = jax.random.normal(k_x2, (N, C2, 2 * Dsm, 2 * Dsm, 2 * Dsm), jnp.float32)
    params = make_params(k_p, in_channel, out_channel)

    out = jax.block_until_ready(up_forward(x1, x2, params))
    ref = up_forward_reference(x1, x2, params)

    assert out.shape == (N, out_channel, 2 * Dsm, 2 * Dsm, 2 * Dsm), out.shape
    # bf16 activations/weights on the MXU path -> compare at bf16 tolerance.
    if not jnp.allclose(out, ref, rtol=3e-2, atol=3e-2):
        raise AssertionError(
            f"mismatch vs reference: max abs err = {jnp.max(jnp.abs(out - ref))}")
    print("KERNEL_OK")
</pallas_src>

<mosaic_0001>
module attributes {stable_mosaic.version = 11 : i64} {
  func.func @kernel(%arg0: i32, %arg1: memref<1x4x1024xbf16, #tpu.memory_space<vmem>>, %arg2: memref<1x4x1024xbf16, #tpu.memory_space<vmem>>, %arg3: memref<4x256xbf16, #tpu.memory_space<vmem>>, %arg4: memref<4x1xf32, #tpu.memory_space<vmem>>, %arg5: memref<1x896xf32, #tpu.memory_space<vmem>>, %arg6: memref<1x4x896xbf16, #tpu.memory_space<vmem>>, %arg7: memref<1x4x2xf32, #tpu.memory_space<vmem>>, %arg8: memref<256x1024xbf16, #tpu.memory_space<vmem>>) attributes {dimension_semantics = [#tpu.dimension_semantics<parallel>], iteration_bounds = array<i64: 2>, scalar_prefetch = 0 : i64, scratch_operands = 1 : i64, tpu.core_type = #tpu.core_type<tc>, window_params = [{transform_indices = @transform_0, window_bounds = array<i64: 1, 4, 1024>}, {transform_indices = @transform_1, window_bounds = array<i64: 1, 4, 1024>}, {pipeline_mode = #tpu.pipeline_mode<synchronous>, transform_indices = @transform_2, window_bounds = array<i64: 4, 256>}, {pipeline_mode = #tpu.pipeline_mode<synchronous>, transform_indices = @transform_3, window_bounds = array<i64: 4, 1>}, {pipeline_mode = #tpu.pipeline_mode<synchronous>, transform_indices = @transform_4, window_bounds = array<i64: 1, 896>}, {transform_indices = @transform_5, window_bounds = array<i64: 1, 4, 896>}, {transform_indices = @transform_6, window_bounds = array<i64: 1, 4, 2>}]} {
    %c0_i32 = arith.constant 0 : i32
    %c0_i32_0 = arith.constant 0 : i32
    %c0_i32_1 = arith.constant 0 : i32
    %0 = tpu.memref_slice %arg1[%c0_i32, %c0_i32_0, %c0_i32_1] : memref<1x4x1024xbf16, #tpu.memory_space<vmem>> -> memref<1x4x1024xbf16, #tpu.memory_space<vmem>>
    %1 = tpu.memref_squeeze %0 : memref<1x4x1024xbf16, #tpu.memory_space<vmem>> -> memref<4x1024xbf16, #tpu.memory_space<vmem>>
    %c0 = arith.constant 0 : index
    %c0_2 = arith.constant 0 : index
    %2 = vector.load %1[%c0, %c0_2] : memref<4x1024xbf16, #tpu.memory_space<vmem>>, vector<4x800xbf16>
    %c0_3 = arith.constant 0 : index
    %c0_4 = arith.constant 0 : index
    %3 = vector.load %arg8[%c0_3, %c0_4] : memref<256x1024xbf16, #tpu.memory_space<vmem>>, vector<4x800xbf16>
    tpu.vector_store %arg8[%c0_3, %c0_4], %2 {strides = array<i32>} : memref<256x1024xbf16, #tpu.memory_space<vmem>>, vector<4x800xbf16>,
    %c0_i32_5 = arith.constant 0 : i32
    %c0_i32_6 = arith.constant 0 : i32
    %c0_i32_7 = arith.constant 0 : i32
    %4 = tpu.memref_slice %arg2[%c0_i32_5, %c0_i32_6, %c0_i32_7] : memref<1x4x1024xbf16, #tpu.memory_space<vmem>> -> memref<1x4x1024xbf16, #tpu.memory_space<vmem>>
    %5 = tpu.memref_squeeze %4 : memref<1x4x1024xbf16, #tpu.memory_space<vmem>> -> memref<4x1024xbf16, #tpu.memory_space<vmem>>
    %c0_8 = arith.constant 0 : index
    %c0_9 = arith.constant 0 : index
    %6 = vector.load %5[%c0_8, %c0_9] : memref<4x1024xbf16, #tpu.memory_space<vmem>>, vector<4x800xbf16>
    %c4 = arith.constant 4 : index
    %c0_10 = arith.constant 0 : index
    %7 = vector.load %arg8[%c4, %c0_10] : memref<256x1024xbf16, #tpu.memory_space<vmem>>, vector<4x800xbf16>
    tpu.vector_store %arg8[%c4, %c0_10], %6 {strides = array<i32>} : memref<256x1024xbf16, #tpu.memory_space<vmem>>, vector<4x800xbf16>,
    %c0_i32_11 = arith.constant 0 : i32
    %c0_i32_12 = arith.constant 0 : i32
    %c0_i32_13 = arith.constant 0 : i32
    %8 = tpu.memref_slice %arg1[%c0_i32_11, %c0_i32_12, %c0_i32_13] : memref<1x4x1024xbf16, #tpu.memory_space<vmem>> -> memref<1x4x1024xbf16, #tpu.memory_space<vmem>>
    %9 = tpu.memref_squeeze %8 : memref<1x4x1024xbf16, #tpu.memory_space<vmem>> -> memref<4x1024xbf16, #tpu.memory_space<vmem>>
    %c0_14 = arith.constant 0 : index
    %c1 = arith.constant 1 : index
    %10 = vector.load %9[%c0_14, %c1] : memref<4x1024xbf16, #tpu.memory_space<vmem>>, vector<4x800xbf16>
    %c8 = arith.constant 8 : index
    %c0_15 = arith.constant 0 : index
    %11 = vector.load %arg8[%c8, %c0_15] : memref<256x1024xbf16, #tpu.memory_space<vmem>>, vector<4x800xbf16>
    tpu.vector_store %arg8[%c8, %c0_15], %10 {strides = array<i32>} : memref<256x1024xbf16, #tpu.memory_space<vmem>>, vector<4x800xbf16>,
    %c0_i32_16 = arith.constant 0 : i32
    %c0_i32_17 = arith.constant 0 : i32
    %c0_i32_18 = arith.constant 0 : i32
    %12 = tpu.memref_slice %arg2[%c0_i32_16, %c0_i32_17, %c0_i32_18] : memref<1x4x1024xbf16, #tpu.memory_space<vmem>> -> memref<1x4x1024xbf16, #tpu.memory_space<vmem>>
    %13 = tpu.memref_squeeze %12 : memref<1x4x1024xbf16, #tpu.memory_space<vmem>> -> memref<4x1024xbf16, #tpu.memory_space<vmem>>
    %c0_19 = arith.constant 0 : index
    %c1_20 = arith.constant 1 : index
    %14 = vector.load %13[%c0_19, %c1_20] : memref<4x1024xbf16, #tpu.memory_space<vmem>>, vector<4x800xbf16>
    %c12 = arith.constant 12 : index
    %c0_21 = arith.constant 0 : index
    %15 = vector.load %arg8[%c12, %c0_21] : memref<256x1024xbf16, #tpu.memory_space<vmem>>, vector<4x800xbf16>
    tpu.vector_store %arg8[%c12, %c0_21], %14 {strides = array<i32>} : memref<256x1024xbf16, #tpu.memory_space<vmem>>, vector<4x800xbf16>,
    %c0_i32_22 = arith.constant 0 : i32
    %c0_i32_23 = arith.constant 0 : i32
    %c0_i32_24 = arith.constant 0 : i32
    %16 = tpu.memref_slice %arg1[%c0_i32_22, %c0_i32_23, %c0_i32_24] : memref<1x4x1024xbf16, #tpu.memory_space<vmem>> -> memref<1x4x1024xbf16, #tpu.memory_space<vmem>>
    %17 = tpu.memref_squeeze %16 : memref<1x4x1024xbf16, #tpu.memory_space<vmem>> -> memref<4x1024xbf16, #tpu.memory_space<vmem>>
    %c0_25 = arith.constant 0 : index
    %c2 = arith.constant 2 : index
    %18 = vector.load %17[%c0_25, %c2] : memref<4x1024xbf16, #tpu.memory_space<vmem>>, vector<4x800xbf16>
    %c16 = arith.constant 16 : index
    %c0_26 = arith.constant 0 : index
    %19 = vector.load %arg8[%c16, %c0_26] : memref<256x1024xbf16, #tpu.memory_space<vmem>>, vector<4x800xbf16>
    tpu.vector_store %arg8[%c16, %c0_26], %18 {strides = array<i32>} : memref<256x1024xbf16, #tpu.memory_space<vmem>>, vector<4x800xbf16>,
    %c0_i32_27 = arith.constant 0 : i32
    %c0_i32_28 = arith.constant 0 : i32
    %c0_i32_29 = arith.constant 0 : i32
    %20 = tpu.memref_slice %arg2[%c0_i32_27, %c0_i32_28, %c0_i32_29] : memref<1x4x1024xbf16, #tpu.memory_space<vmem>> -> memref<1x4x1024xbf16, #tpu.memory_space<vmem>>
    %21 = tpu.memref_squeeze %20 : memref<1x4x1024xbf16, #tpu.memory_space<vmem>> -> memref<4x1024xbf16, #tpu.memory_space<vmem>>
    %c0_30 = arith.constant 0 : index
    %c2_31 = arith.constant 2 : index
    %22 = vector.load %21[%c0_30, %c2_31] : memref<4x1024xbf16, #tpu.memory_space<vmem>>, vector<4x800xbf16>
    %c20 = arith.constant 20 : index
    %c0_32 = arith.constant 0 : index
    %23 = vector.load %arg8[%c20, %c0_32] : memref<256x1024xbf16, #tpu.memory_space<vmem>>, vector<4x800xbf16>
    tpu.vector_store %arg8[%c20, %c0_32], %22 {strides = array<i32>} : memref<256x1024xbf16, #tpu.memory_space<vmem>>, vector<4x800xbf16>,
    %c0_i32_33 = arith.constant 0 : i32
    %c0_i32_34 = arith.constant 0 : i32
    %c0_i32_35 = arith.constant 0 : i32
    %24 = tpu.memref_slice %arg1[%c0_i32_33, %c0_i32_34, %c0_i32_35] : memref<1x4x1024xbf16, #tpu.memory_space<vmem>> -> memref<1x4x1024xbf16, #tpu.memory_space<vmem>>
    %25 = tpu.memref_squeeze %24 : memref<1x4x1024xbf16, #tpu.memory_space<vmem>> -> memref<4x1024xbf16, #tpu.memory_space<vmem>>
    %c0_36 = arith.constant 0 : index
    %c10 = arith.constant 10 : index
    %26 = vector.load %25[%c0_36, %c10] : memref<4x1024xbf16, #tpu.memory_space<vmem>>, vector<4x800xbf16>
    %c24 = arith.constant 24 : index
    %c0_37 = arith.constant 0 : index
    %27 = vector.load %arg8[%c24, %c0_37] : memref<256x1024xbf16, #tpu.memory_space<vmem>>, vector<4x800xbf16>
    tpu.vector_store %arg8[%c24, %c0_37], %26 {strides = array<i32>} : memref<256x1024xbf16, #tpu.memory_space<vmem>>, vector<4x800xbf16>,
    %c0_i32_38 = arith.constant 0 : i32
    %c0_i32_39 = arith.constant 0 : i32
    %c0_i32_40 = arith.constant 0 : i32
    %28 = tpu.memref_slice %arg2[%c0_i32_38, %c0_i32_39, %c0_i32_40] : memref<1x4x1024xbf16, #tpu.memory_space<vmem>> -> memref<1x4x1024xbf16, #tpu.memory_space<vmem>>
    %29 = tpu.memref_squeeze %28 : memref<1x4x1024xbf16, #tpu.memory_space<vmem>> -> memref<4x1024xbf16, #tpu.memory_space<vmem>>
    %c0_41 = arith.constant 0 : index
    %c10_42 = arith.constant 10 : index
    %30 = vector.load %29[%c0_41, %c10_42] : memref<4x1024xbf16, #tpu.memory_space<vmem>>, vector<4x800xbf16>
    %c28 = arith.constant 28 : index
    %c0_43 = arith.constant 0 : index
    %31 = vector.load %arg8[%c28, %c0_43] : memref<256x1024xbf16, #tpu.memory_space<vmem>>, vector<4x800xbf16>
    tpu.vector_store %arg8[%c28, %c0_43], %30 {strides = array<i32>} : memref<256x1024xbf16, #tpu.memory_space<vmem>>, vector<4x800xbf16>,
    %c0_i32_44 = arith.constant 0 : i32
    %c0_i32_45 = arith.constant 0 : i32
    %c0_i32_46 = arith.constant 0 : i32
    %32 = tpu.memref_slice %arg1[%c0_i32_44, %c0_i32_45, %c0_i32_46] : memref<1x4x1024xbf16, #tpu.memory_space<vmem>> -> memref<1x4x1024xbf16, #tpu.memory_space<vmem>>
    %33 = tpu.memref_squeeze %32 : memref<1x4x1024xbf16, #tpu.memory_space<vmem>> -> memref<4x1024xbf16, #tpu.memory_space<vmem>>
    %c0_47 = arith.constant 0 : index
    %c11 = arith.constant 11 : index
    %34 = vector.load %33[%c0_47, %c11] : memref<4x1024xbf16, #tpu.memory_space<vmem>>, vector<4x800xbf16>
    %c32 = arith.constant 32 : index
    %c0_48 = arith.constant 0 : index
    %35 = vector.load %arg8[%c32, %c0_48] : memref<256x1024xbf16, #tpu.memory_space<vmem>>, vector<4x800xbf16>
    tpu.vector_store %arg8[%c32, %c0_48], %34 {strides = array<i32>} : memref<256x1024xbf16, #tpu.memory_space<vmem>>, vector<4x800xbf16>,
    %c0_i32_49 = arith.constant 0 : i32
    %c0_i32_50 = arith.constant 0 : i32
    %c0_i32_51 = arith.constant 0 : i32
    %36 = tpu.memref_slice %arg2[%c0_i32_49, %c0_i32_50, %c0_i32_51] : memref<1x4x1024xbf16, #tpu.memory_space<vmem>> -> memref<1x4x1024xbf16, #tpu.memory_space<vmem>>
    %37 = tpu.memref_squeeze %36 : memref<1x4x1024xbf16, #tpu.memory_space<vmem>> -> memref<4x1024xbf16, #tpu.memory_space<vmem>>
    %c0_52 = arith.constant 0 : index
    %c11_53 = arith.constant 11 : index
    %38 = vector.load %37[%c0_52, %c11_53] : memref<4x1024xbf16, #tpu.memory_space<vmem>>, vector<4x800xbf16>
    %c36 = arith.constant 36 : index
    %c0_54 = arith.constant 0 : index
    %39 = vector.load %arg8[%c36, %c0_54] : memref<256x1024xbf16, #tpu.memory_space<vmem>>, vector<4x800xbf16>
    tpu.vector_store %arg8[%c36, %c0_54], %38 {strides = array<i32>} : memref<256x1024xbf16, #tpu.memory_space<vmem>>, vector<4x800xbf16>,
    %c0_i32_55 = arith.constant 0 : i32
    %c0_i32_56 = arith.constant 0 : i32
    %c0_i32_57 = arith.constant 0 : i32
    %40 = tpu.memref_slice %arg1[%c0_i32_55, %c0_i32_56, %c0_i32_57] : memref<1x4x1024xbf16, #tpu.memory_space<vmem>> -> memref<1x4x1024xbf16, #tpu.memory_space<vmem>>
    %41 = tpu.memref_squeeze %40 : memref<1x4x1024xbf16, #tpu.memory_space<vmem>> -> memref<4x1024xbf16, #tpu.memory_space<vmem>>
    %c0_58 = arith.constant 0 : index
    %c12_59 = arith.constant 12 : index
    %42 = vector.load %41[%c0_58, %c12_59] : memref<4x1024xbf16, #tpu.memory_space<vmem>>, vector<4x800xbf16>
    %c40 = arith.constant 40 : index
    %c0_60 = arith.constant 0 : index
    %43 = vector.load %arg8[%c40, %c0_60] : memref<256x1024xbf16, #tpu.memory_space<vmem>>, vector<4x800xbf16>
    tpu.vector_store %arg8[%c40, %c0_60], %42 {strides = array<i32>} : memref<256x1024xbf16, #tpu.memory_space<vmem>>, vector<4x800xbf16>,
    %c0_i32_61 = arith.constant 0 : i32
    %c0_i32_62 = arith.constant 0 : i32
    %c0_i32_63 = arith.constant 0 : i32
    %44 = tpu.memref_slice %arg2[%c0_i32_61, %c0_i32_62, %c0_i32_63] : memref<1x4x1024xbf16, #tpu.memory_space<vmem>> -> memref<1x4x1024xbf16, #tpu.memory_space<vmem>>
    %45 = tpu.memref_squeeze %44 : memref<1x4x1024xbf16, #tpu.memory_space<vmem>> -> memref<4x1024xbf16, #tpu.memory_space<vmem>>
    %c0_64 = arith.constant 0 : index
    %c12_65 = arith.constant 12 : index
    %46 = vector.load %45[%c0_64, %c12_65] : memref<4x1024xbf16, #tpu.memory_space<vmem>>, vector<4x800xbf16>
    %c44 = arith.constant 44 : index
    %c0_66 = arith.constant 0 : index
    %47 = vector.load %arg8[%c44, %c0_66] : memref<256x1024xbf16, #tpu.memory_space<vmem>>, vector<4x800xbf16>
    tpu.vector_store %arg8[%c44, %c0_66], %46 {strides = array<i32>} : memref<256x1024xbf16, #tpu.memory_space<vmem>>, vector<4x800xbf16>,
    %c0_i32_67 = arith.constant 0 : i32
    %c0_i32_68 = arith.constant 0 : i32
    %c0_i32_69 = arith.constant 0 : i32
    %48 = tpu.memref_slice %arg1[%c0_i32_67, %c0_i32_68, %c0_i32_69] : memref<1x4x1024xbf16, #tpu.memory_space<vmem>> -> memref<1x4x1024xbf16, #tpu.memory_space<vmem>>
    %49 = tpu.memref_squeeze %48 : memref<1x4x1024xbf16, #tpu.memory_space<vmem>> -> memref<4x1024xbf16, #tpu.memory_space<vmem>>
    %c0_70 = arith.constant 0 : index
    %c20_71 = arith.constant 20 : index
    %50 = vector.load %49[%c0_70, %c20_71] : memref<4x1024xbf16, #tpu.memory_space<vmem>>, vector<4x800xbf16>
    %c48 = arith.constant 48 : index
    %c0_72 = arith.constant 0 : index
    %51 = vector.load %arg8[%c48, %c0_72] : memref<256x1024xbf16, #tpu.memory_space<vmem>>, vector<4x800xbf16>
    tpu.vector_store %arg8[%c48, %c0_72], %50 {strides = array<i32>} : memref<256x1024xbf16, #tpu.memory_space<vmem>>, vector<4x800xbf16>,
    %c0_i32_73 = arith.constant 0 : i32
    %c0_i32_74 = arith.constant 0 : i32
    %c0_i32_75 = arith.constant 0 : i32
    %52 = tpu.memref_slice %arg2[%c0_i32_73, %c0_i32_74, %c0_i32_75] : memref<1x4x1024xbf16, #tpu.memory_space<vmem>> -> memref<1x4x1024xbf16, #tpu.memory_space<vmem>>
    %53 = tpu.memref_squeeze %52 : memref<1x4x1024xbf16, #tpu.memory_space<vmem>> -> memref<4x1024xbf16, #tpu.memory_space<vmem>>
    %c0_76 = arith.constant 0 : index
    %c20_77 = arith.constant 20 : index
    %54 = vector.load %53[%c0_76, %c20_77] : memref<4x1024xbf16, #tpu.memory_space<vmem>>, vector<4x800xbf16>
    %c52 = arith.constant 52 : index
    %c0_78 = arith.constant 0 : index
    %55 = vector.load %arg8[%c52, %c0_78] : memref<256x1024xbf16, #tpu.memory_space<vmem>>, vector<4x800xbf16>
    tpu.vector_store %arg8[%c52, %c0_78], %54 {strides = array<i32>} : memref<256x1024xbf16, #tpu.memory_space<vmem>>, vector<4x800xbf16>,
    %c0_i32_79 = arith.constant 0 : i32
    %c0_i32_80 = arith.constant 0 : i32
    %c0_i32_81 = arith.constant 0 : i32
    %56 = tpu.memref_slice %arg1[%c0_i32_79, %c0_i32_80, %c0_i32_81] : memref<1x4x1024xbf16, #tpu.memory_space<vmem>> -> memref<1x4x1024xbf16, #tpu.memory_space<vmem>>
    %57 = tpu.memref_squeeze %56 : memref<1x4x1024xbf16, #tpu.memory_space<vmem>> -> memref<4x1024xbf16, #tpu.memory_space<vmem>>
    %c0_82 = arith.constant 0 : index
    %c21 = arith.constant 21 : index
    %58 = vector.load %57[%c0_82, %c21] : memref<4x1024xbf16, #tpu.memory_space<vmem>>, vector<4x800xbf16>
    %c56 = arith.constant 56 : index
    %c0_83 = arith.constant 0 : index
    %59 = vector.load %arg8[%c56, %c0_83] : memref<256x1024xbf16, #tpu.memory_space<vmem>>, vector<4x800xbf16>
    tpu.vector_store %arg8[%c56, %c0_83], %58 {strides = array<i32>} : memref<256x1024xbf16, #tpu.memory_space<vmem>>, vector<4x800xbf16>,
    %c0_i32_84 = arith.constant 0 : i32
    %c0_i32_85 = arith.constant 0 : i32
    %c0_i32_86 = arith.constant 0 : i32
    %60 = tpu.memref_slice %arg2[%c0_i32_84, %c0_i32_85, %c0_i32_86] : memref<1x4x1024xbf16, #tpu.memory_space<vmem>> -> memref<1x4x1024xbf16, #tpu.memory_space<vmem>>
    %61 = tpu.memref_squeeze %60 : memref<1x4x1024xbf16, #tpu.memory_space<vmem>> -> memref<4x1024xbf16, #tpu.memory_space<vmem>>
    %c0_87 = arith.constant 0 : index
    %c21_88 = arith.constant 21 : index
    %62 = vector.load %61[%c0_87, %c21_88] : memref<4x1024xbf16, #tpu.memory_space<vmem>>, vector<4x800xbf16>
    %c60 = arith.constant 60 : index
    %c0_89 = arith.constant 0 : index
    %63 = vector.load %arg8[%c60, %c0_89] : memref<256x1024xbf16, #tpu.memory_space<vmem>>, vector<4x800xbf16>
    tpu.vector_store %arg8[%c60, %c0_89], %62 {strides = array<i32>} : memref<256x1024xbf16, #tpu.memory_space<vmem>>, vector<4x800xbf16>,
    %c0_i32_90 = arith.constant 0 : i32
    %c0_i32_91 = arith.constant 0 : i32
    %c0_i32_92 = arith.constant 0 : i32
    %64 = tpu.memref_slice %arg1[%c0_i32_90, %c0_i32_91, %c0_i32_92] : memref<1x4x1024xbf16, #tpu.memory_space<vmem>> -> memref<1x4x1024xbf16, #tpu.memory_space<vmem>>
    %65 = tpu.memref_squeeze %64 : memref<1x4x1024xbf16, #tpu.memory_space<vmem>> -> memref<4x1024xbf16, #tpu.memory_space<vmem>>
    %c0_93 = arith.constant 0 : index
    %c22 = arith.constant 22 : index
    %66 = vector.load %65[%c0_93, %c22] : memref<4x1024xbf16, #tpu.memory_space<vmem>>, vector<4x800xbf16>
    %c64 = arith.constant 64 : index
    %c0_94 = arith.constant 0 : index
    %67 = vector.load %arg8[%c64, %c0_94] : memref<256x1024xbf16, #tpu.memory_space<vmem>>, vector<4x800xbf16>
    tpu.vector_store %arg8[%c64, %c0_94], %66 {strides = array<i32>} : memref<256x1024xbf16, #tpu.memory_space<vmem>>, vector<4x800xbf16>,
    %c0_i32_95 = arith.constant 0 : i32
    %c0_i32_96 = arith.constant 0 : i32
    %c0_i32_97 = arith.constant 0 : i32
    %68 = tpu.memref_slice %arg2[%c0_i32_95, %c0_i32_96, %c0_i32_97] : memref<1x4x1024xbf16, #tpu.memory_space<vmem>> -> memref<1x4x1024xbf16, #tpu.memory_space<vmem>>
    %69 = tpu.memref_squeeze %68 : memref<1x4x1024xbf16, #tpu.memory_space<vmem>> -> memref<4x1024xbf16, #tpu.memory_space<vmem>>
    %c0_98 = arith.constant 0 : index
    %c22_99 = arith.constant 22 : index
    %70 = vector.load %69[%c0_98, %c22_99] : memref<4x1024xbf16, #tpu.memory_space<vmem>>, vector<4x800xbf16>
    %c68 = arith.constant 68 : index
    %c0_100 = arith.constant 0 : index
    %71 = vector.load %arg8[%c68, %c0_100] : memref<256x1024xbf16, #tpu.memory_space<vmem>>, vector<4x800xbf16>
    tpu.vector_store %arg8[%c68, %c0_100], %70 {strides = array<i32>} : memref<256x1024xbf16, #tpu.memory_space<vmem>>, vector<4x800xbf16>,
    %c0_i32_101 = arith.constant 0 : i32
    %c0_i32_102 = arith.constant 0 : i32
    %c0_i32_103 = arith.constant 0 : i32
    %72 = tpu.memref_slice %arg1[%c0_i32_101, %c0_i32_102, %c0_i32_103] : memref<1x4x1024xbf16, #tpu.memory_space<vmem>> -> memref<1x4x1024xbf16, #tpu.memory_space<vmem>>
    %73 = tpu.memref_squeeze %72 : memref<1x4x1024xbf16, #tpu.memory_space<vmem>> -> memref<4x1024xbf16, #tpu.memory_space<vmem>>
    %c0_104 = arith.constant 0 : index
    %c100 = arith.constant 100 : index
    %74 = vector.load %73[%c0_104, %c100] : memref<4x1024xbf16, #tpu.memory_space<vmem>>, vector<4x800xbf16>
    %c72 = arith.constant 72 : index
    %c0_105 = arith.constant 0 : index
    %75 = vector.load %arg8[%c72, %c0_105] : memref<256x1024xbf16, #tpu.memory_space<vmem>>, vector<4x800xbf16>
    tpu.vector_store %arg8[%c72, %c0_105], %74 {strides = array<i32>} : memref<256x1024xbf16, #tpu.memory_space<vmem>>, vector<4x800xbf16>,
    %c0_i32_106 = arith.constant 0 : i32
    %c0_i32_107 = arith.constant 0 : i32
    %c0_i32_108 = arith.constant 0 : i32
    %76 = tpu.memref_slice %arg2[%c0_i32_106, %c0_i32_107, %c0_i32_108] : memref<1x4x1024xbf16, #tpu.memory_space<vmem>> -> memref<1x4x1024xbf16, #tpu.memory_space<vmem>>
    %77 = tpu.memref_squeeze %76 : memref<1x4x1024xbf16, #tpu.memory_space<vmem>> -> memref<4x1024xbf16, #tpu.memory_space<vmem>>
    %c0_109 = arith.constant 0 : index
    %c100_110 = arith.constant 100 : index
    %78 = vector.load %77[%c0_109, %c100_110] : memref<4x1024xbf16, #tpu.memory_space<vmem>>, vector<4x800xbf16>
    %c76 = arith.constant 76 : index
    %c0_111 = arith.constant 0 : index
    %79 = vector.load %arg8[%c76, %c0_111] : memref<256x1024xbf16, #tpu.memory_space<vmem>>, vector<4x800xbf16>
    tpu.vector_store %arg8[%c76, %c0_111], %78 {strides = array<i32>} : memref<256x1024xbf16, #tpu.memory_space<vmem>>, vector<4x800xbf16>,
    %c0_i32_112 = arith.constant 0 : i32
    %c0_i32_113 = arith.constant 0 : i32
    %c0_i32_114 = arith.constant 0 : i32
    %80 = tpu.memref_slice %arg1[%c0_i32_112, %c0_i32_113, %c0_i32_114] : memref<1x4x1024xbf16, #tpu.memory_space<vmem>> -> memref<1x4x1024xbf16, #tpu.memory_space<vmem>>
    %81 = tpu.memref_squeeze %80 : memref<1x4x1024xbf16, #tpu.memory_space<vmem>> -> memref<4x1024xbf16, #tpu.memory_space<vmem>>
    %c0_115 = arith.constant 0 : index
    %c101 = arith.constant 101 : index
    %82 = vector.load %81[%c0_115, %c101] : memref<4x1024xbf16, #tpu.memory_space<vmem>>, vector<4x800xbf16>
    %c80 = arith.constant 80 : index
    %c0_116 = arith.constant 0 : index
    %83 = vector.load %arg8[%c80, %c0_116] : memref<256x1024xbf16, #tpu.memory_space<vmem>>, vector<4x800xbf16>
    tpu.vector_store %arg8[%c80, %c0_116], %82 {strides = array<i32>} : memref<256x1024xbf16, #tpu.memory_space<vmem>>, vector<4x800xbf16>,
    %c0_i32_117 = arith.constant 0 : i32
    %c0_i32_118 = arith.constant 0 : i32
    %c0_i32_119 = arith.constant 0 : i32
    %84 = tpu.memref_slice %arg2[%c0_i32_117, %c0_i32_118, %c0_i32_119] : memref<1x4x1024xbf16, #tpu.memory_space<vmem>> -> memref<1x4x1024xbf16, #tpu.memory_space<vmem>>
    %85 = tpu.memref_squeeze %84 : memref<1x4x1024xbf16, #tpu.memory_space<vmem>> -> memref<4x1024xbf16, #tpu.memory_space<vmem>>
    %c0_120 = arith.constant 0 : index
    %c101_121 = arith.constant 101 : index
    %86 = vector.load %85[%c0_120, %c101_121] : memref<4x1024xbf16, #tpu.memory_space<vmem>>, vector<4x800xbf16>
    %c84 = arith.constant 84 : index
    %c0_122 = arith.constant 0 : index
    %87 = vector.load %arg8[%c84, %c0_122] : memref<256x1024xbf16, #tpu.memory_space<vmem>>, vector<4x800xbf16>
    tpu.vector_store %arg8[%c84, %c0_122], %86 {strides = array<i32>} : memref<256x1024xbf16, #tpu.memory_space<vmem>>, vector<4x800xbf16>,
    %c0_i32_123 = arith.constant 0 : i32
    %c0_i32_124 = arith.constant 0 : i32
    %c0_i32_125 = arith.constant 0 : i32
    %88 = tpu.memref_slice %arg1[%c0_i32_123, %c0_i32_124, %c0_i32_125] : memref<1x4x1024xbf16, #tpu.memory_space<vmem>> -> memref<1x4x1024xbf16, #tpu.memory_space<vmem>>
    %89 = tpu.memref_squeeze %88 : memref<1x4x1024xbf16, #tpu.memory_space<vmem>> -> memref<4x1024xbf16, #tpu.memory_space<vmem>>
    %c0_126 = arith.constant 0 : index
    %c102 = arith.constant 102 : index
    %90 = vector.load %89[%c0_126, %c102] : memref<4x1024xbf16, #tpu.memory_space<vmem>>, vector<4x800xbf16>
    %c88 = arith.constant 88 : index
    %c0_127 = arith.constant 0 : index
    %91 = vector.load %arg8[%c88, %c0_127] : memref<256x1024xbf16, #tpu.memory_space<vmem>>, vector<4x800xbf16>
    tpu.vector_store %arg8[%c88, %c0_127], %90 {strides = array<i32>} : memref<256x1024xbf16, #tpu.memory_space<vmem>>, vector<4x800xbf16>,
    %c0_i32_128 = arith.constant 0 : i32
    %c0_i32_129 = arith.constant 0 : i32
    %c0_i32_130 = arith.constant 0 : i32
    %92 = tpu.memref_slice %arg2[%c0_i32_128, %c0_i32_129, %c0_i32_130] : memref<1x4x1024xbf16, #tpu.memory_space<vmem>> -> memref<1x4x1024xbf16, #tpu.memory_space<vmem>>
    %93 = tpu.memref_squeeze %92 : memref<1x4x1024xbf16, #tpu.memory_space<vmem>> -> memref<4x1024xbf16, #tpu.memory_space<vmem>>
    %c0_131 = arith.constant 0 : index
    %c102_132 = arith.constant 102 : index
    %94 = vector.load %93[%c0_131, %c102_132] : memref<4x1024xbf16, #tpu.memory_space<vmem>>, vector<4x800xbf16>
    %c92 = arith.constant 92 : index
    %c0_133 = arith.constant 0 : index
    %95 = vector.load %arg8[%c92, %c0_133] : memref<256x1024xbf16, #tpu.memory_space<vmem>>, vector<4x800xbf16>
    tpu.vector_store %arg8[%c92, %c0_133], %94 {strides = array<i32>} : memref<256x1024xbf16, #tpu.memory_space<vmem>>, vector<4x800xbf16>,
    %c0_i32_134 = arith.constant 0 : i32
    %c0_i32_135 = arith.constant 0 : i32
    %c0_i32_136 = arith.constant 0 : i32
    %96 = tpu.memref_slice %arg1[%c0_i32_134, %c0_i32_135, %c0_i32_136] : memref<1x4x1024xbf16, #tpu.memory_space<vmem>> -> memref<1x4x1024xbf16, #tpu.memory_space<vmem>>
    %97 = tpu.memref_squeeze %96 : memref<1x4x1024xbf16, #tpu.memory_space<vmem>> -> memref<4x1024xbf16, #tpu.memory_space<vmem>>
    %c0_137 = arith.constant 0 : index
    %c110 = arith.constant 110 : index
    %98 = vector.load %97[%c0_137, %c110] : memref<4x1024xbf16, #tpu.memory_space<vmem>>, vector<4x800xbf16>
    %c96 = arith.constant 96 : index
    %c0_138 = arith.constant 0 : index
    %99 = vector.load %arg8[%c96, %c0_138] : memref<256x1024xbf16, #tpu.memory_space<vmem>>, vector<4x800xbf16>
    tpu.vector_store %arg8[%c96, %c0_138], %98 {strides = array<i32>} : memref<256x1024xbf16, #tpu.memory_space<vmem>>, vector<4x800xbf16>,
    %c0_i32_139 = arith.constant 0 : i32
    %c0_i32_140 = arith.constant 0 : i32
    %c0_i32_141 = arith.constant 0 : i32
    %100 = tpu.memref_slice %arg2[%c0_i32_139, %c0_i32_140, %c0_i32_141] : memref<1x4x1024xbf16, #tpu.memory_space<vmem>> -> memref<1x4x1024xbf16, #tpu.memory_space<vmem>>
    %101 = tpu.memref_squeeze %100 : memref<1x4x1024xbf16, #tpu.memory_space<vmem>> -> memref<4x1024xbf16, #tpu.memory_space<vmem>>
    %c0_142 = arith.constant 0 : index
    %c110_143 = arith.constant 110 : index
    %102 = vector.load %101[%c0_142, %c110_143] : memref<4x1024xbf16, #tpu.memory_space<vmem>>, vector<4x800xbf16>
    %c100_144 = arith.constant 100 : index
    %c0_145 = arith.constant 0 : index
    %103 = vector.load %arg8[%c100_144, %c0_145] : memref<256x1024xbf16, #tpu.memory_space<vmem>>, vector<4x800xbf16>
    tpu.vector_store %arg8[%c100_144, %c0_145], %102 {strides = array<i32>} : memref<256x1024xbf16, #tpu.memory_space<vmem>>, vector<4x800xbf16>,
    %c0_i32_146 = arith.constant 0 : i32
    %c0_i32_147 = arith.constant 0 : i32
    %c0_i32_148 = arith.constant 0 : i32
    %104 = tpu.memref_slice %arg1[%c0_i32_146, %c0_i32_147, %c0_i32_148] : memref<1x4x1024xbf16, #tpu.memory_space<vmem>> -> memref<1x4x1024xbf16, #tpu.memory_space<vmem>>
    %105 = tpu.memref_squeeze %104 : memref<1x4x1024xbf16, #tpu.memory_space<vmem>> -> memref<4x1024xbf16, #tpu.memory_space<vmem>>
    %c0_149 = arith.constant 0 : index
    %c111 = arith.constant 111 : index
    %106 = vector.load %105[%c0_149, %c111] : memref<4x1024xbf16, #tpu.memory_space<vmem>>, vector<4x800xbf16>
    %c104 = arith.constant 104 : index
    %c0_150 = arith.constant 0 : index
    %107 = vector.load %arg8[%c104, %c0_150] : memref<256x1024xbf16, #tpu.memory_space<vmem>>, vector<4x800xbf16>
    tpu.vector_store %arg8[%c104, %c0_150], %106 {strides = array<i32>} : memref<256x1024xbf16, #tpu.memory_space<vmem>>, vector<4x800xbf16>,
    %c0_i32_151 = arith.constant 0 : i32
    %c0_i32_152 = arith.constant 0 : i32
    %c0_i32_153 = arith.constant 0 : i32
    %108 = tpu.memref_slice %arg2[%c0_i32_151, %c0_i32_152, %c0_i32_153] : memref<1x4x1024xbf16, #tpu.memory_space<vmem>> -> memref<1x4x1024xbf16, #tpu.memory_space<vmem>>
    %109 = tpu.memref_squeeze %108 : memref<1x4x1024xbf16, #tpu.memory_space<vmem>> -> memref<4x1024xbf16, #tpu.memory_space<vmem>>
    %c0_154 = arith.constant 0 : index
    %c111_155 = arith.constant 111 : index
    %110 = vector.load %109[%c0_154, %c111_155] : memref<4x1024xbf16, #tpu.memory_space<vmem>>, vector<4x800xbf16>
    %c108 = arith.constant 108 : index
    %c0_156 = arith.constant 0 : index
    %111 = vector.load %arg8[%c108, %c0_156] : memref<256x1024xbf16, #tpu.memory_space<vmem>>, vector<4x800xbf16>
    tpu.vector_store %arg8[%c108, %c0_156], %110 {strides = array<i32>} : memref<256x1024xbf16, #tpu.memory_space<vmem>>, vector<4x800xbf16>,
    %c0_i32_157 = arith.constant 0 : i32
    %c0_i32_158 = arith.constant 0 : i32
    %c0_i32_159 = arith.constant 0 : i32
    %112 = tpu.memref_slice %arg1[%c0_i32_157, %c0_i32_158, %c0_i32_159] : memref<1x4x1024xbf16, #tpu.memory_space<vmem>> -> memref<1x4x1024xbf16, #tpu.memory_space<vmem>>
    %113 = tpu.memref_squeeze %112 : memref<1x4x1024xbf16, #tpu.memory_space<vmem>> -> memref<4x1024xbf16, #tpu.memory_space<vmem>>
    %c0_160 = arith.constant 0 : index
    %c112 = arith.constant 112 : index
    %114 = vector.load %113[%c0_160, %c112] : memref<4x1024xbf16, #tpu.memory_space<vmem>>, vector<4x800xbf16>
    %c112_161 = arith.constant 112 : index
    %c0_162 = arith.constant 0 : index
    %115 = vector.load %arg8[%c112_161, %c0_162] : memref<256x1024xbf16, #tpu.memory_space<vmem>>, vector<4x800xbf16>
    tpu.vector_store %arg8[%c112_161, %c0_162], %114 {strides = array<i32>} : memref<256x1024xbf16, #tpu.memory_space<vmem>>, vector<4x800xbf16>,
    %c0_i32_163 = arith.constant 0 : i32
    %c0_i32_164 = arith.constant 0 : i32
    %c0_i32_165 = arith.constant 0 : i32
    %116 = tpu.memref_slice %arg2[%c0_i32_163, %c0_i32_164, %c0_i32_165] : memref<1x4x1024xbf16, #tpu.memory_space<vmem>> -> memref<1x4x1024xbf16, #tpu.memory_space<vmem>>
    %117 = tpu.memref_squeeze %116 : memref<1x4x1024xbf16, #tpu.memory_space<vmem>> -> memref<4x1024xbf16, #tpu.memory_space<vmem>>
    %c0_166 = arith.constant 0 : index
    %c112_167 = arith.constant 112 : index
    %118 = vector.load %117[%c0_166, %c112_167] : memref<4x1024xbf16, #tpu.memory_space<vmem>>, vector<4x800xbf16>
    %c116 = arith.constant 116 : index
    %c0_168 = arith.constant 0 : index
    %119 = vector.load %arg8[%c116, %c0_168] : memref<256x1024xbf16, #tpu.memory_space<vmem>>, vector<4x800xbf16>
    tpu.vector_store %arg8[%c116, %c0_168], %118 {strides = array<i32>} : memref<256x1024xbf16, #tpu.memory_space<vmem>>, vector<4x800xbf16>,
    %c0_i32_169 = arith.constant 0 : i32
    %c0_i32_170 = arith.constant 0 : i32
    %c0_i32_171 = arith.constant 0 : i32
    %120 = tpu.memref_slice %arg1[%c0_i32_169, %c0_i32_170, %c0_i32_171] : memref<1x4x1024xbf16, #tpu.memory_space<vmem>> -> memref<1x4x1024xbf16, #tpu.memory_space<vmem>>
    %121 = tpu.memref_squeeze %120 : memref<1x4x1024xbf16, #tpu.memory_space<vmem>> -> memref<4x1024xbf16, #tpu.memory_space<vmem>>
    %c0_172 = arith.constant 0 : index
    %c120 = arith.constant 120 : index
    %122 = vector.load %121[%c0_172, %c120] : memref<4x1024xbf16, #tpu.memory_space<vmem>>, vector<4x800xbf16>
    %c120_173 = arith.constant 120 : index
    %c0_174 = arith.constant 0 : index
    %123 = vector.load %arg8[%c120_173, %c0_174] : memref<256x1024xbf16, #tpu.memory_space<vmem>>, vector<4x800xbf16>
    tpu.vector_store %arg8[%c120_173, %c0_174], %122 {strides = array<i32>} : memref<256x1024xbf16, #tpu.memory_space<vmem>>, vector<4x800xbf16>,
    %c0_i32_175 = arith.constant 0 : i32
    %c0_i32_176 = arith.constant 0 : i32
    %c0_i32_177 = arith.constant 0 : i32
    %124 = tpu.memref_slice %arg2[%c0_i32_175, %c0_i32_176, %c0_i32_177] : memref<1x4x1024xbf16, #tpu.memory_space<vmem>> -> memref<1x4x1024xbf16, #tpu.memory_space<vmem>>
    %125 = tpu.memref_squeeze %124 : memref<1x4x1024xbf16, #tpu.memory_space<vmem>> -> memref<4x1024xbf16, #tpu.memory_space<vmem>>
    %c0_178 = arith.constant 0 : index
    %c120_179 = arith.constant 120 : index
    %126 = vector.load %125[%c0_178, %c120_179] : memref<4x1024xbf16, #tpu.memory_space<vmem>>, vector<4x800xbf16>
    %c124 = arith.constant 124 : index
    %c0_180 = arith.constant 0 : index
    %127 = vector.load %arg8[%c124, %c0_180] : memref<256x1024xbf16, #tpu.memory_space<vmem>>, vector<4x800xbf16>
    tpu.vector_store %arg8[%c124, %c0_180], %126 {strides = array<i32>} : memref<256x1024xbf16, #tpu.memory_space<vmem>>, vector<4x800xbf16>,
    %c0_i32_181 = arith.constant 0 : i32
    %c0_i32_182 = arith.constant 0 : i32
    %c0_i32_183 = arith.constant 0 : i32
    %128 = tpu.memref_slice %arg1[%c0_i32_181, %c0_i32_182, %c0_i32_183] : memref<1x4x1024xbf16, #tpu.memory_space<vmem>> -> memref<1x4x1024xbf16, #tpu.memory_space<vmem>>
    %129 = tpu.memref_squeeze %128 : memref<1x4x1024xbf16, #tpu.memory_space<vmem>> -> memref<4x1024xbf16, #tpu.memory_space<vmem>>
    %c0_184 = arith.constant 0 : index
    %c121 = arith.constant 121 : index
    %130 = vector.load %129[%c0_184, %c121] : memref<4x1024xbf16, #tpu.memory_space<vmem>>, vector<4x800xbf16>
    %c128 = arith.constant 128 : index
    %c0_185 = arith.constant 0 : index
    %131 = vector.load %arg8[%c128, %c0_185] : memref<256x1024xbf16, #tpu.memory_space<vmem>>, vector<4x800xbf16>
    tpu.vector_store %arg8[%c128, %c0_185], %130 {strides = array<i32>} : memref<256x1024xbf16, #tpu.memory_space<vmem>>, vector<4x800xbf16>,
    %c0_i32_186 = arith.constant 0 : i32
    %c0_i32_187 = arith.constant 0 : i32
    %c0_i32_188 = arith.constant 0 : i32
    %132 = tpu.memref_slice %arg2[%c0_i32_186, %c0_i32_187, %c0_i32_188] : memref<1x4x1024xbf16, #tpu.memory_space<vmem>> -> memref<1x4x1024xbf16, #tpu.memory_space<vmem>>
    %133 = tpu.memref_squeeze %132 : memref<1x4x1024xbf16, #tpu.memory_space<vmem>> -> memref<4x1024xbf16, #tpu.memory_space<vmem>>
    %c0_189 = arith.constant 0 : index
    %c121_190 = arith.constant 121 : index
    %134 = vector.load %133[%c0_189, %c121_190] : memref<4x1024xbf16, #tpu.memory_space<vmem>>, vector<4x800xbf16>
    %c132 = arith.constant 132 : index
    %c0_191 = arith.constant 0 : index
    %135 = vector.load %arg8[%c132, %c0_191] : memref<256x1024xbf16, #tpu.memory_space<vmem>>, vector<4x800xbf16>
    tpu.vector_store %arg8[%c132, %c0_191], %134 {strides = array<i32>} : memref<256x1024xbf16, #tpu.memory_space<vmem>>, vector<4x800xbf16>,
    %c0_i32_192 = arith.constant 0 : i32
    %c0_i32_193 = arith.constant 0 : i32
    %c0_i32_194 = arith.constant 0 : i32
    %136 = tpu.memref_slice %arg1[%c0_i32_192, %c0_i32_193, %c0_i32_194] : memref<1x4x1024xbf16, #tpu.memory_space<vmem>> -> memref<1x4x1024xbf16, #tpu.memory_space<vmem>>
    %137 = tpu.memref_squeeze %136 : memref<1x4x1024xbf16, #tpu.memory_space<vmem>> -> memref<4x1024xbf16, #tpu.memory_space<vmem>>
    %c0_195 = arith.constant 0 : index
    %c122 = arith.constant 122 : index
    %138 = vector.load %137[%c0_195, %c122] : memref<4x1024xbf16, #tpu.memory_space<vmem>>, vector<4x800xbf16>
    %c136 = arith.constant 136 : index
    %c0_196 = arith.constant 0 : index
    %139 = vector.load %arg8[%c136, %c0_196] : memref<256x1024xbf16, #tpu.memory_space<vmem>>, vector<4x800xbf16>
    tpu.vector_store %arg8[%c136, %c0_196], %138 {strides = array<i32>} : memref<256x1024xbf16, #tpu.memory_space<vmem>>, vector<4x800xbf16>,
    %c0_i32_197 = arith.constant 0 : i32
    %c0_i32_198 = arith.constant 0 : i32
    %c0_i32_199 = arith.constant 0 : i32
    %140 = tpu.memref_slice %arg2[%c0_i32_197, %c0_i32_198, %c0_i32_199] : memref<1x4x1024xbf16, #tpu.memory_space<vmem>> -> memref<1x4x1024xbf16, #tpu.memory_space<vmem>>
    %141 = tpu.memref_squeeze %140 : memref<1x4x1024xbf16, #tpu.memory_space<vmem>> -> memref<4x1024xbf16, #tpu.memory_space<vmem>>
    %c0_200 = arith.constant 0 : index
    %c122_201 = arith.constant 122 : index
    %142 = vector.load %141[%c0_200, %c122_201] : memref<4x1024xbf16, #tpu.memory_space<vmem>>, vector<4x800xbf16>
    %c140 = arith.constant 140 : index
    %c0_202 = arith.constant 0 : index
    %143 = vector.load %arg8[%c140, %c0_202] : memref<256x1024xbf16, #tpu.memory_space<vmem>>, vector<4x800xbf16>
    tpu.vector_store %arg8[%c140, %c0_202], %142 {strides = array<i32>} : memref<256x1024xbf16, #tpu.memory_space<vmem>>, vector<4x800xbf16>,
    %c0_i32_203 = arith.constant 0 : i32
    %c0_i32_204 = arith.constant 0 : i32
    %c0_i32_205 = arith.constant 0 : i32
    %144 = tpu.memref_slice %arg1[%c0_i32_203, %c0_i32_204, %c0_i32_205] : memref<1x4x1024xbf16, #tpu.memory_space<vmem>> -> memref<1x4x1024xbf16, #tpu.memory_space<vmem>>
    %145 = tpu.memref_squeeze %144 : memref<1x4x1024xbf16, #tpu.memory_space<vmem>> -> memref<4x1024xbf16, #tpu.memory_space<vmem>>
    %c0_206 = arith.constant 0 : index
    %c200 = arith.constant 200 : index
    %146 = vector.load %145[%c0_206, %c200] : memref<4x1024xbf16, #tpu.memory_space<vmem>>, vector<4x800xbf16>
    %c144 = arith.constant 144 : index
    %c0_207 = arith.constant 0 : index
    %147 = vector.load %arg8[%c144, %c0_207] : memref<256x1024xbf16, #tpu.memory_space<vmem>>, vector<4x800xbf16>
    tpu.vector_store %arg8[%c144, %c0_207], %146 {strides = array<i32>} : memref<256x1024xbf16, #tpu.memory_space<vmem>>, vector<4x800xbf16>,
    %c0_i32_208 = arith.constant 0 : i32
    %c0_i32_209 = arith.constant 0 : i32
    %c0_i32_210 = arith.constant 0 : i32
    %148 = tpu.memref_slice %arg2[%c0_i32_208, %c0_i32_209, %c0_i32_210] : memref<1x4x1024xbf16, #tpu.memory_space<vmem>> -> memref<1x4x1024xbf16, #tpu.memory_space<vmem>>
    %149 = tpu.memref_squeeze %148 : memref<1x4x1024xbf16, #tpu.memory_space<vmem>> -> memref<4x1024xbf16, #tpu.memory_space<vmem>>
    %c0_211 = arith.constant 0 : index
    %c200_212 = arith.constant 200 : index
    %150 = vector.load %149[%c0_211, %c200_212] : memref<4x1024xbf16, #tpu.memory_space<vmem>>, vector<4x800xbf16>
    %c148 = arith.constant 148 : index
    %c0_213 = arith.constant 0 : index
    %151 = vector.load %arg8[%c148, %c0_213] : memref<256x1024xbf16, #tpu.memory_space<vmem>>, vector<4x800xbf16>
    tpu.vector_store %arg8[%c148, %c0_213], %150 {strides = array<i32>} : memref<256x1024xbf16, #tpu.memory_space<vmem>>, vector<4x800xbf16>,
    %c0_i32_214 = arith.constant 0 : i32
    %c0_i32_215 = arith.constant 0 : i32
    %c0_i32_216 = arith.constant 0 : i32
    %152 = tpu.memref_slice %arg1[%c0_i32_214, %c0_i32_215, %c0_i32_216] : memref<1x4x1024xbf16, #tpu.memory_space<vmem>> -> memref<1x4x1024xbf16, #tpu.memory_space<vmem>>
    %153 = tpu.memref_squeeze %152 : memref<1x4x1024xbf16, #tpu.memory_space<vmem>> -> memref<4x1024xbf16, #tpu.memory_space<vmem>>
    %c0_217 = arith.constant 0 : index
    %c201 = arith.constant 201 : index
    %154 = vector.load %153[%c0_217, %c201] : memref<4x1024xbf16, #tpu.memory_space<vmem>>, vector<4x800xbf16>
    %c152 = arith.constant 152 : index
    %c0_218 = arith.constant 0 : index
    %155 = vector.load %arg8[%c152, %c0_218] : memref<256x1024xbf16, #tpu.memory_space<vmem>>, vector<4x800xbf16>
    tpu.vector_store %arg8[%c152, %c0_218], %154 {strides = array<i32>} : memref<256x1024xbf16, #tpu.memory_space<vmem>>, vector<4x800xbf16>,
    %c0_i32_219 = arith.constant 0 : i32
    %c0_i32_220 = arith.constant 0 : i32
    %c0_i32_221 = arith.constant 0 : i32
    %156 = tpu.memref_slice %arg2[%c0_i32_219, %c0_i32_220, %c0_i32_221] : memref<1x4x1024xbf16, #tpu.memory_space<vmem>> -> memref<1x4x1024xbf16, #tpu.memory_space<vmem>>
    %157 = tpu.memref_squeeze %156 : memref<1x4x1024xbf16, #tpu.memory_space<vmem>> -> memref<4x1024xbf16, #tpu.memory_space<vmem>>
    %c0_222 = arith.constant 0 : index
    %c201_223 = arith.constant 201 : index
    %158 = vector.load %157[%c0_222, %c201_223] : memref<4x1024xbf16, #tpu.memory_space<vmem>>, vector<4x800xbf16>
    %c156 = arith.constant 156 : index
    %c0_224 = arith.constant 0 : index
    %159 = vector.load %arg8[%c156, %c0_224] : memref<256x1024xbf16, #tpu.memory_space<vmem>>, vector<4x800xbf16>
    tpu.vector_store %arg8[%c156, %c0_224], %158 {strides = array<i32>} : memref<256x1024xbf16, #tpu.memory_space<vmem>>, vector<4x800xbf16>,
    %c0_i32_225 = arith.constant 0 : i32
    %c0_i32_226 = arith.constant 0 : i32
    %c0_i32_227 = arith.constant 0 : i32
    %160 = tpu.memref_slice %arg1[%c0_i32_225, %c0_i32_226, %c0_i32_227] : memref<1x4x1024xbf16, #tpu.memory_space<vmem>> -> memref<1x4x1024xbf16, #tpu.memory_space<vmem>>
    %161 = tpu.memref_squeeze %160 : memref<1x4x1024xbf16, #tpu.memory_space<vmem>> -> memref<4x1024xbf16, #tpu.memory_space<vmem>>
    %c0_228 = arith.constant 0 : index
    %c202 = arith.constant 202 : index
    %162 = vector.load %161[%c0_228, %c202] : memref<4x1024xbf16, #tpu.memory_space<vmem>>, vector<4x800xbf16>
    %c160 = arith.constant 160 : index
    %c0_229 = arith.constant 0 : index
    %163 = vector.load %arg8[%c160, %c0_229] : memref<256x1024xbf16, #tpu.memory_space<vmem>>, vector<4x800xbf16>
    tpu.vector_store %arg8[%c160, %c0_229], %162 {strides = array<i32>} : memref<256x1024xbf16, #tpu.memory_space<vmem>>, vector<4x800xbf16>,
    %c0_i32_230 = arith.constant 0 : i32
    %c0_i32_231 = arith.constant 0 : i32
    %c0_i32_232 = arith.constant 0 : i32
    %164 = tpu.memref_slice %arg2[%c0_i32_230, %c0_i32_231, %c0_i32_232] : memref<1x4x1024xbf16, #tpu.memory_space<vmem>> -> memref<1x4x1024xbf16, #tpu.memory_space<vmem>>
    %165 = tpu.memref_squeeze %164 : memref<1x4x1024xbf16, #tpu.memory_space<vmem>> -> memref<4x1024xbf16, #tpu.memory_space<vmem>>
    %c0_233 = arith.constant 0 : index
    %c202_234 = arith.constant 202 : index
    %166 = vector.load %165[%c0_233, %c202_234] : memref<4x1024xbf16, #tpu.memory_space<vmem>>, vector<4x800xbf16>
    %c164 = arith.constant 164 : index
    %c0_235 = arith.constant 0 : index
    %167 = vector.load %arg8[%c164, %c0_235] : memref<256x1024xbf16, #tpu.memory_space<vmem>>, vector<4x800xbf16>
    tpu.vector_store %arg8[%c164, %c0_235], %166 {strides = array<i32>} : memref<256x1024xbf16, #tpu.memory_space<vmem>>, vector<4x800xbf16>,
    %c0_i32_236 = arith.constant 0 : i32
    %c0_i32_237 = arith.constant 0 : i32
    %c0_i32_238 = arith.constant 0 : i32
    %168 = tpu.memref_slice %arg1[%c0_i32_236, %c0_i32_237, %c0_i32_238] : memref<1x4x1024xbf16, #tpu.memory_space<vmem>> -> memref<1x4x1024xbf16, #tpu.memory_space<vmem>>
    %169 = tpu.memref_squeeze %168 : memref<1x4x1024xbf16, #tpu.memory_space<vmem>> -> memref<4x1024xbf16, #tpu.memory_space<vmem>>
    %c0_239 = arith.constant 0 : index
    %c210 = arith.constant 210 : index
    %170 = vector.load %169[%c0_239, %c210] : memref<4x1024xbf16, #tpu.memory_space<vmem>>, vector<4x800xbf16>
    %c168 = arith.constant 168 : index
    %c0_240 = arith.constant 0 : index
    %171 = vector.load %arg8[%c168, %c0_240] : memref<256x1024xbf16, #tpu.memory_space<vmem>>, vector<4x800xbf16>
    tpu.vector_store %arg8[%c168, %c0_240], %170 {strides = array<i32>} : memref<256x1024xbf16, #tpu.memory_space<vmem>>, vector<4x800xbf16>,
    %c0_i32_241 = arith.constant 0 : i32
    %c0_i32_242 = arith.constant 0 : i32
    %c0_i32_243 = arith.constant 0 : i32
    %172 = tpu.memref_slice %arg2[%c0_i32_241, %c0_i32_242, %c0_i32_243] : memref<1x4x1024xbf16, #tpu.memory_space<vmem>> -> memref<1x4x1024xbf16, #tpu.memory_space<vmem>>
    %173 = tpu.memref_squeeze %172 : memref<1x4x1024xbf16, #tpu.memory_space<vmem>> -> memref<4x1024xbf16, #tpu.memory_space<vmem>>
    %c0_244 = arith.constant 0 : index
    %c210_245 = arith.constant 210 : index
    %174 = vector.load %173[%c0_244, %c210_245] : memref<4x1024xbf16, #tpu.memory_space<vmem>>, vector<4x800xbf16>
    %c172 = arith.constant 172 : index
    %c0_246 = arith.constant 0 : index
    %175 = vector.load %arg8[%c172, %c0_246] : memref<256x1024xbf16, #tpu.memory_space<vmem>>, vector<4x800xbf16>
    tpu.vector_store %arg8[%c172, %c0_246], %174 {strides = array<i32>} : memref<256x1024xbf16, #tpu.memory_space<vmem>>, vector<4x800xbf16>,
    %c0_i32_247 = arith.constant 0 : i32
    %c0_i32_248 = arith.constant 0 : i32
    %c0_i32_249 = arith.constant 0 : i32
    %176 = tpu.memref_slice %arg1[%c0_i32_247, %c0_i32_248, %c0_i32_249] : memref<1x4x1024xbf16, #tpu.memory_space<vmem>> -> memref<1x4x1024xbf16, #tpu.memory_space<vmem>>
    %177 = tpu.memref_squeeze %176 : memref<1x4x1024xbf16, #tpu.memory_space<vmem>> -> memref<4x1024xbf16, #tpu.memory_space<vmem>>
    %c0_250 = arith.constant 0 : index
    %c211 = arith.constant 211 : index
    %178 = vector.load %177[%c0_250, %c211] : memref<4x1024xbf16, #tpu.memory_space<vmem>>, vector<4x800xbf16>
    %c176 = arith.constant 176 : index
    %c0_251 = arith.constant 0 : index
    %179 = vector.load %arg8[%c176, %c0_251] : memref<256x1024xbf16, #tpu.memory_space<vmem>>, vector<4x800xbf16>
    tpu.vector_store %arg8[%c176, %c0_251], %178 {strides = array<i32>} : memref<256x1024xbf16, #tpu.memory_space<vmem>>, vector<4x800xbf16>,
    %c0_i32_252 = arith.constant 0 : i32
    %c0_i32_253 = arith.constant 0 : i32
    %c0_i32_254 = arith.constant 0 : i32
    %180 = tpu.memref_slice %arg2[%c0_i32_252, %c0_i32_253, %c0_i32_254] : memref<1x4x1024xbf16, #tpu.memory_space<vmem>> -> memref<1x4x1024xbf16, #tpu.memory_space<vmem>>
    %181 = tpu.memref_squeeze %180 : memref<1x4x1024xbf16, #tpu.memory_space<vmem>> -> memref<4x1024xbf16, #tpu.memory_space<vmem>>
    %c0_255 = arith.constant 0 : index
    %c211_256 = arith.constant 211 : index
    %182 = vector.load %181[%c0_255, %c211_256] : memref<4x1024xbf16, #tpu.memory_space<vmem>>, vector<4x800xbf16>
    %c180 = arith.constant 180 : index
    %c0_257 = arith.constant 0 : index
    %183 = vector.load %arg8[%c180, %c0_257] : memref<256x1024xbf16, #tpu.memory_space<vmem>>, vector<4x800xbf16>
    tpu.vector_store %arg8[%c180, %c0_257], %182 {strides = array<i32>} : memref<256x1024xbf16, #tpu.memory_space<vmem>>, vector<4x800xbf16>,
    %c0_i32_258 = arith.constant 0 : i32
    %c0_i32_259 = arith.constant 0 : i32
    %c0_i32_260 = arith.constant 0 : i32
    %184 = tpu.memref_slice %arg1[%c0_i32_258, %c0_i32_259, %c0_i32_260] : memref<1x4x1024xbf16, #tpu.memory_space<vmem>> -> memref<1x4x1024xbf16, #tpu.memory_space<vmem>>
    %185 = tpu.memref_squeeze %184 : memref<1x4x1024xbf16, #tpu.memory_space<vmem>> -> memref<4x1024xbf16, #tpu.memory_space<vmem>>
    %c0_261 = arith.constant 0 : index
    %c212 = arith.constant 212 : index
    %186 = vector.load %185[%c0_261, %c212] : memref<4x1024xbf16, #tpu.memory_space<vmem>>, vector<4x800xbf16>
    %c184 = arith.constant 184 : index
    %c0_262 = arith.constant 0 : index
    %187 = vector.load %arg8[%c184, %c0_262] : memref<256x1024xbf16, #tpu.memory_space<vmem>>, vector<4x800xbf16>
    tpu.vector_store %arg8[%c184, %c0_262], %186 {strides = array<i32>} : memref<256x1024xbf16, #tpu.memory_space<vmem>>, vector<4x800xbf16>,
    %c0_i32_263 = arith.constant 0 : i32
    %c0_i32_264 = arith.constant 0 : i32
    %c0_i32_265 = arith.constant 0 : i32
    %188 = tpu.memref_slice %arg2[%c0_i32_263, %c0_i32_264, %c0_i32_265] : memref<1x4x1024xbf16, #tpu.memory_space<vmem>> -> memref<1x4x1024xbf16, #tpu.memory_space<vmem>>
    %189 = tpu.memref_squeeze %188 : memref<1x4x1024xbf16, #tpu.memory_space<vmem>> -> memref<4x1024xbf16, #tpu.memory_space<vmem>>
    %c0_266 = arith.constant 0 : index
    %c212_267 = arith.constant 212 : index
    %190 = vector.load %189[%c0_266, %c212_267] : memref<4x1024xbf16, #tpu.memory_space<vmem>>, vector<4x800xbf16>
    %c188 = arith.constant 188 : index
    %c0_268 = arith.constant 0 : index
    %191 = vector.load %arg8[%c188, %c0_268] : memref<256x1024xbf16, #tpu.memory_space<vmem>>, vector<4x800xbf16>
    tpu.vector_store %arg8[%c188, %c0_268], %190 {strides = array<i32>} : memref<256x1024xbf16, #tpu.memory_space<vmem>>, vector<4x800xbf16>,
    %c0_i32_269 = arith.constant 0 : i32
    %c0_i32_270 = arith.constant 0 : i32
    %c0_i32_271 = arith.constant 0 : i32
    %192 = tpu.memref_slice %arg1[%c0_i32_269, %c0_i32_270, %c0_i32_271] : memref<1x4x1024xbf16, #tpu.memory_space<vmem>> -> memref<1x4x1024xbf16, #tpu.memory_space<vmem>>
    %193 = tpu.memref_squeeze %192 : memref<1x4x1024xbf16, #tpu.memory_space<vmem>> -> memref<4x1024xbf16, #tpu.memory_space<vmem>>
    %c0_272 = arith.constant 0 : index
    %c220 = arith.constant 220 : index
    %194 = vector.load %193[%c0_272, %c220] : memref<4x1024xbf16, #tpu.memory_space<vmem>>, vector<4x800xbf16>
    %c192 = arith.constant 192 : index
    %c0_273 = arith.constant 0 : index
    %195 = vector.load %arg8[%c192, %c0_273] : memref<256x1024xbf16, #tpu.memory_space<vmem>>, vector<4x800xbf16>
    tpu.vector_store %arg8[%c192, %c0_273], %194 {strides = array<i32>} : memref<256x1024xbf16, #tpu.memory_space<vmem>>, vector<4x800xbf16>,
    %c0_i32_274 = arith.constant 0 : i32
    %c0_i32_275 = arith.constant 0 : i32
    %c0_i32_276 = arith.constant 0 : i32
    %196 = tpu.memref_slice %arg2[%c0_i32_274, %c0_i32_275, %c0_i32_276] : memref<1x4x1024xbf16, #tpu.memory_space<vmem>> -> memref<1x4x1024xbf16, #tpu.memory_space<vmem>>
    %197 = tpu.memref_squeeze %196 : memref<1x4x1024xbf16, #tpu.memory_space<vmem>> -> memref<4x1024xbf16, #tpu.memory_space<vmem>>
    %c0_277 = arith.constant 0 : index
    %c220_278 = arith.constant 220 : index
    %198 = vector.load %197[%c0_277, %c220_278] : memref<4x1024xbf16, #tpu.memory_space<vmem>>, vector<4x800xbf16>
    %c196 = arith.constant 196 : index
    %c0_279 = arith.constant 0 : index
    %199 = vector.load %arg8[%c196, %c0_279] : memref<256x1024xbf16, #tpu.memory_space<vmem>>, vector<4x800xbf16>
    tpu.vector_store %arg8[%c196, %c0_279], %198 {strides = array<i32>} : memref<256x1024xbf16, #tpu.memory_space<vmem>>, vector<4x800xbf16>,
    %c0_i32_280 = arith.constant 0 : i32
    %c0_i32_281 = arith.constant 0 : i32
    %c0_i32_282 = arith.constant 0 : i32
    %200 = tpu.memref_slice %arg1[%c0_i32_280, %c0_i32_281, %c0_i32_282] : memref<1x4x1024xbf16, #tpu.memory_space<vmem>> -> memref<1x4x1024xbf16, #tpu.memory_space<vmem>>
    %201 = tpu.memref_squeeze %200 : memref<1x4x1024xbf16, #tpu.memory_space<vmem>> -> memref<4x1024xbf16, #tpu.memory_space<vmem>>
    %c0_283 = arith.constant 0 : index
    %c221 = arith.constant 221 : index
    %202 = vector.load %201[%c0_283, %c221] : memref<4x1024xbf16, #tpu.memory_space<vmem>>, vector<4x800xbf16>
    %c200_284 = arith.constant 200 : index
    %c0_285 = arith.constant 0 : index
    %203 = vector.load %arg8[%c200_284, %c0_285] : memref<256x1024xbf16, #tpu.memory_space<vmem>>, vector<4x800xbf16>
    tpu.vector_store %arg8[%c200_284, %c0_285], %202 {strides = array<i32>} : memref<256x1024xbf16, #tpu.memory_space<vmem>>, vector<4x800xbf16>,
    %c0_i32_286 = arith.constant 0 : i32
    %c0_i32_287 = arith.constant 0 : i32
    %c0_i32_288 = arith.constant 0 : i32
    %204 = tpu.memref_slice %arg2[%c0_i32_286, %c0_i32_287, %c0_i32_288] : memref<1x4x1024xbf16, #tpu.memory_space<vmem>> -> memref<1x4x1024xbf16, #tpu.memory_space<vmem>>
    %205 = tpu.memref_squeeze %204 : memref<1x4x1024xbf16, #tpu.memory_space<vmem>> -> memref<4x1024xbf16, #tpu.memory_space<vmem>>
    %c0_289 = arith.constant 0 : index
    %c221_290 = arith.constant 221 : index
    %206 = vector.load %205[%c0_289, %c221_290] : memref<4x1024xbf16, #tpu.memory_space<vmem>>, vector<4x800xbf16>
    %c204 = arith.constant 204 : index
    %c0_291 = arith.constant 0 : index
    %207 = vector.load %arg8[%c204, %c0_291] : memref<256x1024xbf16, #tpu.memory_space<vmem>>, vector<4x800xbf16>
    tpu.vector_store %arg8[%c204, %c0_291], %206 {strides = array<i32>} : memref<256x1024xbf16, #tpu.memory_space<vmem>>, vector<4x800xbf16>,
    %c0_i32_292 = arith.constant 0 : i32
    %c0_i32_293 = arith.constant 0 : i32
    %c0_i32_294 = arith.constant 0 : i32
    %208 = tpu.memref_slice %arg1[%c0_i32_292, %c0_i32_293, %c0_i32_294] : memref<1x4x1024xbf16, #tpu.memory_space<vmem>> -> memref<1x4x1024xbf16, #tpu.memory_space<vmem>>
    %209 = tpu.memref_squeeze %208 : memref<1x4x1024xbf16, #tpu.memory_space<vmem>> -> memref<4x1024xbf16, #tpu.memory_space<vmem>>
    %c0_295 = arith.constant 0 : index
    %c222 = arith.constant 222 : index
    %210 = vector.load %209[%c0_295, %c222] : memref<4x1024xbf16, #tpu.memory_space<vmem>>, vector<4x800xbf16>
    %c208 = arith.constant 208 : index
    %c0_296 = arith.constant 0 : index
    %211 = vector.load %arg8[%c208, %c0_296] : memref<256x1024xbf16, #tpu.memory_space<vmem>>, vector<4x800xbf16>
    tpu.vector_store %arg8[%c208, %c0_296], %210 {strides = array<i32>} : memref<256x1024xbf16, #tpu.memory_space<vmem>>, vector<4x800xbf16>,
    %c0_i32_297 = arith.constant 0 : i32
    %c0_i32_298 = arith.constant 0 : i32
    %c0_i32_299 = arith.constant 0 : i32
    %212 = tpu.memref_slice %arg2[%c0_i32_297, %c0_i32_298, %c0_i32_299] : memref<1x4x1024xbf16, #tpu.memory_space<vmem>> -> memref<1x4x1024xbf16, #tpu.memory_space<vmem>>
    %213 = tpu.memref_squeeze %212 : memref<1x4x1024xbf16, #tpu.memory_space<vmem>> -> memref<4x1024xbf16, #tpu.memory_space<vmem>>
    %c0_300 = arith.constant 0 : index
    %c222_301 = arith.constant 222 : index
    %214 = vector.load %213[%c0_300, %c222_301] : memref<4x1024xbf16, #tpu.memory_space<vmem>>, vector<4x800xbf16>
    %c212_302 = arith.constant 212 : index
    %c0_303 = arith.constant 0 : index
    %215 = vector.load %arg8[%c212_302, %c0_303] : memref<256x1024xbf16, #tpu.memory_space<vmem>>, vector<4x800xbf16>
    tpu.vector_store %arg8[%c212_302, %c0_303], %214 {strides = array<i32>} : memref<256x1024xbf16, #tpu.memory_space<vmem>>, vector<4x800xbf16>,
    %cst = arith.constant 0.000000e+00 : bf16
    %216 = vector.broadcast %cst : bf16 to vector<40x1024xbf16>
    %c216 = arith.constant 216 : index
    %c0_304 = arith.constant 0 : index
    %217 = vector.load %arg8[%c216, %c0_304] : memref<256x1024xbf16, #tpu.memory_space<vmem>>, vector<40x1024xbf16>
    tpu.vector_store %arg8[%c216, %c0_304], %216 {strides = array<i32>} : memref<256x1024xbf16, #tpu.memory_space<vmem>>, vector<40x1024xbf16>,
    %c0_305 = arith.constant 0 : index
    %c0_306 = arith.constant 0 : index
    %218 = vector.load %arg3[%c0_305, %c0_306] : memref<4x256xbf16, #tpu.memory_space<vmem>>, vector<4x256xbf16>
    %c0_307 = arith.constant 0 : index
    %c0_308 = arith.constant 0 : index
    %219 = vector.load %arg8[%c0_307, %c0_308] : memref<256x1024xbf16, #tpu.memory_space<vmem>>, vector<256x1024xbf16>
    %cst_309 = arith.constant dense<0.000000e+00> : vector<4x1024xf32>
    %220 = tpu.matmul %218, %219, %cst_309 {dimension_numbers = #tpu.dot_dimension_numbers<[1], [0], [0], [1], [0, 0, 1, 1], [], []>} : vector<4x256xbf16>, vector<256x1024xbf16>, vector<4x1024xf32> -> vector<4x1024xf32>
    %c0_310 = arith.constant 0 : index
    %c0_311 = arith.constant 0 : index
    %221 = vector.load %arg5[%c0_310, %c0_311] : memref<1x896xf32, #tpu.memory_space<vmem>>, vector<1x896xf32>
    %cst_312 = arith.constant 0.000000e+00 : f32
    %222 = vector.broadcast %cst_312 : f32 to vector<1x896xf32>
    %223 = arith.cmpf ogt, %221, %222 : vector<1x896xf32>
    %224 = vector.extract_strided_slice %220 {offsets = [0, 0], sizes = [4, 896], strides = [1, 1]} : vector<4x1024xf32> to vector<4x896xf32>
    %c0_313 = arith.constant 0 : index
    %c0_314 = arith.constant 0 : index
    %225 = vector.load %arg4[%c0_313, %c0_314] : memref<4x1xf32, #tpu.memory_space<vmem>>, vector<4x1xf32>
    %226 = vector.broadcast %225 : vector<4x1xf32> to vector<4x896xf32>
    %227 = arith.addf %224, %226 : vector<4x896xf32>
    %cst_315 = arith.constant 0.000000e+00 : f32
    %228 = vector.shape_cast %223 : vector<1x896xi1> to vector<1x896xi1>
    %229 = vector.broadcast %228 : vector<1x896xi1> to vector<4x896xi1>
    %230 = vector.broadcast %cst_315 : f32 to vector<4x896xf32>
    %231 = arith.select %229, %227, %230 : vector<4x896xi1>, vector<4x896xf32>
    %cst_316 = arith.constant dense<0.000000e+00> : vector<4xf32>
    %232 = vector.multi_reduction <add>, %231, %cst_316 [1] : vector<4x896xf32> to vector<4xf32>
    %233 = vector.shape_cast %232 : vector<4xf32> to vector<4x1xf32>
    %c0_317 = arith.constant 0 : index
    %c0_318 = arith.constant 0 : index
    %c0_319 = arith.constant 0 : index
    %234 = vector.load %arg7[%c0_317, %c0_318, %c0_319] : memref<1x4x2xf32, #tpu.memory_space<vmem>>, vector<1x4x1xf32>
    %235 = vector.shape_cast %234 : vector<1x4x1xf32> to vector<4x1xf32>
    %236 = vector.shape_cast %233 : vector<4x1xf32> to vector<1x4x1xf32>
    tpu.vector_store %arg7[%c0_317, %c0_318, %c0_319], %236 {strides = array<i32>} : memref<1x4x2xf32, #tpu.memory_space<vmem>>, vector<1x4x1xf32>,
    %237 = arith.mulf %231, %231 : vector<4x896xf32>
    %cst_320 = arith.constant dense<0.000000e+00> : vector<4xf32>
    %238 = vector.multi_reduction <add>, %237, %cst_320 [1] : vector<4x896xf32> to vector<4xf32>
    %239 = vector.shape_cast %238 : vector<4xf32> to vector<4x1xf32>
    %c0_321 = arith.constant 0 : index
    %c0_322 = arith.constant 0 : index
    %c1_323 = arith.constant 1 : index
    %240 = vector.load %arg7[%c0_321, %c0_322, %c1_323] : memref<1x4x2xf32, #tpu.memory_space<vmem>>, vector<1x4x1xf32>
    %241 = vector.shape_cast %240 : vector<1x4x1xf32> to vector<4x1xf32>
    %242 = vector.shape_cast %239 : vector<4x1xf32> to vector<1x4x1xf32>
    tpu.vector_store %arg7[%c0_321, %c0_322, %c1_323], %242 {strides = array<i32>} : memref<1x4x2xf32, #tpu.memory_space<vmem>>, vector<1x4x1xf32>,
    %243 = arith.truncf %231 : vector<4x896xf32> to vector<4x896xbf16>
    %c0_324 = arith.constant 0 : index
    %c0_325 = arith.constant 0 : index
    %c0_326 = arith.constant 0 : index
    %244 = vector.load %arg6[%c0_324, %c0_325, %c0_326] : memref<1x4x896xbf16, #tpu.memory_space<vmem>>, vector<1x4x896xbf16>
    %245 = vector.shape_cast %244 : vector<1x4x896xbf16> to vector<4x896xbf16>
    %246 = vector.shape_cast %243 : vector<4x896xbf16> to vector<1x4x896xbf16>
    tpu.vector_store %arg6[%c0_324, %c0_325, %c0_326], %246 {strides = array<i32>} : memref<1x4x896xbf16, #tpu.memory_space<vmem>>, vector<1x4x896xbf16>,
    return
  }
  func.func @transform_0(%arg0: i32) -> (i32, i32, i32) {
    %c0_i32 = arith.constant 0 : i32
    %c0_i32_0 = arith.constant 0 : i32
    %c0_i32_1 = arith.constant 0 : i32
    return %arg0, %c0_i32, %c0_i32_0 : i32, i32, i32
  }
  func.func @transform_1(%arg0: i32) -> (i32, i32, i32) {
    %c0_i32 = arith.constant 0 : i32
    %c0_i32_0 = arith.constant 0 : i32
    %c0_i32_1 = arith.constant 0 : i32
    return %arg0, %c0_i32, %c0_i32_0 : i32, i32, i32
  }
  func.func @transform_2(%arg0: i32) -> (i32, i32) {
    %c0_i32 = arith.constant 0 : i32
    %c0_i32_0 = arith.constant 0 : i32
    %c0_i32_1 = arith.constant 0 : i32
    return %c0_i32, %c0_i32_0 : i32, i32
  }
  func.func @transform_3(%arg0: i32) -> (i32, i32) {
    %c0_i32 = arith.constant 0 : i32
    %c0_i32_0 = arith.constant 0 : i32
    %c0_i32_1 = arith.constant 0 : i32
    return %c0_i32, %c0_i32_0 : i32, i32
  }
  func.func @transform_4(%arg0: i32) -> (i32, i32) {
    %c0_i32 = arith.constant 0 : i32
    %c0_i32_0 = arith.constant 0 : i32
    %c0_i32_1 = arith.constant 0 : i32
    return %c0_i32, %c0_i32_0 : i32, i32
  }
  func.func @transform_5(%arg0: i32) -> (i32, i32, i32) {
    %c0_i32 = arith.constant 0 : i32
    %c0_i32_0 = arith.constant 0 : i32
    %c0_i32_1 = arith.constant 0 : i32
    return %arg0, %c0_i32, %c0_i32_0 : i32, i32, i32
  }
  func.func @transform_6(%arg0: i32) -> (i32, i32, i32) {
    %c0_i32 = arith.constant 0 : i32
    %c0_i32_0 = arith.constant 0 : i32
    %c0_i32_1 = arith.constant 0 : i32
    return %arg0, %c0_i32, %c0_i32_0 : i32, i32, i32
  }
}

module attributes {stable_mosaic.version = 11 : i64} {
  func.func @kernel(%arg0: i32, %arg1: memref<1x4x896xbf16, #tpu.memory_space<vmem>>, %arg2: memref<4x1xf32, #tpu.memory_space<vmem>>, %arg3: memref<4x1xf32, #tpu.memory_space<vmem>>, %arg4: memref<4x128xbf16, #tpu.memory_space<vmem>>, %arg5: memref<4x1xf32, #tpu.memory_space<vmem>>, %arg6: memref<1x896xf32, #tpu.memory_space<vmem>>, %arg7: memref<1x4x896xf32, #tpu.memory_space<vmem>>, %arg8: memref<1x4x2xf32, #tpu.memory_space<vmem>>, %arg9: memref<4x1024xbf16, #tpu.memory_space<vmem>>, %arg10: memref<128x1024xbf16, #tpu.memory_space<vmem>>) attributes {dimension_semantics = [#tpu.dimension_semantics<parallel>], iteration_bounds = array<i64: 2>, scalar_prefetch = 0 : i64, scratch_operands = 2 : i64, tpu.core_type = #tpu.core_type<tc>, window_params = [{transform_indices = @transform_0, window_bounds = array<i64: 1, 4, 896>}, {pipeline_mode = #tpu.pipeline_mode<synchronous>, transform_indices = @transform_1, window_bounds = array<i64: 4, 1>}, {pipeline_mode = #tpu.pipeline_mode<synchronous>, transform_indices = @transform_2, window_bounds = array<i64: 4, 1>}, {pipeline_mode = #tpu.pipeline_mode<synchronous>, transform_indices = @transform_3, window_bounds = array<i64: 4, 128>}, {pipeline_mode = #tpu.pipeline_mode<synchronous>, transform_indices = @transform_4, window_bounds = array<i64: 4, 1>}, {pipeline_mode = #tpu.pipeline_mode<synchronous>, transform_indices = @transform_5, window_bounds = array<i64: 1, 896>}, {transform_indices = @transform_6, window_bounds = array<i64: 1, 4, 896>}, {transform_indices = @transform_7, window_bounds = array<i64: 1, 4, 2>}]} {
    %c0 = arith.constant 0 : index
    %c0_0 = arith.constant 0 : index
    %c0_1 = arith.constant 0 : index
    %0 = vector.load %arg1[%c0, %c0_0, %c0_1] : memref<1x4x896xbf16, #tpu.memory_space<vmem>>, vector<1x4x896xbf16>
    %1 = vector.shape_cast %0 : vector<1x4x896xbf16> to vector<4x896xbf16>
    %2 = arith.extf %1 : vector<4x896xbf16> to vector<4x896xf32>
    %c0_2 = arith.constant 0 : index
    %c0_3 = arith.constant 0 : index
    %3 = vector.load %arg2[%c0_2, %c0_3] : memref<4x1xf32, #tpu.memory_space<vmem>>, vector<4x1xf32>
    %4 = vector.broadcast %3 : vector<4x1xf32> to vector<4x896xf32>
    %5 = arith.mulf %2, %4 : vector<4x896xf32>
    %c0_4 = arith.constant 0 : index
    %c0_5 = arith.constant 0 : index
    %6 = vector.load %arg3[%c0_4, %c0_5] : memref<4x1xf32, #tpu.memory_space<vmem>>, vector<4x1xf32>
    %7 = vector.broadcast %6 : vector<4x1xf32> to vector<4x896xf32>
    %8 = arith.addf %5, %7 : vector<4x896xf32>
    %cst = arith.constant 0.000000e+00 : f32
    %9 = vector.broadcast %cst : f32 to vector<4x896xf32>
    %10 = arith.maximumf %8, %9 : vector<4x896xf32>
    %c0_6 = arith.constant 0 : index
    %c0_7 = arith.constant 0 : index
    %11 = vector.load %arg6[%c0_6, %c0_7] : memref<1x896xf32, #tpu.memory_space<vmem>>, vector<1x896xf32>
    %cst_8 = arith.constant 0.000000e+00 : f32
    %12 = vector.broadcast %cst_8 : f32 to vector<1x896xf32>
    %13 = arith.cmpf ogt, %11, %12 : vector<1x896xf32>
    %cst_9 = arith.constant 0.000000e+00 : f32
    %14 = vector.shape_cast %13 : vector<1x896xi1> to vector<1x896xi1>
    %15 = vector.broadcast %14 : vector<1x896xi1> to vector<4x896xi1>
    %16 = vector.broadcast %cst_9 : f32 to vector<4x896xf32>
    %17 = arith.select %15, %10, %16 : vector<4x896xi1>, vector<4x896xf32>
    %cst_10 = arith.constant 0.000000e+00 : bf16
    %18 = vector.broadcast %cst_10 : bf16 to vector<4x1024xbf16>
    %c0_11 = arith.constant 0 : index
    %c0_12 = arith.constant 0 : index
    %19 = vector.load %arg9[%c0_11, %c0_12] : memref<4x1024xbf16, #tpu.memory_space<vmem>>, vector<4x1024xbf16>
    tpu.vector_store %arg9[%c0_11, %c0_12], %18 {strides = array<i32>} : memref<4x1024xbf16, #tpu.memory_space<vmem>>, vector<4x1024xbf16>,
    %20 = arith.truncf %17 : vector<4x896xf32> to vector<4x896xbf16>
    %c0_13 = arith.constant 0 : index
    %c111 = arith.constant 111 : index
    %21 = vector.load %arg9[%c0_13, %c111] : memref<4x1024xbf16, #tpu.memory_space<vmem>>, vector<4x896xbf16>
    tpu.vector_store %arg9[%c0_13, %c111], %20 {strides = array<i32>} : memref<4x1024xbf16, #tpu.memory_space<vmem>>, vector<4x896xbf16>,
    %c0_14 = arith.constant 0 : index
    %c0_15 = arith.constant 0 : index
    %22 = vector.load %arg9[%c0_14, %c0_15] : memref<4x1024xbf16, #tpu.memory_space<vmem>>, vector<4x800xbf16>
    %c0_16 = arith.constant 0 : index
    %c0_17 = arith.constant 0 : index
    %23 = vector.load %arg10[%c0_16, %c0_17] : memref<128x1024xbf16, #tpu.memory_space<vmem>>, vector<4x800xbf16>
    tpu.vector_store %arg10[%c0_16, %c0_17], %22 {strides = array<i32>} : memref<128x1024xbf16, #tpu.memory_space<vmem>>, vector<4x800xbf16>,
    %c0_18 = arith.constant 0 : index
    %c1 = arith.constant 1 : index
    %24 = vector.load %arg9[%c0_18, %c1] : memref<4x1024xbf16, #tpu.memory_space<vmem>>, vector<4x800xbf16>
    %c4 = arith.constant 4 : index
    %c0_19 = arith.constant 0 : index
    %25 = vector.load %arg10[%c4, %c0_19] : memref<128x1024xbf16, #tpu.memory_space<vmem>>, vector<4x800xbf16>
    tpu.vector_store %arg10[%c4, %c0_19], %24 {strides = array<i32>} : memref<128x1024xbf16, #tpu.memory_space<vmem>>, vector<4x800xbf16>,
    %c0_20 = arith.constant 0 : index
    %c2 = arith.constant 2 : index
    %26 = vector.load %arg9[%c0_20, %c2] : memref<4x1024xbf16, #tpu.memory_space<vmem>>, vector<4x800xbf16>
    %c8 = arith.constant 8 : index
    %c0_21 = arith.constant 0 : index
    %27 = vector.load %arg10[%c8, %c0_21] : memref<128x1024xbf16, #tpu.memory_space<vmem>>, vector<4x800xbf16>
    tpu.vector_store %arg10[%c8, %c0_21], %26 {strides = array<i32>} : memref<128x1024xbf16, #tpu.memory_space<vmem>>, vector<4x800xbf16>,
    %c0_22 = arith.constant 0 : index
    %c10 = arith.constant 10 : index
    %28 = vector.load %arg9[%c0_22, %c10] : memref<4x1024xbf16, #tpu.memory_space<vmem>>, vector<4x800xbf16>
    %c12 = arith.constant 12 : index
    %c0_23 = arith.constant 0 : index
    %29 = vector.load %arg10[%c12, %c0_23] : memref<128x1024xbf16, #tpu.memory_space<vmem>>, vector<4x800xbf16>
    tpu.vector_store %arg10[%c12, %c0_23], %28 {strides = array<i32>} : memref<128x1024xbf16, #tpu.memory_space<vmem>>, vector<4x800xbf16>,
    %c0_24 = arith.constant 0 : index
    %c11 = arith.constant 11 : index
    %30 = vector.load %arg9[%c0_24, %c11] : memref<4x1024xbf16, #tpu.memory_space<vmem>>, vector<4x800xbf16>
    %c16 = arith.constant 16 : index
    %c0_25 = arith.constant 0 : index
    %31 = vector.load %arg10[%c16, %c0_25] : memref<128x1024xbf16, #tpu.memory_space<vmem>>, vector<4x800xbf16>
    tpu.vector_store %arg10[%c16, %c0_25], %30 {strides = array<i32>} : memref<128x1024xbf16, #tpu.memory_space<vmem>>, vector<4x800xbf16>,
    %c0_26 = arith.constant 0 : index
    %c12_27 = arith.constant 12 : index
    %32 = vector.load %arg9[%c0_26, %c12_27] : memref<4x1024xbf16, #tpu.memory_space<vmem>>, vector<4x800xbf16>
    %c20 = arith.constant 20 : index
    %c0_28 = arith.constant 0 : index
    %33 = vector.load %arg10[%c20, %c0_28] : memref<128x1024xbf16, #tpu.memory_space<vmem>>, vector<4x800xbf16>
    tpu.vector_store %arg10[%c20, %c0_28], %32 {strides = array<i32>} : memref<128x1024xbf16, #tpu.memory_space<vmem>>, vector<4x800xbf16>,
    %c0_29 = arith.constant 0 : index
    %c20_30 = arith.constant 20 : index
    %34 = vector.load %arg9[%c0_29, %c20_30] : memref<4x1024xbf16, #tpu.memory_space<vmem>>, vector<4x800xbf16>
    %c24 = arith.constant 24 : index
    %c0_31 = arith.constant 0 : index
    %35 = vector.load %arg10[%c24, %c0_31] : memref<128x1024xbf16, #tpu.memory_space<vmem>>, vector<4x800xbf16>
    tpu.vector_store %arg10[%c24, %c0_31], %34 {strides = array<i32>} : memref<128x1024xbf16, #tpu.memory_space<vmem>>, vector<4x800xbf16>,
    %c0_32 = arith.constant 0 : index
    %c21 = arith.constant 21 : index
    %36 = vector.load %arg9[%c0_32, %c21] : memref<4x1024xbf16, #tpu.memory_space<vmem>>, vector<4x800xbf16>
    %c28 = arith.constant 28 : index
    %c0_33 = arith.constant 0 : index
    %37 = vector.load %arg10[%c28, %c0_33] : memref<128x1024xbf16, #tpu.memory_space<vmem>>, vector<4x800xbf16>
    tpu.vector_store %arg10[%c28, %c0_33], %36 {strides = array<i32>} : memref<128x1024xbf16, #tpu.memory_space<vmem>>, vector<4x800xbf16>,
    %c0_34 = arith.constant 0 : index
    %c22 = arith.constant 22 : index
    %38 = vector.load %arg9[%c0_34, %c22] : memref<4x1024xbf16, #tpu.memory_space<vmem>>, vector<4x800xbf16>
    %c32 = arith.constant 32 : index
    %c0_35 = arith.constant 0 : index
    %39 = vector.load %arg10[%c32, %c0_35] : memref<128x1024xbf16, #tpu.memory_space<vmem>>, vector<4x800xbf16>
    tpu.vector_store %arg10[%c32, %c0_35], %38 {strides = array<i32>} : memref<128x1024xbf16, #tpu.memory_space<vmem>>, vector<4x800xbf16>,
    %c0_36 = arith.constant 0 : index
    %c100 = arith.constant 100 : index
    %40 = vector.load %arg9[%c0_36, %c100] : memref<4x1024xbf16, #tpu.memory_space<vmem>>, vector<4x800xbf16>
    %c36 = arith.constant 36 : index
    %c0_37 = arith.constant 0 : index
    %41 = vector.load %arg10[%c36, %c0_37] : memref<128x1024xbf16, #tpu.memory_space<vmem>>, vector<4x800xbf16>
    tpu.vector_store %arg10[%c36, %c0_37], %40 {strides = array<i32>} : memref<128x1024xbf16, #tpu.memory_space<vmem>>, vector<4x800xbf16>,
    %c0_38 = arith.constant 0 : index
    %c101 = arith.constant 101 : index
    %42 = vector.load %arg9[%c0_38, %c101] : memref<4x1024xbf16, #tpu.memory_space<vmem>>, vector<4x800xbf16>
    %c40 = arith.constant 40 : index
    %c0_39 = arith.constant 0 : index
    %43 = vector.load %arg10[%c40, %c0_39] : memref<128x1024xbf16, #tpu.memory_space<vmem>>, vector<4x800xbf16>
    tpu.vector_store %arg10[%c40, %c0_39], %42 {strides = array<i32>} : memref<128x1024xbf16, #tpu.memory_space<vmem>>, vector<4x800xbf16>,
    %c0_40 = arith.constant 0 : index
    %c102 = arith.constant 102 : index
    %44 = vector.load %arg9[%c0_40, %c102] : memref<4x1024xbf16, #tpu.memory_space<vmem>>, vector<4x800xbf16>
    %c44 = arith.constant 44 : index
    %c0_41 = arith.constant 0 : index
    %45 = vector.load %arg10[%c44, %c0_41] : memref<128x1024xbf16, #tpu.memory_space<vmem>>, vector<4x800xbf16>
    tpu.vector_store %arg10[%c44, %c0_41], %44 {strides = array<i32>} : memref<128x1024xbf16, #tpu.memory_space<vmem>>, vector<4x800xbf16>,
    %c0_42 = arith.constant 0 : index
    %c110 = arith.constant 110 : index
    %46 = vector.load %arg9[%c0_42, %c110] : memref<4x1024xbf16, #tpu.memory_space<vmem>>, vector<4x800xbf16>
    %c48 = arith.constant 48 : index
    %c0_43 = arith.constant 0 : index
    %47 = vector.load %arg10[%c48, %c0_43] : memref<128x1024xbf16, #tpu.memory_space<vmem>>, vector<4x800xbf16>
    tpu.vector_store %arg10[%c48, %c0_43], %46 {strides = array<i32>} : memref<128x1024xbf16, #tpu.memory_space<vmem>>, vector<4x800xbf16>,
    %c0_44 = arith.constant 0 : index
    %c111_45 = arith.constant 111 : index
    %48 = vector.load %arg9[%c0_44, %c111_45] : memref<4x1024xbf16, #tpu.memory_space<vmem>>, vector<4x800xbf16>
    %c52 = arith.constant 52 : index
    %c0_46 = arith.constant 0 : index
    %49 = vector.load %arg10[%c52, %c0_46] : memref<128x1024xbf16, #tpu.memory_space<vmem>>, vector<4x800xbf16>
    tpu.vector_store %arg10[%c52, %c0_46], %48 {strides = array<i32>} : memref<128x1024xbf16, #tpu.memory_space<vmem>>, vector<4x800xbf16>,
    %c0_47 = arith.constant 0 : index
    %c112 = arith.constant 112 : index
    %50 = vector.load %arg9[%c0_47, %c112] : memref<4x1024xbf16, #tpu.memory_space<vmem>>, vector<4x800xbf16>
    %c56 = arith.constant 56 : index
    %c0_48 = arith.constant 0 : index
    %51 = vector.load %arg10[%c56, %c0_48] : memref<128x1024xbf16, #tpu.memory_space<vmem>>, vector<4x800xbf16>
    tpu.vector_store %arg10[%c56, %c0_48], %50 {strides = array<i32>} : memref<128x1024xbf16, #tpu.memory_space<vmem>>, vector<4x800xbf16>,
    %c0_49 = arith.constant 0 : index
    %c120 = arith.constant 120 : index
    %52 = vector.load %arg9[%c0_49, %c120] : memref<4x1024xbf16, #tpu.memory_space<vmem>>, vector<4x800xbf16>
    %c60 = arith.constant 60 : index
    %c0_50 = arith.constant 0 : index
    %53 = vector.load %arg10[%c60, %c0_50] : memref<128x1024xbf16, #tpu.memory_space<vmem>>, vector<4x800xbf16>
    tpu.vector_store %arg10[%c60, %c0_50], %52 {strides = array<i32>} : memref<128x1024xbf16, #tpu.memory_space<vmem>>, vector<4x800xbf16>,
    %c0_51 = arith.constant 0 : index
    %c121 = arith.constant 121 : index
    %54 = vector.load %arg9[%c0_51, %c121] : memref<4x1024xbf16, #tpu.memory_space<vmem>>, vector<4x800xbf16>
    %c64 = arith.constant 64 : index
    %c0_52 = arith.constant 0 : index
    %55 = vector.load %arg10[%c64, %c0_52] : memref<128x1024xbf16, #tpu.memory_space<vmem>>, vector<4x800xbf16>
    tpu.vector_store %arg10[%c64, %c0_52], %54 {strides = array<i32>} : memref<128x1024xbf16, #tpu.memory_space<vmem>>, vector<4x800xbf16>,
    %c0_53 = arith.constant 0 : index
    %c122 = arith.constant 122 : index
    %56 = vector.load %arg9[%c0_53, %c122] : memref<4x1024xbf16, #tpu.memory_space<vmem>>, vector<4x800xbf16>
    %c68 = arith.constant 68 : index
    %c0_54 = arith.constant 0 : index
    %57 = vector.load %arg10[%c68, %c0_54] : memref<128x1024xbf16, #tpu.memory_space<vmem>>, vector<4x800xbf16>
    tpu.vector_store %arg10[%c68, %c0_54], %56 {strides = array<i32>} : memref<128x1024xbf16, #tpu.memory_space<vmem>>, vector<4x800xbf16>,
    %c0_55 = arith.constant 0 : index
    %c200 = arith.constant 200 : index
    %58 = vector.load %arg9[%c0_55, %c200] : memref<4x1024xbf16, #tpu.memory_space<vmem>>, vector<4x800xbf16>
    %c72 = arith.constant 72 : index
    %c0_56 = arith.constant 0 : index
    %59 = vector.load %arg10[%c72, %c0_56] : memref<128x1024xbf16, #tpu.memory_space<vmem>>, vector<4x800xbf16>
    tpu.vector_store %arg10[%c72, %c0_56], %58 {strides = array<i32>} : memref<128x1024xbf16, #tpu.memory_space<vmem>>, vector<4x800xbf16>,
    %c0_57 = arith.constant 0 : index
    %c201 = arith.constant 201 : index
    %60 = vector.load %arg9[%c0_57, %c201] : memref<4x1024xbf16, #tpu.memory_space<vmem>>, vector<4x800xbf16>
    %c76 = arith.constant 76 : index
    %c0_58 = arith.constant 0 : index
    %61 = vector.load %arg10[%c76, %c0_58] : memref<128x1024xbf16, #tpu.memory_space<vmem>>, vector<4x800xbf16>
    tpu.vector_store %arg10[%c76, %c0_58], %60 {strides = array<i32>} : memref<128x1024xbf16, #tpu.memory_space<vmem>>, vector<4x800xbf16>,
    %c0_59 = arith.constant 0 : index
    %c202 = arith.constant 202 : index
    %62 = vector.load %arg9[%c0_59, %c202] : memref<4x1024xbf16, #tpu.memory_space<vmem>>, vector<4x800xbf16>
    %c80 = arith.constant 80 : index
    %c0_60 = arith.constant 0 : index
    %63 = vector.load %arg10[%c80, %c0_60] : memref<128x1024xbf16, #tpu.memory_space<vmem>>, vector<4x800xbf16>
    tpu.vector_store %arg10[%c80, %c0_60], %62 {strides = array<i32>} : memref<128x1024xbf16, #tpu.memory_space<vmem>>, vector<4x800xbf16>,
    %c0_61 = arith.constant 0 : index
    %c210 = arith.constant 210 : index
    %64 = vector.load %arg9[%c0_61, %c210] : memref<4x1024xbf16, #tpu.memory_space<vmem>>, vector<4x800xbf16>
    %c84 = arith.constant 84 : index
    %c0_62 = arith.constant 0 : index
    %65 = vector.load %arg10[%c84, %c0_62] : memref<128x1024xbf16, #tpu.memory_space<vmem>>, vector<4x800xbf16>
    tpu.vector_store %arg10[%c84, %c0_62], %64 {strides = array<i32>} : memref<128x1024xbf16, #tpu.memory_space<vmem>>, vector<4x800xbf16>,
    %c0_63 = arith.constant 0 : index
    %c211 = arith.constant 211 : index
    %66 = vector.load %arg9[%c0_63, %c211] : memref<4x1024xbf16, #tpu.memory_space<vmem>>, vector<4x800xbf16>
    %c88 = arith.constant 88 : index
    %c0_64 = arith.constant 0 : index
    %67 = vector.load %arg10[%c88, %c0_64] : memref<128x1024xbf16, #tpu.memory_space<vmem>>, vector<4x800xbf16>
    tpu.vector_store %arg10[%c88, %c0_64], %66 {strides = array<i32>} : memref<128x1024xbf16, #tpu.memory_space<vmem>>, vector<4x800xbf16>,
    %c0_65 = arith.constant 0 : index
    %c212 = arith.constant 212 : index
    %68 = vector.load %arg9[%c0_65, %c212] : memref<4x1024xbf16, #tpu.memory_space<vmem>>, vector<4x800xbf16>
    %c92 = arith.constant 92 : index
    %c0_66 = arith.constant 0 : index
    %69 = vector.load %arg10[%c92, %c0_66] : memref<128x1024xbf16, #tpu.memory_space<vmem>>, vector<4x800xbf16>
    tpu.vector_store %arg10[%c92, %c0_66], %68 {strides = array<i32>} : memref<128x1024xbf16, #tpu.memory_space<vmem>>, vector<4x800xbf16>,
    %c0_67 = arith.constant 0 : index
    %c220 = arith.constant 220 : index
    %70 = vector.load %arg9[%c0_67, %c220] : memref<4x1024xbf16, #tpu.memory_space<vmem>>, vector<4x800xbf16>
    %c96 = arith.constant 96 : index
    %c0_68 = arith.constant 0 : index
    %71 = vector.load %arg10[%c96, %c0_68] : memref<128x1024xbf16, #tpu.memory_space<vmem>>, vector<4x800xbf16>
    tpu.vector_store %arg10[%c96, %c0_68], %70 {strides = array<i32>} : memref<128x1024xbf16, #tpu.memory_space<vmem>>, vector<4x800xbf16>,
    %c0_69 = arith.constant 0 : index
    %c221 = arith.constant 221 : index
    %72 = vector.load %arg9[%c0_69, %c221] : memref<4x1024xbf16, #tpu.memory_space<vmem>>, vector<4x800xbf16>
    %c100_70 = arith.constant 100 : index
    %c0_71 = arith.constant 0 : index
    %73 = vector.load %arg10[%c100_70, %c0_71] : memref<128x1024xbf16, #tpu.memory_space<vmem>>, vector<4x800xbf16>
    tpu.vector_store %arg10[%c100_70, %c0_71], %72 {strides = array<i32>} : memref<128x1024xbf16, #tpu.memory_space<vmem>>, vector<4x800xbf16>,
    %c0_72 = arith.constant 0 : index
    %c222 = arith.constant 222 : index
    %74 = vector.load %arg9[%c0_72, %c222] : memref<4x1024xbf16, #tpu.memory_space<vmem>>, vector<4x800xbf16>
    %c104 = arith.constant 104 : index
    %c0_73 = arith.constant 0 : index
    %75 = vector.load %arg10[%c104, %c0_73] : memref<128x1024xbf16, #tpu.memory_space<vmem>>, vector<4x800xbf16>
    tpu.vector_store %arg10[%c104, %c0_73], %74 {strides = array<i32>} : memref<128x1024xbf16, #tpu.memory_space<vmem>>, vector<4x800xbf16>,
    %cst_74 = arith.constant 0.000000e+00 : bf16
    %76 = vector.broadcast %cst_74 : bf16 to vector<20x1024xbf16>
    %c108 = arith.constant 108 : index
    %c0_75 = arith.constant 0 : index
    %77 = vector.load %arg10[%c108, %c0_75] : memref<128x1024xbf16, #tpu.memory_space<vmem>>, vector<20x1024xbf16>
    tpu.vector_store %arg10[%c108, %c0_75], %76 {strides = array<i32>} : memref<128x1024xbf16, #tpu.memory_space<vmem>>, vector<20x1024xbf16>,
    %c0_76 = arith.constant 0 : index
    %c0_77 = arith.constant 0 : index
    %78 = vector.load %arg4[%c0_76, %c0_77] : memref<4x128xbf16, #tpu.memory_space<vmem>>, vector<4x128xbf16>
    %c0_78 = arith.constant 0 : index
    %c0_79 = arith.constant 0 : index
    %79 = vector.load %arg10[%c0_78, %c0_79] : memref<128x1024xbf16, #tpu.memory_space<vmem>>, vector<128x1024xbf16>
    %cst_80 = arith.constant dense<0.000000e+00> : vector<4x1024xf32>
    %80 = tpu.matmul %78, %79, %cst_80 {dimension_numbers = #tpu.dot_dimension_numbers<[1], [0], [0], [1], [0, 0, 1, 1], [], []>} : vector<4x128xbf16>, vector<128x1024xbf16>, vector<4x1024xf32> -> vector<4x1024xf32>
    %c0_81 = arith.constant 0 : index
    %c0_82 = arith.constant 0 : index
    %81 = vector.load %arg6[%c0_81, %c0_82] : memref<1x896xf32, #tpu.memory_space<vmem>>, vector<1x896xf32>
    %cst_83 = arith.constant 0.000000e+00 : f32
    %82 = vector.broadcast %cst_83 : f32 to vector<1x896xf32>
    %83 = arith.cmpf ogt, %81, %82 : vector<1x896xf32>
    %84 = vector.extract_strided_slice %80 {offsets = [0, 0], sizes = [4, 896], strides = [1, 1]} : vector<4x1024xf32> to vector<4x896xf32>
    %c0_84 = arith.constant 0 : index
    %c0_85 = arith.constant 0 : index
    %85 = vector.load %arg5[%c0_84, %c0_85] : memref<4x1xf32, #tpu.memory_space<vmem>>, vector<4x1xf32>
    %86 = vector.broadcast %85 : vector<4x1xf32> to vector<4x896xf32>
    %87 = arith.addf %84, %86 : vector<4x896xf32>
    %cst_86 = arith.constant 0.000000e+00 : f32
    %88 = vector.shape_cast %83 : vector<1x896xi1> to vector<1x896xi1>
    %89 = vector.broadcast %88 : vector<1x896xi1> to vector<4x896xi1>
    %90 = vector.broadcast %cst_86 : f32 to vector<4x896xf32>
    %91 = arith.select %89, %87, %90 : vector<4x896xi1>, vector<4x896xf32>
    %cst_87 = arith.constant dense<0.000000e+00> : vector<4xf32>
    %92 = vector.multi_reduction <add>, %91, %cst_87 [1] : vector<4x896xf32> to vector<4xf32>
    %93 = vector.shape_cast %92 : vector<4xf32> to vector<4x1xf32>
    %c0_88 = arith.constant 0 : index
    %c0_89 = arith.constant 0 : index
    %c0_90 = arith.constant 0 : index
    %94 = vector.load %arg8[%c0_88, %c0_89, %c0_90] : memref<1x4x2xf32, #tpu.memory_space<vmem>>, vector<1x4x1xf32>
    %95 = vector.shape_cast %94 : vector<1x4x1xf32> to vector<4x1xf32>
    %96 = vector.shape_cast %93 : vector<4x1xf32> to vector<1x4x1xf32>
    tpu.vector_store %arg8[%c0_88, %c0_89, %c0_90], %96 {strides = array<i32>} : memref<1x4x2xf32, #tpu.memory_space<vmem>>, vector<1x4x1xf32>,
    %97 = arith.mulf %91, %91 : vector<4x896xf32>
    %cst_91 = arith.constant dense<0.000000e+00> : vector<4xf32>
    %98 = vector.multi_reduction <add>, %97, %cst_91 [1] : vector<4x896xf32> to vector<4xf32>
    %99 = vector.shape_cast %98 : vector<4xf32> to vector<4x1xf32>
    %c0_92 = arith.constant 0 : index
    %c0_93 = arith.constant 0 : index
    %c1_94 = arith.constant 1 : index
    %100 = vector.load %arg8[%c0_92, %c0_93, %c1_94] : memref<1x4x2xf32, #tpu.memory_space<vmem>>, vector<1x4x1xf32>
    %101 = vector.shape_cast %100 : vector<1x4x1xf32> to vector<4x1xf32>
    %102 = vector.shape_cast %99 : vector<4x1xf32> to vector<1x4x1xf32>
    tpu.vector_store %arg8[%c0_92, %c0_93, %c1_94], %102 {strides = array<i32>} : memref<1x4x2xf32, #tpu.memory_space<vmem>>, vector<1x4x1xf32>,
    %c0_95 = arith.constant 0 : index
    %c0_96 = arith.constant 0 : index
    %c0_97 = arith.constant 0 : index
    %103 = vector.load %arg7[%c0_95, %c0_96, %c0_97] : memref<1x4x896xf32, #tpu.memory_space<vmem>>, vector<1x4x896xf32>
    %104 = vector.shape_cast %103 : vector<1x4x896xf32> to vector<4x896xf32>
    %105 = vector.shape_cast %91 : vector<4x896xf32> to vector<1x4x896xf32>
    tpu.vector_store %arg7[%c0_95, %c0_96, %c0_97], %105 {strides = array<i32>} : memref<1x4x896xf32, #tpu.memory_space<vmem>>, vector<1x4x896xf32>,
    return
  }
  func.func @transform_0(%arg0: i32) -> (i32, i32, i32) {
    %c0_i32 = arith.constant 0 : i32
    %c0_i32_0 = arith.constant 0 : i32
    %c0_i32_1 = arith.constant 0 : i32
    return %arg0, %c0_i32, %c0_i32_0 : i32, i32, i32
  }
  func.func @transform_1(%arg0: i32) -> (i32, i32) {
    %c0_i32 = arith.constant 0 : i32
    %c0_i32_0 = arith.constant 0 : i32
    %c0_i32_1 = arith.constant 0 : i32
    return %c0_i32, %c0_i32_0 : i32, i32
  }
  func.func @transform_2(%arg0: i32) -> (i32, i32) {
    %c0_i32 = arith.constant 0 : i32
    %c0_i32_0 = arith.constant 0 : i32
    %c0_i32_1 = arith.constant 0 : i32
    return %c0_i32, %c0_i32_0 : i32, i32
  }
  func.func @transform_3(%arg0: i32) -> (i32, i32) {
    %c0_i32 = arith.constant 0 : i32
    %c0_i32_0 = arith.constant 0 : i32
    %c0_i32_1 = arith.constant 0 : i32
    return %c0_i32, %c0_i32_0 : i32, i32
  }
  func.func @transform_4(%arg0: i32) -> (i32, i32) {
    %c0_i32 = arith.constant 0 : i32
    %c0_i32_0 = arith.constant 0 : i32
    %c0_i32_1 = arith.constant 0 : i32
    return %c0_i32, %c0_i32_0 : i32, i32
  }
  func.func @transform_5(%arg0: i32) -> (i32, i32) {
    %c0_i32 = arith.constant 0 : i32
    %c0_i32_0 = arith.constant 0 : i32
    %c0_i32_1 = arith.constant 0 : i32
    return %c0_i32, %c0_i32_0 : i32, i32
  }
  func.func @transform_6(%arg0: i32) -> (i32, i32, i32) {
    %c0_i32 = arith.constant 0 : i32
    %c0_i32_0 = arith.constant 0 : i32
    %c0_i32_1 = arith.constant 0 : i32
    return %arg0, %c0_i32, %c0_i32_0 : i32, i32, i32
  }
  func.func @transform_7(%arg0: i32) -> (i32, i32, i32) {
    %c0_i32 = arith.constant 0 : i32
    %c0_i32_0 = arith.constant 0 : i32
    %c0_i32_1 = arith.constant 0 : i32
    return %arg0, %c0_i32, %c0_i32_0 : i32, i32, i32
  }
}

</mosaic_0001>

<llo_original>
// kernel: up_forward.3
$region0: #{up_forward.3}
  #allocation0 [shape = 'u32[]', space=smem, size = 0x4, offset = 0x4, fixed_abs, tag = 'smem constant byte address 0x4 - core index']
  #allocation1 [shape = 'u32[144,128]{1,0:T(1,128)}', space=vmem, size = 0x12000, scoped, tag = 'internal scratch']
  #allocation2 [shape = 'bf16[4,1024]{1,0:T(4,128)(2,1)}', space=vmem, size = 0x2000, scoped, tag = 'scratch operand']
  #allocation3 [shape = 'bf16[128,1024]{1,0:T(16,128)(2,1)}', space=vmem, size = 0x40000, scoped, tag = 'scratch operand']
  %s0 = inlined_call_operand.vmem [shape: bf16[2,4,896], index: 0, kind: input, shape index: {}]
  %s1 = inlined_call_operand.vmem [shape: f32[4,1], index: 1, kind: input, shape index: {}]
  %s2 = inlined_call_operand.vmem [shape: f32[4,1], index: 2, kind: input, shape index: {}]
  %s3 = inlined_call_operand.vmem [shape: bf16[4,128], index: 3, kind: input, shape index: {}]
  %s4 = inlined_call_operand.vmem [shape: f32[4,1], index: 4, kind: input, shape index: {}]
  %s5 = inlined_call_operand.vmem [shape: f32[1,896], index: 5, kind: input, shape index: {}]
  %s6 = inlined_call_operand.vmem [shape: f32[2,4,896], index: 6, kind: output, shape index: {0}]
  %s7 = inlined_call_operand.vmem [shape: f32[2,4,2], index: 7, kind: output, shape index: {1}]
  %8 = xla_tuple %s6, %s7
  %s9 = sld [smem:[#allocation0]]
  $region65: #{up_forward.3} parent=0
    _
  %s11 = ssub.s32 1, %s9
  %s12 = scalar_select 0, %s11, %s9
  loop: start=0, step=1, limit=4
  $region2: #{up_forward.3} parent=0 // loop_pre_header
    _
  $region3: #{up_forward.3} parent=0 // loop_header
    %s14 = sphi 0, %s18
    %p15 = scmp.ge.s32.totalorder %s14, 4
    %s24 = sphi 0, %s26
    %s27 = sphi 0, %s24
    %s28 = sphi 0, %s27
    %s44 = sphi 0, %s28
    %s48 = sphi 0, %s48
    %s50 = sphi 0, %s48
    %s51 = sphi 0, %s50
    %s65 = sphi 0, %s51
    %s69 = sphi 0, %s69
    %s71 = sphi 0, %s69
    %s72 = sphi 0, %s71
    %s86 = sphi 0, %s72
    %s90 = sphi 0, %s90
    %s92 = sphi 0, %s90
    %s93 = sphi 0, %s92
    %s107 = sphi 0, %s93
    %s111 = sphi 0, %s111
    %s113 = sphi 0, %s111
    %s114 = sphi 0, %s113
    %s128 = sphi 0, %s114
    %s132 = sphi 0, %s132
    %s134 = sphi 0, %s132
    %s135 = sphi 0, %s134
    %s149 = sphi 0, %s135
    %s155 = sphi 0, %s157
    %s158 = sphi 0, %s155
    %s159 = sphi 0, %s158
    %s175 = sphi 0, %s159
    %s181 = sphi 0, %s183
    %s184 = sphi 0, %s181
    %s185 = sphi 0, %s184
    %s201 = sphi 0, %s185
  $region4: #{up_forward.3} parent=0 // loop_header_branch
    %17 = sbr.rel (%p15) target = $region8
  $region5: #{up_forward.3} parent=0 // loop_body
    %s19 = ssub.s32 %s14, 1
    %s20 = ssub.s32 %s14, 2
    %s21 = sadd.s32 %s14, 1
    %s22 = ssub.s32 %s14, %s21
    %p23 = scmp.eq.s32.totalorder %s22, 0
    %s25 = sadd.s32 %s24, 1
    %s26 = scalar_select %p23, %s24, %s25
    %p29 = pneg %p23
    %p30 = scmp.eq.s32.totalorder %s14, 1
    %p31 = por %p29, %p30
    %p32 = scmp.ne.s32.totalorder %s24, %s27
    %p33 = scmp.eq.s32.totalorder %s14, 0
    %p34 = por %p32, %p33
    %p35 = scmp.ne.s32.totalorder %s24, %s27
    %p36 = scmp.eq.s32.totalorder %s19, 1
    %p37 = por %p35, %p36
    %p38 = scmp.ne.s32.totalorder %s27, %s28
    %p39 = scmp.eq.s32.totalorder %s19, 0
    %p40 = por %p38, %p39
    %p41 = scmp.ne.s32.totalorder %s27, %s28
    %p42 = scmp.eq.s32.totalorder %s20, 1
    %p43 = por %p41, %p42
    %p45 = scmp.ne.s32.totalorder %s28, %s44
    %p46 = scmp.eq.s32.totalorder %s20, 0
    %p47 = por %p45, %p46
    %s49 = sadd.s32 %s48, 1
    %p52 = scmp.eq.s32.totalorder %s14, 1
    %p53 = scmp.ne.s32.totalorder %s48, %s50
    %p54 = scmp.eq.s32.totalorder %s14, 0
    %p55 = por %p53, %p54
    %p56 = scmp.ne.s32.totalorder %s48, %s50
    %p57 = scmp.eq.s32.totalorder %s19, 1
    %p58 = por %p56, %p57
    %p59 = scmp.ne.s32.totalorder %s50, %s51
    %p60 = scmp.eq.s32.totalorder %s19, 0
    %p61 = por %p59, %p60
    %p62 = scmp.ne.s32.totalorder %s50, %s51
    %p63 = scmp.eq.s32.totalorder %s20, 1
    %p64 = por %p62, %p63
    %p66 = scmp.ne.s32.totalorder %s51, %s65
    %p67 = scmp.eq.s32.totalorder %s20, 0
    %p68 = por %p66, %p67
    %s70 = sadd.s32 %s69, 1
    %p73 = scmp.eq.s32.totalorder %s14, 1
    %p74 = scmp.ne.s32.totalorder %s69, %s71
    %p75 = scmp.eq.s32.totalorder %s14, 0
    %p76 = por %p74, %p75
    %p77 = scmp.ne.s32.totalorder %s69, %s71
    %p78 = scmp.eq.s32.totalorder %s19, 1
    %p79 = por %p77, %p78
    %p80 = scmp.ne.s32.totalorder %s71, %s72
    %p81 = scmp.eq.s32.totalorder %s19, 0
    %p82 = por %p80, %p81
    %p83 = scmp.ne.s32.totalorder %s71, %s72
    %p84 = scmp.eq.s32.totalorder %s20, 1
    %p85 = por %p83, %p84
    %p87 = scmp.ne.s32.totalorder %s72, %s86
    %p88 = scmp.eq.s32.totalorder %s20, 0
    %p89 = por %p87, %p88
    %s91 = sadd.s32 %s90, 1
    %p94 = scmp.eq.s32.totalorder %s14, 1
    %p95 = scmp.ne.s32.totalorder %s90, %s92
    %p96 = scmp.eq.s32.totalorder %s14, 0
    %p97 = por %p95, %p96
    %p98 = scmp.ne.s32.totalorder %s90, %s92
    %p99 = scmp.eq.s32.totalorder %s19, 1
    %p100 = por %p98, %p99
    %p101 = scmp.ne.s32.totalorder %s92, %s93
    %p102 = scmp.eq.s32.totalorder %s19, 0
    %p103 = por %p101, %p102
    %p104 = scmp.ne.s32.totalorder %s92, %s93
    %p105 = scmp.eq.s32.totalorder %s20, 1
    %p106 = por %p104, %p105
    %p108 = scmp.ne.s32.totalorder %s93, %s107
    %p109 = scmp.eq.s32.totalorder %s20, 0
    %p110 = por %p108, %p109
    %s112 = sadd.s32 %s111, 1
    %p115 = scmp.eq.s32.totalorder %s14, 1
    %p116 = scmp.ne.s32.totalorder %s111, %s113
    %p117 = scmp.eq.s32.totalorder %s14, 0
    %p118 = por %p116, %p117
    %p119 = scmp.ne.s32.totalorder %s111, %s113
    %p120 = scmp.eq.s32.totalorder %s19, 1
    %p121 = por %p119, %p120
    %p122 = scmp.ne.s32.totalorder %s113, %s114
    %p123 = scmp.eq.s32.totalorder %s19, 0
    %p124 = por %p122, %p123
    %p125 = scmp.ne.s32.totalorder %s113, %s114
    %p126 = scmp.eq.s32.totalorder %s20, 1
    %p127 = por %p125, %p126
    %p129 = scmp.ne.s32.totalorder %s114, %s128
    %p130 = scmp.eq.s32.totalorder %s20, 0
    %p131 = por %p129, %p130
    %s133 = sadd.s32 %s132, 1
    %p136 = scmp.eq.s32.totalorder %s14, 1
    %p137 = scmp.ne.s32.totalorder %s132, %s134
    %p138 = scmp.eq.s32.totalorder %s14, 0
    %p139 = por %p137, %p138
    %p140 = scmp.ne.s32.totalorder %s132, %s134
    %p141 = scmp.eq.s32.totalorder %s19, 1
    %p142 = por %p140, %p141
    %p143 = scmp.ne.s32.totalorder %s134, %s135
    %p144 = scmp.eq.s32.totalorder %s19, 0
    %p145 = por %p143, %p144
    %p146 = scmp.ne.s32.totalorder %s134, %s135
    %p147 = scmp.eq.s32.totalorder %s20, 1
    %p148 = por %p146, %p147
    %p150 = scmp.ne.s32.totalorder %s135, %s149
    %p151 = scmp.eq.s32.totalorder %s20, 0
    %p152 = por %p150, %p151
    %s153 = ssub.s32 %s14, %s21
    %p154 = scmp.eq.s32.totalorder %s153, 0
    %s156 = sadd.s32 %s155, 1
    %s157 = scalar_select %p154, %s155, %s156
    %p160 = pneg %p154
    %p161 = scmp.eq.s32.totalorder %s14, 1
    %p162 = por %p160, %p161
    %p163 = scmp.ne.s32.totalorder %s155, %s158
    %p164 = scmp.eq.s32.totalorder %s14, 0
    %p165 = por %p163, %p164
    %p166 = scmp.ne.s32.totalorder %s155, %s158
    %p167 = scmp.eq.s32.totalorder %s19, 1
    %p168 = por %p166, %p167
    %p169 = scmp.ne.s32.totalorder %s158, %s159
    %p170 = scmp.eq.s32.totalorder %s19, 0
    %p171 = por %p169, %p170
    %p172 = scmp.ne.s32.totalorder %s158, %s159
    %p173 = scmp.eq.s32.totalorder %s20, 1
    %p174 = por %p172, %p173
    %p176 = scmp.ne.s32.totalorder %s159, %s175
    %p177 = scmp.eq.s32.totalorder %s20, 0
    %p178 = por %p176, %p177
    %s179 = ssub.s32 %s14, %s21
    %p180 = scmp.eq.s32.totalorder %s179, 0
    %s182 = sadd.s32 %s181, 1
    %s183 = scalar_select %p180, %s181, %s182
    %p186 = pneg %p180
    %p187 = scmp.eq.s32.totalorder %s14, 1
    %p188 = por %p186, %p187
    %p189 = scmp.ne.s32.totalorder %s181, %s184
    %p190 = scmp.eq.s32.totalorder %s14, 0
    %p191 = por %p189, %p190
    %p192 = scmp.ne.s32.totalorder %s181, %s184
    %p193 = scmp.eq.s32.totalorder %s19, 1
    %p194 = por %p192, %p193
    %p195 = scmp.ne.s32.totalorder %s184, %s185
    %p196 = scmp.eq.s32.totalorder %s19, 0
    %p197 = por %p195, %p196
    %p198 = scmp.ne.s32.totalorder %s184, %s185
    %p199 = scmp.eq.s32.totalorder %s20, 1
    %p200 = por %p198, %p199
    %p202 = scmp.ne.s32.totalorder %s185, %s201
    %p203 = scmp.eq.s32.totalorder %s20, 0
    %p204 = por %p202, %p203
    %p205 = scmp.le.s32.totalorder 1, %s14
    %p206 = scmp.lt.s32.totalorder %s14, 3
    %p207 = pnand %p205, %p206
    %p208 = pneg %p207
    // Predicated region
    $region9: #{up_forward.3} parent=5 // pred_check
      _
    $region10: #{up_forward.3} parent=5 // pred_check_branch
      %210 = sbr.rel (%p207) target = $region12
    $region11: #{up_forward.3} parent=5 // pred_region
      %s211 = ssub.s32 %s14, 1
      // Predicated region
      $region13: #{up_forward.3} parent=11 // pred_check
        %p212 = pneg %p61
      $region14: #{up_forward.3} parent=11 // pred_check_branch
        %214 = sbr.rel (%p212) target = $region16
      $region15: #{up_forward.3} parent=11 // pred_region
        _
      $region16: #{up_forward.3} parent=11 // pred_fallthru
        _
      // Predicated region
      $region17: #{up_forward.3} parent=11 // pred_check
        %p215 = pneg %p82
      $region18: #{up_forward.3} parent=11 // pred_check_branch
        %217 = sbr.rel (%p215) target = $region20
      $region19: #{up_forward.3} parent=11 // pred_region
        _
      $region20: #{up_forward.3} parent=11 // pred_fallthru
        _
      // Predicated region
      $region21: #{up_forward.3} parent=11 // pred_check
        %p218 = pneg %p103
      $region22: #{up_forward.3} parent=11 // pred_check_branch
        %220 = sbr.rel (%p218) target = $region24
      $region23: #{up_forward.3} parent=11 // pred_region
        _
      $region24: #{up_forward.3} parent=11 // pred_fallthru
        _
      // Predicated region
      $region25: #{up_forward.3} parent=11 // pred_check
        %p221 = pneg %p124
      $region26: #{up_forward.3} parent=11 // pred_check_branch
        %223 = sbr.rel (%p221) target = $region28
      $region27: #{up_forward.3} parent=11 // pred_region
        _
      $region28: #{up_forward.3} parent=11 // pred_fallthru
        _
      // Predicated region
      $region29: #{up_forward.3} parent=11 // pred_check
        %p224 = pneg %p145
      $region30: #{up_forward.3} parent=11 // pred_check_branch
        %226 = sbr.rel (%p224) target = $region32
      $region31: #{up_forward.3} parent=11 // pred_region
        _
      $region32: #{up_forward.3} parent=11 // pred_fallthru
        _
    $region12: #{up_forward.3} parent=5 // pred_fallthru
      _
    %p227 = scmp.lt.s32.totalorder %s14, 2
    // Predicated region
    $region33: #{up_forward.3} parent=5 // pred_check
      %p228 = pneg %p227
    $region34: #{up_forward.3} parent=5 // pred_check_branch
      %230 = sbr.rel (%p228) target = $region36
    $region35: #{up_forward.3} parent=5 // pred_region
      // Predicated region
      $region37: #{up_forward.3} parent=35 // pred_check
        %p231 = pneg %p34
      $region38: #{up_forward.3} parent=35 // pred_check_branch
        %233 = sbr.rel (%p231) target = $region40
      $region39: #{up_forward.3} parent=35 // pred_region
        %p234 = scmp.lt.s32.totalorder %s14, 1
        %s235 = scalar_select %p234, %s14, 1
        %s236 = smul.addr %s235, 7
        %s237 = smul.addr %s236, 2
        %s238 = scalar_lea.vmem %s0, %s237
      $region40: #{up_forward.3} parent=35 // pred_fallthru
        _
    $region36: #{up_forward.3} parent=5 // pred_fallthru
      _
    %p239 = scmp.le.s32.totalorder 1, %s14
    %p240 = scmp.lt.s32.totalorder %s14, 3
    %p241 = pnand %p239, %p240
    %p242 = pneg %p241
    // Predicated region
    $region41: #{up_forward.3} parent=5 // pred_check
      _
    $region42: #{up_forward.3} parent=5 // pred_check_branch
      %244 = sbr.rel (%p241) target = $region44
    $region43: #{up_forward.3} parent=5 // pred_region
      %s245 = ssub.s32 %s14, 1
      %p246 = scmp.lt.s32.totalorder %s19, 1
      %s247 = scalar_select %p246, %s19, 1
      %s248 = smul.addr %s247, 7
      %s249 = smul.addr %s248, 2
      %s250 = scalar_lea.vmem %s0, %s249
      %p251 = pneg %p40
      %p252 = pneg %p37
      %p253 = pneg %p61
      %p254 = pneg %p58
      %p255 = pneg %p82
      %p256 = pneg %p79
      %p257 = pneg %p103
      %p258 = pneg %p100
      %p259 = pneg %p124
      %p260 = pneg %p121
      %p261 = pneg %p145
      %p262 = pneg %p142
      %p263 = pneg %p171
      %p264 = pneg %p168
      %p265 = scmp.lt.s32.totalorder %s19, 1
      %s266 = scalar_select %p265, %s19, 1
      %s267 = smul.addr %s266, 7
      %s268 = smul.addr %s267, 4
      %s269 = scalar_lea.vmem %s6, %s268
      %p270 = pneg %p197
      %p271 = pneg %p194
      %p272 = scmp.lt.s32.totalorder %s19, 1
      %s273 = scalar_select %p272, %s19, 1
      %s274 = smul.addr %s273, 4
      %s275 = scalar_lea.vmem %s7, %s274
      %p276 = scmp.lt.s32.totalorder %s19, 1
      %s277 = scalar_select %p276, %s19, 1
      %s278 = smul.addr %s277, 7
      %s279 = smul.addr %s278, 2
      %s280 = scalar_lea.vmem %s0, %s279
      %p281 = scmp.lt.s32.totalorder %s19, 1
      %s282 = scalar_select %p281, %s19, 1
      %s283 = smul.addr %s282, 7
      %s284 = smul.addr %s283, 4
      %s285 = scalar_lea.vmem %s6, %s284
      %p286 = scmp.lt.s32.totalorder %s19, 1
      %s287 = scalar_select %p286, %s19, 1
      %s288 = smul.addr %s287, 4
      %s289 = scalar_lea.vmem %s7, %s288
      %v291 = vld [vmem:[%s280] sm:$0xff]
      %v292 = vld [vmem:[%s280 + $0x8] sm:$0x3f]
      %v293 = vunpack.c.l.bf16 %v291
      %v294 = vunpack.c.h.bf16 %v291
      %v295 = vunpack.c.l.bf16 %v292
      %v296 = vunpack.c.h.bf16 %v292
      %v297 = vld [vmem:[%s1] sm:$0xf]
      %299 = vset.pattern.permute.xlu0 0
      %300 = vperm.xlu0 %299, %v297
      %v301 = vpop.permute.xlu0 %300
      %v303 = vunpack.c.l.s4 839922192
      %v304 = vunpack.c.0.s8 %v303
      %v305 = vlaneseq
      %v306 = vshrl.u32 %v305, 7
      %v307 = vsub.s32 %v304, %v306
      %v308 = vrot.slane %v301, %v307
      %v310 = vmul.f32 %v293, %v308
      %v311 = vmul.f32 %v294, %v308
      %v312 = vmul.f32 %v295, %v308
      %v313 = vmul.f32 %v296, %v308
      %v314 = vld [vmem:[%s2] sm:$0xf]
      %316 = vset.pattern.permute.xlu0 0
      %317 = vperm.xlu0 %316, %v314
      %v318 = vpop.permute.xlu0 %317
      %v320 = vunpack.c.l.s4 839922192
      %v321 = vunpack.c.0.s8 %v320
      %v322 = vlaneseq
      %v323 = vshrl.u32 %v322, 7
      %v324 = vsub.s32 %v321, %v323
      %v325 = vrot.slane %v318, %v324
      %v327 = vadd.f32 %v310, %v325
      %v328 = vadd.f32 %v311, %v325
      %v329 = vadd.f32 %v312, %v325
      %v330 = vadd.f32 %v313, %v325
      %v331 = vmax.f32 %v327, 0.0
      %v332 = vmax.f32 %v328, 0.0
      %v333 = vmax.f32 %v329, 0.0
      %v334 = vmax.f32 %v330, 0.0
      %v335 = vld [vmem:[%s5] sm:$0xff]
      %vm336 = vcmp.gt.f32.partialorder %v335, 0.0
      %v337 = vsel %vm336, 1, 0
      %v338 = vlaneseq
      %v339 = vshrl.u32 %v338, 7
      %v340 = vsub.s32 0, %v339
      %v341 = vrot.slane %v337, %v340
      %v342 = vlaneseq
      %v343 = vshrl.u32 %v342, 7
      %v344 = vsub.s32 1, %v343
      %v345 = vrot.slane %v337, %v344
      %v346 = vlaneseq
      %v347 = vshrl.u32 %v346, 7
      %v348 = vsub.s32 2, %v347
      %v349 = vrot.slane %v337, %v348
      %v350 = vlaneseq
      %v351 = vshrl.u32 %v350, 7
      %v352 = vsub.s32 3, %v351
      %v353 = vrot.slane %v337, %v352
      %v354 = vlaneseq
      %v355 = vshrl.u32 %v354, 7
      %v356 = vsub.s32 4, %v355
      %v357 = vrot.slane %v337, %v356
      %v358 = vlaneseq
      %v359 = vshrl.u32 %v358, 7
      %v360 = vsub.s32 5, %v359
      %v361 = vrot.slane %v337, %v360
      %v362 = vlaneseq
      %v363 = vshrl.u32 %v362, 7
      %v364 = vsub.s32 6, %v363
      %v365 = vrot.slane %v337, %v364
      %vm366 = vcmp.eq.s32.totalorder %v341, 1
      %vm367 = vcmp.eq.s32.totalorder %v345, 1
      %vm368 = vcmp.eq.s32.totalorder %v349, 1
      %vm369 = vcmp.eq.s32.totalorder %v353, 1
      %vm370 = vcmp.eq.s32.totalorder %v357, 1
      %vm371 = vcmp.eq.s32.totalorder %v361, 1
      %vm372 = vcmp.eq.s32.totalorder %v365, 1
      %v376 = vcombine.high %v331, %v331
      %v377 = vcombine.high %v332, %v332
      %v378 = vcombine.high %v333, %v333
      %v382 = vsel %vm366, %v331, 0.0
      %v383 = vsel %vm367, %v376, 0.0
      %v384 = vsel %vm368, %v332, 0.0
      %v385 = vsel %vm369, %v377, 0.0
      %v386 = vsel %vm370, %v333, 0.0
      %v387 = vsel %vm371, %v378, 0.0
      %v388 = vsel %vm372, %v334, 0.0
      %389 = vst [vmem:[#allocation2] sm:$0xff] 0
      %390 = vst [vmem:[#allocation2 + $0x8] sm:$0xff] 0
      %v391 = vpack.c.bf16 %v382, %v382
      %v392 = vpack.c.bf16 %v383, %v383
      %v393 = vpack.c.bf16 %v384, %v384
      %v394 = vpack.c.bf16 %v385, %v385
      %v395 = vpack.c.bf16 %v386, %v386
      %v396 = vpack.c.bf16 %v387, %v387
      %v397 = vpack.c.bf16 %v388, %v388
      %v405 = vcombine.low %v391, %v392
      %v406 = vcombine.low %v393, %v394
      %v408 = vunpack.c.l.s4 1983009808
      %v409 = vunpack.c.0.s8 %v408
      %v410 = vlaneseq
      %v411 = vshrl.u32 %v410, 7
      %v412 = vsub.s32 %v409, %v411
      %v413 = vrot.slane %v405, %v412
      %v415 = vunpack.c.l.s4 1983009808
      %v416 = vunpack.c.0.s8 %v415
      %v417 = vlaneseq
      %v418 = vshrl.u32 %v417, 7
      %v419 = vsub.s32 %v416, %v418
      %v420 = vrot.slane %v406, %v419
      %v421 = vcombine.low %v413, %v420
      %v422 = vcombine.low %v395, %v396
      %v424 = vunpack.c.l.s4 1983009808
      %v425 = vunpack.c.0.s8 %v424
      %v426 = vlaneseq
      %v427 = vshrl.u32 %v426, 7
      %v428 = vsub.s32 %v425, %v427
      %v429 = vrot.slane %v422, %v428
      %v431 = vunpack.c.l.s4 1983009808
      %v432 = vunpack.c.0.s8 %v431
      %v433 = vlaneseq
      %v434 = vshrl.u32 %v433, 7
      %v435 = vsub.s32 %v432, %v434
      %v436 = vrot.slane %v397, %v435
      %v437 = vcombine.low %v429, %v436
      %438 = vrot.lane.b32.xlu0 %v421, 111
      %v439 = vpop.permute.xlu0 %438
      %440 = vrot.lane.b32.xlu0 %v437, 111
      %v441 = vpop.permute.xlu0 %440
      %v442 = vrot.slane %v439, 6
      %v443 = vrot.slane %v441, 6
      %vm444 = vcmask 908288
      %v445 = vsel %vm444, %v442, %v439
      %vm446 = vcmask 1041408
      %v447 = vsel %vm446, %v442, %v443
      %v448 = vsel %vm444, %v447, %v441
      %vm451 = vcmask 1042296
      %vm452 = vcmask 1043458
      %vm453 = vmor %vm452, %vm451
      %vm454 = vcmask 1045508
      %vm455 = vmor %vm454, %vm453
      %vm456 = vcmask 1047558
      %vm457 = vmor %vm456, %vm455
      %458 = vst.msk [vmem:[#allocation2] sm:$0xff] %vm457, %v445
      %vm459 = vcmask 1041408
      %vm460 = vmor %vm452, %vm459
      %vm461 = vmor %vm454, %vm460
      %vm462 = vcmask 908294
      %vm463 = vmor %vm462, %vm461
      %464 = vst.msk [vmem:[#allocation2 + $0x8] sm:$0xff] %vm463, %v448
      %v465 = vld [vmem:[#allocation2] sm:$0xff]
      %v466 = vld [vmem:[#allocation2 + $0x8] sm:$0x3f]
      %v469 = vcombine.high %v465, %v465
      %v471 = vunpack.c.l.s4 1983009808
      %v472 = vunpack.c.0.s8 %v471
      %v473 = vlaneseq
      %v474 = vshrl.u32 %v473, 7
      %v475 = vsub.s32 %v472, %v474
      %v476 = vrot.slane %v465, %v475
      %v478 = vunpack.c.l.s4 1983009808
      %v479 = vunpack.c.0.s8 %v478
      %v480 = vlaneseq
      %v481 = vshrl.u32 %v480, 7
      %v482 = vsub.s32 %v479, %v481
      %v483 = vrot.slane %v469, %v482
      %v484 = vcombine.high %v476, %v476
      %v485 = vcombine.high %v483, %v483
      %v486 = vcombine.high %v466, %v466
      %v488 = vunpack.c.l.s4 1983009808
      %v489 = vunpack.c.0.s8 %v488
      %v490 = vlaneseq
      %v491 = vshrl.u32 %v490, 7
      %v492 = vsub.s32 %v489, %v491
      %v493 = vrot.slane %v466, %v492
      %v495 = vunpack.c.l.s4 1983009808
      %v496 = vunpack.c.0.s8 %v495
      %v497 = vlaneseq
      %v498 = vshrl.u32 %v497, 7
      %v499 = vsub.s32 %v496, %v498
      %v500 = vrot.slane %v486, %v499
      %v501 = vcombine.high %v493, %v493
      %509 = vst [vmem:[#allocation3] sm:$0x3] %v476
      %510 = vst [vmem:[#allocation3 + $0x8] sm:$0x3] %v484
      %511 = vst [vmem:[#allocation3 + $0x10] sm:$0x3] %v483
      %512 = vst [vmem:[#allocation3 + $0x18] sm:$0x3] %v485
      %513 = vst [vmem:[#allocation3 + $0x20] sm:$0x3] %v493
      %514 = vst [vmem:[#allocation3 + $0x28] sm:$0x3] %v501
      %vm515 = vcmask 254976
      %516 = vst.msk [vmem:[#allocation3 + $0x30] sm:$0x3] %vm515, %v500
      %v517 = vld [vmem:[#allocation2] sm:$0xff]
      %v518 = vld [vmem:[#allocation2 + $0x8] sm:$0x3f]
      %v521 = vcombine.low %v517, %v517
      %v523 = vunpack.c.l.s4 1983009808
      %v524 = vunpack.c.0.s8 %v523
      %v525 = vlaneseq
      %v526 = vshrl.u32 %v525, 7
      %v527 = vsub.s32 %v524, %v526
      %v528 = vrot.slane %v521, %v527
      %v530 = vunpack.c.l.s4 1983009808
      %v531 = vunpack.c.0.s8 %v530
      %v532 = vlaneseq
      %v533 = vshrl.u32 %v532, 7
      %v534 = vsub.s32 %v531, %v533
      %v535 = vrot.slane %v517, %v534
      %v536 = vcombine.high %v528, %v528
      %v537 = vcombine.high %v535, %v535
      %v538 = vcombine.low %v518, %v518
      %v540 = vunpack.c.l.s4 1983009808
      %v541 = vunpack.c.0.s8 %v540
      %v542 = vlaneseq
      %v543 = vshrl.u32 %v542, 7
      %v544 = vsub.s32 %v541, %v543
      %v545 = vrot.slane %v538, %v544
      %v547 = vunpack.c.l.s4 1983009808
      %v548 = vunpack.c.0.s8 %v547
      %v549 = vlaneseq
      %v550 = vshrl.u32 %v549, 7
      %v551 = vsub.s32 %v548, %v550
      %v552 = vrot.slane %v518, %v551
      %v553 = vcombine.high %v545, %v545
      %554 = vrot.lane.b32.xlu0 %v528, 127
      %v555 = vpop.permute.xlu0 %554
      %556 = vrot.lane.b32.xlu0 %v536, 127
      %v557 = vpop.permute.xlu0 %556
      %558 = vrot.lane.b32.xlu0 %v535, 127
      %v559 = vpop.permute.xlu0 %558
      %560 = vrot.lane.b32.xlu0 %v537, 127
      %v561 = vpop.permute.xlu0 %560
      %562 = vrot.lane.b32.xlu0 %v545, 127
      %v563 = vpop.permute.xlu0 %562
      %564 = vrot.lane.b32.xlu0 %v553, 127
      %v565 = vpop.permute.xlu0 %564
      %566 = vrot.lane.b32.xlu0 %v552, 127
      %v567 = vpop.permute.xlu0 %566
      %vm568 = vcmask 1039360
      %v569 = vsel %vm568, %v555, %v557
      %v570 = vsel %vm568, %v557, %v559
      %v571 = vsel %vm568, %v559, %v561
      %v572 = vsel %vm568, %v561, %v563
      %v573 = vsel %vm568, %v563, %v565
      %v574 = vsel %vm568, %v565, %v567
      %582 = vst [vmem:[#allocation3] sm:$0xc] %v569
      %583 = vst [vmem:[#allocation3 + $0x8] sm:$0xc] %v570
      %584 = vst [vmem:[#allocation3 + $0x10] sm:$0xc] %v571
      %585 = vst [vmem:[#allocation3 + $0x18] sm:$0xc] %v572
      %586 = vst [vmem:[#allocation3 + $0x20] sm:$0xc] %v573
      %587 = vst [vmem:[#allocation3 + $0x28] sm:$0xc] %v574
      %vm588 = vcmask 257026
      %589 = vst.msk [vmem:[#allocation3 + $0x30] sm:$0xc] %vm588, %v567
      %v590 = vld [vmem:[#allocation2] sm:$0xff]
      %v591 = vld [vmem:[#allocation2 + $0x8] sm:$0x3f]
      %v594 = vcombine.high %v590, %v590
      %v596 = vunpack.c.l.s4 1983009808
      %v597 = vunpack.c.0.s8 %v596
      %v598 = vlaneseq
      %v599 = vshrl.u32 %v598, 7
      %v600 = vsub.s32 %v597, %v599
      %v601 = vrot.slane %v590, %v600
      %v603 = vunpack.c.l.s4 1983009808
      %v604 = vunpack.c.0.s8 %v603
      %v605 = vlaneseq
      %v606 = vshrl.u32 %v605, 7
      %v607 = vsub.s32 %v604, %v606
      %v608 = vrot.slane %v594, %v607
      %v609 = vcombine.low %v601, %v601
      %v610 = vcombine.low %v608, %v608
      %v611 = vcombine.high %v591, %v591
      %v613 = vunpack.c.l.s4 1983009808
      %v614 = vunpack.c.0.s8 %v613
      %v615 = vlaneseq
      %v616 = vshrl.u32 %v615, 7
      %v617 = vsub.s32 %v614, %v616
      %v618 = vrot.slane %v591, %v617
      %v620 = vunpack.c.l.s4 1983009808
      %v621 = vunpack.c.0.s8 %v620
      %v622 = vlaneseq
      %v623 = vshrl.u32 %v622, 7
      %v624 = vsub.s32 %v621, %v623
      %v625 = vrot.slane %v611, %v624
      %v626 = vcombine.low %v618, %v618
      %v627 = vcombine.low %v625, %v625
      %628 = vrot.lane.b32.xlu0 %v609, 126
      %v629 = vpop.permute.xlu0 %628
      %630 = vrot.lane.b32.xlu0 %v601, 126
      %v631 = vpop.permute.xlu0 %630
      %632 = vrot.lane.b32.xlu0 %v610, 126
      %v633 = vpop.permute.xlu0 %632
      %634 = vrot.lane.b32.xlu0 %v608, 126
      %v635 = vpop.permute.xlu0 %634
      %636 = vrot.lane.b32.xlu0 %v626, 126
      %v637 = vpop.permute.xlu0 %636
      %638 = vrot.lane.b32.xlu0 %v618, 126
      %v639 = vpop.permute.xlu0 %638
      %640 = vrot.lane.b32.xlu0 %v627, 126
      %v641 = vpop.permute.xlu0 %640
      %vm642 = vcmask 1031168
      %v643 = vsel %vm642, %v629, %v631
      %v644 = vsel %vm642, %v631, %v633
      %v645 = vsel %vm642, %v633, %v635
      %v646 = vsel %vm642, %v635, %v637
      %v647 = vsel %vm642, %v637, %v639
      %v648 = vsel %vm642, %v639, %v641
      %656 = vst [vmem:[#allocation3] sm:$0x30] %v643
      %657 = vst [vmem:[#allocation3 + $0x8] sm:$0x30] %v644
      %658 = vst [vmem:[#allocation3 + $0x10] sm:$0x30] %v645
      %659 = vst [vmem:[#allocation3 + $0x18] sm:$0x30] %v646
      %660 = vst [vmem:[#allocation3 + $0x20] sm:$0x30] %v647
      %661 = vst [vmem:[#allocation3 + $0x28] sm:$0x30] %v648
      %vm662 = vcmask 259076
      %663 = vst.msk [vmem:[#allocation3 + $0x30] sm:$0x30] %vm662, %v641
      %v664 = vld [vmem:[#allocation2] sm:$0xff]
      %v665 = vld [vmem:[#allocation2 + $0x8] sm:$0x3f]
      %v668 = vcombine.low %v664, %v664
      %v670 = vunpack.c.l.s4 1983009808
      %v671 = vunpack.c.0.s8 %v670
      %v672 = vlaneseq
      %v673 = vshrl.u32 %v672, 7
      %v674 = vsub.s32 %v671, %v673
      %v675 = vrot.slane %v668, %v674
      %v677 = vunpack.c.l.s4 1983009808
      %v678 = vunpack.c.0.s8 %v677
      %v679 = vlaneseq
      %v680 = vshrl.u32 %v679, 7
      %v681 = vsub.s32 %v678, %v680
      %v682 = vrot.slane %v664, %v681
      %v683 = vcombine.low %v675, %v675
      %v684 = vcombine.low %v682, %v682
      %v685 = vcombine.low %v665, %v665
      %v687 = vunpack.c.l.s4 1983009808
      %v688 = vunpack.c.0.s8 %v687
      %v689 = vlaneseq
      %v690 = vshrl.u32 %v689, 7
      %v691 = vsub.s32 %v688, %v690
      %v692 = vrot.slane %v685, %v691
      %v694 = vunpack.c.l.s4 1983009808
      %v695 = vunpack.c.0.s8 %v694
      %v696 = vlaneseq
      %v697 = vshrl.u32 %v696, 7
      %v698 = vsub.s32 %v695, %v697
      %v699 = vrot.slane %v665, %v698
      %v700 = vcombine.low %v692, %v692
      %v701 = vcombine.low %v699, %v699
      %702 = vrot.lane.b32.xlu0 %v683, 118
      %v703 = vpop.permute.xlu0 %702
      %704 = vrot.lane.b32.xlu0 %v675, 118
      %v705 = vpop.permute.xlu0 %704
      %706 = vrot.lane.b32.xlu0 %v684, 118
      %v707 = vpop.permute.xlu0 %706
      %708 = vrot.lane.b32.xlu0 %v682, 118
      %v709 = vpop.permute.xlu0 %708
      %710 = vrot.lane.b32.xlu0 %v700, 118
      %v711 = vpop.permute.xlu0 %710
      %712 = vrot.lane.b32.xlu0 %v692, 118
      %v713 = vpop.permute.xlu0 %712
      %714 = vrot.lane.b32.xlu0 %v701, 118
      %v715 = vpop.permute.xlu0 %714
      %vm716 = vcmask 965632
      %v717 = vsel %vm716, %v703, %v705
      %v718 = vsel %vm716, %v705, %v707
      %v719 = vsel %vm716, %v707, %v709
      %v720 = vsel %vm716, %v709, %v711
      %v721 = vsel %vm716, %v711, %v713
      %v722 = vsel %vm716, %v713, %v715
      %730 = vst [vmem:[#allocation3] sm:$0xc0] %v717
      %731 = vst [vmem:[#allocation3 + $0x8] sm:$0xc0] %v718
      %732 = vst [vmem:[#allocation3 + $0x10] sm:$0xc0] %v719
      %733 = vst [vmem:[#allocation3 + $0x18] sm:$0xc0] %v720
      %734 = vst [vmem:[#allocation3 + $0x20] sm:$0xc0] %v721
      %735 = vst [vmem:[#allocation3 + $0x28] sm:$0xc0] %v722
      %vm736 = vcmask 261126
      %737 = vst.msk [vmem:[#allocation3 + $0x30] sm:$0xc0] %vm736, %v715
      %v738 = vld [vmem:[#allocation2] sm:$0xff]
      %v739 = vld [vmem:[#allocation2 + $0x8] sm:$0x3f]
      %v742 = vcombine.high %v738, %v738
      %v744 = vunpack.c.l.s4 1983009808
      %v745 = vunpack.c.0.s8 %v744
      %v746 = vlaneseq
      %v747 = vshrl.u32 %v746, 7
      %v748 = vsub.s32 %v745, %v747
      %v749 = vrot.slane %v738, %v748
      %v751 = vunpack.c.l.s4 1983009808
      %v752 = vunpack.c.0.s8 %v751
      %v753 = vlaneseq
      %v754 = vshrl.u32 %v753, 7
      %v755 = vsub.s32 %v752, %v754
      %v756 = vrot.slane %v742, %v755
      %v757 = vcombine.high %v749, %v749
      %v758 = vcombine.high %v756, %v756
      %v759 = vcombine.high %v739, %v739
      %v761 = vunpack.c.l.s4 1983009808
      %v762 = vunpack.c.0.s8 %v761
      %v763 = vlaneseq
      %v764 = vshrl.u32 %v763, 7
      %v765 = vsub.s32 %v762, %v764
      %v766 = vrot.slane %v739, %v765
      %v768 = vunpack.c.l.s4 1983009808
      %v769 = vunpack.c.0.s8 %v768
      %v770 = vlaneseq
      %v771 = vshrl.u32 %v770, 7
      %v772 = vsub.s32 %v769, %v771
      %v773 = vrot.slane %v759, %v772
      %v774 = vcombine.high %v766, %v766
      %775 = vrot.lane.b32.xlu0 %v749, 117
      %v776 = vpop.permute.xlu0 %775
      %777 = vrot.lane.b32.xlu0 %v757, 117
      %v778 = vpop.permute.xlu0 %777
      %779 = vrot.lane.b32.xlu0 %v756, 117
      %v780 = vpop.permute.xlu0 %779
      %781 = vrot.lane.b32.xlu0 %v758, 117
      %v782 = vpop.permute.xlu0 %781
      %783 = vrot.lane.b32.xlu0 %v766, 117
      %v784 = vpop.permute.xlu0 %783
      %785 = vrot.lane.b32.xlu0 %v774, 117
      %v786 = vpop.permute.xlu0 %785
      %787 = vrot.lane.b32.xlu0 %v773, 117
      %v788 = vpop.permute.xlu0 %787
      %vm789 = vcmask 957440
      %v790 = vsel %vm789, %v776, %v778
      %v791 = vsel %vm789, %v778, %v780
      %v792 = vsel %vm789, %v780, %v782
      %v793 = vsel %vm789, %v782, %v784
      %v794 = vsel %vm789, %v784, %v786
      %v795 = vsel %vm789, %v786, %v788
      %803 = vst [vmem:[#allocation3 + $0x40] sm:$0x3] %v790
      %804 = vst [vmem:[#allocation3 + $0x48] sm:$0x3] %v791
      %805 = vst [vmem:[#allocation3 + $0x50] sm:$0x3] %v792
      %806 = vst [vmem:[#allocation3 + $0x58] sm:$0x3] %v793
      %807 = vst [vmem:[#allocation3 + $0x60] sm:$0x3] %v794
      %808 = vst [vmem:[#allocation3 + $0x68] sm:$0x3] %v795
      %809 = vst.msk [vmem:[#allocation3 + $0x70] sm:$0x3] %vm515, %v788
      %v810 = vld [vmem:[#allocation2] sm:$0xff]
      %v811 = vld [vmem:[#allocation2 + $0x8] sm:$0x3f]
      %v814 = vcombine.low %v810, %v810
      %v816 = vunpack.c.l.s4 1983009808
      %v817 = vunpack.c.0.s8 %v816
      %v818 = vlaneseq
      %v819 = vshrl.u32 %v818, 7
      %v820 = vsub.s32 %v817, %v819
      %v821 = vrot.slane %v814, %v820
      %v823 = vunpack.c.l.s4 1983009808
      %v824 = vunpack.c.0.s8 %v823
      %v825 = vlaneseq
      %v826 = vshrl.u32 %v825, 7
      %v827 = vsub.s32 %v824, %v826
      %v828 = vrot.slane %v810, %v827
      %v829 = vcombine.high %v821, %v821
      %v830 = vcombine.high %v828, %v828
      %v831 = vcombine.low %v811, %v811
      %v833 = vunpack.c.l.s4 1983009808
      %v834 = vunpack.c.0.s8 %v833
      %v835 = vlaneseq
      %v836 = vshrl.u32 %v835, 7
      %v837 = vsub.s32 %v834, %v836
      %v838 = vrot.slane %v831, %v837
      %v840 = vunpack.c.l.s4 1983009808
      %v841 = vunpack.c.0.s8 %v840
      %v842 = vlaneseq
      %v843 = vshrl.u32 %v842, 7
      %v844 = vsub.s32 %v841, %v843
      %v845 = vrot.slane %v811, %v844
      %v846 = vcombine.high %v838, %v838
      %847 = vrot.lane.b32.xlu0 %v821, 116
      %v848 = vpop.permute.xlu0 %847
      %849 = vrot.lane.b32.xlu0 %v829, 116
      %v850 = vpop.permute.xlu0 %849
      %851 = vrot.lane.b32.xlu0 %v828, 116
      %v852 = vpop.permute.xlu0 %851
      %853 = vrot.lane.b32.xlu0 %v830, 116
      %v854 = vpop.permute.xlu0 %853
      %855 = vrot.lane.b32.xlu0 %v838, 116
      %v856 = vpop.permute.xlu0 %855
      %857 = vrot.lane.b32.xlu0 %v846, 116
      %v858 = vpop.permute.xlu0 %857
      %859 = vrot.lane.b32.xlu0 %v845, 116
      %v860 = vpop.permute.xlu0 %859
      %vm861 = vcmask 949248
      %v862 = vsel %vm861, %v848, %v850
      %v863 = vsel %vm861, %v850, %v852
      %v864 = vsel %vm861, %v852, %v854
      %v865 = vsel %vm861, %v854, %v856
      %v866 = vsel %vm861, %v856, %v858
      %v867 = vsel %vm861, %v858, %v860
      %875 = vst [vmem:[#allocation3 + $0x40] sm:$0xc] %v862
      %876 = vst [vmem:[#allocation3 + $0x48] sm:$0xc] %v863
      %877 = vst [vmem:[#allocation3 + $0x50] sm:$0xc] %v864
      %878 = vst [vmem:[#allocation3 + $0x58] sm:$0xc] %v865
      %879 = vst [vmem:[#allocation3 + $0x60] sm:$0xc] %v866
      %880 = vst [vmem:[#allocation3 + $0x68] sm:$0xc] %v867
      %881 = vst.msk [vmem:[#allocation3 + $0x70] sm:$0xc] %vm588, %v860
      %v882 = vld [vmem:[#allocation2] sm:$0xff]
      %v883 = vld [vmem:[#allocation2 + $0x8] sm:$0x3f]
      %v886 = vcombine.high %v882, %v882
      %v888 = vunpack.c.l.s4 1983009808
      %v889 = vunpack.c.0.s8 %v888
      %v890 = vlaneseq
      %v891 = vshrl.u32 %v890, 7
      %v892 = vsub.s32 %v889, %v891
      %v893 = vrot.slane %v882, %v892
      %v895 = vunpack.c.l.s4 1983009808
      %v896 = vunpack.c.0.s8 %v895
      %v897 = vlaneseq
      %v898 = vshrl.u32 %v897, 7
      %v899 = vsub.s32 %v896, %v898
      %v900 = vrot.slane %v886, %v899
      %v901 = vcombine.low %v893, %v893
      %v902 = vcombine.low %v900, %v900
      %v903 = vcombine.high %v883, %v883
      %v905 = vunpack.c.l.s4 1983009808
      %v906 = vunpack.c.0.s8 %v905
      %v907 = vlaneseq
      %v908 = vshrl.u32 %v907, 7
      %v909 = vsub.s32 %v906, %v908
      %v910 = vrot.slane %v883, %v909
      %v912 = vunpack.c.l.s4 1983009808
      %v913 = vunpack.c.0.s8 %v912
      %v914 = vlaneseq
      %v915 = vshrl.u32 %v914, 7
      %v916 = vsub.s32 %v913, %v915
      %v917 = vrot.slane %v903, %v916
      %v918 = vcombine.low %v910, %v910
      %v919 = vcombine.low %v917, %v917
      %920 = vrot.lane.b32.xlu0 %v901, 108
      %v921 = vpop.permute.xlu0 %920
      %922 = vrot.lane.b32.xlu0 %v893, 108
      %v923 = vpop.permute.xlu0 %922
      %924 = vrot.lane.b32.xlu0 %v902, 108
      %v925 = vpop.permute.xlu0 %924
      %926 = vrot.lane.b32.xlu0 %v900, 108
      %v927 = vpop.permute.xlu0 %926
      %928 = vrot.lane.b32.xlu0 %v918, 108
      %v929 = vpop.permute.xlu0 %928
      %930 = vrot.lane.b32.xlu0 %v910, 108
      %v931 = vpop.permute.xlu0 %930
      %932 = vrot.lane.b32.xlu0 %v919, 108
      %v933 = vpop.permute.xlu0 %932
      %vm934 = vcmask 883712
      %v935 = vsel %vm934, %v921, %v923
      %v936 = vsel %vm934, %v923, %v925
      %v937 = vsel %vm934, %v925, %v927
      %v938 = vsel %vm934, %v927, %v929
      %v939 = vsel %vm934, %v929, %v931
      %v940 = vsel %vm934, %v931, %v933
      %948 = vst [vmem:[#allocation3 + $0x40] sm:$0x30] %v935
      %949 = vst [vmem:[#allocation3 + $0x48] sm:$0x30] %v936
      %950 = vst [vmem:[#allocation3 + $0x50] sm:$0x30] %v937
      %951 = vst [vmem:[#allocation3 + $0x58] sm:$0x30] %v938
      %952 = vst [vmem:[#allocation3 + $0x60] sm:$0x30] %v939
      %953 = vst [vmem:[#allocation3 + $0x68] sm:$0x30] %v940
      %954 = vst.msk [vmem:[#allocation3 + $0x70] sm:$0x30] %vm662, %v933
      %v955 = vld [vmem:[#allocation2] sm:$0xff]
      %v956 = vld [vmem:[#allocation2 + $0x8] sm:$0x3f]
      %v959 = vcombine.low %v955, %v955
      %v961 = vunpack.c.l.s4 1983009808
      %v962 = vunpack.c.0.s8 %v961
      %v963 = vlaneseq
      %v964 = vshrl.u32 %v963, 7
      %v965 = vsub.s32 %v962, %v964
      %v966 = vrot.slane %v959, %v965
      %v968 = vunpack.c.l.s4 1983009808
      %v969 = vunpack.c.0.s8 %v968
      %v970 = vlaneseq
      %v971 = vshrl.u32 %v970, 7
      %v972 = vsub.s32 %v969, %v971
      %v973 = vrot.slane %v955, %v972
      %v974 = vcombine.low %v966, %v966
      %v975 = vcombine.low %v973, %v973
      %v976 = vcombine.low %v956, %v956
      %v978 = vunpack.c.l.s4 1983009808
      %v979 = vunpack.c.0.s8 %v978
      %v980 = vlaneseq
      %v981 = vshrl.u32 %v980, 7
      %v982 = vsub.s32 %v979, %v981
      %v983 = vrot.slane %v976, %v982
      %v985 = vunpack.c.l.s4 1983009808
      %v986 = vunpack.c.0.s8 %v985
      %v987 = vlaneseq
      %v988 = vshrl.u32 %v987, 7
      %v989 = vsub.s32 %v986, %v988
      %v990 = vrot.slane %v956, %v989
      %v991 = vcombine.low %v983, %v983
      %v992 = vcombine.low %v990, %v990
      %993 = vrot.lane.b32.xlu0 %v974, 107
      %v994 = vpop.permute.xlu0 %993
      %995 = vrot.lane.b32.xlu0 %v966, 107
      %v996 = vpop.permute.xlu0 %995
      %997 = vrot.lane.b32.xlu0 %v975, 107
      %v998 = vpop.permute.xlu0 %997
      %999 = vrot.lane.b32.xlu0 %v973, 107
      %v1000 = vpop.permute.xlu0 %999
      %1001 = vrot.lane.b32.xlu0 %v991, 107
      %v1002 = vpop.permute.xlu0 %1001
      %1003 = vrot.lane.b32.xlu0 %v983, 107
      %v1004 = vpop.permute.xlu0 %1003
      %1005 = vrot.lane.b32.xlu0 %v992, 107
      %v1006 = vpop.permute.xlu0 %1005
      %vm1007 = vcmask 875520
      %v1008 = vsel %vm1007, %v994, %v996
      %v1009 = vsel %vm1007, %v996, %v998
      %v1010 = vsel %vm1007, %v998, %v1000
      %v1011 = vsel %vm1007, %v1000, %v1002
      %v1012 = vsel %vm1007, %v1002, %v1004
      %v1013 = vsel %vm1007, %v1004, %v1006
      %1021 = vst [vmem:[#allocation3 + $0x40] sm:$0xc0] %v1008
      %1022 = vst [vmem:[#allocation3 + $0x48] sm:$0xc0] %v1009
      %1023 = vst [vmem:[#allocation3 + $0x50] sm:$0xc0] %v1010
      %1024 = vst [vmem:[#allocation3 + $0x58] sm:$0xc0] %v1011
      %1025 = vst [vmem:[#allocation3 + $0x60] sm:$0xc0] %v1012
      %1026 = vst [vmem:[#allocation3 + $0x68] sm:$0xc0] %v1013
      %1027 = vst.msk [vmem:[#allocation3 + $0x70] sm:$0xc0] %vm736, %v1006
      %v1028 = vld [vmem:[#allocation2] sm:$0xff]
      %v1029 = vld [vmem:[#allocation2 + $0x8] sm:$0x3f]
      %v1032 = vcombine.high %v1028, %v1028
      %v1034 = vunpack.c.l.s4 1983009808
      %v1035 = vunpack.c.0.s8 %v1034
      %v1036 = vlaneseq
      %v1037 = vshrl.u32 %v1036, 7
      %v1038 = vsub.s32 %v1035, %v1037
      %v1039 = vrot.slane %v1028, %v1038
      %v1041 = vunpack.c.l.s4 1983009808
      %v1042 = vunpack.c.0.s8 %v1041
      %v1043 = vlaneseq
      %v1044 = vshrl.u32 %v1043, 7
      %v1045 = vsub.s32 %v1042, %v1044
      %v1046 = vrot.slane %v1032, %v1045
      %v1047 = vcombine.high %v1039, %v1039
      %v1048 = vcombine.high %v1046, %v1046
      %v1049 = vcombine.high %v1029, %v1029
      %v1051 = vunpack.c.l.s4 1983009808
      %v1052 = vunpack.c.0.s8 %v1051
      %v1053 = vlaneseq
      %v1054 = vshrl.u32 %v1053, 7
      %v1055 = vsub.s32 %v1052, %v1054
      %v1056 = vrot.slane %v1029, %v1055
      %v1058 = vunpack.c.l.s4 1983009808
      %v1059 = vunpack.c.0.s8 %v1058
      %v1060 = vlaneseq
      %v1061 = vshrl.u32 %v1060, 7
      %v1062 = vsub.s32 %v1059, %v1061
      %v1063 = vrot.slane %v1049, %v1062
      %v1064 = vcombine.high %v1056, %v1056
      %1065 = vrot.lane.b32.xlu0 %v1039, 106
      %v1066 = vpop.permute.xlu0 %1065
      %1067 = vrot.lane.b32.xlu0 %v1047, 106
      %v1068 = vpop.permute.xlu0 %1067
      %1069 = vrot.lane.b32.xlu0 %v1046, 106
      %v1070 = vpop.permute.xlu0 %1069
      %1071 = vrot.lane.b32.xlu0 %v1048, 106
      %v1072 = vpop.permute.xlu0 %1071
      %1073 = vrot.lane.b32.xlu0 %v1056, 106
      %v1074 = vpop.permute.xlu0 %1073
      %1075 = vrot.lane.b32.xlu0 %v1064, 106
      %v1076 = vpop.permute.xlu0 %1075
      %1077 = vrot.lane.b32.xlu0 %v1063, 106
      %v1078 = vpop.permute.xlu0 %1077
      %vm1079 = vcmask 867328
      %v1080 = vsel %vm1079, %v1066, %v1068
      %v1081 = vsel %vm1079, %v1068, %v1070
      %v1082 = vsel %vm1079, %v1070, %v1072
      %v1083 = vsel %vm1079, %v1072, %v1074
      %v1084 = vsel %vm1079, %v1074, %v1076
      %v1085 = vsel %vm1079, %v1076, %v1078
      %1093 = vst [vmem:[#allocation3 + $0x80] sm:$0x3] %v1080
      %1094 = vst [vmem:[#allocation3 + $0x88] sm:$0x3] %v1081
      %1095 = vst [vmem:[#allocation3 + $0x90] sm:$0x3] %v1082
      %1096 = vst [vmem:[#allocation3 + $0x98] sm:$0x3] %v1083
      %1097 = vst [vmem:[#allocation3 + $0xa0] sm:$0x3] %v1084
      %1098 = vst [vmem:[#allocation3 + $0xa8] sm:$0x3] %v1085
      %1099 = vst.msk [vmem:[#allocation3 + $0xb0] sm:$0x3] %vm515, %v1078
      %v1100 = vld [vmem:[#allocation2] sm:$0xff]
      %v1101 = vld [vmem:[#allocation2 + $0x8] sm:$0xff]
      %v1104 = vcombine.low %v1100, %v1100
      %v1106 = vunpack.c.l.s4 1983009808
      %v1107 = vunpack.c.0.s8 %v1106
      %v1108 = vlaneseq
      %v1109 = vshrl.u32 %v1108, 7
      %v1110 = vsub.s32 %v1107, %v1109
      %v1111 = vrot.slane %v1104, %v1110
      %v1113 = vunpack.c.l.s4 1983009808
      %v1114 = vunpack.c.0.s8 %v1113
      %v1115 = vlaneseq
      %v1116 = vshrl.u32 %v1115, 7
      %v1117 = vsub.s32 %v1114, %v1116
      %v1118 = vrot.slane %v1100, %v1117
      %v1119 = vcombine.high %v1111, %v1111
      %v1120 = vcombine.high %v1118, %v1118
      %v1121 = vcombine.low %v1101, %v1101
      %v1123 = vunpack.c.l.s4 1983009808
      %v1124 = vunpack.c.0.s8 %v1123
      %v1125 = vlaneseq
      %v1126 = vshrl.u32 %v1125, 7
      %v1127 = vsub.s32 %v1124, %v1126
      %v1128 = vrot.slane %v1121, %v1127
      %v1130 = vunpack.c.l.s4 1983009808
      %v1131 = vunpack.c.0.s8 %v1130
      %v1132 = vlaneseq
      %v1133 = vshrl.u32 %v1132, 7
      %v1134 = vsub.s32 %v1131, %v1133
      %v1135 = vrot.slane %v1101, %v1134
      %v1136 = vcombine.high %v1128, %v1128
      %v1137 = vcombine.high %v1135, %v1135
      %1138 = vrot.lane.b32.xlu0 %v1111, 28
      %v1139 = vpop.permute.xlu0 %1138
      %1140 = vrot.lane.b32.xlu0 %v1119, 28
      %v1141 = vpop.permute.xlu0 %1140
      %1142 = vrot.lane.b32.xlu0 %v1118, 28
      %v1143 = vpop.permute.xlu0 %1142
      %1144 = vrot.lane.b32.xlu0 %v1120, 28
      %v1145 = vpop.permute.xlu0 %1144
      %1146 = vrot.lane.b32.xlu0 %v1128, 28
      %v1147 = vpop.permute.xlu0 %1146
      %1148 = vrot.lane.b32.xlu0 %v1136, 28
      %v1149 = vpop.permute.xlu0 %1148
      %1150 = vrot.lane.b32.xlu0 %v1135, 28
      %v1151 = vpop.permute.xlu0 %1150
      %1152 = vrot.lane.b32.xlu0 %v1137, 28
      %v1153 = vpop.permute.xlu0 %1152
      %vm1154 = vcmask 228352
      %v1155 = vsel %vm1154, %v1139, %v1141
      %v1156 = vsel %vm1154, %v1141, %v1143
      %v1157 = vsel %vm1154, %v1143, %v1145
      %v1158 = vsel %vm1154, %v1145, %v1147
      %v1159 = vsel %vm1154, %v1147, %v1149
      %v1160 = vsel %vm1154, %v1149, %v1151
      %v1161 = vsel %vm1154, %v1151, %v1153
      %1169 = vst [vmem:[#allocation3 + $0x80] sm:$0xc] %v1155
      %1170 = vst [vmem:[#allocation3 + $0x88] sm:$0xc] %v1156
      %1171 = vst [vmem:[#allocation3 + $0x90] sm:$0xc] %v1157
      %1172 = vst [vmem:[#allocation3 + $0x98] sm:$0xc] %v1158
      %1173 = vst [vmem:[#allocation3 + $0xa0] sm:$0xc] %v1159
      %1174 = vst [vmem:[#allocation3 + $0xa8] sm:$0xc] %v1160
      %1175 = vst.msk [vmem:[#allocation3 + $0xb0] sm:$0xc] %vm588, %v1161
      %v1176 = vld [vmem:[#allocation2] sm:$0xff]
      %v1177 = vld [vmem:[#allocation2 + $0x8] sm:$0xff]
      %v1180 = vcombine.high %v1176, %v1176
      %v1182 = vunpack.c.l.s4 1983009808
      %v1183 = vunpack.c.0.s8 %v1182
      %v1184 = vlaneseq
      %v1185 = vshrl.u32 %v1184, 7
      %v1186 = vsub.s32 %v1183, %v1185
      %v1187 = vrot.slane %v1176, %v1186
      %v1189 = vunpack.c.l.s4 1983009808
      %v1190 = vunpack.c.0.s8 %v1189
      %v1191 = vlaneseq
      %v1192 = vshrl.u32 %v1191, 7
      %v1193 = vsub.s32 %v1190, %v1192
      %v1194 = vrot.slane %v1180, %v1193
      %v1195 = vcombine.low %v1187, %v1187
      %v1196 = vcombine.low %v1194, %v1194
      %v1197 = vcombine.high %v1177, %v1177
      %v1199 = vunpack.c.l.s4 1983009808
      %v1200 = vunpack.c.0.s8 %v1199
      %v1201 = vlaneseq
      %v1202 = vshrl.u32 %v1201, 7
      %v1203 = vsub.s32 %v1200, %v1202
      %v1204 = vrot.slane %v1177, %v1203
      %v1206 = vunpack.c.l.s4 1983009808
      %v1207 = vunpack.c.0.s8 %v1206
      %v1208 = vlaneseq
      %v1209 = vshrl.u32 %v1208, 7
      %v1210 = vsub.s32 %v1207, %v1209
      %v1211 = vrot.slane %v1197, %v1210
      %v1212 = vcombine.low %v1204, %v1204
      %v1213 = vcombine.low %v1211, %v1211
      %1214 = vrot.lane.b32.xlu0 %v1195, 27
      %v1215 = vpop.permute.xlu0 %1214
      %1216 = vrot.lane.b32.xlu0 %v1187, 27
      %v1217 = vpop.permute.xlu0 %1216
      %1218 = vrot.lane.b32.xlu0 %v1196, 27
      %v1219 = vpop.permute.xlu0 %1218
      %1220 = vrot.lane.b32.xlu0 %v1194, 27
      %v1221 = vpop.permute.xlu0 %1220
      %1222 = vrot.lane.b32.xlu0 %v1212, 27
      %v1223 = vpop.permute.xlu0 %1222
      %1224 = vrot.lane.b32.xlu0 %v1204, 27
      %v1225 = vpop.permute.xlu0 %1224
      %1226 = vrot.lane.b32.xlu0 %v1213, 27
      %v1227 = vpop.permute.xlu0 %1226
      %1228 = vrot.lane.b32.xlu0 %v1211, 27
      %v1229 = vpop.permute.xlu0 %1228
      %vm1230 = vcmask 220160
      %v1231 = vsel %vm1230, %v1215, %v1217
      %v1232 = vsel %vm1230, %v1217, %v1219
      %v1233 = vsel %vm1230, %v1219, %v1221
      %v1234 = vsel %vm1230, %v1221, %v1223
      %v1235 = vsel %vm1230, %v1223, %v1225
      %v1236 = vsel %vm1230, %v1225, %v1227
      %v1237 = vsel %vm1230, %v1227, %v1229
      %1245 = vst [vmem:[#allocation3 + $0x80] sm:$0x30] %v1231
      %1246 = vst [vmem:[#allocation3 + $0x88] sm:$0x30] %v1232
      %1247 = vst [vmem:[#allocation3 + $0x90] sm:$0x30] %v1233
      %1248 = vst [vmem:[#allocation3 + $0x98] sm:$0x30] %v1234
      %1249 = vst [vmem:[#allocation3 + $0xa0] sm:$0x30] %v1235
      %1250 = vst [vmem:[#allocation3 + $0xa8] sm:$0x30] %v1236
      %1251 = vst.msk [vmem:[#allocation3 + $0xb0] sm:$0x30] %vm662, %v1237
      %v1252 = vld [vmem:[#allocation2] sm:$0xff]
      %v1253 = vld [vmem:[#allocation2 + $0x8] sm:$0xff]
      %v1256 = vcombine.low %v1252, %v1252
      %v1258 = vunpack.c.l.s4 1983009808
      %v1259 = vunpack.c.0.s8 %v1258
      %v1260 = vlaneseq
      %v1261 = vshrl.u32 %v1260, 7
      %v1262 = vsub.s32 %v1259, %v1261
      %v1263 = vrot.slane %v1256, %v1262
      %v1265 = vunpack.c.l.s4 1983009808
      %v1266 = vunpack.c.0.s8 %v1265
      %v1267 = vlaneseq
      %v1268 = vshrl.u32 %v1267, 7
      %v1269 = vsub.s32 %v1266, %v1268
      %v1270 = vrot.slane %v1252, %v1269
      %v1271 = vcombine.low %v1263, %v1263
      %v1272 = vcombine.low %v1270, %v1270
      %v1273 = vcombine.low %v1253, %v1253
      %v1275 = vunpack.c.l.s4 1983009808
      %v1276 = vunpack.c.0.s8 %v1275
      %v1277 = vlaneseq
      %v1278 = vshrl.u32 %v1277, 7
      %v1279 = vsub.s32 %v1276, %v1278
      %v1280 = vrot.slane %v1273, %v1279
      %v1282 = vunpack.c.l.s4 1983009808
      %v1283 = vunpack.c.0.s8 %v1282
      %v1284 = vlaneseq
      %v1285 = vshrl.u32 %v1284, 7
      %v1286 = vsub.s32 %v1283, %v1285
      %v1287 = vrot.slane %v1253, %v1286
      %v1288 = vcombine.low %v1280, %v1280
      %v1289 = vcombine.low %v1287, %v1287
      %1290 = vrot.lane.b32.xlu0 %v1271, 26
      %v1291 = vpop.permute.xlu0 %1290
      %1292 = vrot.lane.b32.xlu0 %v1263, 26
      %v1293 = vpop.permute.xlu0 %1292
      %1294 = vrot.lane.b32.xlu0 %v1272, 26
      %v1295 = vpop.permute.xlu0 %1294
      %1296 = vrot.lane.b32.xlu0 %v1270, 26
      %v1297 = vpop.permute.xlu0 %1296
      %1298 = vrot.lane.b32.xlu0 %v1288, 26
      %v1299 = vpop.permute.xlu0 %1298
      %1300 = vrot.lane.b32.xlu0 %v1280, 26
      %v1301 = vpop.permute.xlu0 %1300
      %1302 = vrot.lane.b32.xlu0 %v1289, 26
      %v1303 = vpop.permute.xlu0 %1302
      %1304 = vrot.lane.b32.xlu0 %v1287, 26
      %v1305 = vpop.permute.xlu0 %1304
      %vm1306 = vcmask 211968
      %v1307 = vsel %vm1306, %v1291, %v1293
      %v1308 = vsel %vm1306, %v1293, %v1295
      %v1309 = vsel %vm1306, %v1295, %v1297
      %v1310 = vsel %vm1306, %v1297, %v1299
      %v1311 = vsel %vm1306, %v1299, %v1301
      %v1312 = vsel %vm1306, %v1301, %v1303
      %v1313 = vsel %vm1306, %v1303, %v1305
      %1321 = vst [vmem:[#allocation3 + $0x80] sm:$0xc0] %v1307
      %1322 = vst [vmem:[#allocation3 + $0x88] sm:$0xc0] %v1308
      %1323 = vst [vmem:[#allocation3 + $0x90] sm:$0xc0] %v1309
      %1324 = vst [vmem:[#allocation3 + $0x98] sm:$0xc0] %v1310
      %1325 = vst [vmem:[#allocation3 + $0xa0] sm:$0xc0] %v1311
      %1326 = vst [vmem:[#allocation3 + $0xa8] sm:$0xc0] %v1312
      %1327 = vst.msk [vmem:[#allocation3 + $0xb0] sm:$0xc0] %vm736, %v1313
      %v1328 = vld [vmem:[#allocation2] sm:$0xff]
      %v1329 = vld [vmem:[#allocation2 + $0x8] sm:$0xff]
      %v1332 = vcombine.high %v1328, %v1328
      %v1334 = vunpack.c.l.s4 1983009808
      %v1335 = vunpack.c.0.s8 %v1334
      %v1336 = vlaneseq
      %v1337 = vshrl.u32 %v1336, 7
      %v1338 = vsub.s32 %v1335, %v1337
      %v1339 = vrot.slane %v1328, %v1338
      %v1341 = vunpack.c.l.s4 1983009808
      %v1342 = vunpack.c.0.s8 %v1341
      %v1343 = vlaneseq
      %v1344 = vshrl.u32 %v1343, 7
      %v1345 = vsub.s32 %v1342, %v1344
      %v1346 = vrot.slane %v1332, %v1345
      %v1347 = vcombine.high %v1339, %v1339
      %v1348 = vcombine.high %v1346, %v1346
      %v1349 = vcombine.high %v1329, %v1329
      %v1351 = vunpack.c.l.s4 1983009808
      %v1352 = vunpack.c.0.s8 %v1351
      %v1353 = vlaneseq
      %v1354 = vshrl.u32 %v1353, 7
      %v1355 = vsub.s32 %v1352, %v1354
      %v1356 = vrot.slane %v1329, %v1355
      %v1358 = vunpack.c.l.s4 1983009808
      %v1359 = vunpack.c.0.s8 %v1358
      %v1360 = vlaneseq
      %v1361 = vshrl.u32 %v1360, 7
      %v1362 = vsub.s32 %v1359, %v1361
      %v1363 = vrot.slane %v1349, %v1362
      %v1364 = vcombine.high %v1356, %v1356
      %v1365 = vcombine.high %v1363, %v1363
      %1366 = vrot.lane.b32.xlu0 %v1339, 18
      %v1367 = vpop.permute.xlu0 %1366
      %1368 = vrot.lane.b32.xlu0 %v1347, 18
      %v1369 = vpop.permute.xlu0 %1368
      %1370 = vrot.lane.b32.xlu0 %v1346, 18
      %v1371 = vpop.permute.xlu0 %1370
      %1372 = vrot.lane.b32.xlu0 %v1348, 18
      %v1373 = vpop.permute.xlu0 %1372
      %1374 = vrot.lane.b32.xlu0 %v1356, 18
      %v1375 = vpop.permute.xlu0 %1374
      %1376 = vrot.lane.b32.xlu0 %v1364, 18
      %v1377 = vpop.permute.xlu0 %1376
      %1378 = vrot.lane.b32.xlu0 %v1363, 18
      %v1379 = vpop.permute.xlu0 %1378
      %1380 = vrot.lane.b32.xlu0 %v1365, 18
      %v1381 = vpop.permute.xlu0 %1380
      %vm1382 = vcmask 146432
      %v1383 = vsel %vm1382, %v1367, %v1369
      %v1384 = vsel %vm1382, %v1369, %v1371
      %v1385 = vsel %vm1382, %v1371, %v1373
      %v1386 = vsel %vm1382, %v1373, %v1375
      %v1387 = vsel %vm1382, %v1375, %v1377
      %v1388 = vsel %vm1382, %v1377, %v1379
      %v1389 = vsel %vm1382, %v1379, %v1381
      %1397 = vst [vmem:[#allocation3 + $0xc0] sm:$0x3] %v1383
      %1398 = vst [vmem:[#allocation3 + $0xc8] sm:$0x3] %v1384
      %1399 = vst [vmem:[#allocation3 + $0xd0] sm:$0x3] %v1385
      %1400 = vst [vmem:[#allocation3 + $0xd8] sm:$0x3] %v1386
      %1401 = vst [vmem:[#allocation3 + $0xe0] sm:$0x3] %v1387
      %1402 = vst [vmem:[#allocation3 + $0xe8] sm:$0x3] %v1388
      %1403 = vst.msk [vmem:[#allocation3 + $0xf0] sm:$0x3] %vm515, %v1389
      %v1404 = vld [vmem:[#allocation2] sm:$0xff]
      %v1405 = vld [vmem:[#allocation2 + $0x8] sm:$0xff]
      %v1408 = vcombine.low %v1404, %v1404
      %v1410 = vunpack.c.l.s4 1983009808
      %v1411 = vunpack.c.0.s8 %v1410
      %v1412 = vlaneseq
      %v1413 = vshrl.u32 %v1412, 7
      %v1414 = vsub.s32 %v1411, %v1413
      %v1415 = vrot.slane %v1408, %v1414
      %v1417 = vunpack.c.l.s4 1983009808
      %v1418 = vunpack.c.0.s8 %v1417
      %v1419 = vlaneseq
      %v1420 = vshrl.u32 %v1419, 7
      %v1421 = vsub.s32 %v1418, %v1420
      %v1422 = vrot.slane %v1404, %v1421
      %v1423 = vcombine.high %v1415, %v1415
      %v1424 = vcombine.high %v1422, %v1422
      %v1425 = vcombine.low %v1405, %v1405
      %v1427 = vunpack.c.l.s4 1983009808
      %v1428 = vunpack.c.0.s8 %v1427
      %v1429 = vlaneseq
      %v1430 = vshrl.u32 %v1429, 7
      %v1431 = vsub.s32 %v1428, %v1430
      %v1432 = vrot.slane %v1425, %v1431
      %v1434 = vunpack.c.l.s4 1983009808
      %v1435 = vunpack.c.0.s8 %v1434
      %v1436 = vlaneseq
      %v1437 = vshrl.u32 %v1436, 7
      %v1438 = vsub.s32 %v1435, %v1437
      %v1439 = vrot.slane %v1405, %v1438
      %v1440 = vcombine.high %v1432, %v1432
      %v1441 = vcombine.high %v1439, %v1439
      %1442 = vrot.lane.b32.xlu0 %v1415, 17
      %v1443 = vpop.permute.xlu0 %1442
      %1444 = vrot.lane.b32.xlu0 %v1423, 17
      %v1445 = vpop.permute.xlu0 %1444
      %1446 = vrot.lane.b32.xlu0 %v1422, 17
      %v1447 = vpop.permute.xlu0 %1446
      %1448 = vrot.lane.b32.xlu0 %v1424, 17
      %v1449 = vpop.permute.xlu0 %1448
      %1450 = vrot.lane.b32.xlu0 %v1432, 17
      %v1451 = vpop.permute.xlu0 %1450
      %1452 = vrot.lane.b32.xlu0 %v1440, 17
      %v1453 = vpop.permute.xlu0 %1452
      %1454 = vrot.lane.b32.xlu0 %v1439, 17
      %v1455 = vpop.permute.xlu0 %1454
      %1456 = vrot.lane.b32.xlu0 %v1441, 17
      %v1457 = vpop.permute.xlu0 %1456
      %vm1458 = vcmask 138240
      %v1459 = vsel %vm1458, %v1443, %v1445
      %v1460 = vsel %vm1458, %v1445, %v1447
      %v1461 = vsel %vm1458, %v1447, %v1449
      %v1462 = vsel %vm1458, %v1449, %v1451
      %v1463 = vsel %vm1458, %v1451, %v1453
      %v1464 = vsel %vm1458, %v1453, %v1455
      %v1465 = vsel %vm1458, %v1455, %v1457
      %1473 = vst [vmem:[#allocation3 + $0xc0] sm:$0xc] %v1459
      %1474 = vst [vmem:[#allocation3 + $0xc8] sm:$0xc] %v1460
      %1475 = vst [vmem:[#allocation3 + $0xd0] sm:$0xc] %v1461
      %1476 = vst [vmem:[#allocation3 + $0xd8] sm:$0xc] %v1462
      %1477 = vst [vmem:[#allocation3 + $0xe0] sm:$0xc] %v1463
      %1478 = vst [vmem:[#allocation3 + $0xe8] sm:$0xc] %v1464
      %1479 = vst.msk [vmem:[#allocation3 + $0xf0] sm:$0xc] %vm588, %v1465
      %v1480 = vld [vmem:[#allocation2] sm:$0xff]
      %v1481 = vld [vmem:[#allocation2 + $0x8] sm:$0xff]
      %v1484 = vcombine.high %v1480, %v1480
      %v1486 = vunpack.c.l.s4 1983009808
      %v1487 = vunpack.c.0.s8 %v1486
      %v1488 = vlaneseq
      %v1489 = vshrl.u32 %v1488, 7
      %v1490 = vsub.s32 %v1487, %v1489
      %v1491 = vrot.slane %v1480, %v1490
      %v1493 = vunpack.c.l.s4 1983009808
      %v1494 = vunpack.c.0.s8 %v1493
      %v1495 = vlaneseq
      %v1496 = vshrl.u32 %v1495, 7
      %v1497 = vsub.s32 %v1494, %v1496
      %v1498 = vrot.slane %v1484, %v1497
      %v1499 = vcombine.low %v1491, %v1491
      %v1500 = vcombine.low %v1498, %v1498
      %v1501 = vcombine.high %v1481, %v1481
      %v1503 = vunpack.c.l.s4 1983009808
      %v1504 = vunpack.c.0.s8 %v1503
      %v1505 = vlaneseq
      %v1506 = vshrl.u32 %v1505, 7
      %v1507 = vsub.s32 %v1504, %v1506
      %v1508 = vrot.slane %v1481, %v1507
      %v1510 = vunpack.c.l.s4 1983009808
      %v1511 = vunpack.c.0.s8 %v1510
      %v1512 = vlaneseq
      %v1513 = vshrl.u32 %v1512, 7
      %v1514 = vsub.s32 %v1511, %v1513
      %v1515 = vrot.slane %v1501, %v1514
      %v1516 = vcombine.low %v1508, %v1508
      %v1517 = vcombine.low %v1515, %v1515
      %1518 = vrot.lane.b32.xlu0 %v1499, 16
      %v1519 = vpop.permute.xlu0 %1518
      %1520 = vrot.lane.b32.xlu0 %v1491, 16
      %v1521 = vpop.permute.xlu0 %1520
      %1522 = vrot.lane.b32.xlu0 %v1500, 16
      %v1523 = vpop.permute.xlu0 %1522
      %1524 = vrot.lane.b32.xlu0 %v1498, 16
      %v1525 = vpop.permute.xlu0 %1524
      %1526 = vrot.lane.b32.xlu0 %v1516, 16
      %v1527 = vpop.permute.xlu0 %1526
      %1528 = vrot.lane.b32.xlu0 %v1508, 16
      %v1529 = vpop.permute.xlu0 %1528
      %1530 = vrot.lane.b32.xlu0 %v1517, 16
      %v1531 = vpop.permute.xlu0 %1530
      %1532 = vrot.lane.b32.xlu0 %v1515, 16
      %v1533 = vpop.permute.xlu0 %1532
      %vm1534 = vcmask 130048
      %v1535 = vsel %vm1534, %v1519, %v1521
      %v1536 = vsel %vm1534, %v1521, %v1523
      %v1537 = vsel %vm1534, %v1523, %v1525
      %v1538 = vsel %vm1534, %v1525, %v1527
      %v1539 = vsel %vm1534, %v1527, %v1529
      %v1540 = vsel %vm1534, %v1529, %v1531
      %v1541 = vsel %vm1534, %v1531, %v1533
      %1549 = vst [vmem:[#allocation3 + $0xc0] sm:$0x30] %v1535
      %1550 = vst [vmem:[#allocation3 + $0xc8] sm:$0x30] %v1536
      %1551 = vst [vmem:[#allocation3 + $0xd0] sm:$0x30] %v1537
      %1552 = vst [vmem:[#allocation3 + $0xd8] sm:$0x30] %v1538
      %1553 = vst [vmem:[#allocation3 + $0xe0] sm:$0x30] %v1539
      %1554 = vst [vmem:[#allocation3 + $0xe8] sm:$0x30] %v1540
      %1555 = vst.msk [vmem:[#allocation3 + $0xf0] sm:$0x30] %vm662, %v1541
      %v1556 = vld [vmem:[#allocation2] sm:$0xff]
      %v1557 = vld [vmem:[#allocation2 + $0x8] sm:$0xff]
      %v1560 = vcombine.low %v1556, %v1556
      %v1562 = vunpack.c.l.s4 1983009808
      %v1563 = vunpack.c.0.s8 %v1562
      %v1564 = vlaneseq
      %v1565 = vshrl.u32 %v1564, 7
      %v1566 = vsub.s32 %v1563, %v1565
      %v1567 = vrot.slane %v1560, %v1566
      %v1569 = vunpack.c.l.s4 1983009808
      %v1570 = vunpack.c.0.s8 %v1569
      %v1571 = vlaneseq
      %v1572 = vshrl.u32 %v1571, 7
      %v1573 = vsub.s32 %v1570, %v1572
      %v1574 = vrot.slane %v1556, %v1573
      %v1575 = vcombine.low %v1567, %v1567
      %v1576 = vcombine.low %v1574, %v1574
      %v1577 = vcombine.low %v1557, %v1557
      %v1579 = vunpack.c.l.s4 1983009808
      %v1580 = vunpack.c.0.s8 %v1579
      %v1581 = vlaneseq
      %v1582 = vshrl.u32 %v1581, 7
      %v1583 = vsub.s32 %v1580, %v1582
      %v1584 = vrot.slane %v1577, %v1583
      %v1586 = vunpack.c.l.s4 1983009808
      %v1587 = vunpack.c.0.s8 %v1586
      %v1588 = vlaneseq
      %v1589 = vshrl.u32 %v1588, 7
      %v1590 = vsub.s32 %v1587, %v1589
      %v1591 = vrot.slane %v1557, %v1590
      %v1592 = vcombine.low %v1584, %v1584
      %v1593 = vcombine.low %v1591, %v1591
      %1594 = vrot.lane.b32.xlu0 %v1575, 8
      %v1595 = vpop.permute.xlu0 %1594
      %1596 = vrot.lane.b32.xlu0 %v1567, 8
      %v1597 = vpop.permute.xlu0 %1596
      %1598 = vrot.lane.b32.xlu0 %v1576, 8
      %v1599 = vpop.permute.xlu0 %1598
      %1600 = vrot.lane.b32.xlu0 %v1574, 8
      %v1601 = vpop.permute.xlu0 %1600
      %1602 = vrot.lane.b32.xlu0 %v1592, 8
      %v1603 = vpop.permute.xlu0 %1602
      %1604 = vrot.lane.b32.xlu0 %v1584, 8
      %v1605 = vpop.permute.xlu0 %1604
      %1606 = vrot.lane.b32.xlu0 %v1593, 8
      %v1607 = vpop.permute.xlu0 %1606
      %1608 = vrot.lane.b32.xlu0 %v1591, 8
      %v1609 = vpop.permute.xlu0 %1608
      %vm1610 = vcmask 64512
      %v1611 = vsel %vm1610, %v1595, %v1597
      %v1612 = vsel %vm1610, %v1597, %v1599
      %v1613 = vsel %vm1610, %v1599, %v1601
      %v1614 = vsel %vm1610, %v1601, %v1603
      %v1615 = vsel %vm1610, %v1603, %v1605
      %v1616 = vsel %vm1610, %v1605, %v1607
      %v1617 = vsel %vm1610, %v1607, %v1609
      %1625 = vst [vmem:[#allocation3 + $0xc0] sm:$0xc0] %v1611
      %1626 = vst [vmem:[#allocation3 + $0xc8] sm:$0xc0] %v1612
      %1627 = vst [vmem:[#allocation3 + $0xd0] sm:$0xc0] %v1613
      %1628 = vst [vmem:[#allocation3 + $0xd8] sm:$0xc0] %v1614
      %1629 = vst [vmem:[#allocation3 + $0xe0] sm:$0xc0] %v1615
      %1630 = vst [vmem:[#allocation3 + $0xe8] sm:$0xc0] %v1616
      %1631 = vst.msk [vmem:[#allocation3 + $0xf0] sm:$0xc0] %vm736, %v1617
      %v1632 = vld [vmem:[#allocation2] sm:$0xff]
      %v1633 = vld [vmem:[#allocation2 + $0x8] sm:$0xff]
      %v1636 = vcombine.high %v1632, %v1632
      %v1638 = vunpack.c.l.s4 1983009808
      %v1639 = vunpack.c.0.s8 %v1638
      %v1640 = vlaneseq
      %v1641 = vshrl.u32 %v1640, 7
      %v1642 = vsub.s32 %v1639, %v1641
      %v1643 = vrot.slane %v1632, %v1642
      %v1645 = vunpack.c.l.s4 1983009808
      %v1646 = vunpack.c.0.s8 %v1645
      %v1647 = vlaneseq
      %v1648 = vshrl.u32 %v1647, 7
      %v1649 = vsub.s32 %v1646, %v1648
      %v1650 = vrot.slane %v1636, %v1649
      %v1651 = vcombine.high %v1643, %v1643
      %v1652 = vcombine.high %v1650, %v1650
      %v1653 = vcombine.high %v1633, %v1633
      %v1655 = vunpack.c.l.s4 1983009808
      %v1656 = vunpack.c.0.s8 %v1655
      %v1657 = vlaneseq
      %v1658 = vshrl.u32 %v1657, 7
      %v1659 = vsub.s32 %v1656, %v1658
      %v1660 = vrot.slane %v1633, %v1659
      %v1662 = vunpack.c.l.s4 1983009808
      %v1663 = vunpack.c.0.s8 %v1662
      %v1664 = vlaneseq
      %v1665 = vshrl.u32 %v1664, 7
      %v1666 = vsub.s32 %v1663, %v1665
      %v1667 = vrot.slane %v1653, %v1666
      %v1668 = vcombine.high %v1660, %v1660
      %v1669 = vcombine.high %v1667, %v1667
      %1670 = vrot.lane.b32.xlu0 %v1643, 7
      %v1671 = vpop.permute.xlu0 %1670
      %1672 = vrot.lane.b32.xlu0 %v1651, 7
      %v1673 = vpop.permute.xlu0 %1672
      %1674 = vrot.lane.b32.xlu0 %v1650, 7
      %v1675 = vpop.permute.xlu0 %1674
      %1676 = vrot.lane.b32.xlu0 %v1652, 7
      %v1677 = vpop.permute.xlu0 %1676
      %1678 = vrot.lane.b32.xlu0 %v1660, 7
      %v1679 = vpop.permute.xlu0 %1678
      %1680 = vrot.lane.b32.xlu0 %v1668, 7
      %v1681 = vpop.permute.xlu0 %1680
      %1682 = vrot.lane.b32.xlu0 %v1667, 7
      %v1683 = vpop.permute.xlu0 %1682
      %1684 = vrot.lane.b32.xlu0 %v1669, 7
      %v1685 = vpop.permute.xlu0 %1684
      %vm1686 = vcmask 56320
      %v1687 = vsel %vm1686, %v1671, %v1673
      %v1688 = vsel %vm1686, %v1673, %v1675
      %v1689 = vsel %vm1686, %v1675, %v1677
      %v1690 = vsel %vm1686, %v1677, %v1679
      %v1691 = vsel %vm1686, %v1679, %v1681
      %v1692 = vsel %vm1686, %v1681, %v1683
      %v1693 = vsel %vm1686, %v1683, %v1685
      %1701 = vst [vmem:[#allocation3 + $0x100] sm:$0x3] %v1687
      %1702 = vst [vmem:[#allocation3 + $0x108] sm:$0x3] %v1688
      %1703 = vst [vmem:[#allocation3 + $0x110] sm:$0x3] %v1689
      %1704 = vst [vmem:[#allocation3 + $0x118] sm:$0x3] %v1690
      %1705 = vst [vmem:[#allocation3 + $0x120] sm:$0x3] %v1691
      %1706 = vst [vmem:[#allocation3 + $0x128] sm:$0x3] %v1692
      %1707 = vst.msk [vmem:[#allocation3 + $0x130] sm:$0x3] %vm515, %v1693
      %v1708 = vld [vmem:[#allocation2] sm:$0xff]
      %v1709 = vld [vmem:[#allocation2 + $0x8] sm:$0xff]
      %v1712 = vcombine.low %v1708, %v1708
      %v1714 = vunpack.c.l.s4 1983009808
      %v1715 = vunpack.c.0.s8 %v1714
      %v1716 = vlaneseq
      %v1717 = vshrl.u32 %v1716, 7
      %v1718 = vsub.s32 %v1715, %v1717
      %v1719 = vrot.slane %v1712, %v1718
      %v1721 = vunpack.c.l.s4 1983009808
      %v1722 = vunpack.c.0.s8 %v1721
      %v1723 = vlaneseq
      %v1724 = vshrl.u32 %v1723, 7
      %v1725 = vsub.s32 %v1722, %v1724
      %v1726 = vrot.slane %v1708, %v1725
      %v1727 = vcombine.high %v1719, %v1719
      %v1728 = vcombine.high %v1726, %v1726
      %v1729 = vcombine.low %v1709, %v1709
      %v1731 = vunpack.c.l.s4 1983009808
      %v1732 = vunpack.c.0.s8 %v1731
      %v1733 = vlaneseq
      %v1734 = vshrl.u32 %v1733, 7
      %v1735 = vsub.s32 %v1732, %v1734
      %v1736 = vrot.slane %v1729, %v1735
      %v1738 = vunpack.c.l.s4 1983009808
      %v1739 = vunpack.c.0.s8 %v1738
      %v1740 = vlaneseq
      %v1741 = vshrl.u32 %v1740, 7
      %v1742 = vsub.s32 %v1739, %v1741
      %v1743 = vrot.slane %v1709, %v1742
      %v1744 = vcombine.high %v1736, %v1736
      %v1745 = vcombine.high %v1743, %v1743
      %1746 = vrot.lane.b32.xlu0 %v1719, 6
      %v1747 = vpop.permute.xlu0 %1746
      %1748 = vrot.lane.b32.xlu0 %v1727, 6
      %v1749 = vpop.permute.xlu0 %1748
      %1750 = vrot.lane.b32.xlu0 %v1726, 6
      %v1751 = vpop.permute.xlu0 %1750
      %1752 = vrot.lane.b32.xlu0 %v1728, 6
      %v1753 = vpop.permute.xlu0 %1752
      %1754 = vrot.lane.b32.xlu0 %v1736, 6
      %v1755 = vpop.permute.xlu0 %1754
      %1756 = vrot.lane.b32.xlu0 %v1744, 6
      %v1757 = vpop.permute.xlu0 %1756
      %1758 = vrot.lane.b32.xlu0 %v1743, 6
      %v1759 = vpop.permute.xlu0 %1758
      %1760 = vrot.lane.b32.xlu0 %v1745, 6
      %v1761 = vpop.permute.xlu0 %1760
      %vm1762 = vcmask 48128
      %v1763 = vsel %vm1762, %v1747, %v1749
      %v1764 = vsel %vm1762, %v1749, %v1751
      %v1765 = vsel %vm1762, %v1751, %v1753
      %v1766 = vsel %vm1762, %v1753, %v1755
      %v1767 = vsel %vm1762, %v1755, %v1757
      %v1768 = vsel %vm1762, %v1757, %v1759
      %v1769 = vsel %vm1762, %v1759, %v1761
      %1777 = vst [vmem:[#allocation3 + $0x100] sm:$0xc] %v1763
      %1778 = vst [vmem:[#allocation3 + $0x108] sm:$0xc] %v1764
      %1779 = vst [vmem:[#allocation3 + $0x110] sm:$0xc] %v1765
      %1780 = vst [vmem:[#allocation3 + $0x118] sm:$0xc] %v1766
      %1781 = vst [vmem:[#allocation3 + $0x120] sm:$0xc] %v1767
      %1782 = vst [vmem:[#allocation3 + $0x128] sm:$0xc] %v1768
      %1783 = vst.msk [vmem:[#allocation3 + $0x130] sm:$0xc] %vm588, %v1769
      %v1784 = vld [vmem:[#allocation2 + $0x2] sm:$0xff]
      %v1785 = vld [vmem:[#allocation2 + $0xa] sm:$0x3f]
      %v1788 = vcombine.high %v1784, %v1784
      %v1790 = vunpack.c.l.s4 1983009808
      %v1791 = vunpack.c.0.s8 %v1790
      %v1792 = vlaneseq
      %v1793 = vshrl.u32 %v1792, 7
      %v1794 = vsub.s32 %v1791, %v1793
      %v1795 = vrot.slane %v1784, %v1794
      %v1797 = vunpack.c.l.s4 1983009808
      %v1798 = vunpack.c.0.s8 %v1797
      %v1799 = vlaneseq
      %v1800 = vshrl.u32 %v1799, 7
      %v1801 = vsub.s32 %v1798, %v1800
      %v1802 = vrot.slane %v1788, %v1801
      %v1803 = vcombine.low %v1795, %v1795
      %v1804 = vcombine.low %v1802, %v1802
      %v1805 = vcombine.high %v1785, %v1785
      %v1807 = vunpack.c.l.s4 1983009808
      %v1808 = vunpack.c.0.s8 %v1807
      %v1809 = vlaneseq
      %v1810 = vshrl.u32 %v1809, 7
      %v1811 = vsub.s32 %v1808, %v1810
      %v1812 = vrot.slane %v1785, %v1811
      %v1814 = vunpack.c.l.s4 1983009808
      %v1815 = vunpack.c.0.s8 %v1814
      %v1816 = vlaneseq
      %v1817 = vshrl.u32 %v1816, 7
      %v1818 = vsub.s32 %v1815, %v1817
      %v1819 = vrot.slane %v1805, %v1818
      %v1820 = vcombine.low %v1812, %v1812
      %v1821 = vcombine.low %v1819, %v1819
      %1822 = vrot.lane.b32.xlu0 %v1803, 56
      %v1823 = vpop.permute.xlu0 %1822
      %1824 = vrot.lane.b32.xlu0 %v1795, 56
      %v1825 = vpop.permute.xlu0 %1824
      %1826 = vrot.lane.b32.xlu0 %v1804, 56
      %v1827 = vpop.permute.xlu0 %1826
      %1828 = vrot.lane.b32.xlu0 %v1802, 56
      %v1829 = vpop.permute.xlu0 %1828
      %1830 = vrot.lane.b32.xlu0 %v1820, 56
      %v1831 = vpop.permute.xlu0 %1830
      %1832 = vrot.lane.b32.xlu0 %v1812, 56
      %v1833 = vpop.permute.xlu0 %1832
      %1834 = vrot.lane.b32.xlu0 %v1821, 56
      %v1835 = vpop.permute.xlu0 %1834
      %vm1836 = vcmask 457728
      %v1837 = vsel %vm1836, %v1823, %v1825
      %v1838 = vsel %vm1836, %v1825, %v1827
      %v1839 = vsel %vm1836, %v1827, %v1829
      %v1840 = vsel %vm1836, %v1829, %v1831
      %v1841 = vsel %vm1836, %v1831, %v1833
      %v1842 = vsel %vm1836, %v1833, %v1835
      %1850 = vst [vmem:[#allocation3 + $0x100] sm:$0x30] %v1837
      %1851 = vst [vmem:[#allocation3 + $0x108] sm:$0x30] %v1838
      %1852 = vst [vmem:[#allocation3 + $0x110] sm:$0x30] %v1839
      %1853 = vst [vmem:[#allocation3 + $0x118] sm:$0x30] %v1840
      %1854 = vst [vmem:[#allocation3 + $0x120] sm:$0x30] %v1841
      %1855 = vst [vmem:[#allocation3 + $0x128] sm:$0x30] %v1842
      %1856 = vst.msk [vmem:[#allocation3 + $0x130] sm:$0x30] %vm662, %v1835
      %v1857 = vld [vmem:[#allocation2 + $0x2] sm:$0xff]
      %v1858 = vld [vmem:[#allocation2 + $0xa] sm:$0x3f]
      %v1861 = vcombine.low %v1857, %v1857
      %v1863 = vunpack.c.l.s4 1983009808
      %v1864 = vunpack.c.0.s8 %v1863
      %v1865 = vlaneseq
      %v1866 = vshrl.u32 %v1865, 7
      %v1867 = vsub.s32 %v1864, %v1866
      %v1868 = vrot.slane %v1861, %v1867
      %v1870 = vunpack.c.l.s4 1983009808
      %v1871 = vunpack.c.0.s8 %v1870
      %v1872 = vlaneseq
      %v1873 = vshrl.u32 %v1872, 7
      %v1874 = vsub.s32 %v1871, %v1873
      %v1875 = vrot.slane %v1857, %v1874
      %v1876 = vcombine.low %v1868, %v1868
      %v1877 = vcombine.low %v1875, %v1875
      %v1878 = vcombine.low %v1858, %v1858
      %v1880 = vunpack.c.l.s4 1983009808
      %v1881 = vunpack.c.0.s8 %v1880
      %v1882 = vlaneseq
      %v1883 = vshrl.u32 %v1882, 7
      %v1884 = vsub.s32 %v1881, %v1883
      %v1885 = vrot.slane %v1878, %v1884
      %v1887 = vunpack.c.l.s4 1983009808
      %v1888 = vunpack.c.0.s8 %v1887
      %v1889 = vlaneseq
      %v1890 = vshrl.u32 %v1889, 7
      %v1891 = vsub.s32 %v1888, %v1890
      %v1892 = vrot.slane %v1858, %v1891
      %v1893 = vcombine.low %v1885, %v1885
      %v1894 = vcombine.low %v1892, %v1892
      %1895 = vrot.lane.b32.xlu0 %v1876, 55
      %v1896 = vpop.permute.xlu0 %1895
      %1897 = vrot.lane.b32.xlu0 %v1868, 55
      %v1898 = vpop.permute.xlu0 %1897
      %1899 = vrot.lane.b32.xlu0 %v1877, 55
      %v1900 = vpop.permute.xlu0 %1899
      %1901 = vrot.lane.b32.xlu0 %v1875, 55
      %v1902 = vpop.permute.xlu0 %1901
      %1903 = vrot.lane.b32.xlu0 %v1893, 55
      %v1904 = vpop.permute.xlu0 %1903
      %1905 = vrot.lane.b32.xlu0 %v1885, 55
      %v1906 = vpop.permute.xlu0 %1905
      %1907 = vrot.lane.b32.xlu0 %v1894, 55
      %v1908 = vpop.permute.xlu0 %1907
      %vm1909 = vcmask 449536
      %v1910 = vsel %vm1909, %v1896, %v1898
      %v1911 = vsel %vm1909, %v1898, %v1900
      %v1912 = vsel %vm1909, %v1900, %v1902
      %v1913 = vsel %vm1909, %v1902, %v1904
      %v1914 = vsel %vm1909, %v1904, %v1906
      %v1915 = vsel %vm1909, %v1906, %v1908
      %1923 = vst [vmem:[#allocation3 + $0x100] sm:$0xc0] %v1910
      %1924 = vst [vmem:[#allocation3 + $0x108] sm:$0xc0] %v1911
      %1925 = vst [vmem:[#allocation3 + $0x110] sm:$0xc0] %v1912
      %1926 = vst [vmem:[#allocation3 + $0x118] sm:$0xc0] %v1913
      %1927 = vst [vmem:[#allocation3 + $0x120] sm:$0xc0] %v1914
      %1928 = vst [vmem:[#allocation3 + $0x128] sm:$0xc0] %v1915
      %1929 = vst.msk [vmem:[#allocation3 + $0x130] sm:$0xc0] %vm736, %v1908
      %v1930 = vld [vmem:[#allocation2 + $0x2] sm:$0xff]
      %v1931 = vld [vmem:[#allocation2 + $0xa] sm:$0x3f]
      %v1934 = vcombine.high %v1930, %v1930
      %v1936 = vunpack.c.l.s4 1983009808
      %v1937 = vunpack.c.0.s8 %v1936
      %v1938 = vlaneseq
      %v1939 = vshrl.u32 %v1938, 7
      %v1940 = vsub.s32 %v1937, %v1939
      %v1941 = vrot.slane %v1930, %v1940
      %v1943 = vunpack.c.l.s4 1983009808
      %v1944 = vunpack.c.0.s8 %v1943
      %v1945 = vlaneseq
      %v1946 = vshrl.u32 %v1945, 7
      %v1947 = vsub.s32 %v1944, %v1946
      %v1948 = vrot.slane %v1934, %v1947
      %v1949 = vcombine.high %v1941, %v1941
      %v1950 = vcombine.high %v1948, %v1948
      %v1951 = vcombine.high %v1931, %v1931
      %v1953 = vunpack.c.l.s4 1983009808
      %v1954 = vunpack.c.0.s8 %v1953
      %v1955 = vlaneseq
      %v1956 = vshrl.u32 %v1955, 7
      %v1957 = vsub.s32 %v1954, %v1956
      %v1958 = vrot.slane %v1931, %v1957
      %v1960 = vunpack.c.l.s4 1983009808
      %v1961 = vunpack.c.0.s8 %v1960
      %v1962 = vlaneseq
      %v1963 = vshrl.u32 %v1962, 7
      %v1964 = vsub.s32 %v1961, %v1963
      %v1965 = vrot.slane %v1951, %v1964
      %v1966 = vcombine.high %v1958, %v1958
      %1967 = vrot.lane.b32.xlu0 %v1941, 54
      %v1968 = vpop.permute.xlu0 %1967
      %1969 = vrot.lane.b32.xlu0 %v1949, 54
      %v1970 = vpop.permute.xlu0 %1969
      %1971 = vrot.lane.b32.xlu0 %v1948, 54
      %v1972 = vpop.permute.xlu0 %1971
      %1973 = vrot.lane.b32.xlu0 %v1950, 54
      %v1974 = vpop.permute.xlu0 %1973
      %1975 = vrot.lane.b32.xlu0 %v1958, 54
      %v1976 = vpop.permute.xlu0 %1975
      %1977 = vrot.lane.b32.xlu0 %v1966, 54
      %v1978 = vpop.permute.xlu0 %1977
      %1979 = vrot.lane.b32.xlu0 %v1965, 54
      %v1980 = vpop.permute.xlu0 %1979
      %vm1981 = vcmask 441344
      %v1982 = vsel %vm1981, %v1968, %v1970
      %v1983 = vsel %vm1981, %v1970, %v1972
      %v1984 = vsel %vm1981, %v1972, %v1974
      %v1985 = vsel %vm1981, %v1974, %v1976
      %v1986 = vsel %vm1981, %v1976, %v1978
      %v1987 = vsel %vm1981, %v1978, %v1980
      %1995 = vst [vmem:[#allocation3 + $0x140] sm:$0x3] %v1982
      %1996 = vst [vmem:[#allocation3 + $0x148] sm:$0x3] %v1983
      %1997 = vst [vmem:[#allocation3 + $0x150] sm:$0x3] %v1984
      %1998 = vst [vmem:[#allocation3 + $0x158] sm:$0x3] %v1985
      %1999 = vst [vmem:[#allocation3 + $0x160] sm:$0x3] %v1986
      %2000 = vst [vmem:[#allocation3 + $0x168] sm:$0x3] %v1987
      %2001 = vst.msk [vmem:[#allocation3 + $0x170] sm:$0x3] %vm515, %v1980
      %v2002 = vld [vmem:[#allocation2 + $0x2] sm:$0xff]
      %v2003 = vld [vmem:[#allocation2 + $0xa] sm:$0x3f]
      %v2006 = vcombine.low %v2002, %v2002
      %v2008 = vunpack.c.l.s4 1983009808
      %v2009 = vunpack.c.0.s8 %v2008
      %v2010 = vlaneseq
      %v2011 = vshrl.u32 %v2010, 7
      %v2012 = vsub.s32 %v2009, %v2011
      %v2013 = vrot.slane %v2006, %v2012
      %v2015 = vunpack.c.l.s4 1983009808
      %v2016 = vunpack.c.0.s8 %v2015
      %v2017 = vlaneseq
      %v2018 = vshrl.u32 %v2017, 7
      %v2019 = vsub.s32 %v2016, %v2018
      %v2020 = vrot.slane %v2002, %v2019
      %v2021 = vcombine.high %v2013, %v2013
      %v2022 = vcombine.high %v2020, %v2020
      %v2023 = vcombine.low %v2003, %v2003
      %v2025 = vunpack.c.l.s4 1983009808
      %v2026 = vunpack.c.0.s8 %v2025
      %v2027 = vlaneseq
      %v2028 = vshrl.u32 %v2027, 7
      %v2029 = vsub.s32 %v2026, %v2028
      %v2030 = vrot.slane %v2023, %v2029
      %v2032 = vunpack.c.l.s4 1983009808
      %v2033 = vunpack.c.0.s8 %v2032
      %v2034 = vlaneseq
      %v2035 = vshrl.u32 %v2034, 7
      %v2036 = vsub.s32 %v2033, %v2035
      %v2037 = vrot.slane %v2003, %v2036
      %v2038 = vcombine.high %v2030, %v2030
      %2039 = vrot.lane.b32.xlu0 %v2013, 46
      %v2040 = vpop.permute.xlu0 %2039
      %2041 = vrot.lane.b32.xlu0 %v2021, 46
      %v2042 = vpop.permute.xlu0 %2041
      %2043 = vrot.lane.b32.xlu0 %v2020, 46
      %v2044 = vpop.permute.xlu0 %2043
      %2045 = vrot.lane.b32.xlu0 %v2022, 46
      %v2046 = vpop.permute.xlu0 %2045
      %2047 = vrot.lane.b32.xlu0 %v2030, 46
      %v2048 = vpop.permute.xlu0 %2047
      %2049 = vrot.lane.b32.xlu0 %v2038, 46
      %v2050 = vpop.permute.xlu0 %2049
      %2051 = vrot.lane.b32.xlu0 %v2037, 46
      %v2052 = vpop.permute.xlu0 %2051
      %vm2053 = vcmask 375808
      %v2054 = vsel %vm2053, %v2040, %v2042
      %v2055 = vsel %vm2053, %v2042, %v2044
      %v2056 = vsel %vm2053, %v2044, %v2046
      %v2057 = vsel %vm2053, %v2046, %v2048
      %v2058 = vsel %vm2053, %v2048, %v2050
      %v2059 = vsel %vm2053, %v2050, %v2052
      %2067 = vst [vmem:[#allocation3 + $0x140] sm:$0xc] %v2054
      %2068 = vst [vmem:[#allocation3 + $0x148] sm:$0xc] %v2055
      %2069 = vst [vmem:[#allocation3 + $0x150] sm:$0xc] %v2056
      %2070 = vst [vmem:[#allocation3 + $0x158] sm:$0xc] %v2057
      %2071 = vst [vmem:[#allocation3 + $0x160] sm:$0xc] %v2058
      %2072 = vst [vmem:[#allocation3 + $0x168] sm:$0xc] %v2059
      %2073 = vst.msk [vmem:[#allocation3 + $0x170] sm:$0xc] %vm588, %v2052
      %v2074 = vld [vmem:[#allocation2 + $0x2] sm:$0xff]
      %v2075 = vld [vmem:[#allocation2 + $0xa] sm:$0x3f]
      %v2078 = vcombine.high %v2074, %v2074
      %v2080 = vunpack.c.l.s4 1983009808
      %v2081 = vunpack.c.0.s8 %v2080
      %v2082 = vlaneseq
      %v2083 = vshrl.u32 %v2082, 7
      %v2084 = vsub.s32 %v2081, %v2083
      %v2085 = vrot.slane %v2074, %v2084
      %v2087 = vunpack.c.l.s4 1983009808
      %v2088 = vunpack.c.0.s8 %v2087
      %v2089 = vlaneseq
      %v2090 = vshrl.u32 %v2089, 7
      %v2091 = vsub.s32 %v2088, %v2090
      %v2092 = vrot.slane %v2078, %v2091
      %v2093 = vcombine.low %v2085, %v2085
      %v2094 = vcombine.low %v2092, %v2092
      %v2095 = vcombine.high %v2075, %v2075
      %v2097 = vunpack.c.l.s4 1983009808
      %v2098 = vunpack.c.0.s8 %v2097
      %v2099 = vlaneseq
      %v2100 = vshrl.u32 %v2099, 7
      %v2101 = vsub.s32 %v2098, %v2100
      %v2102 = vrot.slane %v2075, %v2101
      %v2104 = vunpack.c.l.s4 1983009808
      %v2105 = vunpack.c.0.s8 %v2104
      %v2106 = vlaneseq
      %v2107 = vshrl.u32 %v2106, 7
      %v2108 = vsub.s32 %v2105, %v2107
      %v2109 = vrot.slane %v2095, %v2108
      %v2110 = vcombine.low %v2102, %v2102
      %v2111 = vcombine.low %v2109, %v2109
      %2112 = vrot.lane.b32.xlu0 %v2093, 45
      %v2113 = vpop.permute.xlu0 %2112
      %2114 = vrot.lane.b32.xlu0 %v2085, 45
      %v2115 = vpop.permute.xlu0 %2114
      %2116 = vrot.lane.b32.xlu0 %v2094, 45
      %v2117 = vpop.permute.xlu0 %2116
      %2118 = vrot.lane.b32.xlu0 %v2092, 45
      %v2119 = vpop.permute.xlu0 %2118
      %2120 = vrot.lane.b32.xlu0 %v2110, 45
      %v2121 = vpop.permute.xlu0 %2120
      %2122 = vrot.lane.b32.xlu0 %v2102, 45
      %v2123 = vpop.permute.xlu0 %2122
      %2124 = vrot.lane.b32.xlu0 %v2111, 45
      %v2125 = vpop.permute.xlu0 %2124
      %vm2126 = vcmask 367616
      %v2127 = vsel %vm2126, %v2113, %v2115
      %v2128 = vsel %vm2126, %v2115, %v2117
      %v2129 = vsel %vm2126, %v2117, %v2119
      %v2130 = vsel %vm2126, %v2119, %v2121
      %v2131 = vsel %vm2126, %v2121, %v2123
      %v2132 = vsel %vm2126, %v2123, %v2125
      %2140 = vst [vmem:[#allocation3 + $0x140] sm:$0x30] %v2127
      %2141 = vst [vmem:[#allocation3 + $0x148] sm:$0x30] %v2128
      %2142 = vst [vmem:[#allocation3 + $0x150] sm:$0x30] %v2129
      %2143 = vst [vmem:[#allocation3 + $0x158] sm:$0x30] %v2130
      %2144 = vst [vmem:[#allocation3 + $0x160] sm:$0x30] %v2131
      %2145 = vst [vmem:[#allocation3 + $0x168] sm:$0x30] %v2132
      %2146 = vst.msk [vmem:[#allocation3 + $0x170] sm:$0x30] %vm662, %v2125
      %v2147 = vld [vmem:[#allocation2 + $0x2] sm:$0xff]
      %v2148 = vld [vmem:[#allocation2 + $0xa] sm:$0x3f]
      %v2151 = vcombine.low %v2147, %v2147
      %v2153 = vunpack.c.l.s4 1983009808
      %v2154 = vunpack.c.0.s8 %v2153
      %v2155 = vlaneseq
      %v2156 = vshrl.u32 %v2155, 7
      %v2157 = vsub.s32 %v2154, %v2156
      %v2158 = vrot.slane %v2151, %v2157
      %v2160 = vunpack.c.l.s4 1983009808
      %v2161 = vunpack.c.0.s8 %v2160
      %v2162 = vlaneseq
      %v2163 = vshrl.u32 %v2162, 7
      %v2164 = vsub.s32 %v2161, %v2163
      %v2165 = vrot.slane %v2147, %v2164
      %v2166 = vcombine.low %v2158, %v2158
      %v2167 = vcombine.low %v2165, %v2165
      %v2168 = vcombine.low %v2148, %v2148
      %v2170 = vunpack.c.l.s4 1983009808
      %v2171 = vunpack.c.0.s8 %v2170
      %v2172 = vlaneseq
      %v2173 = vshrl.u32 %v2172, 7
      %v2174 = vsub.s32 %v2171, %v2173
      %v2175 = vrot.slane %v2168, %v2174
      %v2177 = vunpack.c.l.s4 1983009808
      %v2178 = vunpack.c.0.s8 %v2177
      %v2179 = vlaneseq
      %v2180 = vshrl.u32 %v2179, 7
      %v2181 = vsub.s32 %v2178, %v2180
      %v2182 = vrot.slane %v2148, %v2181
      %v2183 = vcombine.low %v2175, %v2175
      %v2184 = vcombine.low %v2182, %v2182
      %2185 = vrot.lane.b32.xlu0 %v2166, 44
      %v2186 = vpop.permute.xlu0 %2185
      %2187 = vrot.lane.b32.xlu0 %v2158, 44
      %v2188 = vpop.permute.xlu0 %2187
      %2189 = vrot.lane.b32.xlu0 %v2167, 44
      %v2190 = vpop.permute.xlu0 %2189
      %2191 = vrot.lane.b32.xlu0 %v2165, 44
      %v2192 = vpop.permute.xlu0 %2191
      %2193 = vrot.lane.b32.xlu0 %v2183, 44
      %v2194 = vpop.permute.xlu0 %2193
      %2195 = vrot.lane.b32.xlu0 %v2175, 44
      %v2196 = vpop.permute.xlu0 %2195
      %2197 = vrot.lane.b32.xlu0 %v2184, 44
      %v2198 = vpop.permute.xlu0 %2197
      %vm2199 = vcmask 359424
      %v2200 = vsel %vm2199, %v2186, %v2188
      %v2201 = vsel %vm2199, %v2188, %v2190
      %v2202 = vsel %vm2199, %v2190, %v2192
      %v2203 = vsel %vm2199, %v2192, %v2194
      %v2204 = vsel %vm2199, %v2194, %v2196
      %v2205 = vsel %vm2199, %v2196, %v2198
      %2213 = vst [vmem:[#allocation3 + $0x140] sm:$0xc0] %v2200
      %2214 = vst [vmem:[#allocation3 + $0x148] sm:$0xc0] %v2201
      %2215 = vst [vmem:[#allocation3 + $0x150] sm:$0xc0] %v2202
      %2216 = vst [vmem:[#allocation3 + $0x158] sm:$0xc0] %v2203
      %2217 = vst [vmem:[#allocation3 + $0x160] sm:$0xc0] %v2204
      %2218 = vst [vmem:[#allocation3 + $0x168] sm:$0xc0] %v2205
      %2219 = vst.msk [vmem:[#allocation3 + $0x170] sm:$0xc0] %vm736, %v2198
      %v2220 = vld [vmem:[#allocation2 + $0x2] sm:$0xff]
      %v2221 = vld [vmem:[#allocation2 + $0xa] sm:$0x3f]
      %v2224 = vcombine.high %v2220, %v2220
      %v2226 = vunpack.c.l.s4 1983009808
      %v2227 = vunpack.c.0.s8 %v2226
      %v2228 = vlaneseq
      %v2229 = vshrl.u32 %v2228, 7
      %v2230 = vsub.s32 %v2227, %v2229
      %v2231 = vrot.slane %v2220, %v2230
      %v2233 = vunpack.c.l.s4 1983009808
      %v2234 = vunpack.c.0.s8 %v2233
      %v2235 = vlaneseq
      %v2236 = vshrl.u32 %v2235, 7
      %v2237 = vsub.s32 %v2234, %v2236
      %v2238 = vrot.slane %v2224, %v2237
      %v2239 = vcombine.high %v2231, %v2231
      %v2240 = vcombine.high %v2238, %v2238
      %v2241 = vcombine.high %v2221, %v2221
      %v2243 = vunpack.c.l.s4 1983009808
      %v2244 = vunpack.c.0.s8 %v2243
      %v2245 = vlaneseq
      %v2246 = vshrl.u32 %v2245, 7
      %v2247 = vsub.s32 %v2244, %v2246
      %v2248 = vrot.slane %v2221, %v2247
      %v2250 = vunpack.c.l.s4 1983009808
      %v2251 = vunpack.c.0.s8 %v2250
      %v2252 = vlaneseq
      %v2253 = vshrl.u32 %v2252, 7
      %v2254 = vsub.s32 %v2251, %v2253
      %v2255 = vrot.slane %v2241, %v2254
      %v2256 = vcombine.high %v2248, %v2248
      %2257 = vrot.lane.b32.xlu0 %v2231, 36
      %v2258 = vpop.permute.xlu0 %2257
      %2259 = vrot.lane.b32.xlu0 %v2239, 36
      %v2260 = vpop.permute.xlu0 %2259
      %2261 = vrot.lane.b32.xlu0 %v2238, 36
      %v2262 = vpop.permute.xlu0 %2261
      %2263 = vrot.lane.b32.xlu0 %v2240, 36
      %v2264 = vpop.permute.xlu0 %2263
      %2265 = vrot.lane.b32.xlu0 %v2248, 36
      %v2266 = vpop.permute.xlu0 %2265
      %2267 = vrot.lane.b32.xlu0 %v2256, 36
      %v2268 = vpop.permute.xlu0 %2267
      %2269 = vrot.lane.b32.xlu0 %v2255, 36
      %v2270 = vpop.permute.xlu0 %2269
      %vm2271 = vcmask 293888
      %v2272 = vsel %vm2271, %v2258, %v2260
      %v2273 = vsel %vm2271, %v2260, %v2262
      %v2274 = vsel %vm2271, %v2262, %v2264
      %v2275 = vsel %vm2271, %v2264, %v2266
      %v2276 = vsel %vm2271, %v2266, %v2268
      %v2277 = vsel %vm2271, %v2268, %v2270
      %2285 = vst [vmem:[#allocation3 + $0x180] sm:$0x3] %v2272
      %2286 = vst [vmem:[#allocation3 + $0x188] sm:$0x3] %v2273
      %2287 = vst [vmem:[#allocation3 + $0x190] sm:$0x3] %v2274
      %2288 = vst [vmem:[#allocation3 + $0x198] sm:$0x3] %v2275
      %2289 = vst [vmem:[#allocation3 + $0x1a0] sm:$0x3] %v2276
      %2290 = vst [vmem:[#allocation3 + $0x1a8] sm:$0x3] %v2277
      %2291 = vst.msk [vmem:[#allocation3 + $0x1b0] sm:$0x3] %vm515, %v2270
      %v2292 = vld [vmem:[#allocation2 + $0x2] sm:$0xff]
      %v2293 = vld [vmem:[#allocation2 + $0xa] sm:$0x3f]
      %v2296 = vcombine.low %v2292, %v2292
      %v2298 = vunpack.c.l.s4 1983009808
      %v2299 = vunpack.c.0.s8 %v2298
      %v2300 = vlaneseq
      %v2301 = vshrl.u32 %v2300, 7
      %v2302 = vsub.s32 %v2299, %v2301
      %v2303 = vrot.slane %v2296, %v2302
      %v2305 = vunpack.c.l.s4 1983009808
      %v2306 = vunpack.c.0.s8 %v2305
      %v2307 = vlaneseq
      %v2308 = vshrl.u32 %v2307, 7
      %v2309 = vsub.s32 %v2306, %v2308
      %v2310 = vrot.slane %v2292, %v2309
      %v2311 = vcombine.high %v2303, %v2303
      %v2312 = vcombine.high %v2310, %v2310
      %v2313 = vcombine.low %v2293, %v2293
      %v2315 = vunpack.c.l.s4 1983009808
      %v2316 = vunpack.c.0.s8 %v2315
      %v2317 = vlaneseq
      %v2318 = vshrl.u32 %v2317, 7
      %v2319 = vsub.s32 %v2316, %v2318
      %v2320 = vrot.slane %v2313, %v2319
      %v2322 = vunpack.c.l.s4 1983009808
      %v2323 = vunpack.c.0.s8 %v2322
      %v2324 = vlaneseq
      %v2325 = vshrl.u32 %v2324, 7
      %v2326 = vsub.s32 %v2323, %v2325
      %v2327 = vrot.slane %v2293, %v2326
      %v2328 = vcombine.high %v2320, %v2320
      %2329 = vrot.lane.b32.xlu0 %v2303, 35
      %v2330 = vpop.permute.xlu0 %2329
      %2331 = vrot.lane.b32.xlu0 %v2311, 35
      %v2332 = vpop.permute.xlu0 %2331
      %2333 = vrot.lane.b32.xlu0 %v2310, 35
      %v2334 = vpop.permute.xlu0 %2333
      %2335 = vrot.lane.b32.xlu0 %v2312, 35
      %v2336 = vpop.permute.xlu0 %2335
      %2337 = vrot.lane.b32.xlu0 %v2320, 35
      %v2338 = vpop.permute.xlu0 %2337
      %2339 = vrot.lane.b32.xlu0 %v2328, 35
      %v2340 = vpop.permute.xlu0 %2339
      %2341 = vrot.lane.b32.xlu0 %v2327, 35
      %v2342 = vpop.permute.xlu0 %2341
      %vm2343 = vcmask 285696
      %v2344 = vsel %vm2343, %v2330, %v2332
      %v2345 = vsel %vm2343, %v2332, %v2334
      %v2346 = vsel %vm2343, %v2334, %v2336
      %v2347 = vsel %vm2343, %v2336, %v2338
      %v2348 = vsel %vm2343, %v2338, %v2340
      %v2349 = vsel %vm2343, %v2340, %v2342
      %2357 = vst [vmem:[#allocation3 + $0x180] sm:$0xc] %v2344
      %2358 = vst [vmem:[#allocation3 + $0x188] sm:$0xc] %v2345
      %2359 = vst [vmem:[#allocation3 + $0x190] sm:$0xc] %v2346
      %2360 = vst [vmem:[#allocation3 + $0x198] sm:$0xc] %v2347
      %2361 = vst [vmem:[#allocation3 + $0x1a0] sm:$0xc] %v2348
      %2362 = vst [vmem:[#allocation3 + $0x1a8] sm:$0xc] %v2349
      %2363 = vst.msk [vmem:[#allocation3 + $0x1b0] sm:$0xc] %vm588, %v2342
      %v2364 = vld [vmem:[#allocation2 + $0x2] sm:$0xff]
      %v2365 = vld [vmem:[#allocation2 + $0xa] sm:$0x3f]
      %v2368 = vcombine.high %v2364, %v2364
      %v2370 = vunpack.c.l.s4 1983009808
      %v2371 = vunpack.c.0.s8 %v2370
      %v2372 = vlaneseq
      %v2373 = vshrl.u32 %v2372, 7
      %v2374 = vsub.s32 %v2371, %v2373
      %v2375 = vrot.slane %v2364, %v2374
      %v2377 = vunpack.c.l.s4 1983009808
      %v2378 = vunpack.c.0.s8 %v2377
      %v2379 = vlaneseq
      %v2380 = vshrl.u32 %v2379, 7
      %v2381 = vsub.s32 %v2378, %v2380
      %v2382 = vrot.slane %v2368, %v2381
      %v2383 = vcombine.low %v2375, %v2375
      %v2384 = vcombine.low %v2382, %v2382
      %v2385 = vcombine.high %v2365, %v2365
      %v2387 = vunpack.c.l.s4 1983009808
      %v2388 = vunpack.c.0.s8 %v2387
      %v2389 = vlaneseq
      %v2390 = vshrl.u32 %v2389, 7
      %v2391 = vsub.s32 %v2388, %v2390
      %v2392 = vrot.slane %v2365, %v2391
      %v2394 = vunpack.c.l.s4 1983009808
      %v2395 = vunpack.c.0.s8 %v2394
      %v2396 = vlaneseq
      %v2397 = vshrl.u32 %v2396, 7
      %v2398 = vsub.s32 %v2395, %v2397
      %v2399 = vrot.slane %v2385, %v2398
      %v2400 = vcombine.low %v2392, %v2392
      %v2401 = vcombine.low %v2399, %v2399
      %2402 = vrot.lane.b32.xlu0 %v2383, 34
      %v2403 = vpop.permute.xlu0 %2402
      %2404 = vrot.lane.b32.xlu0 %v2375, 34
      %v2405 = vpop.permute.xlu0 %2404
      %2406 = vrot.lane.b32.xlu0 %v2384, 34
      %v2407 = vpop.permute.xlu0 %2406
      %2408 = vrot.lane.b32.xlu0 %v2382, 34
      %v2409 = vpop.permute.xlu0 %2408
      %2410 = vrot.lane.b32.xlu0 %v2400, 34
      %v2411 = vpop.permute.xlu0 %2410
      %2412 = vrot.lane.b32.xlu0 %v2392, 34
      %v2413 = vpop.permute.xlu0 %2412
      %2414 = vrot.lane.b32.xlu0 %v2401, 34
      %v2415 = vpop.permute.xlu0 %2414
      %vm2416 = vcmask 277504
      %v2417 = vsel %vm2416, %v2403, %v2405
      %v2418 = vsel %vm2416, %v2405, %v2407
      %v2419 = vsel %vm2416, %v2407, %v2409
      %v2420 = vsel %vm2416, %v2409, %v2411
      %v2421 = vsel %vm2416, %v2411, %v2413
      %v2422 = vsel %vm2416, %v2413, %v2415
      %2430 = vst [vmem:[#allocation3 + $0x180] sm:$0x30] %v2417
      %2431 = vst [vmem:[#allocation3 + $0x188] sm:$0x30] %v2418
      %2432 = vst [vmem:[#allocation3 + $0x190] sm:$0x30] %v2419
      %2433 = vst [vmem:[#allocation3 + $0x198] sm:$0x30] %v2420
      %2434 = vst [vmem:[#allocation3 + $0x1a0] sm:$0x30] %v2421
      %2435 = vst [vmem:[#allocation3 + $0x1a8] sm:$0x30] %v2422
      %2436 = vst.msk [vmem:[#allocation3 + $0x1b0] sm:$0x30] %vm662, %v2415
      %2437 = vst [vmem:[#allocation3 + $0x180] sm:$0xc0] 0
      %2438 = vst [vmem:[#allocation3 + $0x188] sm:$0xc0] 0
      %2439 = vst [vmem:[#allocation3 + $0x190] sm:$0xc0] 0
      %2440 = vst [vmem:[#allocation3 + $0x198] sm:$0xc0] 0
      %2441 = vst [vmem:[#allocation3 + $0x1a0] sm:$0xc0] 0
      %2442 = vst [vmem:[#allocation3 + $0x1a8] sm:$0xc0] 0
      %2443 = vst [vmem:[#allocation3 + $0x1b0] sm:$0xc0] 0
      %2444 = vst [vmem:[#allocation3 + $0x1b8] sm:$0xc0] 0
      %2445 = vst [vmem:[#allocation3 + $0x1c0] sm:$0xff] 0
      %2446 = vst [vmem:[#allocation3 + $0x1c8] sm:$0xff] 0
      %2447 = vst [vmem:[#allocation3 + $0x1d0] sm:$0xff] 0
      %2448 = vst [vmem:[#allocation3 + $0x1d8] sm:$0xff] 0
      %2449 = vst [vmem:[#allocation3 + $0x1e0] sm:$0xff] 0
      %2450 = vst [vmem:[#allocation3 + $0x1e8] sm:$0xff] 0
      %2451 = vst [vmem:[#allocation3 + $0x1f0] sm:$0xff] 0
      %2452 = vst [vmem:[#allocation3 + $0x1f8] sm:$0xff] 0
      %v2453 = vld [vmem:[%s3] sm:$0x3]
      %v2454 = vld [vmem:[#allocation3] sm:$0xff]
      %v2455 = vld [vmem:[#allocation3 + $0x8] sm:$0xff]
      %v2456 = vld [vmem:[#allocation3 + $0x10] sm:$0xff]
      %v2457 = vld [vmem:[#allocation3 + $0x18] sm:$0xff]
      %v2458 = vld [vmem:[#allocation3 + $0x20] sm:$0xff]
      %v2459 = vld [vmem:[#allocation3 + $0x28] sm:$0xff]
      %v2460 = vld [vmem:[#allocation3 + $0x30] sm:$0xff]
      %v2461 = vld [vmem:[#allocation3 + $0x38] sm:$0xff]
      %v2462 = vld [vmem:[#allocation3 + $0x40] sm:$0xff]
      %v2463 = vld [vmem:[#allocation3 + $0x48] sm:$0xff]
      %v2464 = vld [vmem:[#allocation3 + $0x50] sm:$0xff]
      %v2465 = vld [vmem:[#allocation3 + $0x58] sm:$0xff]
      %v2466 = vld [vmem:[#allocation3 + $0x60] sm:$0xff]
      %v2467 = vld [vmem:[#allocation3 + $0x68] sm:$0xff]
      %v2468 = vld [vmem:[#allocation3 + $0x70] sm:$0xff]
      %v2469 = vld [vmem:[#allocation3 + $0x78] sm:$0xff]
      %v2470 = vld [vmem:[#allocation3 + $0x80] sm:$0xff]
      %v2471 = vld [vmem:[#allocation3 + $0x88] sm:$0xff]
      %v2472 = vld [vmem:[#allocation3 + $0x90] sm:$0xff]
      %v2473 = vld [vmem:[#allocation3 + $0x98] sm:$0xff]
      %v2474 = vld [vmem:[#allocation3 + $0xa0] sm:$0xff]
      %v2475 = vld [vmem:[#allocation3 + $0xa8] sm:$0xff]
      %v2476 = vld [vmem:[#allocation3 + $0xb0] sm:$0xff]
      %v2477 = vld [vmem:[#allocation3 + $0xb8] sm:$0xff]
      %v2478 = vld [vmem:[#allocation3 + $0xc0] sm:$0xff]
      %v2479 = vld [vmem:[#allocation3 + $0xc8] sm:$0xff]
      %v2480 = vld [vmem:[#allocation3 + $0xd0] sm:$0xff]
      %v2481 = vld [vmem:[#allocation3 + $0xd8] sm:$0xff]
      %v2482 = vld [vmem:[#allocation3 + $0xe0] sm:$0xff]
      %v2483 = vld [vmem:[#allocation3 + $0xe8] sm:$0xff]
      %v2484 = vld [vmem:[#allocation3 + $0xf0] sm:$0xff]
      %v2485 = vld [vmem:[#allocation3 + $0xf8] sm:$0xff]
      %v2486 = vld [vmem:[#allocation3 + $0x100] sm:$0xff]
      %v2487 = vld [vmem:[#allocation3 + $0x108] sm:$0xff]
      %v2488 = vld [vmem:[#allocation3 + $0x110] sm:$0xff]
      %v2489 = vld [vmem:[#allocation3 + $0x118] sm:$0xff]
      %v2490 = vld [vmem:[#allocation3 + $0x120] sm:$0xff]
      %v2491 = vld [vmem:[#allocation3 + $0x128] sm:$0xff]
      %v2492 = vld [vmem:[#allocation3 + $0x130] sm:$0xff]
      %v2493 = vld [vmem:[#allocation3 + $0x138] sm:$0xff]
      %v2494 = vld [vmem:[#allocation3 + $0x140] sm:$0xff]
      %v2495 = vld [vmem:[#allocation3 + $0x148] sm:$0xff]
      %v2496 = vld [vmem:[#allocation3 + $0x150] sm:$0xff]
      %v2497 = vld [vmem:[#allocation3 + $0x158] sm:$0xff]
      %v2498 = vld [vmem:[#allocation3 + $0x160] sm:$0xff]
      %v2499 = vld [vmem:[#allocation3 + $0x168] sm:$0xff]
      %v2500 = vld [vmem:[#allocation3 + $0x170] sm:$0xff]
      %v2501 = vld [vmem:[#allocation3 + $0x178] sm:$0xff]
      %v2502 = vld [vmem:[#allocation3 + $0x180] sm:$0xff]
      %v2503 = vld [vmem:[#allocation3 + $0x188] sm:$0xff]
      %v2504 = vld [vmem:[#allocation3 + $0x190] sm:$0xff]
      %v2505 = vld [vmem:[#allocation3 + $0x198] sm:$0xff]
      %v2506 = vld [vmem:[#allocation3 + $0x1a0] sm:$0xff]
      %v2507 = vld [vmem:[#allocation3 + $0x1a8] sm:$0xff]
      %v2508 = vld [vmem:[#allocation3 + $0x1b0] sm:$0xff]
      %v2509 = vld [vmem:[#allocation3 + $0x1b8] sm:$0xff]
      %v2510 = vld [vmem:[#allocation3 + $0x1c0] sm:$0xff]
      %v2511 = vld [vmem:[#allocation3 + $0x1c8] sm:$0xff]
      %v2512 = vld [vmem:[#allocation3 + $0x1d0] sm:$0xff]
      %v2513 = vld [vmem:[#allocation3 + $0x1d8] sm:$0xff]
      %v2514 = vld [vmem:[#allocation3 + $0x1e0] sm:$0xff]
      %v2515 = vld [vmem:[#allocation3 + $0x1e8] sm:$0xff]
      %v2516 = vld [vmem:[#allocation3 + $0x1f0] sm:$0xff]
      %v2517 = vld [vmem:[#allocation3 + $0x1f8] sm:$0xff]
      %2518 = vmatprep.subr.bf16.mxu0 %v2455
      %2519 = vmatpush1.bf16.msra.mxu0 %v2454
      %2520 = vmatprep.subr.bf16.mxu0 %v2463
      %2521 = vmatpush1.bf16.msra.mxu0 %v2462
      %2522 = vmatprep.subr.bf16.mxu0 %v2471
      %2523 = vmatpush1.bf16.msra.mxu0 %v2470
      %2524 = vmatprep.subr.bf16.mxu0 %v2479
      %2525 = vmatpush1.bf16.msra.mxu0 %v2478
      %2526 = vmatprep.subr.bf16.mxu0 %v2487
      %2527 = vmatpush1.bf16.msra.mxu0 %v2486
      %2528 = vmatprep.subr.bf16.mxu0 %v2495
      %2529 = vmatpush1.bf16.msra.mxu0 %v2494
      %2530 = vmatprep.subr.bf16.mxu0 %v2503
      %2531 = vmatpush1.bf16.msra.mxu0 %v2502
      %2532 = vmatprep.subr.bf16.mxu0 %v2511
      %2533 = vmatpush1.bf16.msra.mxu0 %v2510
      %2534 = vmatprep.subr.bf16.mxu0 0
      %2535 = vmatpush1.bf16.msra.mxu0 0
      %2536 = vmatprep.subr.bf16.mxu0 0
      %2537 = vmatpush1.bf16.msra.mxu0 0
      %2538 = vmatprep.subr.bf16.mxu0 0
      %2539 = vmatpush1.bf16.msra.mxu0 0
      %2540 = vmatprep.subr.bf16.mxu0 0
      %2541 = vmatpush1.bf16.msra.mxu0 0
      %2542 = vmatprep.subr.bf16.mxu0 0
      %2543 = vmatpush1.bf16.msra.mxu0 0
      %2544 = vmatprep.subr.bf16.mxu0 0
      %2545 = vmatpush1.bf16.msra.mxu0 0
      %2546 = vmatprep.subr.bf16.mxu0 0
      %2547 = vmatpush1.bf16.msra.mxu0 0
      %2548 = vmatprep.subr.bf16.mxu0 0
      %2549 = vmatpush1.bf16.msra.mxu0 0
      %2550 = vmatprep.mubr.bf16.mxu0 0
      %2551 = vmatmul.mubr.bf16.gmra.mrb[0].mxu0 %v2453
      %v2552 = vpop.f32.mrb[0].mxu0
      %v2553 = vadd.f32 0.0, %v2552
      %v2554 = vpop.f32.mrb[0].mxu0
      %v2555 = vadd.f32 0.0, %v2554
      %v2556 = vpop.f32.mrb[0].mxu0
      %v2557 = vpop.f32.mrb[0].mxu0
      %2558 = vdwg.mxu0
      %2559 = vmatprep.subr.bf16.mxu0 %v2457
      %2560 = vmatpush1.bf16.msra.mxu0 %v2456
      %2561 = vmatprep.subr.bf16.mxu0 %v2465
      %2562 = vmatpush1.bf16.msra.mxu0 %v2464
      %2563 = vmatprep.subr.bf16.mxu0 %v2473
      %2564 = vmatpush1.bf16.msra.mxu0 %v2472
      %2565 = vmatprep.subr.bf16.mxu0 %v2481
      %2566 = vmatpush1.bf16.msra.mxu0 %v2480
      %2567 = vmatprep.subr.bf16.mxu0 %v2489
      %2568 = vmatpush1.bf16.msra.mxu0 %v2488
      %2569 = vmatprep.subr.bf16.mxu0 %v2497
      %2570 = vmatpush1.bf16.msra.mxu0 %v2496
      %2571 = vmatprep.subr.bf16.mxu0 %v2505
      %2572 = vmatpush1.bf16.msra.mxu0 %v2504
      %2573 = vmatprep.subr.bf16.mxu0 %v2513
      %2574 = vmatpush1.bf16.msra.mxu0 %v2512
      %2575 = vmatprep.subr.bf16.mxu0 0
      %2576 = vmatpush1.bf16.msra.mxu0 0
      %2577 = vmatprep.subr.bf16.mxu0 0
      %2578 = vmatpush1.bf16.msra.mxu0 0
      %2579 = vmatprep.subr.bf16.mxu0 0
      %2580 = vmatpush1.bf16.msra.mxu0 0
      %2581 = vmatprep.subr.bf16.mxu0 0
      %2582 = vmatpush1.bf16.msra.mxu0 0
      %2583 = vmatprep.subr.bf16.mxu0 0
      %2584 = vmatpush1.bf16.msra.mxu0 0
      %2585 = vmatprep.subr.bf16.mxu0 0
      %2586 = vmatpush1.bf16.msra.mxu0 0
      %2587 = vmatprep.subr.bf16.mxu0 0
      %2588 = vmatpush1.bf16.msra.mxu0 0
      %2589 = vmatprep.subr.bf16.mxu0 0
      %2590 = vmatpush1.bf16.msra.mxu0 0
      %2591 = vmatprep.mubr.bf16.mxu0 0
      %2592 = vmatmul.mubr.bf16.gmra.mrb[0].mxu0 %v2453
      %v2593 = vpop.f32.mrb[0].mxu0
      %v2594 = vadd.f32 0.0, %v2593
      %v2595 = vpop.f32.mrb[0].mxu0
      %v2596 = vadd.f32 0.0, %v2595
      %v2597 = vpop.f32.mrb[0].mxu0
      %v2598 = vpop.f32.mrb[0].mxu0
      %2599 = vdwg.mxu0
      %2600 = vmatprep.subr.bf16.mxu0 %v2459
      %2601 = vmatpush1.bf16.msra.mxu0 %v2458
      %2602 = vmatprep.subr.bf16.mxu0 %v2467
      %2603 = vmatpush1.bf16.msra.mxu0 %v2466
      %2604 = vmatprep.subr.bf16.mxu0 %v2475
      %2605 = vmatpush1.bf16.msra.mxu0 %v2474
      %2606 = vmatprep.subr.bf16.mxu0 %v2483
      %2607 = vmatpush1.bf16.msra.mxu0 %v2482
      %2608 = vmatprep.subr.bf16.mxu0 %v2491
      %2609 = vmatpush1.bf16.msra.mxu0 %v2490
      %2610 = vmatprep.subr.bf16.mxu0 %v2499
      %2611 = vmatpush1.bf16.msra.mxu0 %v2498
      %2612 = vmatprep.subr.bf16.mxu0 %v2507
      %2613 = vmatpush1.bf16.msra.mxu0 %v2506
      %2614 = vmatprep.subr.bf16.mxu0 %v2515
      %2615 = vmatpush1.bf16.msra.mxu0 %v2514
      %2616 = vmatprep.subr.bf16.mxu0 0
      %2617 = vmatpush1.bf16.msra.mxu0 0
      %2618 = vmatprep.subr.bf16.mxu0 0
      %2619 = vmatpush1.bf16.msra.mxu0 0
      %2620 = vmatprep.subr.bf16.mxu0 0
      %2621 = vmatpush1.bf16.msra.mxu0 0
      %2622 = vmatprep.subr.bf16.mxu0 0
      %2623 = vmatpush1.bf16.msra.mxu0 0
      %2624 = vmatprep.subr.bf16.mxu0 0
      %2625 = vmatpush1.bf16.msra.mxu0 0
      %2626 = vmatprep.subr.bf16.mxu0 0
      %2627 = vmatpush1.bf16.msra.mxu0 0
      %2628 = vmatprep.subr.bf16.mxu0 0
      %2629 = vmatpush1.bf16.msra.mxu0 0
      %2630 = vmatprep.subr.bf16.mxu0 0
      %2631 = vmatpush1.bf16.msra.mxu0 0
      %2632 = vmatprep.mubr.bf16.mxu0 0
      %2633 = vmatmul.mubr.bf16.gmra.mrb[0].mxu0 %v2453
      %v2634 = vpop.f32.mrb[0].mxu0
      %v2635 = vadd.f32 0.0, %v2634
      %v2636 = vpop.f32.mrb[0].mxu0
      %v2637 = vadd.f32 0.0, %v2636
      %v2638 = vpop.f32.mrb[0].mxu0
      %v2639 = vpop.f32.mrb[0].mxu0
      %2640 = vdwg.mxu0
      %2641 = vmatprep.subr.bf16.mxu0 %v2461
      %2642 = vmatpush1.bf16.msra.mxu0 %v2460
      %2643 = vmatprep.subr.bf16.mxu0 %v2469
      %2644 = vmatpush1.bf16.msra.mxu0 %v2468
      %2645 = vmatprep.subr.bf16.mxu0 %v2477
      %2646 = vmatpush1.bf16.msra.mxu0 %v2476
      %2647 = vmatprep.subr.bf16.mxu0 %v2485
      %2648 = vmatpush1.bf16.msra.mxu0 %v2484
      %2649 = vmatprep.subr.bf16.mxu0 %v2493
      %2650 = vmatpush1.bf16.msra.mxu0 %v2492
      %2651 = vmatprep.subr.bf16.mxu0 %v2501
      %2652 = vmatpush1.bf16.msra.mxu0 %v2500
      %2653 = vmatprep.subr.bf16.mxu0 %v2509
      %2654 = vmatpush1.bf16.msra.mxu0 %v2508
      %2655 = vmatprep.subr.bf16.mxu0 %v2517
      %2656 = vmatpush1.bf16.msra.mxu0 %v2516
      %2657 = vmatprep.subr.bf16.mxu0 0
      %2658 = vmatpush1.bf16.msra.mxu0 0
      %2659 = vmatprep.subr.bf16.mxu0 0
      %2660 = vmatpush1.bf16.msra.mxu0 0
      %2661 = vmatprep.subr.bf16.mxu0 0
      %2662 = vmatpush1.bf16.msra.mxu0 0
      %2663 = vmatprep.subr.bf16.mxu0 0
      %2664 = vmatpush1.bf16.msra.mxu0 0
      %2665 = vmatprep.subr.bf16.mxu0 0
      %2666 = vmatpush1.bf16.msra.mxu0 0
      %2667 = vmatprep.subr.bf16.mxu0 0
      %2668 = vmatpush1.bf16.msra.mxu0 0
      %2669 = vmatprep.subr.bf16.mxu0 0
      %2670 = vmatpush1.bf16.msra.mxu0 0
      %2671 = vmatprep.subr.bf16.mxu0 0
      %2672 = vmatpush1.bf16.msra.mxu0 0
      %2673 = vmatprep.mubr.bf16.mxu0 0
      %2674 = vmatmul.mubr.bf16.gmra.mrb[0].mxu0 %v2453
      %v2675 = vpop.f32.mrb[0].mxu0
      %v2676 = vadd.f32 0.0, %v2675
      %v2677 = vpop.f32.mrb[0].mxu0
      %v2678 = vpop.f32.mrb[0].mxu0
      %v2679 = vpop.f32.mrb[0].mxu0
      %2680 = vdwg.mxu0
      %v2681 = vld [vmem:[%s5] sm:$0xff]
      %vm2682 = vcmp.gt.f32.partialorder %v2681, 0.0
      %v2683 = vld [vmem:[%s4] sm:$0xf]
      %2685 = vset.pattern.permute.xlu0 0
      %2686 = vperm.xlu0 %2685, %v2683
      %v2687 = vpop.permute.xlu0 %2686
      %v2689 = vadd.f32 %v2553, %v2687
      %v2690 = vadd.f32 %v2555, %v2687
      %v2691 = vadd.f32 %v2594, %v2687
      %v2692 = vadd.f32 %v2596, %v2687
      %v2693 = vadd.f32 %v2635, %v2687
      %v2694 = vadd.f32 %v2637, %v2687
      %v2695 = vadd.f32 %v2676, %v2687
      %v2696 = vsel %vm2682, 1, 0
      %v2697 = vlaneseq
      %v2698 = vshrl.u32 %v2697, 7
      %v2699 = vsub.s32 0, %v2698
      %v2700 = vrot.slane %v2696, %v2699
      %v2701 = vlaneseq
      %v2702 = vshrl.u32 %v2701, 7
      %v2703 = vsub.s32 1, %v2702
      %v2704 = vrot.slane %v2696, %v2703
      %v2705 = vlaneseq
      %v2706 = vshrl.u32 %v2705, 7
      %v2707 = vsub.s32 2, %v2706
      %v2708 = vrot.slane %v2696, %v2707
      %v2709 = vlaneseq
      %v2710 = vshrl.u32 %v2709, 7
      %v2711 = vsub.s32 3, %v2710
      %v2712 = vrot.slane %v2696, %v2711
      %v2713 = vlaneseq
      %v2714 = vshrl.u32 %v2713, 7
      %v2715 = vsub.s32 4, %v2714
      %v2716 = vrot.slane %v2696, %v2715
      %v2717 = vlaneseq
      %v2718 = vshrl.u32 %v2717, 7
      %v2719 = vsub.s32 5, %v2718
      %v2720 = vrot.slane %v2696, %v2719
      %v2721 = vlaneseq
      %v2722 = vshrl.u32 %v2721, 7
      %v2723 = vsub.s32 6, %v2722
      %v2724 = vrot.slane %v2696, %v2723
      %vm2725 = vcmp.eq.s32.totalorder %v2700, 1
      %vm2726 = vcmp.eq.s32.totalorder %v2704, 1
      %vm2727 = vcmp.eq.s32.totalorder %v2708, 1
      %vm2728 = vcmp.eq.s32.totalorder %v2712, 1
      %vm2729 = vcmp.eq.s32.totalorder %v2716, 1
      %vm2730 = vcmp.eq.s32.totalorder %v2720, 1
      %vm2731 = vcmp.eq.s32.totalorder %v2724, 1
      %v2732 = vsel %vm2725, %v2689, 0.0
      %v2733 = vsel %vm2726, %v2690, 0.0
      %v2734 = vsel %vm2727, %v2691, 0.0
      %v2735 = vsel %vm2728, %v2692, 0.0
      %v2736 = vsel %vm2729, %v2693, 0.0
      %v2737 = vsel %vm2730, %v2694, 0.0
      %v2738 = vsel %vm2731, %v2695, 0.0
      %vm2739 = vcmask 1043456
      %v2740 = vsel %vm2739, %v2732, 0.0
      %v2741 = vsel %vm2739, %v2733, 0.0
      %v2742 = vadd.f32 %v2740, %v2741
      %v2743 = vsel %vm2739, %v2734, 0.0
      %v2744 = vadd.f32 %v2742, %v2743
      %v2745 = vsel %vm2739, %v2735, 0.0
      %v2746 = vadd.f32 %v2744, %v2745
      %v2747 = vsel %vm2739, %v2736, 0.0
      %v2748 = vadd.f32 %v2746, %v2747
      %v2749 = vsel %vm2739, %v2737, 0.0
      %v2750 = vadd.f32 %v2748, %v2749
      %v2751 = vsel %vm2739, %v2738, 0.0
      %v2752 = vadd.f32 %v2750, %v2751
      %2753 = vadd.xlane.f32.xlu0 %v2752
      %v2754 = vpop.xlane.xlu0 %2753
      %vm2755 = vcmask 3072
      %2756 = vst.msk [vmem:[%s289] sm:$0xf] %vm2755, %v2754
      %v2757 = vmul.f32 %v2732, %v2732
      %v2758 = vmul.f32 %v2733, %v2733
      %v2759 = vmul.f32 %v2734, %v2734
      %v2760 = vmul.f32 %v2735, %v2735
      %v2761 = vmul.f32 %v2736, %v2736
      %v2762 = vmul.f32 %v2737, %v2737
      %v2763 = vmul.f32 %v2738, %v2738
      %v2764 = vsel %vm2739, %v2757, 0.0
      %v2765 = vsel %vm2739, %v2758, 0.0
      %v2766 = vadd.f32 %v2764, %v2765
      %v2767 = vsel %vm2739, %v2759, 0.0
      %v2768 = vadd.f32 %v2766, %v2767
      %v2769 = vsel %vm2739, %v2760, 0.0
      %v2770 = vadd.f32 %v2768, %v2769
      %v2771 = vsel %vm2739, %v2761, 0.0
      %v2772 = vadd.f32 %v2770, %v2771
      %v2773 = vsel %vm2739, %v2762, 0.0
      %v2774 = vadd.f32 %v2772, %v2773
      %v2775 = vsel %vm2739, %v2763, 0.0
      %v2776 = vadd.f32 %v2774, %v2775
      %2777 = vadd.xlane.f32.xlu0 %v2776
      %v2778 = vpop.xlane.xlu0 %2777
      %vm2779 = vcmask 11272
      %2780 = vst.msk [vmem:[%s289] sm:$0xf] %vm2779, %v2778
      %v2787 = vcombine.low %v2732, %v2733
      %v2788 = vcombine.low %v2734, %v2735
      %v2789 = vcombine.low %v2736, %v2737
      %2793 = vst [vmem:[%s285] sm:$0xff] %v2787
      %2794 = vst [vmem:[%s285 + $0x8] sm:$0xff] %v2788
      %2795 = vst [vmem:[%s285 + $0x10] sm:$0xff] %v2789
      %2796 = vst [vmem:[%s285 + $0x18] sm:$0xf] %v2738
      %p2797 = scmp.lt.s32.totalorder %s19, 1
      %s2798 = scalar_select %p2797, %s19, 1
      %s2799 = smul.addr %s2798, 7
      %s2800 = smul.addr %s2799, 4
      %s2801 = scalar_lea.vmem %s6, %s2800
      %p2802 = scmp.lt.s32.totalorder %s19, 1
      %s2803 = scalar_select %p2802, %s19, 1
      %s2804 = smul.addr %s2803, 4
      %s2805 = scalar_lea.vmem %s7, %s2804
      // Predicated region
      $region45: #{up_forward.3} parent=43 // pred_check
        %p2806 = pneg %p168
      $region46: #{up_forward.3} parent=43 // pred_check_branch
        %2808 = sbr.rel (%p2806) target = $region48
      $region47: #{up_forward.3} parent=43 // pred_region
        _
      $region48: #{up_forward.3} parent=43 // pred_fallthru
        _
      // Predicated region
      $region49: #{up_forward.3} parent=43 // pred_check
        %p2809 = pneg %p194
      $region50: #{up_forward.3} parent=43 // pred_check_branch
        %2811 = sbr.rel (%p2809) target = $region52
      $region51: #{up_forward.3} parent=43 // pred_region
        _
      $region52: #{up_forward.3} parent=43 // pred_fallthru
        _
    $region44: #{up_forward.3} parent=5 // pred_fallthru
      _
    %p2812 = scmp.le.s32.totalorder 2, %s14
    // Predicated region
    $region53: #{up_forward.3} parent=5 // pred_check
      %p2813 = pneg %p2812
    $region54: #{up_forward.3} parent=5 // pred_check_branch
      %2815 = sbr.rel (%p2813) target = $region56
    $region55: #{up_forward.3} parent=5 // pred_region
      %s2816 = ssub.s32 %s14, 2
      // Predicated region
      $region57: #{up_forward.3} parent=55 // pred_check
        %p2817 = pneg %p174
      $region58: #{up_forward.3} parent=55 // pred_check_branch
        %2819 = sbr.rel (%p2817) target = $region60
      $region59: #{up_forward.3} parent=55 // pred_region
        %p2820 = scmp.lt.s32.totalorder %s20, 1
        %s2821 = scalar_select %p2820, %s20, 1
        %s2822 = smul.addr %s2821, 7
        %s2823 = smul.addr %s2822, 4
        %s2824 = scalar_lea.vmem %s6, %s2823
      $region60: #{up_forward.3} parent=55 // pred_fallthru
        _
      // Predicated region
      $region61: #{up_forward.3} parent=55 // pred_check
        %p2825 = pneg %p200
      $region62: #{up_forward.3} parent=55 // pred_check_branch
        %2827 = sbr.rel (%p2825) target = $region64
      $region63: #{up_forward.3} parent=55 // pred_region
        %p2828 = scmp.lt.s32.totalorder %s20, 1
        %s2829 = scalar_select %p2828, %s20, 1
        %s2830 = smul.addr %s2829, 4
        %s2831 = scalar_lea.vmem %s7, %s2830
      $region64: #{up_forward.3} parent=55 // pred_fallthru
        _
    $region56: #{up_forward.3} parent=5 // pred_fallthru
      _
  $region6: #{up_forward.3} parent=0 // loop_footer
    %s18 = sadd.s32 1, %s14
  $region7: #{up_forward.3} parent=0 // loop_footer_branch
    %13 = sbr.rel target = $region3
  $region8: #{up_forward.3} parent=0 // loop_exit
    _

// kernel: up_forward.2
$region0: #{up_forward.2}
  #allocation0 [shape = 'u32[]', space=smem, size = 0x4, offset = 0x4, fixed_abs, tag = 'smem constant byte address 0x4 - core index']
  #allocation1 [shape = 'u32[144,128]{1,0:T(1,128)}', space=vmem, size = 0x12000, scoped, tag = 'internal scratch']
  #allocation2 [shape = 'bf16[256,1024]{1,0:T(16,128)(2,1)}', space=vmem, size = 0x80000, scoped, tag = 'scratch operand']
  %s0 = inlined_call_operand.vmem [shape: bf16[2,4,1024], index: 0, kind: input, shape index: {}]
  %s1 = inlined_call_operand.vmem [shape: bf16[2,4,1024], index: 1, kind: input, shape index: {}]
  %s2 = inlined_call_operand.vmem [shape: bf16[4,256], index: 2, kind: input, shape index: {}]
  %s3 = inlined_call_operand.vmem [shape: f32[4,1], index: 3, kind: input, shape index: {}]
  %s4 = inlined_call_operand.vmem [shape: f32[1,896], index: 4, kind: input, shape index: {}]
  %s5 = inlined_call_operand.vmem [shape: bf16[2,4,896], index: 5, kind: output, shape index: {0}]
  %s6 = inlined_call_operand.vmem [shape: f32[2,4,2], index: 6, kind: output, shape index: {1}]
  %7 = xla_tuple %s5, %s6
  %s8 = sld [smem:[#allocation0]]
  $region61: #{up_forward.2} parent=0
    _
  %s10 = ssub.s32 1, %s8
  %s11 = scalar_select 0, %s10, %s8
  loop: start=0, step=1, limit=4
  $region2: #{up_forward.2} parent=0 // loop_pre_header
    _
  $region3: #{up_forward.2} parent=0 // loop_header
    %s13 = sphi 0, %s17
    %p14 = scmp.ge.s32.totalorder %s13, 4
    %s23 = sphi 0, %s25
    %s26 = sphi 0, %s23
    %s27 = sphi 0, %s26
    %s43 = sphi 0, %s27
    %s49 = sphi 0, %s51
    %s52 = sphi 0, %s49
    %s53 = sphi 0, %s52
    %s69 = sphi 0, %s53
    %s73 = sphi 0, %s73
    %s75 = sphi 0, %s73
    %s76 = sphi 0, %s75
    %s90 = sphi 0, %s76
    %s94 = sphi 0, %s94
    %s96 = sphi 0, %s94
    %s97 = sphi 0, %s96
    %s111 = sphi 0, %s97
    %s115 = sphi 0, %s115
    %s117 = sphi 0, %s115
    %s118 = sphi 0, %s117
    %s132 = sphi 0, %s118
    %s138 = sphi 0, %s140
    %s141 = sphi 0, %s138
    %s142 = sphi 0, %s141
    %s158 = sphi 0, %s142
    %s164 = sphi 0, %s166
    %s167 = sphi 0, %s164
    %s168 = sphi 0, %s167
    %s184 = sphi 0, %s168
  $region4: #{up_forward.2} parent=0 // loop_header_branch
    %16 = sbr.rel (%p14) target = $region8
  $region5: #{up_forward.2} parent=0 // loop_body
    %s18 = ssub.s32 %s13, 1
    %s19 = ssub.s32 %s13, 2
    %s20 = sadd.s32 %s13, 1
    %s21 = ssub.s32 %s13, %s20
    %p22 = scmp.eq.s32.totalorder %s21, 0
    %s24 = sadd.s32 %s23, 1
    %s25 = scalar_select %p22, %s23, %s24
    %p28 = pneg %p22
    %p29 = scmp.eq.s32.totalorder %s13, 1
    %p30 = por %p28, %p29
    %p31 = scmp.ne.s32.totalorder %s23, %s26
    %p32 = scmp.eq.s32.totalorder %s13, 0
    %p33 = por %p31, %p32
    %p34 = scmp.ne.s32.totalorder %s23, %s26
    %p35 = scmp.eq.s32.totalorder %s18, 1
    %p36 = por %p34, %p35
    %p37 = scmp.ne.s32.totalorder %s26, %s27
    %p38 = scmp.eq.s32.totalorder %s18, 0
    %p39 = por %p37, %p38
    %p40 = scmp.ne.s32.totalorder %s26, %s27
    %p41 = scmp.eq.s32.totalorder %s19, 1
    %p42 = por %p40, %p41
    %p44 = scmp.ne.s32.totalorder %s27, %s43
    %p45 = scmp.eq.s32.totalorder %s19, 0
    %p46 = por %p44, %p45
    %s47 = ssub.s32 %s13, %s20
    %p48 = scmp.eq.s32.totalorder %s47, 0
    %s50 = sadd.s32 %s49, 1
    %s51 = scalar_select %p48, %s49, %s50
    %p54 = pneg %p48
    %p55 = scmp.eq.s32.totalorder %s13, 1
    %p56 = por %p54, %p55
    %p57 = scmp.ne.s32.totalorder %s49, %s52
    %p58 = scmp.eq.s32.totalorder %s13, 0
    %p59 = por %p57, %p58
    %p60 = scmp.ne.s32.totalorder %s49, %s52
    %p61 = scmp.eq.s32.totalorder %s18, 1
    %p62 = por %p60, %p61
    %p63 = scmp.ne.s32.totalorder %s52, %s53
    %p64 = scmp.eq.s32.totalorder %s18, 0
    %p65 = por %p63, %p64
    %p66 = scmp.ne.s32.totalorder %s52, %s53
    %p67 = scmp.eq.s32.totalorder %s19, 1
    %p68 = por %p66, %p67
    %p70 = scmp.ne.s32.totalorder %s53, %s69
    %p71 = scmp.eq.s32.totalorder %s19, 0
    %p72 = por %p70, %p71
    %s74 = sadd.s32 %s73, 1
    %p77 = scmp.eq.s32.totalorder %s13, 1
    %p78 = scmp.ne.s32.totalorder %s73, %s75
    %p79 = scmp.eq.s32.totalorder %s13, 0
    %p80 = por %p78, %p79
    %p81 = scmp.ne.s32.totalorder %s73, %s75
    %p82 = scmp.eq.s32.totalorder %s18, 1
    %p83 = por %p81, %p82
    %p84 = scmp.ne.s32.totalorder %s75, %s76
    %p85 = scmp.eq.s32.totalorder %s18, 0
    %p86 = por %p84, %p85
    %p87 = scmp.ne.s32.totalorder %s75, %s76
    %p88 = scmp.eq.s32.totalorder %s19, 1
    %p89 = por %p87, %p88
    %p91 = scmp.ne.s32.totalorder %s76, %s90
    %p92 = scmp.eq.s32.totalorder %s19, 0
    %p93 = por %p91, %p92
    %s95 = sadd.s32 %s94, 1
    %p98 = scmp.eq.s32.totalorder %s13, 1
    %p99 = scmp.ne.s32.totalorder %s94, %s96
    %p100 = scmp.eq.s32.totalorder %s13, 0
    %p101 = por %p99, %p100
    %p102 = scmp.ne.s32.totalorder %s94, %s96
    %p103 = scmp.eq.s32.totalorder %s18, 1
    %p104 = por %p102, %p103
    %p105 = scmp.ne.s32.totalorder %s96, %s97
    %p106 = scmp.eq.s32.totalorder %s18, 0
    %p107 = por %p105, %p106
    %p108 = scmp.ne.s32.totalorder %s96, %s97
    %p109 = scmp.eq.s32.totalorder %s19, 1
    %p110 = por %p108, %p109
    %p112 = scmp.ne.s32.totalorder %s97, %s111
    %p113 = scmp.eq.s32.totalorder %s19, 0
    %p114 = por %p112, %p113
    %s116 = sadd.s32 %s115, 1
    %p119 = scmp.eq.s32.totalorder %s13, 1
    %p120 = scmp.ne.s32.totalorder %s115, %s117
    %p121 = scmp.eq.s32.totalorder %s13, 0
    %p122 = por %p120, %p121
    %p123 = scmp.ne.s32.totalorder %s115, %s117
    %p124 = scmp.eq.s32.totalorder %s18, 1
    %p125 = por %p123, %p124
    %p126 = scmp.ne.s32.totalorder %s117, %s118
    %p127 = scmp.eq.s32.totalorder %s18, 0
    %p128 = por %p126, %p127
    %p129 = scmp.ne.s32.totalorder %s117, %s118
    %p130 = scmp.eq.s32.totalorder %s19, 1
    %p131 = por %p129, %p130
    %p133 = scmp.ne.s32.totalorder %s118, %s132
    %p134 = scmp.eq.s32.totalorder %s19, 0
    %p135 = por %p133, %p134
    %s136 = ssub.s32 %s13, %s20
    %p137 = scmp.eq.s32.totalorder %s136, 0
    %s139 = sadd.s32 %s138, 1
    %s140 = scalar_select %p137, %s138, %s139
    %p143 = pneg %p137
    %p144 = scmp.eq.s32.totalorder %s13, 1
    %p145 = por %p143, %p144
    %p146 = scmp.ne.s32.totalorder %s138, %s141
    %p147 = scmp.eq.s32.totalorder %s13, 0
    %p148 = por %p146, %p147
    %p149 = scmp.ne.s32.totalorder %s138, %s141
    %p150 = scmp.eq.s32.totalorder %s18, 1
    %p151 = por %p149, %p150
    %p152 = scmp.ne.s32.totalorder %s141, %s142
    %p153 = scmp.eq.s32.totalorder %s18, 0
    %p154 = por %p152, %p153
    %p155 = scmp.ne.s32.totalorder %s141, %s142
    %p156 = scmp.eq.s32.totalorder %s19, 1
    %p157 = por %p155, %p156
    %p159 = scmp.ne.s32.totalorder %s142, %s158
    %p160 = scmp.eq.s32.totalorder %s19, 0
    %p161 = por %p159, %p160
    %s162 = ssub.s32 %s13, %s20
    %p163 = scmp.eq.s32.totalorder %s162, 0
    %s165 = sadd.s32 %s164, 1
    %s166 = scalar_select %p163, %s164, %s165
    %p169 = pneg %p163
    %p170 = scmp.eq.s32.totalorder %s13, 1
    %p171 = por %p169, %p170
    %p172 = scmp.ne.s32.totalorder %s164, %s167
    %p173 = scmp.eq.s32.totalorder %s13, 0
    %p174 = por %p172, %p173
    %p175 = scmp.ne.s32.totalorder %s164, %s167
    %p176 = scmp.eq.s32.totalorder %s18, 1
    %p177 = por %p175, %p176
    %p178 = scmp.ne.s32.totalorder %s167, %s168
    %p179 = scmp.eq.s32.totalorder %s18, 0
    %p180 = por %p178, %p179
    %p181 = scmp.ne.s32.totalorder %s167, %s168
    %p182 = scmp.eq.s32.totalorder %s19, 1
    %p183 = por %p181, %p182
    %p185 = scmp.ne.s32.totalorder %s168, %s184
    %p186 = scmp.eq.s32.totalorder %s19, 0
    %p187 = por %p185, %p186
    %p188 = scmp.le.s32.totalorder 1, %s13
    %p189 = scmp.lt.s32.totalorder %s13, 3
    %p190 = pnand %p188, %p189
    %p191 = pneg %p190
    // Predicated region
    $region9: #{up_forward.2} parent=5 // pred_check
      _
    $region10: #{up_forward.2} parent=5 // pred_check_branch
      %193 = sbr.rel (%p190) target = $region12
    $region11: #{up_forward.2} parent=5 // pred_region
      %s194 = ssub.s32 %s13, 1
      // Predicated region
      $region13: #{up_forward.2} parent=11 // pred_check
        %p195 = pneg %p86
      $region14: #{up_forward.2} parent=11 // pred_check_branch
        %197 = sbr.rel (%p195) target = $region16
      $region15: #{up_forward.2} parent=11 // pred_region
        _
      $region16: #{up_forward.2} parent=11 // pred_fallthru
        _
      // Predicated region
      $region17: #{up_forward.2} parent=11 // pred_check
        %p198 = pneg %p107
      $region18: #{up_forward.2} parent=11 // pred_check_branch
        %200 = sbr.rel (%p198) target = $region20
      $region19: #{up_forward.2} parent=11 // pred_region
        _
      $region20: #{up_forward.2} parent=11 // pred_fallthru
        _
      // Predicated region
      $region21: #{up_forward.2} parent=11 // pred_check
        %p201 = pneg %p128
      $region22: #{up_forward.2} parent=11 // pred_check_branch
        %203 = sbr.rel (%p201) target = $region24
      $region23: #{up_forward.2} parent=11 // pred_region
        _
      $region24: #{up_forward.2} parent=11 // pred_fallthru
        _
    $region12: #{up_forward.2} parent=5 // pred_fallthru
      _
    %p204 = scmp.lt.s32.totalorder %s13, 2
    // Predicated region
    $region25: #{up_forward.2} parent=5 // pred_check
      %p205 = pneg %p204
    $region26: #{up_forward.2} parent=5 // pred_check_branch
      %207 = sbr.rel (%p205) target = $region28
    $region27: #{up_forward.2} parent=5 // pred_region
      // Predicated region
      $region29: #{up_forward.2} parent=27 // pred_check
        %p208 = pneg %p33
      $region30: #{up_forward.2} parent=27 // pred_check_branch
        %210 = sbr.rel (%p208) target = $region32
      $region31: #{up_forward.2} parent=27 // pred_region
        %p211 = scmp.lt.s32.totalorder %s13, 1
        %s212 = scalar_select %p211, %s13, 1
        %s213 = smul.addr %s212, 8
        %s214 = smul.addr %s213, 2
        %s215 = scalar_lea.vmem %s0, %s214
      $region32: #{up_forward.2} parent=27 // pred_fallthru
        _
      // Predicated region
      $region33: #{up_forward.2} parent=27 // pred_check
        %p216 = pneg %p59
      $region34: #{up_forward.2} parent=27 // pred_check_branch
        %218 = sbr.rel (%p216) target = $region36
      $region35: #{up_forward.2} parent=27 // pred_region
        %p219 = scmp.lt.s32.totalorder %s13, 1
        %s220 = scalar_select %p219, %s13, 1
        %s221 = smul.addr %s220, 8
        %s222 = smul.addr %s221, 2
        %s223 = scalar_lea.vmem %s1, %s222
      $region36: #{up_forward.2} parent=27 // pred_fallthru
        _
    $region28: #{up_forward.2} parent=5 // pred_fallthru
      _
    %p224 = scmp.le.s32.totalorder 1, %s13
    %p225 = scmp.lt.s32.totalorder %s13, 3
    %p226 = pnand %p224, %p225
    %p227 = pneg %p226
    // Predicated region
    $region37: #{up_forward.2} parent=5 // pred_check
      _
    $region38: #{up_forward.2} parent=5 // pred_check_branch
      %229 = sbr.rel (%p226) target = $region40
    $region39: #{up_forward.2} parent=5 // pred_region
      %s230 = ssub.s32 %s13, 1
      %p231 = scmp.lt.s32.totalorder %s18, 1
      %s232 = scalar_select %p231, %s18, 1
      %s233 = smul.addr %s232, 8
      %s234 = smul.addr %s233, 2
      %s235 = scalar_lea.vmem %s0, %s234
      %p236 = pneg %p39
      %p237 = pneg %p36
      %p238 = scmp.lt.s32.totalorder %s18, 1
      %s239 = scalar_select %p238, %s18, 1
      %s240 = smul.addr %s239, 8
      %s241 = smul.addr %s240, 2
      %s242 = scalar_lea.vmem %s1, %s241
      %p243 = pneg %p65
      %p244 = pneg %p62
      %p245 = pneg %p86
      %p246 = pneg %p83
      %p247 = pneg %p107
      %p248 = pneg %p104
      %p249 = pneg %p128
      %p250 = pneg %p125
      %p251 = pneg %p154
      %p252 = pneg %p151
      %p253 = scmp.lt.s32.totalorder %s18, 1
      %s254 = scalar_select %p253, %s18, 1
      %s255 = smul.addr %s254, 7
      %s256 = smul.addr %s255, 2
      %s257 = scalar_lea.vmem %s5, %s256
      %p258 = pneg %p180
      %p259 = pneg %p177
      %p260 = scmp.lt.s32.totalorder %s18, 1
      %s261 = scalar_select %p260, %s18, 1
      %s262 = smul.addr %s261, 4
      %s263 = scalar_lea.vmem %s6, %s262
      %p264 = scmp.lt.s32.totalorder %s18, 1
      %s265 = scalar_select %p264, %s18, 1
      %s266 = smul.addr %s265, 8
      %s267 = smul.addr %s266, 2
      %s268 = scalar_lea.vmem %s0, %s267
      %p269 = scmp.lt.s32.totalorder %s18, 1
      %s270 = scalar_select %p269, %s18, 1
      %s271 = smul.addr %s270, 8
      %s272 = smul.addr %s271, 2
      %s273 = scalar_lea.vmem %s1, %s272
      %p274 = scmp.lt.s32.totalorder %s18, 1
      %s275 = scalar_select %p274, %s18, 1
      %s276 = smul.addr %s275, 7
      %s277 = smul.addr %s276, 2
      %s278 = scalar_lea.vmem %s5, %s277
      %p279 = scmp.lt.s32.totalorder %s18, 1
      %s280 = scalar_select %p279, %s18, 1
      %s281 = smul.addr %s280, 4
      %s282 = scalar_lea.vmem %s6, %s281
      %v284 = vld [vmem:[%s268] sm:$0xff]
      %v285 = vld [vmem:[%s268 + $0x8] sm:$0x3f]
      %v288 = vcombine.high %v284, %v284
      %v290 = vunpack.c.l.s4 1983009808
      %v291 = vunpack.c.0.s8 %v290
      %v292 = vlaneseq
      %v293 = vshrl.u32 %v292, 7
      %v294 = vsub.s32 %v291, %v293
      %v295 = vrot.slane %v284, %v294
      %v297 = vunpack.c.l.s4 1983009808
      %v298 = vunpack.c.0.s8 %v297
      %v299 = vlaneseq
      %v300 = vshrl.u32 %v299, 7
      %v301 = vsub.s32 %v298, %v300
      %v302 = vrot.slane %v288, %v301
      %v303 = vcombine.high %v295, %v295
      %v304 = vcombine.high %v302, %v302
      %v305 = vcombine.high %v285, %v285
      %v307 = vunpack.c.l.s4 1983009808
      %v308 = vunpack.c.0.s8 %v307
      %v309 = vlaneseq
      %v310 = vshrl.u32 %v309, 7
      %v311 = vsub.s32 %v308, %v310
      %v312 = vrot.slane %v285, %v311
      %v314 = vunpack.c.l.s4 1983009808
      %v315 = vunpack.c.0.s8 %v314
      %v316 = vlaneseq
      %v317 = vshrl.u32 %v316, 7
      %v318 = vsub.s32 %v315, %v317
      %v319 = vrot.slane %v305, %v318
      %v320 = vcombine.high %v312, %v312
      %328 = vst [vmem:[#allocation2] sm:$0x3] %v295
      %329 = vst [vmem:[#allocation2 + $0x8] sm:$0x3] %v303
      %330 = vst [vmem:[#allocation2 + $0x10] sm:$0x3] %v302
      %331 = vst [vmem:[#allocation2 + $0x18] sm:$0x3] %v304
      %332 = vst [vmem:[#allocation2 + $0x20] sm:$0x3] %v312
      %333 = vst [vmem:[#allocation2 + $0x28] sm:$0x3] %v320
      %vm334 = vcmask 254976
      %335 = vst.msk [vmem:[#allocation2 + $0x30] sm:$0x3] %vm334, %v319
      %v336 = vld [vmem:[%s273] sm:$0xff]
      %v337 = vld [vmem:[%s273 + $0x8] sm:$0x3f]
      %v340 = vcombine.low %v336, %v336
      %v342 = vunpack.c.l.s4 1983009808
      %v343 = vunpack.c.0.s8 %v342
      %v344 = vlaneseq
      %v345 = vshrl.u32 %v344, 7
      %v346 = vsub.s32 %v343, %v345
      %v347 = vrot.slane %v340, %v346
      %v349 = vunpack.c.l.s4 1983009808
      %v350 = vunpack.c.0.s8 %v349
      %v351 = vlaneseq
      %v352 = vshrl.u32 %v351, 7
      %v353 = vsub.s32 %v350, %v352
      %v354 = vrot.slane %v336, %v353
      %v355 = vcombine.high %v347, %v347
      %v356 = vcombine.high %v354, %v354
      %v357 = vcombine.low %v337, %v337
      %v359 = vunpack.c.l.s4 1983009808
      %v360 = vunpack.c.0.s8 %v359
      %v361 = vlaneseq
      %v362 = vshrl.u32 %v361, 7
      %v363 = vsub.s32 %v360, %v362
      %v364 = vrot.slane %v357, %v363
      %v366 = vunpack.c.l.s4 1983009808
      %v367 = vunpack.c.0.s8 %v366
      %v368 = vlaneseq
      %v369 = vshrl.u32 %v368, 7
      %v370 = vsub.s32 %v367, %v369
      %v371 = vrot.slane %v337, %v370
      %v372 = vcombine.high %v364, %v364
      %380 = vst [vmem:[#allocation2] sm:$0xc] %v347
      %381 = vst [vmem:[#allocation2 + $0x8] sm:$0xc] %v355
      %382 = vst [vmem:[#allocation2 + $0x10] sm:$0xc] %v354
      %383 = vst [vmem:[#allocation2 + $0x18] sm:$0xc] %v356
      %384 = vst [vmem:[#allocation2 + $0x20] sm:$0xc] %v364
      %385 = vst [vmem:[#allocation2 + $0x28] sm:$0xc] %v372
      %vm386 = vcmask 257026
      %387 = vst.msk [vmem:[#allocation2 + $0x30] sm:$0xc] %vm386, %v371
      %v388 = vld [vmem:[%s268] sm:$0xff]
      %v389 = vld [vmem:[%s268 + $0x8] sm:$0x3f]
      %v392 = vcombine.high %v388, %v388
      %v394 = vunpack.c.l.s4 1983009808
      %v395 = vunpack.c.0.s8 %v394
      %v396 = vlaneseq
      %v397 = vshrl.u32 %v396, 7
      %v398 = vsub.s32 %v395, %v397
      %v399 = vrot.slane %v388, %v398
      %v401 = vunpack.c.l.s4 1983009808
      %v402 = vunpack.c.0.s8 %v401
      %v403 = vlaneseq
      %v404 = vshrl.u32 %v403, 7
      %v405 = vsub.s32 %v402, %v404
      %v406 = vrot.slane %v392, %v405
      %v407 = vcombine.low %v399, %v399
      %v408 = vcombine.low %v406, %v406
      %v409 = vcombine.high %v389, %v389
      %v411 = vunpack.c.l.s4 1983009808
      %v412 = vunpack.c.0.s8 %v411
      %v413 = vlaneseq
      %v414 = vshrl.u32 %v413, 7
      %v415 = vsub.s32 %v412, %v414
      %v416 = vrot.slane %v389, %v415
      %v418 = vunpack.c.l.s4 1983009808
      %v419 = vunpack.c.0.s8 %v418
      %v420 = vlaneseq
      %v421 = vshrl.u32 %v420, 7
      %v422 = vsub.s32 %v419, %v421
      %v423 = vrot.slane %v409, %v422
      %v424 = vcombine.low %v416, %v416
      %v425 = vcombine.low %v423, %v423
      %426 = vrot.lane.b32.xlu0 %v407, 127
      %v427 = vpop.permute.xlu0 %426
      %428 = vrot.lane.b32.xlu0 %v399, 127
      %v429 = vpop.permute.xlu0 %428
      %430 = vrot.lane.b32.xlu0 %v408, 127
      %v431 = vpop.permute.xlu0 %430
      %432 = vrot.lane.b32.xlu0 %v406, 127
      %v433 = vpop.permute.xlu0 %432
      %434 = vrot.lane.b32.xlu0 %v424, 127
      %v435 = vpop.permute.xlu0 %434
      %436 = vrot.lane.b32.xlu0 %v416, 127
      %v437 = vpop.permute.xlu0 %436
      %438 = vrot.lane.b32.xlu0 %v425, 127
      %v439 = vpop.permute.xlu0 %438
      %vm440 = vcmask 1039360
      %v441 = vsel %vm440, %v427, %v429
      %v442 = vsel %vm440, %v429, %v431
      %v443 = vsel %vm440, %v431, %v433
      %v444 = vsel %vm440, %v433, %v435
      %v445 = vsel %vm440, %v435, %v437
      %v446 = vsel %vm440, %v437, %v439
      %454 = vst [vmem:[#allocation2] sm:$0x30] %v441
      %455 = vst [vmem:[#allocation2 + $0x8] sm:$0x30] %v442
      %456 = vst [vmem:[#allocation2 + $0x10] sm:$0x30] %v443
      %457 = vst [vmem:[#allocation2 + $0x18] sm:$0x30] %v444
      %458 = vst [vmem:[#allocation2 + $0x20] sm:$0x30] %v445
      %459 = vst [vmem:[#allocation2 + $0x28] sm:$0x30] %v446
      %vm460 = vcmask 259076
      %461 = vst.msk [vmem:[#allocation2 + $0x30] sm:$0x30] %vm460, %v439
      %v462 = vld [vmem:[%s273] sm:$0xff]
      %v463 = vld [vmem:[%s273 + $0x8] sm:$0x3f]
      %v466 = vcombine.low %v462, %v462
      %v468 = vunpack.c.l.s4 1983009808
      %v469 = vunpack.c.0.s8 %v468
      %v470 = vlaneseq
      %v471 = vshrl.u32 %v470, 7
      %v472 = vsub.s32 %v469, %v471
      %v473 = vrot.slane %v466, %v472
      %v475 = vunpack.c.l.s4 1983009808
      %v476 = vunpack.c.0.s8 %v475
      %v477 = vlaneseq
      %v478 = vshrl.u32 %v477, 7
      %v479 = vsub.s32 %v476, %v478
      %v480 = vrot.slane %v462, %v479
      %v481 = vcombine.low %v473, %v473
      %v482 = vcombine.low %v480, %v480
      %v483 = vcombine.low %v463, %v463
      %v485 = vunpack.c.l.s4 1983009808
      %v486 = vunpack.c.0.s8 %v485
      %v487 = vlaneseq
      %v488 = vshrl.u32 %v487, 7
      %v489 = vsub.s32 %v486, %v488
      %v490 = vrot.slane %v483, %v489
      %v492 = vunpack.c.l.s4 1983009808
      %v493 = vunpack.c.0.s8 %v492
      %v494 = vlaneseq
      %v495 = vshrl.u32 %v494, 7
      %v496 = vsub.s32 %v493, %v495
      %v497 = vrot.slane %v463, %v496
      %v498 = vcombine.low %v490, %v490
      %v499 = vcombine.low %v497, %v497
      %500 = vrot.lane.b32.xlu0 %v481, 127
      %v501 = vpop.permute.xlu0 %500
      %502 = vrot.lane.b32.xlu0 %v473, 127
      %v503 = vpop.permute.xlu0 %502
      %504 = vrot.lane.b32.xlu0 %v482, 127
      %v505 = vpop.permute.xlu0 %504
      %506 = vrot.lane.b32.xlu0 %v480, 127
      %v507 = vpop.permute.xlu0 %506
      %508 = vrot.lane.b32.xlu0 %v498, 127
      %v509 = vpop.permute.xlu0 %508
      %510 = vrot.lane.b32.xlu0 %v490, 127
      %v511 = vpop.permute.xlu0 %510
      %512 = vrot.lane.b32.xlu0 %v499, 127
      %v513 = vpop.permute.xlu0 %512
      %v514 = vsel %vm440, %v501, %v503
      %v515 = vsel %vm440, %v503, %v505
      %v516 = vsel %vm440, %v505, %v507
      %v517 = vsel %vm440, %v507, %v509
      %v518 = vsel %vm440, %v509, %v511
      %v519 = vsel %vm440, %v511, %v513
      %527 = vst [vmem:[#allocation2] sm:$0xc0] %v514
      %528 = vst [vmem:[#allocation2 + $0x8] sm:$0xc0] %v515
      %529 = vst [vmem:[#allocation2 + $0x10] sm:$0xc0] %v516
      %530 = vst [vmem:[#allocation2 + $0x18] sm:$0xc0] %v517
      %531 = vst [vmem:[#allocation2 + $0x20] sm:$0xc0] %v518
      %532 = vst [vmem:[#allocation2 + $0x28] sm:$0xc0] %v519
      %vm533 = vcmask 261126
      %534 = vst.msk [vmem:[#allocation2 + $0x30] sm:$0xc0] %vm533, %v513
      %v535 = vld [vmem:[%s268] sm:$0xff]
      %v536 = vld [vmem:[%s268 + $0x8] sm:$0x3f]
      %v539 = vcombine.high %v535, %v535
      %v541 = vunpack.c.l.s4 1983009808
      %v542 = vunpack.c.0.s8 %v541
      %v543 = vlaneseq
      %v544 = vshrl.u32 %v543, 7
      %v545 = vsub.s32 %v542, %v544
      %v546 = vrot.slane %v535, %v545
      %v548 = vunpack.c.l.s4 1983009808
      %v549 = vunpack.c.0.s8 %v548
      %v550 = vlaneseq
      %v551 = vshrl.u32 %v550, 7
      %v552 = vsub.s32 %v549, %v551
      %v553 = vrot.slane %v539, %v552
      %v554 = vcombine.high %v546, %v546
      %v555 = vcombine.high %v553, %v553
      %v556 = vcombine.high %v536, %v536
      %v558 = vunpack.c.l.s4 1983009808
      %v559 = vunpack.c.0.s8 %v558
      %v560 = vlaneseq
      %v561 = vshrl.u32 %v560, 7
      %v562 = vsub.s32 %v559, %v561
      %v563 = vrot.slane %v536, %v562
      %v565 = vunpack.c.l.s4 1983009808
      %v566 = vunpack.c.0.s8 %v565
      %v567 = vlaneseq
      %v568 = vshrl.u32 %v567, 7
      %v569 = vsub.s32 %v566, %v568
      %v570 = vrot.slane %v556, %v569
      %v571 = vcombine.high %v563, %v563
      %572 = vrot.lane.b32.xlu0 %v546, 126
      %v573 = vpop.permute.xlu0 %572
      %574 = vrot.lane.b32.xlu0 %v554, 126
      %v575 = vpop.permute.xlu0 %574
      %576 = vrot.lane.b32.xlu0 %v553, 126
      %v577 = vpop.permute.xlu0 %576
      %578 = vrot.lane.b32.xlu0 %v555, 126
      %v579 = vpop.permute.xlu0 %578
      %580 = vrot.lane.b32.xlu0 %v563, 126
      %v581 = vpop.permute.xlu0 %580
      %582 = vrot.lane.b32.xlu0 %v571, 126
      %v583 = vpop.permute.xlu0 %582
      %584 = vrot.lane.b32.xlu0 %v570, 126
      %v585 = vpop.permute.xlu0 %584
      %vm586 = vcmask 1031168
      %v587 = vsel %vm586, %v573, %v575
      %v588 = vsel %vm586, %v575, %v577
      %v589 = vsel %vm586, %v577, %v579
      %v590 = vsel %vm586, %v579, %v581
      %v591 = vsel %vm586, %v581, %v583
      %v592 = vsel %vm586, %v583, %v585
      %600 = vst [vmem:[#allocation2 + $0x40] sm:$0x3] %v587
      %601 = vst [vmem:[#allocation2 + $0x48] sm:$0x3] %v588
      %602 = vst [vmem:[#allocation2 + $0x50] sm:$0x3] %v589
      %603 = vst [vmem:[#allocation2 + $0x58] sm:$0x3] %v590
      %604 = vst [vmem:[#allocation2 + $0x60] sm:$0x3] %v591
      %605 = vst [vmem:[#allocation2 + $0x68] sm:$0x3] %v592
      %606 = vst.msk [vmem:[#allocation2 + $0x70] sm:$0x3] %vm334, %v585
      %v607 = vld [vmem:[%s273] sm:$0xff]
      %v608 = vld [vmem:[%s273 + $0x8] sm:$0x3f]
      %v611 = vcombine.low %v607, %v607
      %v613 = vunpack.c.l.s4 1983009808
      %v614 = vunpack.c.0.s8 %v613
      %v615 = vlaneseq
      %v616 = vshrl.u32 %v615, 7
      %v617 = vsub.s32 %v614, %v616
      %v618 = vrot.slane %v611, %v617
      %v620 = vunpack.c.l.s4 1983009808
      %v621 = vunpack.c.0.s8 %v620
      %v622 = vlaneseq
      %v623 = vshrl.u32 %v622, 7
      %v624 = vsub.s32 %v621, %v623
      %v625 = vrot.slane %v607, %v624
      %v626 = vcombine.high %v618, %v618
      %v627 = vcombine.high %v625, %v625
      %v628 = vcombine.low %v608, %v608
      %v630 = vunpack.c.l.s4 1983009808
      %v631 = vunpack.c.0.s8 %v630
      %v632 = vlaneseq
      %v633 = vshrl.u32 %v632, 7
      %v634 = vsub.s32 %v631, %v633
      %v635 = vrot.slane %v628, %v634
      %v637 = vunpack.c.l.s4 1983009808
      %v638 = vunpack.c.0.s8 %v637
      %v639 = vlaneseq
      %v640 = vshrl.u32 %v639, 7
      %v641 = vsub.s32 %v638, %v640
      %v642 = vrot.slane %v608, %v641
      %v643 = vcombine.high %v635, %v635
      %644 = vrot.lane.b32.xlu0 %v618, 126
      %v645 = vpop.permute.xlu0 %644
      %646 = vrot.lane.b32.xlu0 %v626, 126
      %v647 = vpop.permute.xlu0 %646
      %648 = vrot.lane.b32.xlu0 %v625, 126
      %v649 = vpop.permute.xlu0 %648
      %650 = vrot.lane.b32.xlu0 %v627, 126
      %v651 = vpop.permute.xlu0 %650
      %652 = vrot.lane.b32.xlu0 %v635, 126
      %v653 = vpop.permute.xlu0 %652
      %654 = vrot.lane.b32.xlu0 %v643, 126
      %v655 = vpop.permute.xlu0 %654
      %656 = vrot.lane.b32.xlu0 %v642, 126
      %v657 = vpop.permute.xlu0 %656
      %v658 = vsel %vm586, %v645, %v647
      %v659 = vsel %vm586, %v647, %v649
      %v660 = vsel %vm586, %v649, %v651
      %v661 = vsel %vm586, %v651, %v653
      %v662 = vsel %vm586, %v653, %v655
      %v663 = vsel %vm586, %v655, %v657
      %671 = vst [vmem:[#allocation2 + $0x40] sm:$0xc] %v658
      %672 = vst [vmem:[#allocation2 + $0x48] sm:$0xc] %v659
      %673 = vst [vmem:[#allocation2 + $0x50] sm:$0xc] %v660
      %674 = vst [vmem:[#allocation2 + $0x58] sm:$0xc] %v661
      %675 = vst [vmem:[#allocation2 + $0x60] sm:$0xc] %v662
      %676 = vst [vmem:[#allocation2 + $0x68] sm:$0xc] %v663
      %677 = vst.msk [vmem:[#allocation2 + $0x70] sm:$0xc] %vm386, %v657
      %v678 = vld [vmem:[%s268] sm:$0xff]
      %v679 = vld [vmem:[%s268 + $0x8] sm:$0x3f]
      %v682 = vcombine.high %v678, %v678
      %v684 = vunpack.c.l.s4 1983009808
      %v685 = vunpack.c.0.s8 %v684
      %v686 = vlaneseq
      %v687 = vshrl.u32 %v686, 7
      %v688 = vsub.s32 %v685, %v687
      %v689 = vrot.slane %v678, %v688
      %v691 = vunpack.c.l.s4 1983009808
      %v692 = vunpack.c.0.s8 %v691
      %v693 = vlaneseq
      %v694 = vshrl.u32 %v693, 7
      %v695 = vsub.s32 %v692, %v694
      %v696 = vrot.slane %v682, %v695
      %v697 = vcombine.low %v689, %v689
      %v698 = vcombine.low %v696, %v696
      %v699 = vcombine.high %v679, %v679
      %v701 = vunpack.c.l.s4 1983009808
      %v702 = vunpack.c.0.s8 %v701
      %v703 = vlaneseq
      %v704 = vshrl.u32 %v703, 7
      %v705 = vsub.s32 %v702, %v704
      %v706 = vrot.slane %v679, %v705
      %v708 = vunpack.c.l.s4 1983009808
      %v709 = vunpack.c.0.s8 %v708
      %v710 = vlaneseq
      %v711 = vshrl.u32 %v710, 7
      %v712 = vsub.s32 %v709, %v711
      %v713 = vrot.slane %v699, %v712
      %v714 = vcombine.low %v706, %v706
      %v715 = vcombine.low %v713, %v713
      %716 = vrot.lane.b32.xlu0 %v697, 118
      %v717 = vpop.permute.xlu0 %716
      %718 = vrot.lane.b32.xlu0 %v689, 118
      %v719 = vpop.permute.xlu0 %718
      %720 = vrot.lane.b32.xlu0 %v698, 118
      %v721 = vpop.permute.xlu0 %720
      %722 = vrot.lane.b32.xlu0 %v696, 118
      %v723 = vpop.permute.xlu0 %722
      %724 = vrot.lane.b32.xlu0 %v714, 118
      %v725 = vpop.permute.xlu0 %724
      %726 = vrot.lane.b32.xlu0 %v706, 118
      %v727 = vpop.permute.xlu0 %726
      %728 = vrot.lane.b32.xlu0 %v715, 118
      %v729 = vpop.permute.xlu0 %728
      %vm730 = vcmask 965632
      %v731 = vsel %vm730, %v717, %v719
      %v732 = vsel %vm730, %v719, %v721
      %v733 = vsel %vm730, %v721, %v723
      %v734 = vsel %vm730, %v723, %v725
      %v735 = vsel %vm730, %v725, %v727
      %v736 = vsel %vm730, %v727, %v729
      %744 = vst [vmem:[#allocation2 + $0x40] sm:$0x30] %v731
      %745 = vst [vmem:[#allocation2 + $0x48] sm:$0x30] %v732
      %746 = vst [vmem:[#allocation2 + $0x50] sm:$0x30] %v733
      %747 = vst [vmem:[#allocation2 + $0x58] sm:$0x30] %v734
      %748 = vst [vmem:[#allocation2 + $0x60] sm:$0x30] %v735
      %749 = vst [vmem:[#allocation2 + $0x68] sm:$0x30] %v736
      %750 = vst.msk [vmem:[#allocation2 + $0x70] sm:$0x30] %vm460, %v729
      %v751 = vld [vmem:[%s273] sm:$0xff]
      %v752 = vld [vmem:[%s273 + $0x8] sm:$0x3f]
      %v755 = vcombine.low %v751, %v751
      %v757 = vunpack.c.l.s4 1983009808
      %v758 = vunpack.c.0.s8 %v757
      %v759 = vlaneseq
      %v760 = vshrl.u32 %v759, 7
      %v761 = vsub.s32 %v758, %v760
      %v762 = vrot.slane %v755, %v761
      %v764 = vunpack.c.l.s4 1983009808
      %v765 = vunpack.c.0.s8 %v764
      %v766 = vlaneseq
      %v767 = vshrl.u32 %v766, 7
      %v768 = vsub.s32 %v765, %v767
      %v769 = vrot.slane %v751, %v768
      %v770 = vcombine.low %v762, %v762
      %v771 = vcombine.low %v769, %v769
      %v772 = vcombine.low %v752, %v752
      %v774 = vunpack.c.l.s4 1983009808
      %v775 = vunpack.c.0.s8 %v774
      %v776 = vlaneseq
      %v777 = vshrl.u32 %v776, 7
      %v778 = vsub.s32 %v775, %v777
      %v779 = vrot.slane %v772, %v778
      %v781 = vunpack.c.l.s4 1983009808
      %v782 = vunpack.c.0.s8 %v781
      %v783 = vlaneseq
      %v784 = vshrl.u32 %v783, 7
      %v785 = vsub.s32 %v782, %v784
      %v786 = vrot.slane %v752, %v785
      %v787 = vcombine.low %v779, %v779
      %v788 = vcombine.low %v786, %v786
      %789 = vrot.lane.b32.xlu0 %v770, 118
      %v790 = vpop.permute.xlu0 %789
      %791 = vrot.lane.b32.xlu0 %v762, 118
      %v792 = vpop.permute.xlu0 %791
      %793 = vrot.lane.b32.xlu0 %v771, 118
      %v794 = vpop.permute.xlu0 %793
      %795 = vrot.lane.b32.xlu0 %v769, 118
      %v796 = vpop.permute.xlu0 %795
      %797 = vrot.lane.b32.xlu0 %v787, 118
      %v798 = vpop.permute.xlu0 %797
      %799 = vrot.lane.b32.xlu0 %v779, 118
      %v800 = vpop.permute.xlu0 %799
      %801 = vrot.lane.b32.xlu0 %v788, 118
      %v802 = vpop.permute.xlu0 %801
      %v803 = vsel %vm730, %v790, %v792
      %v804 = vsel %vm730, %v792, %v794
      %v805 = vsel %vm730, %v794, %v796
      %v806 = vsel %vm730, %v796, %v798
      %v807 = vsel %vm730, %v798, %v800
      %v808 = vsel %vm730, %v800, %v802
      %816 = vst [vmem:[#allocation2 + $0x40] sm:$0xc0] %v803
      %817 = vst [vmem:[#allocation2 + $0x48] sm:$0xc0] %v804
      %818 = vst [vmem:[#allocation2 + $0x50] sm:$0xc0] %v805
      %819 = vst [vmem:[#allocation2 + $0x58] sm:$0xc0] %v806
      %820 = vst [vmem:[#allocation2 + $0x60] sm:$0xc0] %v807
      %821 = vst [vmem:[#allocation2 + $0x68] sm:$0xc0] %v808
      %822 = vst.msk [vmem:[#allocation2 + $0x70] sm:$0xc0] %vm533, %v802
      %v823 = vld [vmem:[%s268] sm:$0xff]
      %v824 = vld [vmem:[%s268 + $0x8] sm:$0x3f]
      %v827 = vcombine.high %v823, %v823
      %v829 = vunpack.c.l.s4 1983009808
      %v830 = vunpack.c.0.s8 %v829
      %v831 = vlaneseq
      %v832 = vshrl.u32 %v831, 7
      %v833 = vsub.s32 %v830, %v832
      %v834 = vrot.slane %v823, %v833
      %v836 = vunpack.c.l.s4 1983009808
      %v837 = vunpack.c.0.s8 %v836
      %v838 = vlaneseq
      %v839 = vshrl.u32 %v838, 7
      %v840 = vsub.s32 %v837, %v839
      %v841 = vrot.slane %v827, %v840
      %v842 = vcombine.high %v834, %v834
      %v843 = vcombine.high %v841, %v841
      %v844 = vcombine.high %v824, %v824
      %v846 = vunpack.c.l.s4 1983009808
      %v847 = vunpack.c.0.s8 %v846
      %v848 = vlaneseq
      %v849 = vshrl.u32 %v848, 7
      %v850 = vsub.s32 %v847, %v849
      %v851 = vrot.slane %v824, %v850
      %v853 = vunpack.c.l.s4 1983009808
      %v854 = vunpack.c.0.s8 %v853
      %v855 = vlaneseq
      %v856 = vshrl.u32 %v855, 7
      %v857 = vsub.s32 %v854, %v856
      %v858 = vrot.slane %v844, %v857
      %v859 = vcombine.high %v851, %v851
      %860 = vrot.lane.b32.xlu0 %v834, 117
      %v861 = vpop.permute.xlu0 %860
      %862 = vrot.lane.b32.xlu0 %v842, 117
      %v863 = vpop.permute.xlu0 %862
      %864 = vrot.lane.b32.xlu0 %v841, 117
      %v865 = vpop.permute.xlu0 %864
      %866 = vrot.lane.b32.xlu0 %v843, 117
      %v867 = vpop.permute.xlu0 %866
      %868 = vrot.lane.b32.xlu0 %v851, 117
      %v869 = vpop.permute.xlu0 %868
      %870 = vrot.lane.b32.xlu0 %v859, 117
      %v871 = vpop.permute.xlu0 %870
      %872 = vrot.lane.b32.xlu0 %v858, 117
      %v873 = vpop.permute.xlu0 %872
      %vm874 = vcmask 957440
      %v875 = vsel %vm874, %v861, %v863
      %v876 = vsel %vm874, %v863, %v865
      %v877 = vsel %vm874, %v865, %v867
      %v878 = vsel %vm874, %v867, %v869
      %v879 = vsel %vm874, %v869, %v871
      %v880 = vsel %vm874, %v871, %v873
      %888 = vst [vmem:[#allocation2 + $0x80] sm:$0x3] %v875
      %889 = vst [vmem:[#allocation2 + $0x88] sm:$0x3] %v876
      %890 = vst [vmem:[#allocation2 + $0x90] sm:$0x3] %v877
      %891 = vst [vmem:[#allocation2 + $0x98] sm:$0x3] %v878
      %892 = vst [vmem:[#allocation2 + $0xa0] sm:$0x3] %v879
      %893 = vst [vmem:[#allocation2 + $0xa8] sm:$0x3] %v880
      %894 = vst.msk [vmem:[#allocation2 + $0xb0] sm:$0x3] %vm334, %v873
      %v895 = vld [vmem:[%s273] sm:$0xff]
      %v896 = vld [vmem:[%s273 + $0x8] sm:$0x3f]
      %v899 = vcombine.low %v895, %v895
      %v901 = vunpack.c.l.s4 1983009808
      %v902 = vunpack.c.0.s8 %v901
      %v903 = vlaneseq
      %v904 = vshrl.u32 %v903, 7
      %v905 = vsub.s32 %v902, %v904
      %v906 = vrot.slane %v899, %v905
      %v908 = vunpack.c.l.s4 1983009808
      %v909 = vunpack.c.0.s8 %v908
      %v910 = vlaneseq
      %v911 = vshrl.u32 %v910, 7
      %v912 = vsub.s32 %v909, %v911
      %v913 = vrot.slane %v895, %v912
      %v914 = vcombine.high %v906, %v906
      %v915 = vcombine.high %v913, %v913
      %v916 = vcombine.low %v896, %v896
      %v918 = vunpack.c.l.s4 1983009808
      %v919 = vunpack.c.0.s8 %v918
      %v920 = vlaneseq
      %v921 = vshrl.u32 %v920, 7
      %v922 = vsub.s32 %v919, %v921
      %v923 = vrot.slane %v916, %v922
      %v925 = vunpack.c.l.s4 1983009808
      %v926 = vunpack.c.0.s8 %v925
      %v927 = vlaneseq
      %v928 = vshrl.u32 %v927, 7
      %v929 = vsub.s32 %v926, %v928
      %v930 = vrot.slane %v896, %v929
      %v931 = vcombine.high %v923, %v923
      %932 = vrot.lane.b32.xlu0 %v906, 117
      %v933 = vpop.permute.xlu0 %932
      %934 = vrot.lane.b32.xlu0 %v914, 117
      %v935 = vpop.permute.xlu0 %934
      %936 = vrot.lane.b32.xlu0 %v913, 117
      %v937 = vpop.permute.xlu0 %936
      %938 = vrot.lane.b32.xlu0 %v915, 117
      %v939 = vpop.permute.xlu0 %938
      %940 = vrot.lane.b32.xlu0 %v923, 117
      %v941 = vpop.permute.xlu0 %940
      %942 = vrot.lane.b32.xlu0 %v931, 117
      %v943 = vpop.permute.xlu0 %942
      %944 = vrot.lane.b32.xlu0 %v930, 117
      %v945 = vpop.permute.xlu0 %944
      %v946 = vsel %vm874, %v933, %v935
      %v947 = vsel %vm874, %v935, %v937
      %v948 = vsel %vm874, %v937, %v939
      %v949 = vsel %vm874, %v939, %v941
      %v950 = vsel %vm874, %v941, %v943
      %v951 = vsel %vm874, %v943, %v945
      %959 = vst [vmem:[#allocation2 + $0x80] sm:$0xc] %v946
      %960 = vst [vmem:[#allocation2 + $0x88] sm:$0xc] %v947
      %961 = vst [vmem:[#allocation2 + $0x90] sm:$0xc] %v948
      %962 = vst [vmem:[#allocation2 + $0x98] sm:$0xc] %v949
      %963 = vst [vmem:[#allocation2 + $0xa0] sm:$0xc] %v950
      %964 = vst [vmem:[#allocation2 + $0xa8] sm:$0xc] %v951
      %965 = vst.msk [vmem:[#allocation2 + $0xb0] sm:$0xc] %vm386, %v945
      %v966 = vld [vmem:[%s268] sm:$0xff]
      %v967 = vld [vmem:[%s268 + $0x8] sm:$0x3f]
      %v970 = vcombine.high %v966, %v966
      %v972 = vunpack.c.l.s4 1983009808
      %v973 = vunpack.c.0.s8 %v972
      %v974 = vlaneseq
      %v975 = vshrl.u32 %v974, 7
      %v976 = vsub.s32 %v973, %v975
      %v977 = vrot.slane %v966, %v976
      %v979 = vunpack.c.l.s4 1983009808
      %v980 = vunpack.c.0.s8 %v979
      %v981 = vlaneseq
      %v982 = vshrl.u32 %v981, 7
      %v983 = vsub.s32 %v980, %v982
      %v984 = vrot.slane %v970, %v983
      %v985 = vcombine.low %v977, %v977
      %v986 = vcombine.low %v984, %v984
      %v987 = vcombine.high %v967, %v967
      %v989 = vunpack.c.l.s4 1983009808
      %v990 = vunpack.c.0.s8 %v989
      %v991 = vlaneseq
      %v992 = vshrl.u32 %v991, 7
      %v993 = vsub.s32 %v990, %v992
      %v994 = vrot.slane %v967, %v993
      %v996 = vunpack.c.l.s4 1983009808
      %v997 = vunpack.c.0.s8 %v996
      %v998 = vlaneseq
      %v999 = vshrl.u32 %v998, 7
      %v1000 = vsub.s32 %v997, %v999
      %v1001 = vrot.slane %v987, %v1000
      %v1002 = vcombine.low %v994, %v994
      %v1003 = vcombine.low %v1001, %v1001
      %1004 = vrot.lane.b32.xlu0 %v985, 116
      %v1005 = vpop.permute.xlu0 %1004
      %1006 = vrot.lane.b32.xlu0 %v977, 116
      %v1007 = vpop.permute.xlu0 %1006
      %1008 = vrot.lane.b32.xlu0 %v986, 116
      %v1009 = vpop.permute.xlu0 %1008
      %1010 = vrot.lane.b32.xlu0 %v984, 116
      %v1011 = vpop.permute.xlu0 %1010
      %1012 = vrot.lane.b32.xlu0 %v1002, 116
      %v1013 = vpop.permute.xlu0 %1012
      %1014 = vrot.lane.b32.xlu0 %v994, 116
      %v1015 = vpop.permute.xlu0 %1014
      %1016 = vrot.lane.b32.xlu0 %v1003, 116
      %v1017 = vpop.permute.xlu0 %1016
      %vm1018 = vcmask 949248
      %v1019 = vsel %vm1018, %v1005, %v1007
      %v1020 = vsel %vm1018, %v1007, %v1009
      %v1021 = vsel %vm1018, %v1009, %v1011
      %v1022 = vsel %vm1018, %v1011, %v1013
      %v1023 = vsel %vm1018, %v1013, %v1015
      %v1024 = vsel %vm1018, %v1015, %v1017
      %1032 = vst [vmem:[#allocation2 + $0x80] sm:$0x30] %v1019
      %1033 = vst [vmem:[#allocation2 + $0x88] sm:$0x30] %v1020
      %1034 = vst [vmem:[#allocation2 + $0x90] sm:$0x30] %v1021
      %1035 = vst [vmem:[#allocation2 + $0x98] sm:$0x30] %v1022
      %1036 = vst [vmem:[#allocation2 + $0xa0] sm:$0x30] %v1023
      %1037 = vst [vmem:[#allocation2 + $0xa8] sm:$0x30] %v1024
      %1038 = vst.msk [vmem:[#allocation2 + $0xb0] sm:$0x30] %vm460, %v1017
      %v1039 = vld [vmem:[%s273] sm:$0xff]
      %v1040 = vld [vmem:[%s273 + $0x8] sm:$0x3f]
      %v1043 = vcombine.low %v1039, %v1039
      %v1045 = vunpack.c.l.s4 1983009808
      %v1046 = vunpack.c.0.s8 %v1045
      %v1047 = vlaneseq
      %v1048 = vshrl.u32 %v1047, 7
      %v1049 = vsub.s32 %v1046, %v1048
      %v1050 = vrot.slane %v1043, %v1049
      %v1052 = vunpack.c.l.s4 1983009808
      %v1053 = vunpack.c.0.s8 %v1052
      %v1054 = vlaneseq
      %v1055 = vshrl.u32 %v1054, 7
      %v1056 = vsub.s32 %v1053, %v1055
      %v1057 = vrot.slane %v1039, %v1056
      %v1058 = vcombine.low %v1050, %v1050
      %v1059 = vcombine.low %v1057, %v1057
      %v1060 = vcombine.low %v1040, %v1040
      %v1062 = vunpack.c.l.s4 1983009808
      %v1063 = vunpack.c.0.s8 %v1062
      %v1064 = vlaneseq
      %v1065 = vshrl.u32 %v1064, 7
      %v1066 = vsub.s32 %v1063, %v1065
      %v1067 = vrot.slane %v1060, %v1066
      %v1069 = vunpack.c.l.s4 1983009808
      %v1070 = vunpack.c.0.s8 %v1069
      %v1071 = vlaneseq
      %v1072 = vshrl.u32 %v1071, 7
      %v1073 = vsub.s32 %v1070, %v1072
      %v1074 = vrot.slane %v1040, %v1073
      %v1075 = vcombine.low %v1067, %v1067
      %v1076 = vcombine.low %v1074, %v1074
      %1077 = vrot.lane.b32.xlu0 %v1058, 116
      %v1078 = vpop.permute.xlu0 %1077
      %1079 = vrot.lane.b32.xlu0 %v1050, 116
      %v1080 = vpop.permute.xlu0 %1079
      %1081 = vrot.lane.b32.xlu0 %v1059, 116
      %v1082 = vpop.permute.xlu0 %1081
      %1083 = vrot.lane.b32.xlu0 %v1057, 116
      %v1084 = vpop.permute.xlu0 %1083
      %1085 = vrot.lane.b32.xlu0 %v1075, 116
      %v1086 = vpop.permute.xlu0 %1085
      %1087 = vrot.lane.b32.xlu0 %v1067, 116
      %v1088 = vpop.permute.xlu0 %1087
      %1089 = vrot.lane.b32.xlu0 %v1076, 116
      %v1090 = vpop.permute.xlu0 %1089
      %v1091 = vsel %vm1018, %v1078, %v1080
      %v1092 = vsel %vm1018, %v1080, %v1082
      %v1093 = vsel %vm1018, %v1082, %v1084
      %v1094 = vsel %vm1018, %v1084, %v1086
      %v1095 = vsel %vm1018, %v1086, %v1088
      %v1096 = vsel %vm1018, %v1088, %v1090
      %1104 = vst [vmem:[#allocation2 + $0x80] sm:$0xc0] %v1091
      %1105 = vst [vmem:[#allocation2 + $0x88] sm:$0xc0] %v1092
      %1106 = vst [vmem:[#allocation2 + $0x90] sm:$0xc0] %v1093
      %1107 = vst [vmem:[#allocation2 + $0x98] sm:$0xc0] %v1094
      %1108 = vst [vmem:[#allocation2 + $0xa0] sm:$0xc0] %v1095
      %1109 = vst [vmem:[#allocation2 + $0xa8] sm:$0xc0] %v1096
      %1110 = vst.msk [vmem:[#allocation2 + $0xb0] sm:$0xc0] %vm533, %v1090
      %v1111 = vld [vmem:[%s268] sm:$0xff]
      %v1112 = vld [vmem:[%s268 + $0x8] sm:$0x3f]
      %v1115 = vcombine.high %v1111, %v1111
      %v1117 = vunpack.c.l.s4 1983009808
      %v1118 = vunpack.c.0.s8 %v1117
      %v1119 = vlaneseq
      %v1120 = vshrl.u32 %v1119, 7
      %v1121 = vsub.s32 %v1118, %v1120
      %v1122 = vrot.slane %v1111, %v1121
      %v1124 = vunpack.c.l.s4 1983009808
      %v1125 = vunpack.c.0.s8 %v1124
      %v1126 = vlaneseq
      %v1127 = vshrl.u32 %v1126, 7
      %v1128 = vsub.s32 %v1125, %v1127
      %v1129 = vrot.slane %v1115, %v1128
      %v1130 = vcombine.high %v1122, %v1122
      %v1131 = vcombine.high %v1129, %v1129
      %v1132 = vcombine.high %v1112, %v1112
      %v1134 = vunpack.c.l.s4 1983009808
      %v1135 = vunpack.c.0.s8 %v1134
      %v1136 = vlaneseq
      %v1137 = vshrl.u32 %v1136, 7
      %v1138 = vsub.s32 %v1135, %v1137
      %v1139 = vrot.slane %v1112, %v1138
      %v1141 = vunpack.c.l.s4 1983009808
      %v1142 = vunpack.c.0.s8 %v1141
      %v1143 = vlaneseq
      %v1144 = vshrl.u32 %v1143, 7
      %v1145 = vsub.s32 %v1142, %v1144
      %v1146 = vrot.slane %v1132, %v1145
      %v1147 = vcombine.high %v1139, %v1139
      %1148 = vrot.lane.b32.xlu0 %v1122, 108
      %v1149 = vpop.permute.xlu0 %1148
      %1150 = vrot.lane.b32.xlu0 %v1130, 108
      %v1151 = vpop.permute.xlu0 %1150
      %1152 = vrot.lane.b32.xlu0 %v1129, 108
      %v1153 = vpop.permute.xlu0 %1152
      %1154 = vrot.lane.b32.xlu0 %v1131, 108
      %v1155 = vpop.permute.xlu0 %1154
      %1156 = vrot.lane.b32.xlu0 %v1139, 108
      %v1157 = vpop.permute.xlu0 %1156
      %1158 = vrot.lane.b32.xlu0 %v1147, 108
      %v1159 = vpop.permute.xlu0 %1158
      %1160 = vrot.lane.b32.xlu0 %v1146, 108
      %v1161 = vpop.permute.xlu0 %1160
      %vm1162 = vcmask 883712
      %v1163 = vsel %vm1162, %v1149, %v1151
      %v1164 = vsel %vm1162, %v1151, %v1153
      %v1165 = vsel %vm1162, %v1153, %v1155
      %v1166 = vsel %vm1162, %v1155, %v1157
      %v1167 = vsel %vm1162, %v1157, %v1159
      %v1168 = vsel %vm1162, %v1159, %v1161
      %1176 = vst [vmem:[#allocation2 + $0xc0] sm:$0x3] %v1163
      %1177 = vst [vmem:[#allocation2 + $0xc8] sm:$0x3] %v1164
      %1178 = vst [vmem:[#allocation2 + $0xd0] sm:$0x3] %v1165
      %1179 = vst [vmem:[#allocation2 + $0xd8] sm:$0x3] %v1166
      %1180 = vst [vmem:[#allocation2 + $0xe0] sm:$0x3] %v1167
      %1181 = vst [vmem:[#allocation2 + $0xe8] sm:$0x3] %v1168
      %1182 = vst.msk [vmem:[#allocation2 + $0xf0] sm:$0x3] %vm334, %v1161
      %v1183 = vld [vmem:[%s273] sm:$0xff]
      %v1184 = vld [vmem:[%s273 + $0x8] sm:$0x3f]
      %v1187 = vcombine.low %v1183, %v1183
      %v1189 = vunpack.c.l.s4 1983009808
      %v1190 = vunpack.c.0.s8 %v1189
      %v1191 = vlaneseq
      %v1192 = vshrl.u32 %v1191, 7
      %v1193 = vsub.s32 %v1190, %v1192
      %v1194 = vrot.slane %v1187, %v1193
      %v1196 = vunpack.c.l.s4 1983009808
      %v1197 = vunpack.c.0.s8 %v1196
      %v1198 = vlaneseq
      %v1199 = vshrl.u32 %v1198, 7
      %v1200 = vsub.s32 %v1197, %v1199
      %v1201 = vrot.slane %v1183, %v1200
      %v1202 = vcombine.high %v1194, %v1194
      %v1203 = vcombine.high %v1201, %v1201
      %v1204 = vcombine.low %v1184, %v1184
      %v1206 = vunpack.c.l.s4 1983009808
      %v1207 = vunpack.c.0.s8 %v1206
      %v1208 = vlaneseq
      %v1209 = vshrl.u32 %v1208, 7
      %v1210 = vsub.s32 %v1207, %v1209
      %v1211 = vrot.slane %v1204, %v1210
      %v1213 = vunpack.c.l.s4 1983009808
      %v1214 = vunpack.c.0.s8 %v1213
      %v1215 = vlaneseq
      %v1216 = vshrl.u32 %v1215, 7
      %v1217 = vsub.s32 %v1214, %v1216
      %v1218 = vrot.slane %v1184, %v1217
      %v1219 = vcombine.high %v1211, %v1211
      %1220 = vrot.lane.b32.xlu0 %v1194, 108
      %v1221 = vpop.permute.xlu0 %1220
      %1222 = vrot.lane.b32.xlu0 %v1202, 108
      %v1223 = vpop.permute.xlu0 %1222
      %1224 = vrot.lane.b32.xlu0 %v1201, 108
      %v1225 = vpop.permute.xlu0 %1224
      %1226 = vrot.lane.b32.xlu0 %v1203, 108
      %v1227 = vpop.permute.xlu0 %1226
      %1228 = vrot.lane.b32.xlu0 %v1211, 108
      %v1229 = vpop.permute.xlu0 %1228
      %1230 = vrot.lane.b32.xlu0 %v1219, 108
      %v1231 = vpop.permute.xlu0 %1230
      %1232 = vrot.lane.b32.xlu0 %v1218, 108
      %v1233 = vpop.permute.xlu0 %1232
      %v1234 = vsel %vm1162, %v1221, %v1223
      %v1235 = vsel %vm1162, %v1223, %v1225
      %v1236 = vsel %vm1162, %v1225, %v1227
      %v1237 = vsel %vm1162, %v1227, %v1229
      %v1238 = vsel %vm1162, %v1229, %v1231
      %v1239 = vsel %vm1162, %v1231, %v1233
      %1247 = vst [vmem:[#allocation2 + $0xc0] sm:$0xc] %v1234
      %1248 = vst [vmem:[#allocation2 + $0xc8] sm:$0xc] %v1235
      %1249 = vst [vmem:[#allocation2 + $0xd0] sm:$0xc] %v1236
      %1250 = vst [vmem:[#allocation2 + $0xd8] sm:$0xc] %v1237
      %1251 = vst [vmem:[#allocation2 + $0xe0] sm:$0xc] %v1238
      %1252 = vst [vmem:[#allocation2 + $0xe8] sm:$0xc] %v1239
      %1253 = vst.msk [vmem:[#allocation2 + $0xf0] sm:$0xc] %vm386, %v1233
      %v1254 = vld [vmem:[%s268] sm:$0xff]
      %v1255 = vld [vmem:[%s268 + $0x8] sm:$0x3f]
      %v1258 = vcombine.high %v1254, %v1254
      %v1260 = vunpack.c.l.s4 1983009808
      %v1261 = vunpack.c.0.s8 %v1260
      %v1262 = vlaneseq
      %v1263 = vshrl.u32 %v1262, 7
      %v1264 = vsub.s32 %v1261, %v1263
      %v1265 = vrot.slane %v1254, %v1264
      %v1267 = vunpack.c.l.s4 1983009808
      %v1268 = vunpack.c.0.s8 %v1267
      %v1269 = vlaneseq
      %v1270 = vshrl.u32 %v1269, 7
      %v1271 = vsub.s32 %v1268, %v1270
      %v1272 = vrot.slane %v1258, %v1271
      %v1273 = vcombine.low %v1265, %v1265
      %v1274 = vcombine.low %v1272, %v1272
      %v1275 = vcombine.high %v1255, %v1255
      %v1277 = vunpack.c.l.s4 1983009808
      %v1278 = vunpack.c.0.s8 %v1277
      %v1279 = vlaneseq
      %v1280 = vshrl.u32 %v1279, 7
      %v1281 = vsub.s32 %v1278, %v1280
      %v1282 = vrot.slane %v1255, %v1281
      %v1284 = vunpack.c.l.s4 1983009808
      %v1285 = vunpack.c.0.s8 %v1284
      %v1286 = vlaneseq
      %v1287 = vshrl.u32 %v1286, 7
      %v1288 = vsub.s32 %v1285, %v1287
      %v1289 = vrot.slane %v1275, %v1288
      %v1290 = vcombine.low %v1282, %v1282
      %v1291 = vcombine.low %v1289, %v1289
      %1292 = vrot.lane.b32.xlu0 %v1273, 107
      %v1293 = vpop.permute.xlu0 %1292
      %1294 = vrot.lane.b32.xlu0 %v1265, 107
      %v1295 = vpop.permute.xlu0 %1294
      %1296 = vrot.lane.b32.xlu0 %v1274, 107
      %v1297 = vpop.permute.xlu0 %1296
      %1298 = vrot.lane.b32.xlu0 %v1272, 107
      %v1299 = vpop.permute.xlu0 %1298
      %1300 = vrot.lane.b32.xlu0 %v1290, 107
      %v1301 = vpop.permute.xlu0 %1300
      %1302 = vrot.lane.b32.xlu0 %v1282, 107
      %v1303 = vpop.permute.xlu0 %1302
      %1304 = vrot.lane.b32.xlu0 %v1291, 107
      %v1305 = vpop.permute.xlu0 %1304
      %vm1306 = vcmask 875520
      %v1307 = vsel %vm1306, %v1293, %v1295
      %v1308 = vsel %vm1306, %v1295, %v1297
      %v1309 = vsel %vm1306, %v1297, %v1299
      %v1310 = vsel %vm1306, %v1299, %v1301
      %v1311 = vsel %vm1306, %v1301, %v1303
      %v1312 = vsel %vm1306, %v1303, %v1305
      %1320 = vst [vmem:[#allocation2 + $0xc0] sm:$0x30] %v1307
      %1321 = vst [vmem:[#allocation2 + $0xc8] sm:$0x30] %v1308
      %1322 = vst [vmem:[#allocation2 + $0xd0] sm:$0x30] %v1309
      %1323 = vst [vmem:[#allocation2 + $0xd8] sm:$0x30] %v1310
      %1324 = vst [vmem:[#allocation2 + $0xe0] sm:$0x30] %v1311
      %1325 = vst [vmem:[#allocation2 + $0xe8] sm:$0x30] %v1312
      %1326 = vst.msk [vmem:[#allocation2 + $0xf0] sm:$0x30] %vm460, %v1305
      %v1327 = vld [vmem:[%s273] sm:$0xff]
      %v1328 = vld [vmem:[%s273 + $0x8] sm:$0x3f]
      %v1331 = vcombine.low %v1327, %v1327
      %v1333 = vunpack.c.l.s4 1983009808
      %v1334 = vunpack.c.0.s8 %v1333
      %v1335 = vlaneseq
      %v1336 = vshrl.u32 %v1335, 7
      %v1337 = vsub.s32 %v1334, %v1336
      %v1338 = vrot.slane %v1331, %v1337
      %v1340 = vunpack.c.l.s4 1983009808
      %v1341 = vunpack.c.0.s8 %v1340
      %v1342 = vlaneseq
      %v1343 = vshrl.u32 %v1342, 7
      %v1344 = vsub.s32 %v1341, %v1343
      %v1345 = vrot.slane %v1327, %v1344
      %v1346 = vcombine.low %v1338, %v1338
      %v1347 = vcombine.low %v1345, %v1345
      %v1348 = vcombine.low %v1328, %v1328
      %v1350 = vunpack.c.l.s4 1983009808
      %v1351 = vunpack.c.0.s8 %v1350
      %v1352 = vlaneseq
      %v1353 = vshrl.u32 %v1352, 7
      %v1354 = vsub.s32 %v1351, %v1353
      %v1355 = vrot.slane %v1348, %v1354
      %v1357 = vunpack.c.l.s4 1983009808
      %v1358 = vunpack.c.0.s8 %v1357
      %v1359 = vlaneseq
      %v1360 = vshrl.u32 %v1359, 7
      %v1361 = vsub.s32 %v1358, %v1360
      %v1362 = vrot.slane %v1328, %v1361
      %v1363 = vcombine.low %v1355, %v1355
      %v1364 = vcombine.low %v1362, %v1362
      %1365 = vrot.lane.b32.xlu0 %v1346, 107
      %v1366 = vpop.permute.xlu0 %1365
      %1367 = vrot.lane.b32.xlu0 %v1338, 107
      %v1368 = vpop.permute.xlu0 %1367
      %1369 = vrot.lane.b32.xlu0 %v1347, 107
      %v1370 = vpop.permute.xlu0 %1369
      %1371 = vrot.lane.b32.xlu0 %v1345, 107
      %v1372 = vpop.permute.xlu0 %1371
      %1373 = vrot.lane.b32.xlu0 %v1363, 107
      %v1374 = vpop.permute.xlu0 %1373
      %1375 = vrot.lane.b32.xlu0 %v1355, 107
      %v1376 = vpop.permute.xlu0 %1375
      %1377 = vrot.lane.b32.xlu0 %v1364, 107
      %v1378 = vpop.permute.xlu0 %1377
      %v1379 = vsel %vm1306, %v1366, %v1368
      %v1380 = vsel %vm1306, %v1368, %v1370
      %v1381 = vsel %vm1306, %v1370, %v1372
      %v1382 = vsel %vm1306, %v1372, %v1374
      %v1383 = vsel %vm1306, %v1374, %v1376
      %v1384 = vsel %vm1306, %v1376, %v1378
      %1392 = vst [vmem:[#allocation2 + $0xc0] sm:$0xc0] %v1379
      %1393 = vst [vmem:[#allocation2 + $0xc8] sm:$0xc0] %v1380
      %1394 = vst [vmem:[#allocation2 + $0xd0] sm:$0xc0] %v1381
      %1395 = vst [vmem:[#allocation2 + $0xd8] sm:$0xc0] %v1382
      %1396 = vst [vmem:[#allocation2 + $0xe0] sm:$0xc0] %v1383
      %1397 = vst [vmem:[#allocation2 + $0xe8] sm:$0xc0] %v1384
      %1398 = vst.msk [vmem:[#allocation2 + $0xf0] sm:$0xc0] %vm533, %v1378
      %v1399 = vld [vmem:[%s268] sm:$0xff]
      %v1400 = vld [vmem:[%s268 + $0x8] sm:$0x3f]
      %v1403 = vcombine.high %v1399, %v1399
      %v1405 = vunpack.c.l.s4 1983009808
      %v1406 = vunpack.c.0.s8 %v1405
      %v1407 = vlaneseq
      %v1408 = vshrl.u32 %v1407, 7
      %v1409 = vsub.s32 %v1406, %v1408
      %v1410 = vrot.slane %v1399, %v1409
      %v1412 = vunpack.c.l.s4 1983009808
      %v1413 = vunpack.c.0.s8 %v1412
      %v1414 = vlaneseq
      %v1415 = vshrl.u32 %v1414, 7
      %v1416 = vsub.s32 %v1413, %v1415
      %v1417 = vrot.slane %v1403, %v1416
      %v1418 = vcombine.high %v1410, %v1410
      %v1419 = vcombine.high %v1417, %v1417
      %v1420 = vcombine.high %v1400, %v1400
      %v1422 = vunpack.c.l.s4 1983009808
      %v1423 = vunpack.c.0.s8 %v1422
      %v1424 = vlaneseq
      %v1425 = vshrl.u32 %v1424, 7
      %v1426 = vsub.s32 %v1423, %v1425
      %v1427 = vrot.slane %v1400, %v1426
      %v1429 = vunpack.c.l.s4 1983009808
      %v1430 = vunpack.c.0.s8 %v1429
      %v1431 = vlaneseq
      %v1432 = vshrl.u32 %v1431, 7
      %v1433 = vsub.s32 %v1430, %v1432
      %v1434 = vrot.slane %v1420, %v1433
      %v1435 = vcombine.high %v1427, %v1427
      %1436 = vrot.lane.b32.xlu0 %v1410, 106
      %v1437 = vpop.permute.xlu0 %1436
      %1438 = vrot.lane.b32.xlu0 %v1418, 106
      %v1439 = vpop.permute.xlu0 %1438
      %1440 = vrot.lane.b32.xlu0 %v1417, 106
      %v1441 = vpop.permute.xlu0 %1440
      %1442 = vrot.lane.b32.xlu0 %v1419, 106
      %v1443 = vpop.permute.xlu0 %1442
      %1444 = vrot.lane.b32.xlu0 %v1427, 106
      %v1445 = vpop.permute.xlu0 %1444
      %1446 = vrot.lane.b32.xlu0 %v1435, 106
      %v1447 = vpop.permute.xlu0 %1446
      %1448 = vrot.lane.b32.xlu0 %v1434, 106
      %v1449 = vpop.permute.xlu0 %1448
      %vm1450 = vcmask 867328
      %v1451 = vsel %vm1450, %v1437, %v1439
      %v1452 = vsel %vm1450, %v1439, %v1441
      %v1453 = vsel %vm1450, %v1441, %v1443
      %v1454 = vsel %vm1450, %v1443, %v1445
      %v1455 = vsel %vm1450, %v1445, %v1447
      %v1456 = vsel %vm1450, %v1447, %v1449
      %1464 = vst [vmem:[#allocation2 + $0x100] sm:$0x3] %v1451
      %1465 = vst [vmem:[#allocation2 + $0x108] sm:$0x3] %v1452
      %1466 = vst [vmem:[#allocation2 + $0x110] sm:$0x3] %v1453
      %1467 = vst [vmem:[#allocation2 + $0x118] sm:$0x3] %v1454
      %1468 = vst [vmem:[#allocation2 + $0x120] sm:$0x3] %v1455
      %1469 = vst [vmem:[#allocation2 + $0x128] sm:$0x3] %v1456
      %1470 = vst.msk [vmem:[#allocation2 + $0x130] sm:$0x3] %vm334, %v1449
      %v1471 = vld [vmem:[%s273] sm:$0xff]
      %v1472 = vld [vmem:[%s273 + $0x8] sm:$0x3f]
      %v1475 = vcombine.low %v1471, %v1471
      %v1477 = vunpack.c.l.s4 1983009808
      %v1478 = vunpack.c.0.s8 %v1477
      %v1479 = vlaneseq
      %v1480 = vshrl.u32 %v1479, 7
      %v1481 = vsub.s32 %v1478, %v1480
      %v1482 = vrot.slane %v1475, %v1481
      %v1484 = vunpack.c.l.s4 1983009808
      %v1485 = vunpack.c.0.s8 %v1484
      %v1486 = vlaneseq
      %v1487 = vshrl.u32 %v1486, 7
      %v1488 = vsub.s32 %v1485, %v1487
      %v1489 = vrot.slane %v1471, %v1488
      %v1490 = vcombine.high %v1482, %v1482
      %v1491 = vcombine.high %v1489, %v1489
      %v1492 = vcombine.low %v1472, %v1472
      %v1494 = vunpack.c.l.s4 1983009808
      %v1495 = vunpack.c.0.s8 %v1494
      %v1496 = vlaneseq
      %v1497 = vshrl.u32 %v1496, 7
      %v1498 = vsub.s32 %v1495, %v1497
      %v1499 = vrot.slane %v1492, %v1498
      %v1501 = vunpack.c.l.s4 1983009808
      %v1502 = vunpack.c.0.s8 %v1501
      %v1503 = vlaneseq
      %v1504 = vshrl.u32 %v1503, 7
      %v1505 = vsub.s32 %v1502, %v1504
      %v1506 = vrot.slane %v1472, %v1505
      %v1507 = vcombine.high %v1499, %v1499
      %1508 = vrot.lane.b32.xlu0 %v1482, 106
      %v1509 = vpop.permute.xlu0 %1508
      %1510 = vrot.lane.b32.xlu0 %v1490, 106
      %v1511 = vpop.permute.xlu0 %1510
      %1512 = vrot.lane.b32.xlu0 %v1489, 106
      %v1513 = vpop.permute.xlu0 %1512
      %1514 = vrot.lane.b32.xlu0 %v1491, 106
      %v1515 = vpop.permute.xlu0 %1514
      %1516 = vrot.lane.b32.xlu0 %v1499, 106
      %v1517 = vpop.permute.xlu0 %1516
      %1518 = vrot.lane.b32.xlu0 %v1507, 106
      %v1519 = vpop.permute.xlu0 %1518
      %1520 = vrot.lane.b32.xlu0 %v1506, 106
      %v1521 = vpop.permute.xlu0 %1520
      %v1522 = vsel %vm1450, %v1509, %v1511
      %v1523 = vsel %vm1450, %v1511, %v1513
      %v1524 = vsel %vm1450, %v1513, %v1515
      %v1525 = vsel %vm1450, %v1515, %v1517
      %v1526 = vsel %vm1450, %v1517, %v1519
      %v1527 = vsel %vm1450, %v1519, %v1521
      %1535 = vst [vmem:[#allocation2 + $0x100] sm:$0xc] %v1522
      %1536 = vst [vmem:[#allocation2 + $0x108] sm:$0xc] %v1523
      %1537 = vst [vmem:[#allocation2 + $0x110] sm:$0xc] %v1524
      %1538 = vst [vmem:[#allocation2 + $0x118] sm:$0xc] %v1525
      %1539 = vst [vmem:[#allocation2 + $0x120] sm:$0xc] %v1526
      %1540 = vst [vmem:[#allocation2 + $0x128] sm:$0xc] %v1527
      %1541 = vst.msk [vmem:[#allocation2 + $0x130] sm:$0xc] %vm386, %v1521
      %v1542 = vld [vmem:[%s268] sm:$0xff]
      %v1543 = vld [vmem:[%s268 + $0x8] sm:$0xff]
      %v1546 = vcombine.high %v1542, %v1542
      %v1548 = vunpack.c.l.s4 1983009808
      %v1549 = vunpack.c.0.s8 %v1548
      %v1550 = vlaneseq
      %v1551 = vshrl.u32 %v1550, 7
      %v1552 = vsub.s32 %v1549, %v1551
      %v1553 = vrot.slane %v1542, %v1552
      %v1555 = vunpack.c.l.s4 1983009808
      %v1556 = vunpack.c.0.s8 %v1555
      %v1557 = vlaneseq
      %v1558 = vshrl.u32 %v1557, 7
      %v1559 = vsub.s32 %v1556, %v1558
      %v1560 = vrot.slane %v1546, %v1559
      %v1561 = vcombine.low %v1553, %v1553
      %v1562 = vcombine.low %v1560, %v1560
      %v1563 = vcombine.high %v1543, %v1543
      %v1565 = vunpack.c.l.s4 1983009808
      %v1566 = vunpack.c.0.s8 %v1565
      %v1567 = vlaneseq
      %v1568 = vshrl.u32 %v1567, 7
      %v1569 = vsub.s32 %v1566, %v1568
      %v1570 = vrot.slane %v1543, %v1569
      %v1572 = vunpack.c.l.s4 1983009808
      %v1573 = vunpack.c.0.s8 %v1572
      %v1574 = vlaneseq
      %v1575 = vshrl.u32 %v1574, 7
      %v1576 = vsub.s32 %v1573, %v1575
      %v1577 = vrot.slane %v1563, %v1576
      %v1578 = vcombine.low %v1570, %v1570
      %v1579 = vcombine.low %v1577, %v1577
      %1580 = vrot.lane.b32.xlu0 %v1561, 28
      %v1581 = vpop.permute.xlu0 %1580
      %1582 = vrot.lane.b32.xlu0 %v1553, 28
      %v1583 = vpop.permute.xlu0 %1582
      %1584 = vrot.lane.b32.xlu0 %v1562, 28
      %v1585 = vpop.permute.xlu0 %1584
      %1586 = vrot.lane.b32.xlu0 %v1560, 28
      %v1587 = vpop.permute.xlu0 %1586
      %1588 = vrot.lane.b32.xlu0 %v1578, 28
      %v1589 = vpop.permute.xlu0 %1588
      %1590 = vrot.lane.b32.xlu0 %v1570, 28
      %v1591 = vpop.permute.xlu0 %1590
      %1592 = vrot.lane.b32.xlu0 %v1579, 28
      %v1593 = vpop.permute.xlu0 %1592
      %1594 = vrot.lane.b32.xlu0 %v1577, 28
      %v1595 = vpop.permute.xlu0 %1594
      %vm1596 = vcmask 228352
      %v1597 = vsel %vm1596, %v1581, %v1583
      %v1598 = vsel %vm1596, %v1583, %v1585
      %v1599 = vsel %vm1596, %v1585, %v1587
      %v1600 = vsel %vm1596, %v1587, %v1589
      %v1601 = vsel %vm1596, %v1589, %v1591
      %v1602 = vsel %vm1596, %v1591, %v1593
      %v1603 = vsel %vm1596, %v1593, %v1595
      %1611 = vst [vmem:[#allocation2 + $0x100] sm:$0x30] %v1597
      %1612 = vst [vmem:[#allocation2 + $0x108] sm:$0x30] %v1598
      %1613 = vst [vmem:[#allocation2 + $0x110] sm:$0x30] %v1599
      %1614 = vst [vmem:[#allocation2 + $0x118] sm:$0x30] %v1600
      %1615 = vst [vmem:[#allocation2 + $0x120] sm:$0x30] %v1601
      %1616 = vst [vmem:[#allocation2 + $0x128] sm:$0x30] %v1602
      %1617 = vst.msk [vmem:[#allocation2 + $0x130] sm:$0x30] %vm460, %v1603
      %v1618 = vld [vmem:[%s273] sm:$0xff]
      %v1619 = vld [vmem:[%s273 + $0x8] sm:$0xff]
      %v1622 = vcombine.low %v1618, %v1618
      %v1624 = vunpack.c.l.s4 1983009808
      %v1625 = vunpack.c.0.s8 %v1624
      %v1626 = vlaneseq
      %v1627 = vshrl.u32 %v1626, 7
      %v1628 = vsub.s32 %v1625, %v1627
      %v1629 = vrot.slane %v1622, %v1628
      %v1631 = vunpack.c.l.s4 1983009808
      %v1632 = vunpack.c.0.s8 %v1631
      %v1633 = vlaneseq
      %v1634 = vshrl.u32 %v1633, 7
      %v1635 = vsub.s32 %v1632, %v1634
      %v1636 = vrot.slane %v1618, %v1635
      %v1637 = vcombine.low %v1629, %v1629
      %v1638 = vcombine.low %v1636, %v1636
      %v1639 = vcombine.low %v1619, %v1619
      %v1641 = vunpack.c.l.s4 1983009808
      %v1642 = vunpack.c.0.s8 %v1641
      %v1643 = vlaneseq
      %v1644 = vshrl.u32 %v1643, 7
      %v1645 = vsub.s32 %v1642, %v1644
      %v1646 = vrot.slane %v1639, %v1645
      %v1648 = vunpack.c.l.s4 1983009808
      %v1649 = vunpack.c.0.s8 %v1648
      %v1650 = vlaneseq
      %v1651 = vshrl.u32 %v1650, 7
      %v1652 = vsub.s32 %v1649, %v1651
      %v1653 = vrot.slane %v1619, %v1652
      %v1654 = vcombine.low %v1646, %v1646
      %v1655 = vcombine.low %v1653, %v1653
      %1656 = vrot.lane.b32.xlu0 %v1637, 28
      %v1657 = vpop.permute.xlu0 %1656
      %1658 = vrot.lane.b32.xlu0 %v1629, 28
      %v1659 = vpop.permute.xlu0 %1658
      %1660 = vrot.lane.b32.xlu0 %v1638, 28
      %v1661 = vpop.permute.xlu0 %1660
      %1662 = vrot.lane.b32.xlu0 %v1636, 28
      %v1663 = vpop.permute.xlu0 %1662
      %1664 = vrot.lane.b32.xlu0 %v1654, 28
      %v1665 = vpop.permute.xlu0 %1664
      %1666 = vrot.lane.b32.xlu0 %v1646, 28
      %v1667 = vpop.permute.xlu0 %1666
      %1668 = vrot.lane.b32.xlu0 %v1655, 28
      %v1669 = vpop.permute.xlu0 %1668
      %1670 = vrot.lane.b32.xlu0 %v1653, 28
      %v1671 = vpop.permute.xlu0 %1670
      %v1672 = vsel %vm1596, %v1657, %v1659
      %v1673 = vsel %vm1596, %v1659, %v1661
      %v1674 = vsel %vm1596, %v1661, %v1663
      %v1675 = vsel %vm1596, %v1663, %v1665
      %v1676 = vsel %vm1596, %v1665, %v1667
      %v1677 = vsel %vm1596, %v1667, %v1669
      %v1678 = vsel %vm1596, %v1669, %v1671
      %1686 = vst [vmem:[#allocation2 + $0x100] sm:$0xc0] %v1672
      %1687 = vst [vmem:[#allocation2 + $0x108] sm:$0xc0] %v1673
      %1688 = vst [vmem:[#allocation2 + $0x110] sm:$0xc0] %v1674
      %1689 = vst [vmem:[#allocation2 + $0x118] sm:$0xc0] %v1675
      %1690 = vst [vmem:[#allocation2 + $0x120] sm:$0xc0] %v1676
      %1691 = vst [vmem:[#allocation2 + $0x128] sm:$0xc0] %v1677
      %1692 = vst.msk [vmem:[#allocation2 + $0x130] sm:$0xc0] %vm533, %v1678
      %v1693 = vld [vmem:[%s268] sm:$0xff]
      %v1694 = vld [vmem:[%s268 + $0x8] sm:$0xff]
      %v1697 = vcombine.high %v1693, %v1693
      %v1699 = vunpack.c.l.s4 1983009808
      %v1700 = vunpack.c.0.s8 %v1699
      %v1701 = vlaneseq
      %v1702 = vshrl.u32 %v1701, 7
      %v1703 = vsub.s32 %v1700, %v1702
      %v1704 = vrot.slane %v1693, %v1703
      %v1706 = vunpack.c.l.s4 1983009808
      %v1707 = vunpack.c.0.s8 %v1706
      %v1708 = vlaneseq
      %v1709 = vshrl.u32 %v1708, 7
      %v1710 = vsub.s32 %v1707, %v1709
      %v1711 = vrot.slane %v1697, %v1710
      %v1712 = vcombine.high %v1704, %v1704
      %v1713 = vcombine.high %v1711, %v1711
      %v1714 = vcombine.high %v1694, %v1694
      %v1716 = vunpack.c.l.s4 1983009808
      %v1717 = vunpack.c.0.s8 %v1716
      %v1718 = vlaneseq
      %v1719 = vshrl.u32 %v1718, 7
      %v1720 = vsub.s32 %v1717, %v1719
      %v1721 = vrot.slane %v1694, %v1720
      %v1723 = vunpack.c.l.s4 1983009808
      %v1724 = vunpack.c.0.s8 %v1723
      %v1725 = vlaneseq
      %v1726 = vshrl.u32 %v1725, 7
      %v1727 = vsub.s32 %v1724, %v1726
      %v1728 = vrot.slane %v1714, %v1727
      %v1729 = vcombine.high %v1721, %v1721
      %v1730 = vcombine.high %v1728, %v1728
      %1731 = vrot.lane.b32.xlu0 %v1704, 27
      %v1732 = vpop.permute.xlu0 %1731
      %1733 = vrot.lane.b32.xlu0 %v1712, 27
      %v1734 = vpop.permute.xlu0 %1733
      %1735 = vrot.lane.b32.xlu0 %v1711, 27
      %v1736 = vpop.permute.xlu0 %1735
      %1737 = vrot.lane.b32.xlu0 %v1713, 27
      %v1738 = vpop.permute.xlu0 %1737
      %1739 = vrot.lane.b32.xlu0 %v1721, 27
      %v1740 = vpop.permute.xlu0 %1739
      %1741 = vrot.lane.b32.xlu0 %v1729, 27
      %v1742 = vpop.permute.xlu0 %1741
      %1743 = vrot.lane.b32.xlu0 %v1728, 27
      %v1744 = vpop.permute.xlu0 %1743
      %1745 = vrot.lane.b32.xlu0 %v1730, 27
      %v1746 = vpop.permute.xlu0 %1745
      %vm1747 = vcmask 220160
      %v1748 = vsel %vm1747, %v1732, %v1734
      %v1749 = vsel %vm1747, %v1734, %v1736
      %v1750 = vsel %vm1747, %v1736, %v1738
      %v1751 = vsel %vm1747, %v1738, %v1740
      %v1752 = vsel %vm1747, %v1740, %v1742
      %v1753 = vsel %vm1747, %v1742, %v1744
      %v1754 = vsel %vm1747, %v1744, %v1746
      %1762 = vst [vmem:[#allocation2 + $0x140] sm:$0x3] %v1748
      %1763 = vst [vmem:[#allocation2 + $0x148] sm:$0x3] %v1749
      %1764 = vst [vmem:[#allocation2 + $0x150] sm:$0x3] %v1750
      %1765 = vst [vmem:[#allocation2 + $0x158] sm:$0x3] %v1751
      %1766 = vst [vmem:[#allocation2 + $0x160] sm:$0x3] %v1752
      %1767 = vst [vmem:[#allocation2 + $0x168] sm:$0x3] %v1753
      %1768 = vst.msk [vmem:[#allocation2 + $0x170] sm:$0x3] %vm334, %v1754
      %v1769 = vld [vmem:[%s273] sm:$0xff]
      %v1770 = vld [vmem:[%s273 + $0x8] sm:$0xff]
      %v1773 = vcombine.low %v1769, %v1769
      %v1775 = vunpack.c.l.s4 1983009808
      %v1776 = vunpack.c.0.s8 %v1775
      %v1777 = vlaneseq
      %v1778 = vshrl.u32 %v1777, 7
      %v1779 = vsub.s32 %v1776, %v1778
      %v1780 = vrot.slane %v1773, %v1779
      %v1782 = vunpack.c.l.s4 1983009808
      %v1783 = vunpack.c.0.s8 %v1782
      %v1784 = vlaneseq
      %v1785 = vshrl.u32 %v1784, 7
      %v1786 = vsub.s32 %v1783, %v1785
      %v1787 = vrot.slane %v1769, %v1786
      %v1788 = vcombine.high %v1780, %v1780
      %v1789 = vcombine.high %v1787, %v1787
      %v1790 = vcombine.low %v1770, %v1770
      %v1792 = vunpack.c.l.s4 1983009808
      %v1793 = vunpack.c.0.s8 %v1792
      %v1794 = vlaneseq
      %v1795 = vshrl.u32 %v1794, 7
      %v1796 = vsub.s32 %v1793, %v1795
      %v1797 = vrot.slane %v1790, %v1796
      %v1799 = vunpack.c.l.s4 1983009808
      %v1800 = vunpack.c.0.s8 %v1799
      %v1801 = vlaneseq
      %v1802 = vshrl.u32 %v1801, 7
      %v1803 = vsub.s32 %v1800, %v1802
      %v1804 = vrot.slane %v1770, %v1803
      %v1805 = vcombine.high %v1797, %v1797
      %v1806 = vcombine.high %v1804, %v1804
      %1807 = vrot.lane.b32.xlu0 %v1780, 27
      %v1808 = vpop.permute.xlu0 %1807
      %1809 = vrot.lane.b32.xlu0 %v1788, 27
      %v1810 = vpop.permute.xlu0 %1809
      %1811 = vrot.lane.b32.xlu0 %v1787, 27
      %v1812 = vpop.permute.xlu0 %1811
      %1813 = vrot.lane.b32.xlu0 %v1789, 27
      %v1814 = vpop.permute.xlu0 %1813
      %1815 = vrot.lane.b32.xlu0 %v1797, 27
      %v1816 = vpop.permute.xlu0 %1815
      %1817 = vrot.lane.b32.xlu0 %v1805, 27
      %v1818 = vpop.permute.xlu0 %1817
      %1819 = vrot.lane.b32.xlu0 %v1804, 27
      %v1820 = vpop.permute.xlu0 %1819
      %1821 = vrot.lane.b32.xlu0 %v1806, 27
      %v1822 = vpop.permute.xlu0 %1821
      %v1823 = vsel %vm1747, %v1808, %v1810
      %v1824 = vsel %vm1747, %v1810, %v1812
      %v1825 = vsel %vm1747, %v1812, %v1814
      %v1826 = vsel %vm1747, %v1814, %v1816
      %v1827 = vsel %vm1747, %v1816, %v1818
      %v1828 = vsel %vm1747, %v1818, %v1820
      %v1829 = vsel %vm1747, %v1820, %v1822
      %1837 = vst [vmem:[#allocation2 + $0x140] sm:$0xc] %v1823
      %1838 = vst [vmem:[#allocation2 + $0x148] sm:$0xc] %v1824
      %1839 = vst [vmem:[#allocation2 + $0x150] sm:$0xc] %v1825
      %1840 = vst [vmem:[#allocation2 + $0x158] sm:$0xc] %v1826
      %1841 = vst [vmem:[#allocation2 + $0x160] sm:$0xc] %v1827
      %1842 = vst [vmem:[#allocation2 + $0x168] sm:$0xc] %v1828
      %1843 = vst.msk [vmem:[#allocation2 + $0x170] sm:$0xc] %vm386, %v1829
      %v1844 = vld [vmem:[%s268] sm:$0xff]
      %v1845 = vld [vmem:[%s268 + $0x8] sm:$0xff]
      %v1848 = vcombine.high %v1844, %v1844
      %v1850 = vunpack.c.l.s4 1983009808
      %v1851 = vunpack.c.0.s8 %v1850
      %v1852 = vlaneseq
      %v1853 = vshrl.u32 %v1852, 7
      %v1854 = vsub.s32 %v1851, %v1853
      %v1855 = vrot.slane %v1844, %v1854
      %v1857 = vunpack.c.l.s4 1983009808
      %v1858 = vunpack.c.0.s8 %v1857
      %v1859 = vlaneseq
      %v1860 = vshrl.u32 %v1859, 7
      %v1861 = vsub.s32 %v1858, %v1860
      %v1862 = vrot.slane %v1848, %v1861
      %v1863 = vcombine.low %v1855, %v1855
      %v1864 = vcombine.low %v1862, %v1862
      %v1865 = vcombine.high %v1845, %v1845
      %v1867 = vunpack.c.l.s4 1983009808
      %v1868 = vunpack.c.0.s8 %v1867
      %v1869 = vlaneseq
      %v1870 = vshrl.u32 %v1869, 7
      %v1871 = vsub.s32 %v1868, %v1870
      %v1872 = vrot.slane %v1845, %v1871
      %v1874 = vunpack.c.l.s4 1983009808
      %v1875 = vunpack.c.0.s8 %v1874
      %v1876 = vlaneseq
      %v1877 = vshrl.u32 %v1876, 7
      %v1878 = vsub.s32 %v1875, %v1877
      %v1879 = vrot.slane %v1865, %v1878
      %v1880 = vcombine.low %v1872, %v1872
      %v1881 = vcombine.low %v1879, %v1879
      %1882 = vrot.lane.b32.xlu0 %v1863, 26
      %v1883 = vpop.permute.xlu0 %1882
      %1884 = vrot.lane.b32.xlu0 %v1855, 26
      %v1885 = vpop.permute.xlu0 %1884
      %1886 = vrot.lane.b32.xlu0 %v1864, 26
      %v1887 = vpop.permute.xlu0 %1886
      %1888 = vrot.lane.b32.xlu0 %v1862, 26
      %v1889 = vpop.permute.xlu0 %1888
      %1890 = vrot.lane.b32.xlu0 %v1880, 26
      %v1891 = vpop.permute.xlu0 %1890
      %1892 = vrot.lane.b32.xlu0 %v1872, 26
      %v1893 = vpop.permute.xlu0 %1892
      %1894 = vrot.lane.b32.xlu0 %v1881, 26
      %v1895 = vpop.permute.xlu0 %1894
      %1896 = vrot.lane.b32.xlu0 %v1879, 26
      %v1897 = vpop.permute.xlu0 %1896
      %vm1898 = vcmask 211968
      %v1899 = vsel %vm1898, %v1883, %v1885
      %v1900 = vsel %vm1898, %v1885, %v1887
      %v1901 = vsel %vm1898, %v1887, %v1889
      %v1902 = vsel %vm1898, %v1889, %v1891
      %v1903 = vsel %vm1898, %v1891, %v1893
      %v1904 = vsel %vm1898, %v1893, %v1895
      %v1905 = vsel %vm1898, %v1895, %v1897
      %1913 = vst [vmem:[#allocation2 + $0x140] sm:$0x30] %v1899
      %1914 = vst [vmem:[#allocation2 + $0x148] sm:$0x30] %v1900
      %1915 = vst [vmem:[#allocation2 + $0x150] sm:$0x30] %v1901
      %1916 = vst [vmem:[#allocation2 + $0x158] sm:$0x30] %v1902
      %1917 = vst [vmem:[#allocation2 + $0x160] sm:$0x30] %v1903
      %1918 = vst [vmem:[#allocation2 + $0x168] sm:$0x30] %v1904
      %1919 = vst.msk [vmem:[#allocation2 + $0x170] sm:$0x30] %vm460, %v1905
      %v1920 = vld [vmem:[%s273] sm:$0xff]
      %v1921 = vld [vmem:[%s273 + $0x8] sm:$0xff]
      %v1924 = vcombine.low %v1920, %v1920
      %v1926 = vunpack.c.l.s4 1983009808
      %v1927 = vunpack.c.0.s8 %v1926
      %v1928 = vlaneseq
      %v1929 = vshrl.u32 %v1928, 7
      %v1930 = vsub.s32 %v1927, %v1929
      %v1931 = vrot.slane %v1924, %v1930
      %v1933 = vunpack.c.l.s4 1983009808
      %v1934 = vunpack.c.0.s8 %v1933
      %v1935 = vlaneseq
      %v1936 = vshrl.u32 %v1935, 7
      %v1937 = vsub.s32 %v1934, %v1936
      %v1938 = vrot.slane %v1920, %v1937
      %v1939 = vcombine.low %v1931, %v1931
      %v1940 = vcombine.low %v1938, %v1938
      %v1941 = vcombine.low %v1921, %v1921
      %v1943 = vunpack.c.l.s4 1983009808
      %v1944 = vunpack.c.0.s8 %v1943
      %v1945 = vlaneseq
      %v1946 = vshrl.u32 %v1945, 7
      %v1947 = vsub.s32 %v1944, %v1946
      %v1948 = vrot.slane %v1941, %v1947
      %v1950 = vunpack.c.l.s4 1983009808
      %v1951 = vunpack.c.0.s8 %v1950
      %v1952 = vlaneseq
      %v1953 = vshrl.u32 %v1952, 7
      %v1954 = vsub.s32 %v1951, %v1953
      %v1955 = vrot.slane %v1921, %v1954
      %v1956 = vcombine.low %v1948, %v1948
      %v1957 = vcombine.low %v1955, %v1955
      %1958 = vrot.lane.b32.xlu0 %v1939, 26
      %v1959 = vpop.permute.xlu0 %1958
      %1960 = vrot.lane.b32.xlu0 %v1931, 26
      %v1961 = vpop.permute.xlu0 %1960
      %1962 = vrot.lane.b32.xlu0 %v1940, 26
      %v1963 = vpop.permute.xlu0 %1962
      %1964 = vrot.lane.b32.xlu0 %v1938, 26
      %v1965 = vpop.permute.xlu0 %1964
      %1966 = vrot.lane.b32.xlu0 %v1956, 26
      %v1967 = vpop.permute.xlu0 %1966
      %1968 = vrot.lane.b32.xlu0 %v1948, 26
      %v1969 = vpop.permute.xlu0 %1968
      %1970 = vrot.lane.b32.xlu0 %v1957, 26
      %v1971 = vpop.permute.xlu0 %1970
      %1972 = vrot.lane.b32.xlu0 %v1955, 26
      %v1973 = vpop.permute.xlu0 %1972
      %v1974 = vsel %vm1898, %v1959, %v1961
      %v1975 = vsel %vm1898, %v1961, %v1963
      %v1976 = vsel %vm1898, %v1963, %v1965
      %v1977 = vsel %vm1898, %v1965, %v1967
      %v1978 = vsel %vm1898, %v1967, %v1969
      %v1979 = vsel %vm1898, %v1969, %v1971
      %v1980 = vsel %vm1898, %v1971, %v1973
      %1988 = vst [vmem:[#allocation2 + $0x140] sm:$0xc0] %v1974
      %1989 = vst [vmem:[#allocation2 + $0x148] sm:$0xc0] %v1975
      %1990 = vst [vmem:[#allocation2 + $0x150] sm:$0xc0] %v1976
      %1991 = vst [vmem:[#allocation2 + $0x158] sm:$0xc0] %v1977
      %1992 = vst [vmem:[#allocation2 + $0x160] sm:$0xc0] %v1978
      %1993 = vst [vmem:[#allocation2 + $0x168] sm:$0xc0] %v1979
      %1994 = vst.msk [vmem:[#allocation2 + $0x170] sm:$0xc0] %vm533, %v1980
      %v1995 = vld [vmem:[%s268] sm:$0xff]
      %v1996 = vld [vmem:[%s268 + $0x8] sm:$0xff]
      %v1999 = vcombine.high %v1995, %v1995
      %v2001 = vunpack.c.l.s4 1983009808
      %v2002 = vunpack.c.0.s8 %v2001
      %v2003 = vlaneseq
      %v2004 = vshrl.u32 %v2003, 7
      %v2005 = vsub.s32 %v2002, %v2004
      %v2006 = vrot.slane %v1995, %v2005
      %v2008 = vunpack.c.l.s4 1983009808
      %v2009 = vunpack.c.0.s8 %v2008
      %v2010 = vlaneseq
      %v2011 = vshrl.u32 %v2010, 7
      %v2012 = vsub.s32 %v2009, %v2011
      %v2013 = vrot.slane %v1999, %v2012
      %v2014 = vcombine.high %v2006, %v2006
      %v2015 = vcombine.high %v2013, %v2013
      %v2016 = vcombine.high %v1996, %v1996
      %v2018 = vunpack.c.l.s4 1983009808
      %v2019 = vunpack.c.0.s8 %v2018
      %v2020 = vlaneseq
      %v2021 = vshrl.u32 %v2020, 7
      %v2022 = vsub.s32 %v2019, %v2021
      %v2023 = vrot.slane %v1996, %v2022
      %v2025 = vunpack.c.l.s4 1983009808
      %v2026 = vunpack.c.0.s8 %v2025
      %v2027 = vlaneseq
      %v2028 = vshrl.u32 %v2027, 7
      %v2029 = vsub.s32 %v2026, %v2028
      %v2030 = vrot.slane %v2016, %v2029
      %v2031 = vcombine.high %v2023, %v2023
      %v2032 = vcombine.high %v2030, %v2030
      %2033 = vrot.lane.b32.xlu0 %v2006, 18
      %v2034 = vpop.permute.xlu0 %2033
      %2035 = vrot.lane.b32.xlu0 %v2014, 18
      %v2036 = vpop.permute.xlu0 %2035
      %2037 = vrot.lane.b32.xlu0 %v2013, 18
      %v2038 = vpop.permute.xlu0 %2037
      %2039 = vrot.lane.b32.xlu0 %v2015, 18
      %v2040 = vpop.permute.xlu0 %2039
      %2041 = vrot.lane.b32.xlu0 %v2023, 18
      %v2042 = vpop.permute.xlu0 %2041
      %2043 = vrot.lane.b32.xlu0 %v2031, 18
      %v2044 = vpop.permute.xlu0 %2043
      %2045 = vrot.lane.b32.xlu0 %v2030, 18
      %v2046 = vpop.permute.xlu0 %2045
      %2047 = vrot.lane.b32.xlu0 %v2032, 18
      %v2048 = vpop.permute.xlu0 %2047
      %vm2049 = vcmask 146432
      %v2050 = vsel %vm2049, %v2034, %v2036
      %v2051 = vsel %vm2049, %v2036, %v2038
      %v2052 = vsel %vm2049, %v2038, %v2040
      %v2053 = vsel %vm2049, %v2040, %v2042
      %v2054 = vsel %vm2049, %v2042, %v2044
      %v2055 = vsel %vm2049, %v2044, %v2046
      %v2056 = vsel %vm2049, %v2046, %v2048
      %2064 = vst [vmem:[#allocation2 + $0x180] sm:$0x3] %v2050
      %2065 = vst [vmem:[#allocation2 + $0x188] sm:$0x3] %v2051
      %2066 = vst [vmem:[#allocation2 + $0x190] sm:$0x3] %v2052
      %2067 = vst [vmem:[#allocation2 + $0x198] sm:$0x3] %v2053
      %2068 = vst [vmem:[#allocation2 + $0x1a0] sm:$0x3] %v2054
      %2069 = vst [vmem:[#allocation2 + $0x1a8] sm:$0x3] %v2055
      %2070 = vst.msk [vmem:[#allocation2 + $0x1b0] sm:$0x3] %vm334, %v2056
      %v2071 = vld [vmem:[%s273] sm:$0xff]
      %v2072 = vld [vmem:[%s273 + $0x8] sm:$0xff]
      %v2075 = vcombine.low %v2071, %v2071
      %v2077 = vunpack.c.l.s4 1983009808
      %v2078 = vunpack.c.0.s8 %v2077
      %v2079 = vlaneseq
      %v2080 = vshrl.u32 %v2079, 7
      %v2081 = vsub.s32 %v2078, %v2080
      %v2082 = vrot.slane %v2075, %v2081
      %v2084 = vunpack.c.l.s4 1983009808
      %v2085 = vunpack.c.0.s8 %v2084
      %v2086 = vlaneseq
      %v2087 = vshrl.u32 %v2086, 7
      %v2088 = vsub.s32 %v2085, %v2087
      %v2089 = vrot.slane %v2071, %v2088
      %v2090 = vcombine.high %v2082, %v2082
      %v2091 = vcombine.high %v2089, %v2089
      %v2092 = vcombine.low %v2072, %v2072
      %v2094 = vunpack.c.l.s4 1983009808
      %v2095 = vunpack.c.0.s8 %v2094
      %v2096 = vlaneseq
      %v2097 = vshrl.u32 %v2096, 7
      %v2098 = vsub.s32 %v2095, %v2097
      %v2099 = vrot.slane %v2092, %v2098
      %v2101 = vunpack.c.l.s4 1983009808
      %v2102 = vunpack.c.0.s8 %v2101
      %v2103 = vlaneseq
      %v2104 = vshrl.u32 %v2103, 7
      %v2105 = vsub.s32 %v2102, %v2104
      %v2106 = vrot.slane %v2072, %v2105
      %v2107 = vcombine.high %v2099, %v2099
      %v2108 = vcombine.high %v2106, %v2106
      %2109 = vrot.lane.b32.xlu0 %v2082, 18
      %v2110 = vpop.permute.xlu0 %2109
      %2111 = vrot.lane.b32.xlu0 %v2090, 18
      %v2112 = vpop.permute.xlu0 %2111
      %2113 = vrot.lane.b32.xlu0 %v2089, 18
      %v2114 = vpop.permute.xlu0 %2113
      %2115 = vrot.lane.b32.xlu0 %v2091, 18
      %v2116 = vpop.permute.xlu0 %2115
      %2117 = vrot.lane.b32.xlu0 %v2099, 18
      %v2118 = vpop.permute.xlu0 %2117
      %2119 = vrot.lane.b32.xlu0 %v2107, 18
      %v2120 = vpop.permute.xlu0 %2119
      %2121 = vrot.lane.b32.xlu0 %v2106, 18
      %v2122 = vpop.permute.xlu0 %2121
      %2123 = vrot.lane.b32.xlu0 %v2108, 18
      %v2124 = vpop.permute.xlu0 %2123
      %v2125 = vsel %vm2049, %v2110, %v2112
      %v2126 = vsel %vm2049, %v2112, %v2114
      %v2127 = vsel %vm2049, %v2114, %v2116
      %v2128 = vsel %vm2049, %v2116, %v2118
      %v2129 = vsel %vm2049, %v2118, %v2120
      %v2130 = vsel %vm2049, %v2120, %v2122
      %v2131 = vsel %vm2049, %v2122, %v2124
      %2139 = vst [vmem:[#allocation2 + $0x180] sm:$0xc] %v2125
      %2140 = vst [vmem:[#allocation2 + $0x188] sm:$0xc] %v2126
      %2141 = vst [vmem:[#allocation2 + $0x190] sm:$0xc] %v2127
      %2142 = vst [vmem:[#allocation2 + $0x198] sm:$0xc] %v2128
      %2143 = vst [vmem:[#allocation2 + $0x1a0] sm:$0xc] %v2129
      %2144 = vst [vmem:[#allocation2 + $0x1a8] sm:$0xc] %v2130
      %2145 = vst.msk [vmem:[#allocation2 + $0x1b0] sm:$0xc] %vm386, %v2131
      %v2146 = vld [vmem:[%s268] sm:$0xff]
      %v2147 = vld [vmem:[%s268 + $0x8] sm:$0xff]
      %v2150 = vcombine.high %v2146, %v2146
      %v2152 = vunpack.c.l.s4 1983009808
      %v2153 = vunpack.c.0.s8 %v2152
      %v2154 = vlaneseq
      %v2155 = vshrl.u32 %v2154, 7
      %v2156 = vsub.s32 %v2153, %v2155
      %v2157 = vrot.slane %v2146, %v2156
      %v2159 = vunpack.c.l.s4 1983009808
      %v2160 = vunpack.c.0.s8 %v2159
      %v2161 = vlaneseq
      %v2162 = vshrl.u32 %v2161, 7
      %v2163 = vsub.s32 %v2160, %v2162
      %v2164 = vrot.slane %v2150, %v2163
      %v2165 = vcombine.low %v2157, %v2157
      %v2166 = vcombine.low %v2164, %v2164
      %v2167 = vcombine.high %v2147, %v2147
      %v2169 = vunpack.c.l.s4 1983009808
      %v2170 = vunpack.c.0.s8 %v2169
      %v2171 = vlaneseq
      %v2172 = vshrl.u32 %v2171, 7
      %v2173 = vsub.s32 %v2170, %v2172
      %v2174 = vrot.slane %v2147, %v2173
      %v2176 = vunpack.c.l.s4 1983009808
      %v2177 = vunpack.c.0.s8 %v2176
      %v2178 = vlaneseq
      %v2179 = vshrl.u32 %v2178, 7
      %v2180 = vsub.s32 %v2177, %v2179
      %v2181 = vrot.slane %v2167, %v2180
      %v2182 = vcombine.low %v2174, %v2174
      %v2183 = vcombine.low %v2181, %v2181
      %2184 = vrot.lane.b32.xlu0 %v2165, 17
      %v2185 = vpop.permute.xlu0 %2184
      %2186 = vrot.lane.b32.xlu0 %v2157, 17
      %v2187 = vpop.permute.xlu0 %2186
      %2188 = vrot.lane.b32.xlu0 %v2166, 17
      %v2189 = vpop.permute.xlu0 %2188
      %2190 = vrot.lane.b32.xlu0 %v2164, 17
      %v2191 = vpop.permute.xlu0 %2190
      %2192 = vrot.lane.b32.xlu0 %v2182, 17
      %v2193 = vpop.permute.xlu0 %2192
      %2194 = vrot.lane.b32.xlu0 %v2174, 17
      %v2195 = vpop.permute.xlu0 %2194
      %2196 = vrot.lane.b32.xlu0 %v2183, 17
      %v2197 = vpop.permute.xlu0 %2196
      %2198 = vrot.lane.b32.xlu0 %v2181, 17
      %v2199 = vpop.permute.xlu0 %2198
      %vm2200 = vcmask 138240
      %v2201 = vsel %vm2200, %v2185, %v2187
      %v2202 = vsel %vm2200, %v2187, %v2189
      %v2203 = vsel %vm2200, %v2189, %v2191
      %v2204 = vsel %vm2200, %v2191, %v2193
      %v2205 = vsel %vm2200, %v2193, %v2195
      %v2206 = vsel %vm2200, %v2195, %v2197
      %v2207 = vsel %vm2200, %v2197, %v2199
      %2215 = vst [vmem:[#allocation2 + $0x180] sm:$0x30] %v2201
      %2216 = vst [vmem:[#allocation2 + $0x188] sm:$0x30] %v2202
      %2217 = vst [vmem:[#allocation2 + $0x190] sm:$0x30] %v2203
      %2218 = vst [vmem:[#allocation2 + $0x198] sm:$0x30] %v2204
      %2219 = vst [vmem:[#allocation2 + $0x1a0] sm:$0x30] %v2205
      %2220 = vst [vmem:[#allocation2 + $0x1a8] sm:$0x30] %v2206
      %2221 = vst.msk [vmem:[#allocation2 + $0x1b0] sm:$0x30] %vm460, %v2207
      %v2222 = vld [vmem:[%s273] sm:$0xff]
      %v2223 = vld [vmem:[%s273 + $0x8] sm:$0xff]
      %v2226 = vcombine.low %v2222, %v2222
      %v2228 = vunpack.c.l.s4 1983009808
      %v2229 = vunpack.c.0.s8 %v2228
      %v2230 = vlaneseq
      %v2231 = vshrl.u32 %v2230, 7
      %v2232 = vsub.s32 %v2229, %v2231
      %v2233 = vrot.slane %v2226, %v2232
      %v2235 = vunpack.c.l.s4 1983009808
      %v2236 = vunpack.c.0.s8 %v2235
      %v2237 = vlaneseq
      %v2238 = vshrl.u32 %v2237, 7
      %v2239 = vsub.s32 %v2236, %v2238
      %v2240 = vrot.slane %v2222, %v2239
      %v2241 = vcombine.low %v2233, %v2233
      %v2242 = vcombine.low %v2240, %v2240
      %v2243 = vcombine.low %v2223, %v2223
      %v2245 = vunpack.c.l.s4 1983009808
      %v2246 = vunpack.c.0.s8 %v2245
      %v2247 = vlaneseq
      %v2248 = vshrl.u32 %v2247, 7
      %v2249 = vsub.s32 %v2246, %v2248
      %v2250 = vrot.slane %v2243, %v2249
      %v2252 = vunpack.c.l.s4 1983009808
      %v2253 = vunpack.c.0.s8 %v2252
      %v2254 = vlaneseq
      %v2255 = vshrl.u32 %v2254, 7
      %v2256 = vsub.s32 %v2253, %v2255
      %v2257 = vrot.slane %v2223, %v2256
      %v2258 = vcombine.low %v2250, %v2250
      %v2259 = vcombine.low %v2257, %v2257
      %2260 = vrot.lane.b32.xlu0 %v2241, 17
      %v2261 = vpop.permute.xlu0 %2260
      %2262 = vrot.lane.b32.xlu0 %v2233, 17
      %v2263 = vpop.permute.xlu0 %2262
      %2264 = vrot.lane.b32.xlu0 %v2242, 17
      %v2265 = vpop.permute.xlu0 %2264
      %2266 = vrot.lane.b32.xlu0 %v2240, 17
      %v2267 = vpop.permute.xlu0 %2266
      %2268 = vrot.lane.b32.xlu0 %v2258, 17
      %v2269 = vpop.permute.xlu0 %2268
      %2270 = vrot.lane.b32.xlu0 %v2250, 17
      %v2271 = vpop.permute.xlu0 %2270
      %2272 = vrot.lane.b32.xlu0 %v2259, 17
      %v2273 = vpop.permute.xlu0 %2272
      %2274 = vrot.lane.b32.xlu0 %v2257, 17
      %v2275 = vpop.permute.xlu0 %2274
      %v2276 = vsel %vm2200, %v2261, %v2263
      %v2277 = vsel %vm2200, %v2263, %v2265
      %v2278 = vsel %vm2200, %v2265, %v2267
      %v2279 = vsel %vm2200, %v2267, %v2269
      %v2280 = vsel %vm2200, %v2269, %v2271
      %v2281 = vsel %vm2200, %v2271, %v2273
      %v2282 = vsel %vm2200, %v2273, %v2275
      %2290 = vst [vmem:[#allocation2 + $0x180] sm:$0xc0] %v2276
      %2291 = vst [vmem:[#allocation2 + $0x188] sm:$0xc0] %v2277
      %2292 = vst [vmem:[#allocation2 + $0x190] sm:$0xc0] %v2278
      %2293 = vst [vmem:[#allocation2 + $0x198] sm:$0xc0] %v2279
      %2294 = vst [vmem:[#allocation2 + $0x1a0] sm:$0xc0] %v2280
      %2295 = vst [vmem:[#allocation2 + $0x1a8] sm:$0xc0] %v2281
      %2296 = vst.msk [vmem:[#allocation2 + $0x1b0] sm:$0xc0] %vm533, %v2282
      %v2297 = vld [vmem:[%s268] sm:$0xff]
      %v2298 = vld [vmem:[%s268 + $0x8] sm:$0xff]
      %v2301 = vcombine.high %v2297, %v2297
      %v2303 = vunpack.c.l.s4 1983009808
      %v2304 = vunpack.c.0.s8 %v2303
      %v2305 = vlaneseq
      %v2306 = vshrl.u32 %v2305, 7
      %v2307 = vsub.s32 %v2304, %v2306
      %v2308 = vrot.slane %v2297, %v2307
      %v2310 = vunpack.c.l.s4 1983009808
      %v2311 = vunpack.c.0.s8 %v2310
      %v2312 = vlaneseq
      %v2313 = vshrl.u32 %v2312, 7
      %v2314 = vsub.s32 %v2311, %v2313
      %v2315 = vrot.slane %v2301, %v2314
      %v2316 = vcombine.high %v2308, %v2308
      %v2317 = vcombine.high %v2315, %v2315
      %v2318 = vcombine.high %v2298, %v2298
      %v2320 = vunpack.c.l.s4 1983009808
      %v2321 = vunpack.c.0.s8 %v2320
      %v2322 = vlaneseq
      %v2323 = vshrl.u32 %v2322, 7
      %v2324 = vsub.s32 %v2321, %v2323
      %v2325 = vrot.slane %v2298, %v2324
      %v2327 = vunpack.c.l.s4 1983009808
      %v2328 = vunpack.c.0.s8 %v2327
      %v2329 = vlaneseq
      %v2330 = vshrl.u32 %v2329, 7
      %v2331 = vsub.s32 %v2328, %v2330
      %v2332 = vrot.slane %v2318, %v2331
      %v2333 = vcombine.high %v2325, %v2325
      %v2334 = vcombine.high %v2332, %v2332
      %2335 = vrot.lane.b32.xlu0 %v2308, 16
      %v2336 = vpop.permute.xlu0 %2335
      %2337 = vrot.lane.b32.xlu0 %v2316, 16
      %v2338 = vpop.permute.xlu0 %2337
      %2339 = vrot.lane.b32.xlu0 %v2315, 16
      %v2340 = vpop.permute.xlu0 %2339
      %2341 = vrot.lane.b32.xlu0 %v2317, 16
      %v2342 = vpop.permute.xlu0 %2341
      %2343 = vrot.lane.b32.xlu0 %v2325, 16
      %v2344 = vpop.permute.xlu0 %2343
      %2345 = vrot.lane.b32.xlu0 %v2333, 16
      %v2346 = vpop.permute.xlu0 %2345
      %2347 = vrot.lane.b32.xlu0 %v2332, 16
      %v2348 = vpop.permute.xlu0 %2347
      %2349 = vrot.lane.b32.xlu0 %v2334, 16
      %v2350 = vpop.permute.xlu0 %2349
      %vm2351 = vcmask 130048
      %v2352 = vsel %vm2351, %v2336, %v2338
      %v2353 = vsel %vm2351, %v2338, %v2340
      %v2354 = vsel %vm2351, %v2340, %v2342
      %v2355 = vsel %vm2351, %v2342, %v2344
      %v2356 = vsel %vm2351, %v2344, %v2346
      %v2357 = vsel %vm2351, %v2346, %v2348
      %v2358 = vsel %vm2351, %v2348, %v2350
      %2366 = vst [vmem:[#allocation2 + $0x1c0] sm:$0x3] %v2352
      %2367 = vst [vmem:[#allocation2 + $0x1c8] sm:$0x3] %v2353
      %2368 = vst [vmem:[#allocation2 + $0x1d0] sm:$0x3] %v2354
      %2369 = vst [vmem:[#allocation2 + $0x1d8] sm:$0x3] %v2355
      %2370 = vst [vmem:[#allocation2 + $0x1e0] sm:$0x3] %v2356
      %2371 = vst [vmem:[#allocation2 + $0x1e8] sm:$0x3] %v2357
      %2372 = vst.msk [vmem:[#allocation2 + $0x1f0] sm:$0x3] %vm334, %v2358
      %v2373 = vld [vmem:[%s273] sm:$0xff]
      %v2374 = vld [vmem:[%s273 + $0x8] sm:$0xff]
      %v2377 = vcombine.low %v2373, %v2373
      %v2379 = vunpack.c.l.s4 1983009808
      %v2380 = vunpack.c.0.s8 %v2379
      %v2381 = vlaneseq
      %v2382 = vshrl.u32 %v2381, 7
      %v2383 = vsub.s32 %v2380, %v2382
      %v2384 = vrot.slane %v2377, %v2383
      %v2386 = vunpack.c.l.s4 1983009808
      %v2387 = vunpack.c.0.s8 %v2386
      %v2388 = vlaneseq
      %v2389 = vshrl.u32 %v2388, 7
      %v2390 = vsub.s32 %v2387, %v2389
      %v2391 = vrot.slane %v2373, %v2390
      %v2392 = vcombine.high %v2384, %v2384
      %v2393 = vcombine.high %v2391, %v2391
      %v2394 = vcombine.low %v2374, %v2374
      %v2396 = vunpack.c.l.s4 1983009808
      %v2397 = vunpack.c.0.s8 %v2396
      %v2398 = vlaneseq
      %v2399 = vshrl.u32 %v2398, 7
      %v2400 = vsub.s32 %v2397, %v2399
      %v2401 = vrot.slane %v2394, %v2400
      %v2403 = vunpack.c.l.s4 1983009808
      %v2404 = vunpack.c.0.s8 %v2403
      %v2405 = vlaneseq
      %v2406 = vshrl.u32 %v2405, 7
      %v2407 = vsub.s32 %v2404, %v2406
      %v2408 = vrot.slane %v2374, %v2407
      %v2409 = vcombine.high %v2401, %v2401
      %v2410 = vcombine.high %v2408, %v2408
      %2411 = vrot.lane.b32.xlu0 %v2384, 16
      %v2412 = vpop.permute.xlu0 %2411
      %2413 = vrot.lane.b32.xlu0 %v2392, 16
      %v2414 = vpop.permute.xlu0 %2413
      %2415 = vrot.lane.b32.xlu0 %v2391, 16
      %v2416 = vpop.permute.xlu0 %2415
      %2417 = vrot.lane.b32.xlu0 %v2393, 16
      %v2418 = vpop.permute.xlu0 %2417
      %2419 = vrot.lane.b32.xlu0 %v2401, 16
      %v2420 = vpop.permute.xlu0 %2419
      %2421 = vrot.lane.b32.xlu0 %v2409, 16
      %v2422 = vpop.permute.xlu0 %2421
      %2423 = vrot.lane.b32.xlu0 %v2408, 16
      %v2424 = vpop.permute.xlu0 %2423
      %2425 = vrot.lane.b32.xlu0 %v2410, 16
      %v2426 = vpop.permute.xlu0 %2425
      %v2427 = vsel %vm2351, %v2412, %v2414
      %v2428 = vsel %vm2351, %v2414, %v2416
      %v2429 = vsel %vm2351, %v2416, %v2418
      %v2430 = vsel %vm2351, %v2418, %v2420
      %v2431 = vsel %vm2351, %v2420, %v2422
      %v2432 = vsel %vm2351, %v2422, %v2424
      %v2433 = vsel %vm2351, %v2424, %v2426
      %2441 = vst [vmem:[#allocation2 + $0x1c0] sm:$0xc] %v2427
      %2442 = vst [vmem:[#allocation2 + $0x1c8] sm:$0xc] %v2428
      %2443 = vst [vmem:[#allocation2 + $0x1d0] sm:$0xc] %v2429
      %2444 = vst [vmem:[#allocation2 + $0x1d8] sm:$0xc] %v2430
      %2445 = vst [vmem:[#allocation2 + $0x1e0] sm:$0xc] %v2431
      %2446 = vst [vmem:[#allocation2 + $0x1e8] sm:$0xc] %v2432
      %2447 = vst.msk [vmem:[#allocation2 + $0x1f0] sm:$0xc] %vm386, %v2433
      %v2448 = vld [vmem:[%s268] sm:$0xff]
      %v2449 = vld [vmem:[%s268 + $0x8] sm:$0xff]
      %v2452 = vcombine.high %v2448, %v2448
      %v2454 = vunpack.c.l.s4 1983009808
      %v2455 = vunpack.c.0.s8 %v2454
      %v2456 = vlaneseq
      %v2457 = vshrl.u32 %v2456, 7
      %v2458 = vsub.s32 %v2455, %v2457
      %v2459 = vrot.slane %v2448, %v2458
      %v2461 = vunpack.c.l.s4 1983009808
      %v2462 = vunpack.c.0.s8 %v2461
      %v2463 = vlaneseq
      %v2464 = vshrl.u32 %v2463, 7
      %v2465 = vsub.s32 %v2462, %v2464
      %v2466 = vrot.slane %v2452, %v2465
      %v2467 = vcombine.low %v2459, %v2459
      %v2468 = vcombine.low %v2466, %v2466
      %v2469 = vcombine.high %v2449, %v2449
      %v2471 = vunpack.c.l.s4 1983009808
      %v2472 = vunpack.c.0.s8 %v2471
      %v2473 = vlaneseq
      %v2474 = vshrl.u32 %v2473, 7
      %v2475 = vsub.s32 %v2472, %v2474
      %v2476 = vrot.slane %v2449, %v2475
      %v2478 = vunpack.c.l.s4 1983009808
      %v2479 = vunpack.c.0.s8 %v2478
      %v2480 = vlaneseq
      %v2481 = vshrl.u32 %v2480, 7
      %v2482 = vsub.s32 %v2479, %v2481
      %v2483 = vrot.slane %v2469, %v2482
      %v2484 = vcombine.low %v2476, %v2476
      %v2485 = vcombine.low %v2483, %v2483
      %2486 = vrot.lane.b32.xlu0 %v2467, 8
      %v2487 = vpop.permute.xlu0 %2486
      %2488 = vrot.lane.b32.xlu0 %v2459, 8
      %v2489 = vpop.permute.xlu0 %2488
      %2490 = vrot.lane.b32.xlu0 %v2468, 8
      %v2491 = vpop.permute.xlu0 %2490
      %2492 = vrot.lane.b32.xlu0 %v2466, 8
      %v2493 = vpop.permute.xlu0 %2492
      %2494 = vrot.lane.b32.xlu0 %v2484, 8
      %v2495 = vpop.permute.xlu0 %2494
      %2496 = vrot.lane.b32.xlu0 %v2476, 8
      %v2497 = vpop.permute.xlu0 %2496
      %2498 = vrot.lane.b32.xlu0 %v2485, 8
      %v2499 = vpop.permute.xlu0 %2498
      %2500 = vrot.lane.b32.xlu0 %v2483, 8
      %v2501 = vpop.permute.xlu0 %2500
      %vm2502 = vcmask 64512
      %v2503 = vsel %vm2502, %v2487, %v2489
      %v2504 = vsel %vm2502, %v2489, %v2491
      %v2505 = vsel %vm2502, %v2491, %v2493
      %v2506 = vsel %vm2502, %v2493, %v2495
      %v2507 = vsel %vm2502, %v2495, %v2497
      %v2508 = vsel %vm2502, %v2497, %v2499
      %v2509 = vsel %vm2502, %v2499, %v2501
      %2517 = vst [vmem:[#allocation2 + $0x1c0] sm:$0x30] %v2503
      %2518 = vst [vmem:[#allocation2 + $0x1c8] sm:$0x30] %v2504
      %2519 = vst [vmem:[#allocation2 + $0x1d0] sm:$0x30] %v2505
      %2520 = vst [vmem:[#allocation2 + $0x1d8] sm:$0x30] %v2506
      %2521 = vst [vmem:[#allocation2 + $0x1e0] sm:$0x30] %v2507
      %2522 = vst [vmem:[#allocation2 + $0x1e8] sm:$0x30] %v2508
      %2523 = vst.msk [vmem:[#allocation2 + $0x1f0] sm:$0x30] %vm460, %v2509
      %v2524 = vld [vmem:[%s273] sm:$0xff]
      %v2525 = vld [vmem:[%s273 + $0x8] sm:$0xff]
      %v2528 = vcombine.low %v2524, %v2524
      %v2530 = vunpack.c.l.s4 1983009808
      %v2531 = vunpack.c.0.s8 %v2530
      %v2532 = vlaneseq
      %v2533 = vshrl.u32 %v2532, 7
      %v2534 = vsub.s32 %v2531, %v2533
      %v2535 = vrot.slane %v2528, %v2534
      %v2537 = vunpack.c.l.s4 1983009808
      %v2538 = vunpack.c.0.s8 %v2537
      %v2539 = vlaneseq
      %v2540 = vshrl.u32 %v2539, 7
      %v2541 = vsub.s32 %v2538, %v2540
      %v2542 = vrot.slane %v2524, %v2541
      %v2543 = vcombine.low %v2535, %v2535
      %v2544 = vcombine.low %v2542, %v2542
      %v2545 = vcombine.low %v2525, %v2525
      %v2547 = vunpack.c.l.s4 1983009808
      %v2548 = vunpack.c.0.s8 %v2547
      %v2549 = vlaneseq
      %v2550 = vshrl.u32 %v2549, 7
      %v2551 = vsub.s32 %v2548, %v2550
      %v2552 = vrot.slane %v2545, %v2551
      %v2554 = vunpack.c.l.s4 1983009808
      %v2555 = vunpack.c.0.s8 %v2554
      %v2556 = vlaneseq
      %v2557 = vshrl.u32 %v2556, 7
      %v2558 = vsub.s32 %v2555, %v2557
      %v2559 = vrot.slane %v2525, %v2558
      %v2560 = vcombine.low %v2552, %v2552
      %v2561 = vcombine.low %v2559, %v2559
      %2562 = vrot.lane.b32.xlu0 %v2543, 8
      %v2563 = vpop.permute.xlu0 %2562
      %2564 = vrot.lane.b32.xlu0 %v2535, 8
      %v2565 = vpop.permute.xlu0 %2564
      %2566 = vrot.lane.b32.xlu0 %v2544, 8
      %v2567 = vpop.permute.xlu0 %2566
      %2568 = vrot.lane.b32.xlu0 %v2542, 8
      %v2569 = vpop.permute.xlu0 %2568
      %2570 = vrot.lane.b32.xlu0 %v2560, 8
      %v2571 = vpop.permute.xlu0 %2570
      %2572 = vrot.lane.b32.xlu0 %v2552, 8
      %v2573 = vpop.permute.xlu0 %2572
      %2574 = vrot.lane.b32.xlu0 %v2561, 8
      %v2575 = vpop.permute.xlu0 %2574
      %2576 = vrot.lane.b32.xlu0 %v2559, 8
      %v2577 = vpop.permute.xlu0 %2576
      %v2578 = vsel %vm2502, %v2563, %v2565
      %v2579 = vsel %vm2502, %v2565, %v2567
      %v2580 = vsel %vm2502, %v2567, %v2569
      %v2581 = vsel %vm2502, %v2569, %v2571
      %v2582 = vsel %vm2502, %v2571, %v2573
      %v2583 = vsel %vm2502, %v2573, %v2575
      %v2584 = vsel %vm2502, %v2575, %v2577
      %2592 = vst [vmem:[#allocation2 + $0x1c0] sm:$0xc0] %v2578
      %2593 = vst [vmem:[#allocation2 + $0x1c8] sm:$0xc0] %v2579
      %2594 = vst [vmem:[#allocation2 + $0x1d0] sm:$0xc0] %v2580
      %2595 = vst [vmem:[#allocation2 + $0x1d8] sm:$0xc0] %v2581
      %2596 = vst [vmem:[#allocation2 + $0x1e0] sm:$0xc0] %v2582
      %2597 = vst [vmem:[#allocation2 + $0x1e8] sm:$0xc0] %v2583
      %2598 = vst.msk [vmem:[#allocation2 + $0x1f0] sm:$0xc0] %vm533, %v2584
      %v2599 = vld [vmem:[%s268] sm:$0xff]
      %v2600 = vld [vmem:[%s268 + $0x8] sm:$0xff]
      %v2603 = vcombine.high %v2599, %v2599
      %v2605 = vunpack.c.l.s4 1983009808
      %v2606 = vunpack.c.0.s8 %v2605
      %v2607 = vlaneseq
      %v2608 = vshrl.u32 %v2607, 7
      %v2609 = vsub.s32 %v2606, %v2608
      %v2610 = vrot.slane %v2599, %v2609
      %v2612 = vunpack.c.l.s4 1983009808
      %v2613 = vunpack.c.0.s8 %v2612
      %v2614 = vlaneseq
      %v2615 = vshrl.u32 %v2614, 7
      %v2616 = vsub.s32 %v2613, %v2615
      %v2617 = vrot.slane %v2603, %v2616
      %v2618 = vcombine.high %v2610, %v2610
      %v2619 = vcombine.high %v2617, %v2617
      %v2620 = vcombine.high %v2600, %v2600
      %v2622 = vunpack.c.l.s4 1983009808
      %v2623 = vunpack.c.0.s8 %v2622
      %v2624 = vlaneseq
      %v2625 = vshrl.u32 %v2624, 7
      %v2626 = vsub.s32 %v2623, %v2625
      %v2627 = vrot.slane %v2600, %v2626
      %v2629 = vunpack.c.l.s4 1983009808
      %v2630 = vunpack.c.0.s8 %v2629
      %v2631 = vlaneseq
      %v2632 = vshrl.u32 %v2631, 7
      %v2633 = vsub.s32 %v2630, %v2632
      %v2634 = vrot.slane %v2620, %v2633
      %v2635 = vcombine.high %v2627, %v2627
      %v2636 = vcombine.high %v2634, %v2634
      %2637 = vrot.lane.b32.xlu0 %v2610, 7
      %v2638 = vpop.permute.xlu0 %2637
      %2639 = vrot.lane.b32.xlu0 %v2618, 7
      %v2640 = vpop.permute.xlu0 %2639
      %2641 = vrot.lane.b32.xlu0 %v2617, 7
      %v2642 = vpop.permute.xlu0 %2641
      %2643 = vrot.lane.b32.xlu0 %v2619, 7
      %v2644 = vpop.permute.xlu0 %2643
      %2645 = vrot.lane.b32.xlu0 %v2627, 7
      %v2646 = vpop.permute.xlu0 %2645
      %2647 = vrot.lane.b32.xlu0 %v2635, 7
      %v2648 = vpop.permute.xlu0 %2647
      %2649 = vrot.lane.b32.xlu0 %v2634, 7
      %v2650 = vpop.permute.xlu0 %2649
      %2651 = vrot.lane.b32.xlu0 %v2636, 7
      %v2652 = vpop.permute.xlu0 %2651
      %vm2653 = vcmask 56320
      %v2654 = vsel %vm2653, %v2638, %v2640
      %v2655 = vsel %vm2653, %v2640, %v2642
      %v2656 = vsel %vm2653, %v2642, %v2644
      %v2657 = vsel %vm2653, %v2644, %v2646
      %v2658 = vsel %vm2653, %v2646, %v2648
      %v2659 = vsel %vm2653, %v2648, %v2650
      %v2660 = vsel %vm2653, %v2650, %v2652
      %2668 = vst [vmem:[#allocation2 + $0x200] sm:$0x3] %v2654
      %2669 = vst [vmem:[#allocation2 + $0x208] sm:$0x3] %v2655
      %2670 = vst [vmem:[#allocation2 + $0x210] sm:$0x3] %v2656
      %2671 = vst [vmem:[#allocation2 + $0x218] sm:$0x3] %v2657
      %2672 = vst [vmem:[#allocation2 + $0x220] sm:$0x3] %v2658
      %2673 = vst [vmem:[#allocation2 + $0x228] sm:$0x3] %v2659
      %2674 = vst.msk [vmem:[#allocation2 + $0x230] sm:$0x3] %vm334, %v2660
      %v2675 = vld [vmem:[%s273] sm:$0xff]
      %v2676 = vld [vmem:[%s273 + $0x8] sm:$0xff]
      %v2679 = vcombine.low %v2675, %v2675
      %v2681 = vunpack.c.l.s4 1983009808
      %v2682 = vunpack.c.0.s8 %v2681
      %v2683 = vlaneseq
      %v2684 = vshrl.u32 %v2683, 7
      %v2685 = vsub.s32 %v2682, %v2684
      %v2686 = vrot.slane %v2679, %v2685
      %v2688 = vunpack.c.l.s4 1983009808
      %v2689 = vunpack.c.0.s8 %v2688
      %v2690 = vlaneseq
      %v2691 = vshrl.u32 %v2690, 7
      %v2692 = vsub.s32 %v2689, %v2691
      %v2693 = vrot.slane %v2675, %v2692
      %v2694 = vcombine.high %v2686, %v2686
      %v2695 = vcombine.high %v2693, %v2693
      %v2696 = vcombine.low %v2676, %v2676
      %v2698 = vunpack.c.l.s4 1983009808
      %v2699 = vunpack.c.0.s8 %v2698
      %v2700 = vlaneseq
      %v2701 = vshrl.u32 %v2700, 7
      %v2702 = vsub.s32 %v2699, %v2701
      %v2703 = vrot.slane %v2696, %v2702
      %v2705 = vunpack.c.l.s4 1983009808
      %v2706 = vunpack.c.0.s8 %v2705
      %v2707 = vlaneseq
      %v2708 = vshrl.u32 %v2707, 7
      %v2709 = vsub.s32 %v2706, %v2708
      %v2710 = vrot.slane %v2676, %v2709
      %v2711 = vcombine.high %v2703, %v2703
      %v2712 = vcombine.high %v2710, %v2710
      %2713 = vrot.lane.b32.xlu0 %v2686, 7
      %v2714 = vpop.permute.xlu0 %2713
      %2715 = vrot.lane.b32.xlu0 %v2694, 7
      %v2716 = vpop.permute.xlu0 %2715
      %2717 = vrot.lane.b32.xlu0 %v2693, 7
      %v2718 = vpop.permute.xlu0 %2717
      %2719 = vrot.lane.b32.xlu0 %v2695, 7
      %v2720 = vpop.permute.xlu0 %2719
      %2721 = vrot.lane.b32.xlu0 %v2703, 7
      %v2722 = vpop.permute.xlu0 %2721
      %2723 = vrot.lane.b32.xlu0 %v2711, 7
      %v2724 = vpop.permute.xlu0 %2723
      %2725 = vrot.lane.b32.xlu0 %v2710, 7
      %v2726 = vpop.permute.xlu0 %2725
      %2727 = vrot.lane.b32.xlu0 %v2712, 7
      %v2728 = vpop.permute.xlu0 %2727
      %v2729 = vsel %vm2653, %v2714, %v2716
      %v2730 = vsel %vm2653, %v2716, %v2718
      %v2731 = vsel %vm2653, %v2718, %v2720
      %v2732 = vsel %vm2653, %v2720, %v2722
      %v2733 = vsel %vm2653, %v2722, %v2724
      %v2734 = vsel %vm2653, %v2724, %v2726
      %v2735 = vsel %vm2653, %v2726, %v2728
      %2743 = vst [vmem:[#allocation2 + $0x200] sm:$0xc] %v2729
      %2744 = vst [vmem:[#allocation2 + $0x208] sm:$0xc] %v2730
      %2745 = vst [vmem:[#allocation2 + $0x210] sm:$0xc] %v2731
      %2746 = vst [vmem:[#allocation2 + $0x218] sm:$0xc] %v2732
      %2747 = vst [vmem:[#allocation2 + $0x220] sm:$0xc] %v2733
      %2748 = vst [vmem:[#allocation2 + $0x228] sm:$0xc] %v2734
      %2749 = vst.msk [vmem:[#allocation2 + $0x230] sm:$0xc] %vm386, %v2735
      %v2750 = vld [vmem:[%s268] sm:$0xff]
      %v2751 = vld [vmem:[%s268 + $0x8] sm:$0xff]
      %v2754 = vcombine.high %v2750, %v2750
      %v2756 = vunpack.c.l.s4 1983009808
      %v2757 = vunpack.c.0.s8 %v2756
      %v2758 = vlaneseq
      %v2759 = vshrl.u32 %v2758, 7
      %v2760 = vsub.s32 %v2757, %v2759
      %v2761 = vrot.slane %v2750, %v2760
      %v2763 = vunpack.c.l.s4 1983009808
      %v2764 = vunpack.c.0.s8 %v2763
      %v2765 = vlaneseq
      %v2766 = vshrl.u32 %v2765, 7
      %v2767 = vsub.s32 %v2764, %v2766
      %v2768 = vrot.slane %v2754, %v2767
      %v2769 = vcombine.low %v2761, %v2761
      %v2770 = vcombine.low %v2768, %v2768
      %v2771 = vcombine.high %v2751, %v2751
      %v2773 = vunpack.c.l.s4 1983009808
      %v2774 = vunpack.c.0.s8 %v2773
      %v2775 = vlaneseq
      %v2776 = vshrl.u32 %v2775, 7
      %v2777 = vsub.s32 %v2774, %v2776
      %v2778 = vrot.slane %v2751, %v2777
      %v2780 = vunpack.c.l.s4 1983009808
      %v2781 = vunpack.c.0.s8 %v2780
      %v2782 = vlaneseq
      %v2783 = vshrl.u32 %v2782, 7
      %v2784 = vsub.s32 %v2781, %v2783
      %v2785 = vrot.slane %v2771, %v2784
      %v2786 = vcombine.low %v2778, %v2778
      %v2787 = vcombine.low %v2785, %v2785
      %2788 = vrot.lane.b32.xlu0 %v2769, 6
      %v2789 = vpop.permute.xlu0 %2788
      %2790 = vrot.lane.b32.xlu0 %v2761, 6
      %v2791 = vpop.permute.xlu0 %2790
      %2792 = vrot.lane.b32.xlu0 %v2770, 6
      %v2793 = vpop.permute.xlu0 %2792
      %2794 = vrot.lane.b32.xlu0 %v2768, 6
      %v2795 = vpop.permute.xlu0 %2794
      %2796 = vrot.lane.b32.xlu0 %v2786, 6
      %v2797 = vpop.permute.xlu0 %2796
      %2798 = vrot.lane.b32.xlu0 %v2778, 6
      %v2799 = vpop.permute.xlu0 %2798
      %2800 = vrot.lane.b32.xlu0 %v2787, 6
      %v2801 = vpop.permute.xlu0 %2800
      %2802 = vrot.lane.b32.xlu0 %v2785, 6
      %v2803 = vpop.permute.xlu0 %2802
      %vm2804 = vcmask 48128
      %v2805 = vsel %vm2804, %v2789, %v2791
      %v2806 = vsel %vm2804, %v2791, %v2793
      %v2807 = vsel %vm2804, %v2793, %v2795
      %v2808 = vsel %vm2804, %v2795, %v2797
      %v2809 = vsel %vm2804, %v2797, %v2799
      %v2810 = vsel %vm2804, %v2799, %v2801
      %v2811 = vsel %vm2804, %v2801, %v2803
      %2819 = vst [vmem:[#allocation2 + $0x200] sm:$0x30] %v2805
      %2820 = vst [vmem:[#allocation2 + $0x208] sm:$0x30] %v2806
      %2821 = vst [vmem:[#allocation2 + $0x210] sm:$0x30] %v2807
      %2822 = vst [vmem:[#allocation2 + $0x218] sm:$0x30] %v2808
      %2823 = vst [vmem:[#allocation2 + $0x220] sm:$0x30] %v2809
      %2824 = vst [vmem:[#allocation2 + $0x228] sm:$0x30] %v2810
      %2825 = vst.msk [vmem:[#allocation2 + $0x230] sm:$0x30] %vm460, %v2811
      %v2826 = vld [vmem:[%s273] sm:$0xff]
      %v2827 = vld [vmem:[%s273 + $0x8] sm:$0xff]
      %v2830 = vcombine.low %v2826, %v2826
      %v2832 = vunpack.c.l.s4 1983009808
      %v2833 = vunpack.c.0.s8 %v2832
      %v2834 = vlaneseq
      %v2835 = vshrl.u32 %v2834, 7
      %v2836 = vsub.s32 %v2833, %v2835
      %v2837 = vrot.slane %v2830, %v2836
      %v2839 = vunpack.c.l.s4 1983009808
      %v2840 = vunpack.c.0.s8 %v2839
      %v2841 = vlaneseq
      %v2842 = vshrl.u32 %v2841, 7
      %v2843 = vsub.s32 %v2840, %v2842
      %v2844 = vrot.slane %v2826, %v2843
      %v2845 = vcombine.low %v2837, %v2837
      %v2846 = vcombine.low %v2844, %v2844
      %v2847 = vcombine.low %v2827, %v2827
      %v2849 = vunpack.c.l.s4 1983009808
      %v2850 = vunpack.c.0.s8 %v2849
      %v2851 = vlaneseq
      %v2852 = vshrl.u32 %v2851, 7
      %v2853 = vsub.s32 %v2850, %v2852
      %v2854 = vrot.slane %v2847, %v2853
      %v2856 = vunpack.c.l.s4 1983009808
      %v2857 = vunpack.c.0.s8 %v2856
      %v2858 = vlaneseq
      %v2859 = vshrl.u32 %v2858, 7
      %v2860 = vsub.s32 %v2857, %v2859
      %v2861 = vrot.slane %v2827, %v2860
      %v2862 = vcombine.low %v2854, %v2854
      %v2863 = vcombine.low %v2861, %v2861
      %2864 = vrot.lane.b32.xlu0 %v2845, 6
      %v2865 = vpop.permute.xlu0 %2864
      %2866 = vrot.lane.b32.xlu0 %v2837, 6
      %v2867 = vpop.permute.xlu0 %2866
      %2868 = vrot.lane.b32.xlu0 %v2846, 6
      %v2869 = vpop.permute.xlu0 %2868
      %2870 = vrot.lane.b32.xlu0 %v2844, 6
      %v2871 = vpop.permute.xlu0 %2870
      %2872 = vrot.lane.b32.xlu0 %v2862, 6
      %v2873 = vpop.permute.xlu0 %2872
      %2874 = vrot.lane.b32.xlu0 %v2854, 6
      %v2875 = vpop.permute.xlu0 %2874
      %2876 = vrot.lane.b32.xlu0 %v2863, 6
      %v2877 = vpop.permute.xlu0 %2876
      %2878 = vrot.lane.b32.xlu0 %v2861, 6
      %v2879 = vpop.permute.xlu0 %2878
      %v2880 = vsel %vm2804, %v2865, %v2867
      %v2881 = vsel %vm2804, %v2867, %v2869
      %v2882 = vsel %vm2804, %v2869, %v2871
      %v2883 = vsel %vm2804, %v2871, %v2873
      %v2884 = vsel %vm2804, %v2873, %v2875
      %v2885 = vsel %vm2804, %v2875, %v2877
      %v2886 = vsel %vm2804, %v2877, %v2879
      %2894 = vst [vmem:[#allocation2 + $0x200] sm:$0xc0] %v2880
      %2895 = vst [vmem:[#allocation2 + $0x208] sm:$0xc0] %v2881
      %2896 = vst [vmem:[#allocation2 + $0x210] sm:$0xc0] %v2882
      %2897 = vst [vmem:[#allocation2 + $0x218] sm:$0xc0] %v2883
      %2898 = vst [vmem:[#allocation2 + $0x220] sm:$0xc0] %v2884
      %2899 = vst [vmem:[#allocation2 + $0x228] sm:$0xc0] %v2885
      %2900 = vst.msk [vmem:[#allocation2 + $0x230] sm:$0xc0] %vm533, %v2886
      %v2901 = vld [vmem:[%s268 + $0x2] sm:$0xff]
      %v2902 = vld [vmem:[%s268 + $0xa] sm:$0x3f]
      %v2905 = vcombine.high %v2901, %v2901
      %v2907 = vunpack.c.l.s4 1983009808
      %v2908 = vunpack.c.0.s8 %v2907
      %v2909 = vlaneseq
      %v2910 = vshrl.u32 %v2909, 7
      %v2911 = vsub.s32 %v2908, %v2910
      %v2912 = vrot.slane %v2901, %v2911
      %v2914 = vunpack.c.l.s4 1983009808
      %v2915 = vunpack.c.0.s8 %v2914
      %v2916 = vlaneseq
      %v2917 = vshrl.u32 %v2916, 7
      %v2918 = vsub.s32 %v2915, %v2917
      %v2919 = vrot.slane %v2905, %v2918
      %v2920 = vcombine.high %v2912, %v2912
      %v2921 = vcombine.high %v2919, %v2919
      %v2922 = vcombine.high %v2902, %v2902
      %v2924 = vunpack.c.l.s4 1983009808
      %v2925 = vunpack.c.0.s8 %v2924
      %v2926 = vlaneseq
      %v2927 = vshrl.u32 %v2926, 7
      %v2928 = vsub.s32 %v2925, %v2927
      %v2929 = vrot.slane %v2902, %v2928
      %v2931 = vunpack.c.l.s4 1983009808
      %v2932 = vunpack.c.0.s8 %v2931
      %v2933 = vlaneseq
      %v2934 = vshrl.u32 %v2933, 7
      %v2935 = vsub.s32 %v2932, %v2934
      %v2936 = vrot.slane %v2922, %v2935
      %v2937 = vcombine.high %v2929, %v2929
      %2938 = vrot.lane.b32.xlu0 %v2912, 56
      %v2939 = vpop.permute.xlu0 %2938
      %2940 = vrot.lane.b32.xlu0 %v2920, 56
      %v2941 = vpop.permute.xlu0 %2940
      %2942 = vrot.lane.b32.xlu0 %v2919, 56
      %v2943 = vpop.permute.xlu0 %2942
      %2944 = vrot.lane.b32.xlu0 %v2921, 56
      %v2945 = vpop.permute.xlu0 %2944
      %2946 = vrot.lane.b32.xlu0 %v2929, 56
      %v2947 = vpop.permute.xlu0 %2946
      %2948 = vrot.lane.b32.xlu0 %v2937, 56
      %v2949 = vpop.permute.xlu0 %2948
      %2950 = vrot.lane.b32.xlu0 %v2936, 56
      %v2951 = vpop.permute.xlu0 %2950
      %vm2952 = vcmask 457728
      %v2953 = vsel %vm2952, %v2939, %v2941
      %v2954 = vsel %vm2952, %v2941, %v2943
      %v2955 = vsel %vm2952, %v2943, %v2945
      %v2956 = vsel %vm2952, %v2945, %v2947
      %v2957 = vsel %vm2952, %v2947, %v2949
      %v2958 = vsel %vm2952, %v2949, %v2951
      %2966 = vst [vmem:[#allocation2 + $0x240] sm:$0x3] %v2953
      %2967 = vst [vmem:[#allocation2 + $0x248] sm:$0x3] %v2954
      %2968 = vst [vmem:[#allocation2 + $0x250] sm:$0x3] %v2955
      %2969 = vst [vmem:[#allocation2 + $0x258] sm:$0x3] %v2956
      %2970 = vst [vmem:[#allocation2 + $0x260] sm:$0x3] %v2957
      %2971 = vst [vmem:[#allocation2 + $0x268] sm:$0x3] %v2958
      %2972 = vst.msk [vmem:[#allocation2 + $0x270] sm:$0x3] %vm334, %v2951
      %v2973 = vld [vmem:[%s273 + $0x2] sm:$0xff]
      %v2974 = vld [vmem:[%s273 + $0xa] sm:$0x3f]
      %v2977 = vcombine.low %v2973, %v2973
      %v2979 = vunpack.c.l.s4 1983009808
      %v2980 = vunpack.c.0.s8 %v2979
      %v2981 = vlaneseq
      %v2982 = vshrl.u32 %v2981, 7
      %v2983 = vsub.s32 %v2980, %v2982
      %v2984 = vrot.slane %v2977, %v2983
      %v2986 = vunpack.c.l.s4 1983009808
      %v2987 = vunpack.c.0.s8 %v2986
      %v2988 = vlaneseq
      %v2989 = vshrl.u32 %v2988, 7
      %v2990 = vsub.s32 %v2987, %v2989
      %v2991 = vrot.slane %v2973, %v2990
      %v2992 = vcombine.high %v2984, %v2984
      %v2993 = vcombine.high %v2991, %v2991
      %v2994 = vcombine.low %v2974, %v2974
      %v2996 = vunpack.c.l.s4 1983009808
      %v2997 = vunpack.c.0.s8 %v2996
      %v2998 = vlaneseq
      %v2999 = vshrl.u32 %v2998, 7
      %v3000 = vsub.s32 %v2997, %v2999
      %v3001 = vrot.slane %v2994, %v3000
      %v3003 = vunpack.c.l.s4 1983009808
      %v3004 = vunpack.c.0.s8 %v3003
      %v3005 = vlaneseq
      %v3006 = vshrl.u32 %v3005, 7
      %v3007 = vsub.s32 %v3004, %v3006
      %v3008 = vrot.slane %v2974, %v3007
      %v3009 = vcombine.high %v3001, %v3001
      %3010 = vrot.lane.b32.xlu0 %v2984, 56
      %v3011 = vpop.permute.xlu0 %3010
      %3012 = vrot.lane.b32.xlu0 %v2992, 56
      %v3013 = vpop.permute.xlu0 %3012
      %3014 = vrot.lane.b32.xlu0 %v2991, 56
      %v3015 = vpop.permute.xlu0 %3014
      %3016 = vrot.lane.b32.xlu0 %v2993, 56
      %v3017 = vpop.permute.xlu0 %3016
      %3018 = vrot.lane.b32.xlu0 %v3001, 56
      %v3019 = vpop.permute.xlu0 %3018
      %3020 = vrot.lane.b32.xlu0 %v3009, 56
      %v3021 = vpop.permute.xlu0 %3020
      %3022 = vrot.lane.b32.xlu0 %v3008, 56
      %v3023 = vpop.permute.xlu0 %3022
      %v3024 = vsel %vm2952, %v3011, %v3013
      %v3025 = vsel %vm2952, %v3013, %v3015
      %v3026 = vsel %vm2952, %v3015, %v3017
      %v3027 = vsel %vm2952, %v3017, %v3019
      %v3028 = vsel %vm2952, %v3019, %v3021
      %v3029 = vsel %vm2952, %v3021, %v3023
      %3037 = vst [vmem:[#allocation2 + $0x240] sm:$0xc] %v3024
      %3038 = vst [vmem:[#allocation2 + $0x248] sm:$0xc] %v3025
      %3039 = vst [vmem:[#allocation2 + $0x250] sm:$0xc] %v3026
      %3040 = vst [vmem:[#allocation2 + $0x258] sm:$0xc] %v3027
      %3041 = vst [vmem:[#allocation2 + $0x260] sm:$0xc] %v3028
      %3042 = vst [vmem:[#allocation2 + $0x268] sm:$0xc] %v3029
      %3043 = vst.msk [vmem:[#allocation2 + $0x270] sm:$0xc] %vm386, %v3023
      %v3044 = vld [vmem:[%s268 + $0x2] sm:$0xff]
      %v3045 = vld [vmem:[%s268 + $0xa] sm:$0x3f]
      %v3048 = vcombine.high %v3044, %v3044
      %v3050 = vunpack.c.l.s4 1983009808
      %v3051 = vunpack.c.0.s8 %v3050
      %v3052 = vlaneseq
      %v3053 = vshrl.u32 %v3052, 7
      %v3054 = vsub.s32 %v3051, %v3053
      %v3055 = vrot.slane %v3044, %v3054
      %v3057 = vunpack.c.l.s4 1983009808
      %v3058 = vunpack.c.0.s8 %v3057
      %v3059 = vlaneseq
      %v3060 = vshrl.u32 %v3059, 7
      %v3061 = vsub.s32 %v3058, %v3060
      %v3062 = vrot.slane %v3048, %v3061
      %v3063 = vcombine.low %v3055, %v3055
      %v3064 = vcombine.low %v3062, %v3062
      %v3065 = vcombine.high %v3045, %v3045
      %v3067 = vunpack.c.l.s4 1983009808
      %v3068 = vunpack.c.0.s8 %v3067
      %v3069 = vlaneseq
      %v3070 = vshrl.u32 %v3069, 7
      %v3071 = vsub.s32 %v3068, %v3070
      %v3072 = vrot.slane %v3045, %v3071
      %v3074 = vunpack.c.l.s4 1983009808
      %v3075 = vunpack.c.0.s8 %v3074
      %v3076 = vlaneseq
      %v3077 = vshrl.u32 %v3076, 7
      %v3078 = vsub.s32 %v3075, %v3077
      %v3079 = vrot.slane %v3065, %v3078
      %v3080 = vcombine.low %v3072, %v3072
      %v3081 = vcombine.low %v3079, %v3079
      %3082 = vrot.lane.b32.xlu0 %v3063, 55
      %v3083 = vpop.permute.xlu0 %3082
      %3084 = vrot.lane.b32.xlu0 %v3055, 55
      %v3085 = vpop.permute.xlu0 %3084
      %3086 = vrot.lane.b32.xlu0 %v3064, 55
      %v3087 = vpop.permute.xlu0 %3086
      %3088 = vrot.lane.b32.xlu0 %v3062, 55
      %v3089 = vpop.permute.xlu0 %3088
      %3090 = vrot.lane.b32.xlu0 %v3080, 55
      %v3091 = vpop.permute.xlu0 %3090
      %3092 = vrot.lane.b32.xlu0 %v3072, 55
      %v3093 = vpop.permute.xlu0 %3092
      %3094 = vrot.lane.b32.xlu0 %v3081, 55
      %v3095 = vpop.permute.xlu0 %3094
      %vm3096 = vcmask 449536
      %v3097 = vsel %vm3096, %v3083, %v3085
      %v3098 = vsel %vm3096, %v3085, %v3087
      %v3099 = vsel %vm3096, %v3087, %v3089
      %v3100 = vsel %vm3096, %v3089, %v3091
      %v3101 = vsel %vm3096, %v3091, %v3093
      %v3102 = vsel %vm3096, %v3093, %v3095
      %3110 = vst [vmem:[#allocation2 + $0x240] sm:$0x30] %v3097
      %3111 = vst [vmem:[#allocation2 + $0x248] sm:$0x30] %v3098
      %3112 = vst [vmem:[#allocation2 + $0x250] sm:$0x30] %v3099
      %3113 = vst [vmem:[#allocation2 + $0x258] sm:$0x30] %v3100
      %3114 = vst [vmem:[#allocation2 + $0x260] sm:$0x30] %v3101
      %3115 = vst [vmem:[#allocation2 + $0x268] sm:$0x30] %v3102
      %3116 = vst.msk [vmem:[#allocation2 + $0x270] sm:$0x30] %vm460, %v3095
      %v3117 = vld [vmem:[%s273 + $0x2] sm:$0xff]
      %v3118 = vld [vmem:[%s273 + $0xa] sm:$0x3f]
      %v3121 = vcombine.low %v3117, %v3117
      %v3123 = vunpack.c.l.s4 1983009808
      %v3124 = vunpack.c.0.s8 %v3123
      %v3125 = vlaneseq
      %v3126 = vshrl.u32 %v3125, 7
      %v3127 = vsub.s32 %v3124, %v3126
      %v3128 = vrot.slane %v3121, %v3127
      %v3130 = vunpack.c.l.s4 1983009808
      %v3131 = vunpack.c.0.s8 %v3130
      %v3132 = vlaneseq
      %v3133 = vshrl.u32 %v3132, 7
      %v3134 = vsub.s32 %v3131, %v3133
      %v3135 = vrot.slane %v3117, %v3134
      %v3136 = vcombine.low %v3128, %v3128
      %v3137 = vcombine.low %v3135, %v3135
      %v3138 = vcombine.low %v3118, %v3118
      %v3140 = vunpack.c.l.s4 1983009808
      %v3141 = vunpack.c.0.s8 %v3140
      %v3142 = vlaneseq
      %v3143 = vshrl.u32 %v3142, 7
      %v3144 = vsub.s32 %v3141, %v3143
      %v3145 = vrot.slane %v3138, %v3144
      %v3147 = vunpack.c.l.s4 1983009808
      %v3148 = vunpack.c.0.s8 %v3147
      %v3149 = vlaneseq
      %v3150 = vshrl.u32 %v3149, 7
      %v3151 = vsub.s32 %v3148, %v3150
      %v3152 = vrot.slane %v3118, %v3151
      %v3153 = vcombine.low %v3145, %v3145
      %v3154 = vcombine.low %v3152, %v3152
      %3155 = vrot.lane.b32.xlu0 %v3136, 55
      %v3156 = vpop.permute.xlu0 %3155
      %3157 = vrot.lane.b32.xlu0 %v3128, 55
      %v3158 = vpop.permute.xlu0 %3157
      %3159 = vrot.lane.b32.xlu0 %v3137, 55
      %v3160 = vpop.permute.xlu0 %3159
      %3161 = vrot.lane.b32.xlu0 %v3135, 55
      %v3162 = vpop.permute.xlu0 %3161
      %3163 = vrot.lane.b32.xlu0 %v3153, 55
      %v3164 = vpop.permute.xlu0 %3163
      %3165 = vrot.lane.b32.xlu0 %v3145, 55
      %v3166 = vpop.permute.xlu0 %3165
      %3167 = vrot.lane.b32.xlu0 %v3154, 55
      %v3168 = vpop.permute.xlu0 %3167
      %v3169 = vsel %vm3096, %v3156, %v3158
      %v3170 = vsel %vm3096, %v3158, %v3160
      %v3171 = vsel %vm3096, %v3160, %v3162
      %v3172 = vsel %vm3096, %v3162, %v3164
      %v3173 = vsel %vm3096, %v3164, %v3166
      %v3174 = vsel %vm3096, %v3166, %v3168
      %3182 = vst [vmem:[#allocation2 + $0x240] sm:$0xc0] %v3169
      %3183 = vst [vmem:[#allocation2 + $0x248] sm:$0xc0] %v3170
      %3184 = vst [vmem:[#allocation2 + $0x250] sm:$0xc0] %v3171
      %3185 = vst [vmem:[#allocation2 + $0x258] sm:$0xc0] %v3172
      %3186 = vst [vmem:[#allocation2 + $0x260] sm:$0xc0] %v3173
      %3187 = vst [vmem:[#allocation2 + $0x268] sm:$0xc0] %v3174
      %3188 = vst.msk [vmem:[#allocation2 + $0x270] sm:$0xc0] %vm533, %v3168
      %v3189 = vld [vmem:[%s268 + $0x2] sm:$0xff]
      %v3190 = vld [vmem:[%s268 + $0xa] sm:$0x3f]
      %v3193 = vcombine.high %v3189, %v3189
      %v3195 = vunpack.c.l.s4 1983009808
      %v3196 = vunpack.c.0.s8 %v3195
      %v3197 = vlaneseq
      %v3198 = vshrl.u32 %v3197, 7
      %v3199 = vsub.s32 %v3196, %v3198
      %v3200 = vrot.slane %v3189, %v3199
      %v3202 = vunpack.c.l.s4 1983009808
      %v3203 = vunpack.c.0.s8 %v3202
      %v3204 = vlaneseq
      %v3205 = vshrl.u32 %v3204, 7
      %v3206 = vsub.s32 %v3203, %v3205
      %v3207 = vrot.slane %v3193, %v3206
      %v3208 = vcombine.high %v3200, %v3200
      %v3209 = vcombine.high %v3207, %v3207
      %v3210 = vcombine.high %v3190, %v3190
      %v3212 = vunpack.c.l.s4 1983009808
      %v3213 = vunpack.c.0.s8 %v3212
      %v3214 = vlaneseq
      %v3215 = vshrl.u32 %v3214, 7
      %v3216 = vsub.s32 %v3213, %v3215
      %v3217 = vrot.slane %v3190, %v3216
      %v3219 = vunpack.c.l.s4 1983009808
      %v3220 = vunpack.c.0.s8 %v3219
      %v3221 = vlaneseq
      %v3222 = vshrl.u32 %v3221, 7
      %v3223 = vsub.s32 %v3220, %v3222
      %v3224 = vrot.slane %v3210, %v3223
      %v3225 = vcombine.high %v3217, %v3217
      %3226 = vrot.lane.b32.xlu0 %v3200, 54
      %v3227 = vpop.permute.xlu0 %3226
      %3228 = vrot.lane.b32.xlu0 %v3208, 54
      %v3229 = vpop.permute.xlu0 %3228
      %3230 = vrot.lane.b32.xlu0 %v3207, 54
      %v3231 = vpop.permute.xlu0 %3230
      %3232 = vrot.lane.b32.xlu0 %v3209, 54
      %v3233 = vpop.permute.xlu0 %3232
      %3234 = vrot.lane.b32.xlu0 %v3217, 54
      %v3235 = vpop.permute.xlu0 %3234
      %3236 = vrot.lane.b32.xlu0 %v3225, 54
      %v3237 = vpop.permute.xlu0 %3236
      %3238 = vrot.lane.b32.xlu0 %v3224, 54
      %v3239 = vpop.permute.xlu0 %3238
      %vm3240 = vcmask 441344
      %v3241 = vsel %vm3240, %v3227, %v3229
      %v3242 = vsel %vm3240, %v3229, %v3231
      %v3243 = vsel %vm3240, %v3231, %v3233
      %v3244 = vsel %vm3240, %v3233, %v3235
      %v3245 = vsel %vm3240, %v3235, %v3237
      %v3246 = vsel %vm3240, %v3237, %v3239
      %3254 = vst [vmem:[#allocation2 + $0x280] sm:$0x3] %v3241
      %3255 = vst [vmem:[#allocation2 + $0x288] sm:$0x3] %v3242
      %3256 = vst [vmem:[#allocation2 + $0x290] sm:$0x3] %v3243
      %3257 = vst [vmem:[#allocation2 + $0x298] sm:$0x3] %v3244
      %3258 = vst [vmem:[#allocation2 + $0x2a0] sm:$0x3] %v3245
      %3259 = vst [vmem:[#allocation2 + $0x2a8] sm:$0x3] %v3246
      %3260 = vst.msk [vmem:[#allocation2 + $0x2b0] sm:$0x3] %vm334, %v3239
      %v3261 = vld [vmem:[%s273 + $0x2] sm:$0xff]
      %v3262 = vld [vmem:[%s273 + $0xa] sm:$0x3f]
      %v3265 = vcombine.low %v3261, %v3261
      %v3267 = vunpack.c.l.s4 1983009808
      %v3268 = vunpack.c.0.s8 %v3267
      %v3269 = vlaneseq
      %v3270 = vshrl.u32 %v3269, 7
      %v3271 = vsub.s32 %v3268, %v3270
      %v3272 = vrot.slane %v3265, %v3271
      %v3274 = vunpack.c.l.s4 1983009808
      %v3275 = vunpack.c.0.s8 %v3274
      %v3276 = vlaneseq
      %v3277 = vshrl.u32 %v3276, 7
      %v3278 = vsub.s32 %v3275, %v3277
      %v3279 = vrot.slane %v3261, %v3278
      %v3280 = vcombine.high %v3272, %v3272
      %v3281 = vcombine.high %v3279, %v3279
      %v3282 = vcombine.low %v3262, %v3262
      %v3284 = vunpack.c.l.s4 1983009808
      %v3285 = vunpack.c.0.s8 %v3284
      %v3286 = vlaneseq
      %v3287 = vshrl.u32 %v3286, 7
      %v3288 = vsub.s32 %v3285, %v3287
      %v3289 = vrot.slane %v3282, %v3288
      %v3291 = vunpack.c.l.s4 1983009808
      %v3292 = vunpack.c.0.s8 %v3291
      %v3293 = vlaneseq
      %v3294 = vshrl.u32 %v3293, 7
      %v3295 = vsub.s32 %v3292, %v3294
      %v3296 = vrot.slane %v3262, %v3295
      %v3297 = vcombine.high %v3289, %v3289
      %3298 = vrot.lane.b32.xlu0 %v3272, 54
      %v3299 = vpop.permute.xlu0 %3298
      %3300 = vrot.lane.b32.xlu0 %v3280, 54
      %v3301 = vpop.permute.xlu0 %3300
      %3302 = vrot.lane.b32.xlu0 %v3279, 54
      %v3303 = vpop.permute.xlu0 %3302
      %3304 = vrot.lane.b32.xlu0 %v3281, 54
      %v3305 = vpop.permute.xlu0 %3304
      %3306 = vrot.lane.b32.xlu0 %v3289, 54
      %v3307 = vpop.permute.xlu0 %3306
      %3308 = vrot.lane.b32.xlu0 %v3297, 54
      %v3309 = vpop.permute.xlu0 %3308
      %3310 = vrot.lane.b32.xlu0 %v3296, 54
      %v3311 = vpop.permute.xlu0 %3310
      %v3312 = vsel %vm3240, %v3299, %v3301
      %v3313 = vsel %vm3240, %v3301, %v3303
      %v3314 = vsel %vm3240, %v3303, %v3305
      %v3315 = vsel %vm3240, %v3305, %v3307
      %v3316 = vsel %vm3240, %v3307, %v3309
      %v3317 = vsel %vm3240, %v3309, %v3311
      %3325 = vst [vmem:[#allocation2 + $0x280] sm:$0xc] %v3312
      %3326 = vst [vmem:[#allocation2 + $0x288] sm:$0xc] %v3313
      %3327 = vst [vmem:[#allocation2 + $0x290] sm:$0xc] %v3314
      %3328 = vst [vmem:[#allocation2 + $0x298] sm:$0xc] %v3315
      %3329 = vst [vmem:[#allocation2 + $0x2a0] sm:$0xc] %v3316
      %3330 = vst [vmem:[#allocation2 + $0x2a8] sm:$0xc] %v3317
      %3331 = vst.msk [vmem:[#allocation2 + $0x2b0] sm:$0xc] %vm386, %v3311
      %v3332 = vld [vmem:[%s268 + $0x2] sm:$0xff]
      %v3333 = vld [vmem:[%s268 + $0xa] sm:$0x3f]
      %v3336 = vcombine.high %v3332, %v3332
      %v3338 = vunpack.c.l.s4 1983009808
      %v3339 = vunpack.c.0.s8 %v3338
      %v3340 = vlaneseq
      %v3341 = vshrl.u32 %v3340, 7
      %v3342 = vsub.s32 %v3339, %v3341
      %v3343 = vrot.slane %v3332, %v3342
      %v3345 = vunpack.c.l.s4 1983009808
      %v3346 = vunpack.c.0.s8 %v3345
      %v3347 = vlaneseq
      %v3348 = vshrl.u32 %v3347, 7
      %v3349 = vsub.s32 %v3346, %v3348
      %v3350 = vrot.slane %v3336, %v3349
      %v3351 = vcombine.low %v3343, %v3343
      %v3352 = vcombine.low %v3350, %v3350
      %v3353 = vcombine.high %v3333, %v3333
      %v3355 = vunpack.c.l.s4 1983009808
      %v3356 = vunpack.c.0.s8 %v3355
      %v3357 = vlaneseq
      %v3358 = vshrl.u32 %v3357, 7
      %v3359 = vsub.s32 %v3356, %v3358
      %v3360 = vrot.slane %v3333, %v3359
      %v3362 = vunpack.c.l.s4 1983009808
      %v3363 = vunpack.c.0.s8 %v3362
      %v3364 = vlaneseq
      %v3365 = vshrl.u32 %v3364, 7
      %v3366 = vsub.s32 %v3363, %v3365
      %v3367 = vrot.slane %v3353, %v3366
      %v3368 = vcombine.low %v3360, %v3360
      %v3369 = vcombine.low %v3367, %v3367
      %3370 = vrot.lane.b32.xlu0 %v3351, 46
      %v3371 = vpop.permute.xlu0 %3370
      %3372 = vrot.lane.b32.xlu0 %v3343, 46
      %v3373 = vpop.permute.xlu0 %3372
      %3374 = vrot.lane.b32.xlu0 %v3352, 46
      %v3375 = vpop.permute.xlu0 %3374
      %3376 = vrot.lane.b32.xlu0 %v3350, 46
      %v3377 = vpop.permute.xlu0 %3376
      %3378 = vrot.lane.b32.xlu0 %v3368, 46
      %v3379 = vpop.permute.xlu0 %3378
      %3380 = vrot.lane.b32.xlu0 %v3360, 46
      %v3381 = vpop.permute.xlu0 %3380
      %3382 = vrot.lane.b32.xlu0 %v3369, 46
      %v3383 = vpop.permute.xlu0 %3382
      %vm3384 = vcmask 375808
      %v3385 = vsel %vm3384, %v3371, %v3373
      %v3386 = vsel %vm3384, %v3373, %v3375
      %v3387 = vsel %vm3384, %v3375, %v3377
      %v3388 = vsel %vm3384, %v3377, %v3379
      %v3389 = vsel %vm3384, %v3379, %v3381
      %v3390 = vsel %vm3384, %v3381, %v3383
      %3398 = vst [vmem:[#allocation2 + $0x280] sm:$0x30] %v3385
      %3399 = vst [vmem:[#allocation2 + $0x288] sm:$0x30] %v3386
      %3400 = vst [vmem:[#allocation2 + $0x290] sm:$0x30] %v3387
      %3401 = vst [vmem:[#allocation2 + $0x298] sm:$0x30] %v3388
      %3402 = vst [vmem:[#allocation2 + $0x2a0] sm:$0x30] %v3389
      %3403 = vst [vmem:[#allocation2 + $0x2a8] sm:$0x30] %v3390
      %3404 = vst.msk [vmem:[#allocation2 + $0x2b0] sm:$0x30] %vm460, %v3383
      %v3405 = vld [vmem:[%s273 + $0x2] sm:$0xff]
      %v3406 = vld [vmem:[%s273 + $0xa] sm:$0x3f]
      %v3409 = vcombine.low %v3405, %v3405
      %v3411 = vunpack.c.l.s4 1983009808
      %v3412 = vunpack.c.0.s8 %v3411
      %v3413 = vlaneseq
      %v3414 = vshrl.u32 %v3413, 7
      %v3415 = vsub.s32 %v3412, %v3414
      %v3416 = vrot.slane %v3409, %v3415
      %v3418 = vunpack.c.l.s4 1983009808
      %v3419 = vunpack.c.0.s8 %v3418
      %v3420 = vlaneseq
      %v3421 = vshrl.u32 %v3420, 7
      %v3422 = vsub.s32 %v3419, %v3421
      %v3423 = vrot.slane %v3405, %v3422
      %v3424 = vcombine.low %v3416, %v3416
      %v3425 = vcombine.low %v3423, %v3423
      %v3426 = vcombine.low %v3406, %v3406
      %v3428 = vunpack.c.l.s4 1983009808
      %v3429 = vunpack.c.0.s8 %v3428
      %v3430 = vlaneseq
      %v3431 = vshrl.u32 %v3430, 7
      %v3432 = vsub.s32 %v3429, %v3431
      %v3433 = vrot.slane %v3426, %v3432
      %v3435 = vunpack.c.l.s4 1983009808
      %v3436 = vunpack.c.0.s8 %v3435
      %v3437 = vlaneseq
      %v3438 = vshrl.u32 %v3437, 7
      %v3439 = vsub.s32 %v3436, %v3438
      %v3440 = vrot.slane %v3406, %v3439
      %v3441 = vcombine.low %v3433, %v3433
      %v3442 = vcombine.low %v3440, %v3440
      %3443 = vrot.lane.b32.xlu0 %v3424, 46
      %v3444 = vpop.permute.xlu0 %3443
      %3445 = vrot.lane.b32.xlu0 %v3416, 46
      %v3446 = vpop.permute.xlu0 %3445
      %3447 = vrot.lane.b32.xlu0 %v3425, 46
      %v3448 = vpop.permute.xlu0 %3447
      %3449 = vrot.lane.b32.xlu0 %v3423, 46
      %v3450 = vpop.permute.xlu0 %3449
      %3451 = vrot.lane.b32.xlu0 %v3441, 46
      %v3452 = vpop.permute.xlu0 %3451
      %3453 = vrot.lane.b32.xlu0 %v3433, 46
      %v3454 = vpop.permute.xlu0 %3453
      %3455 = vrot.lane.b32.xlu0 %v3442, 46
      %v3456 = vpop.permute.xlu0 %3455
      %v3457 = vsel %vm3384, %v3444, %v3446
      %v3458 = vsel %vm3384, %v3446, %v3448
      %v3459 = vsel %vm3384, %v3448, %v3450
      %v3460 = vsel %vm3384, %v3450, %v3452
      %v3461 = vsel %vm3384, %v3452, %v3454
      %v3462 = vsel %vm3384, %v3454, %v3456
      %3470 = vst [vmem:[#allocation2 + $0x280] sm:$0xc0] %v3457
      %3471 = vst [vmem:[#allocation2 + $0x288] sm:$0xc0] %v3458
      %3472 = vst [vmem:[#allocation2 + $0x290] sm:$0xc0] %v3459
      %3473 = vst [vmem:[#allocation2 + $0x298] sm:$0xc0] %v3460
      %3474 = vst [vmem:[#allocation2 + $0x2a0] sm:$0xc0] %v3461
      %3475 = vst [vmem:[#allocation2 + $0x2a8] sm:$0xc0] %v3462
      %3476 = vst.msk [vmem:[#allocation2 + $0x2b0] sm:$0xc0] %vm533, %v3456
      %v3477 = vld [vmem:[%s268 + $0x2] sm:$0xff]
      %v3478 = vld [vmem:[%s268 + $0xa] sm:$0x3f]
      %v3481 = vcombine.high %v3477, %v3477
      %v3483 = vunpack.c.l.s4 1983009808
      %v3484 = vunpack.c.0.s8 %v3483
      %v3485 = vlaneseq
      %v3486 = vshrl.u32 %v3485, 7
      %v3487 = vsub.s32 %v3484, %v3486
      %v3488 = vrot.slane %v3477, %v3487
      %v3490 = vunpack.c.l.s4 1983009808
      %v3491 = vunpack.c.0.s8 %v3490
      %v3492 = vlaneseq
      %v3493 = vshrl.u32 %v3492, 7
      %v3494 = vsub.s32 %v3491, %v3493
      %v3495 = vrot.slane %v3481, %v3494
      %v3496 = vcombine.high %v3488, %v3488
      %v3497 = vcombine.high %v3495, %v3495
      %v3498 = vcombine.high %v3478, %v3478
      %v3500 = vunpack.c.l.s4 1983009808
      %v3501 = vunpack.c.0.s8 %v3500
      %v3502 = vlaneseq
      %v3503 = vshrl.u32 %v3502, 7
      %v3504 = vsub.s32 %v3501, %v3503
      %v3505 = vrot.slane %v3478, %v3504
      %v3507 = vunpack.c.l.s4 1983009808
      %v3508 = vunpack.c.0.s8 %v3507
      %v3509 = vlaneseq
      %v3510 = vshrl.u32 %v3509, 7
      %v3511 = vsub.s32 %v3508, %v3510
      %v3512 = vrot.slane %v3498, %v3511
      %v3513 = vcombine.high %v3505, %v3505
      %3514 = vrot.lane.b32.xlu0 %v3488, 45
      %v3515 = vpop.permute.xlu0 %3514
      %3516 = vrot.lane.b32.xlu0 %v3496, 45
      %v3517 = vpop.permute.xlu0 %3516
      %3518 = vrot.lane.b32.xlu0 %v3495, 45
      %v3519 = vpop.permute.xlu0 %3518
      %3520 = vrot.lane.b32.xlu0 %v3497, 45
      %v3521 = vpop.permute.xlu0 %3520
      %3522 = vrot.lane.b32.xlu0 %v3505, 45
      %v3523 = vpop.permute.xlu0 %3522
      %3524 = vrot.lane.b32.xlu0 %v3513, 45
      %v3525 = vpop.permute.xlu0 %3524
      %3526 = vrot.lane.b32.xlu0 %v3512, 45
      %v3527 = vpop.permute.xlu0 %3526
      %vm3528 = vcmask 367616
      %v3529 = vsel %vm3528, %v3515, %v3517
      %v3530 = vsel %vm3528, %v3517, %v3519
      %v3531 = vsel %vm3528, %v3519, %v3521
      %v3532 = vsel %vm3528, %v3521, %v3523
      %v3533 = vsel %vm3528, %v3523, %v3525
      %v3534 = vsel %vm3528, %v3525, %v3527
      %3542 = vst [vmem:[#allocation2 + $0x2c0] sm:$0x3] %v3529
      %3543 = vst [vmem:[#allocation2 + $0x2c8] sm:$0x3] %v3530
      %3544 = vst [vmem:[#allocation2 + $0x2d0] sm:$0x3] %v3531
      %3545 = vst [vmem:[#allocation2 + $0x2d8] sm:$0x3] %v3532
      %3546 = vst [vmem:[#allocation2 + $0x2e0] sm:$0x3] %v3533
      %3547 = vst [vmem:[#allocation2 + $0x2e8] sm:$0x3] %v3534
      %3548 = vst.msk [vmem:[#allocation2 + $0x2f0] sm:$0x3] %vm334, %v3527
      %v3549 = vld [vmem:[%s273 + $0x2] sm:$0xff]
      %v3550 = vld [vmem:[%s273 + $0xa] sm:$0x3f]
      %v3553 = vcombine.low %v3549, %v3549
      %v3555 = vunpack.c.l.s4 1983009808
      %v3556 = vunpack.c.0.s8 %v3555
      %v3557 = vlaneseq
      %v3558 = vshrl.u32 %v3557, 7
      %v3559 = vsub.s32 %v3556, %v3558
      %v3560 = vrot.slane %v3553, %v3559
      %v3562 = vunpack.c.l.s4 1983009808
      %v3563 = vunpack.c.0.s8 %v3562
      %v3564 = vlaneseq
      %v3565 = vshrl.u32 %v3564, 7
      %v3566 = vsub.s32 %v3563, %v3565
      %v3567 = vrot.slane %v3549, %v3566
      %v3568 = vcombine.high %v3560, %v3560
      %v3569 = vcombine.high %v3567, %v3567
      %v3570 = vcombine.low %v3550, %v3550
      %v3572 = vunpack.c.l.s4 1983009808
      %v3573 = vunpack.c.0.s8 %v3572
      %v3574 = vlaneseq
      %v3575 = vshrl.u32 %v3574, 7
      %v3576 = vsub.s32 %v3573, %v3575
      %v3577 = vrot.slane %v3570, %v3576
      %v3579 = vunpack.c.l.s4 1983009808
      %v3580 = vunpack.c.0.s8 %v3579
      %v3581 = vlaneseq
      %v3582 = vshrl.u32 %v3581, 7
      %v3583 = vsub.s32 %v3580, %v3582
      %v3584 = vrot.slane %v3550, %v3583
      %v3585 = vcombine.high %v3577, %v3577
      %3586 = vrot.lane.b32.xlu0 %v3560, 45
      %v3587 = vpop.permute.xlu0 %3586
      %3588 = vrot.lane.b32.xlu0 %v3568, 45
      %v3589 = vpop.permute.xlu0 %3588
      %3590 = vrot.lane.b32.xlu0 %v3567, 45
      %v3591 = vpop.permute.xlu0 %3590
      %3592 = vrot.lane.b32.xlu0 %v3569, 45
      %v3593 = vpop.permute.xlu0 %3592
      %3594 = vrot.lane.b32.xlu0 %v3577, 45
      %v3595 = vpop.permute.xlu0 %3594
      %3596 = vrot.lane.b32.xlu0 %v3585, 45
      %v3597 = vpop.permute.xlu0 %3596
      %3598 = vrot.lane.b32.xlu0 %v3584, 45
      %v3599 = vpop.permute.xlu0 %3598
      %v3600 = vsel %vm3528, %v3587, %v3589
      %v3601 = vsel %vm3528, %v3589, %v3591
      %v3602 = vsel %vm3528, %v3591, %v3593
      %v3603 = vsel %vm3528, %v3593, %v3595
      %v3604 = vsel %vm3528, %v3595, %v3597
      %v3605 = vsel %vm3528, %v3597, %v3599
      %3613 = vst [vmem:[#allocation2 + $0x2c0] sm:$0xc] %v3600
      %3614 = vst [vmem:[#allocation2 + $0x2c8] sm:$0xc] %v3601
      %3615 = vst [vmem:[#allocation2 + $0x2d0] sm:$0xc] %v3602
      %3616 = vst [vmem:[#allocation2 + $0x2d8] sm:$0xc] %v3603
      %3617 = vst [vmem:[#allocation2 + $0x2e0] sm:$0xc] %v3604
      %3618 = vst [vmem:[#allocation2 + $0x2e8] sm:$0xc] %v3605
      %3619 = vst.msk [vmem:[#allocation2 + $0x2f0] sm:$0xc] %vm386, %v3599
      %v3620 = vld [vmem:[%s268 + $0x2] sm:$0xff]
      %v3621 = vld [vmem:[%s268 + $0xa] sm:$0x3f]
      %v3624 = vcombine.high %v3620, %v3620
      %v3626 = vunpack.c.l.s4 1983009808
      %v3627 = vunpack.c.0.s8 %v3626
      %v3628 = vlaneseq
      %v3629 = vshrl.u32 %v3628, 7
      %v3630 = vsub.s32 %v3627, %v3629
      %v3631 = vrot.slane %v3620, %v3630
      %v3633 = vunpack.c.l.s4 1983009808
      %v3634 = vunpack.c.0.s8 %v3633
      %v3635 = vlaneseq
      %v3636 = vshrl.u32 %v3635, 7
      %v3637 = vsub.s32 %v3634, %v3636
      %v3638 = vrot.slane %v3624, %v3637
      %v3639 = vcombine.low %v3631, %v3631
      %v3640 = vcombine.low %v3638, %v3638
      %v3641 = vcombine.high %v3621, %v3621
      %v3643 = vunpack.c.l.s4 1983009808
      %v3644 = vunpack.c.0.s8 %v3643
      %v3645 = vlaneseq
      %v3646 = vshrl.u32 %v3645, 7
      %v3647 = vsub.s32 %v3644, %v3646
      %v3648 = vrot.slane %v3621, %v3647
      %v3650 = vunpack.c.l.s4 1983009808
      %v3651 = vunpack.c.0.s8 %v3650
      %v3652 = vlaneseq
      %v3653 = vshrl.u32 %v3652, 7
      %v3654 = vsub.s32 %v3651, %v3653
      %v3655 = vrot.slane %v3641, %v3654
      %v3656 = vcombine.low %v3648, %v3648
      %v3657 = vcombine.low %v3655, %v3655
      %3658 = vrot.lane.b32.xlu0 %v3639, 44
      %v3659 = vpop.permute.xlu0 %3658
      %3660 = vrot.lane.b32.xlu0 %v3631, 44
      %v3661 = vpop.permute.xlu0 %3660
      %3662 = vrot.lane.b32.xlu0 %v3640, 44
      %v3663 = vpop.permute.xlu0 %3662
      %3664 = vrot.lane.b32.xlu0 %v3638, 44
      %v3665 = vpop.permute.xlu0 %3664
      %3666 = vrot.lane.b32.xlu0 %v3656, 44
      %v3667 = vpop.permute.xlu0 %3666
      %3668 = vrot.lane.b32.xlu0 %v3648, 44
      %v3669 = vpop.permute.xlu0 %3668
      %3670 = vrot.lane.b32.xlu0 %v3657, 44
      %v3671 = vpop.permute.xlu0 %3670
      %vm3672 = vcmask 359424
      %v3673 = vsel %vm3672, %v3659, %v3661
      %v3674 = vsel %vm3672, %v3661, %v3663
      %v3675 = vsel %vm3672, %v3663, %v3665
      %v3676 = vsel %vm3672, %v3665, %v3667
      %v3677 = vsel %vm3672, %v3667, %v3669
      %v3678 = vsel %vm3672, %v3669, %v3671
      %3686 = vst [vmem:[#allocation2 + $0x2c0] sm:$0x30] %v3673
      %3687 = vst [vmem:[#allocation2 + $0x2c8] sm:$0x30] %v3674
      %3688 = vst [vmem:[#allocation2 + $0x2d0] sm:$0x30] %v3675
      %3689 = vst [vmem:[#allocation2 + $0x2d8] sm:$0x30] %v3676
      %3690 = vst [vmem:[#allocation2 + $0x2e0] sm:$0x30] %v3677
      %3691 = vst [vmem:[#allocation2 + $0x2e8] sm:$0x30] %v3678
      %3692 = vst.msk [vmem:[#allocation2 + $0x2f0] sm:$0x30] %vm460, %v3671
      %v3693 = vld [vmem:[%s273 + $0x2] sm:$0xff]
      %v3694 = vld [vmem:[%s273 + $0xa] sm:$0x3f]
      %v3697 = vcombine.low %v3693, %v3693
      %v3699 = vunpack.c.l.s4 1983009808
      %v3700 = vunpack.c.0.s8 %v3699
      %v3701 = vlaneseq
      %v3702 = vshrl.u32 %v3701, 7
      %v3703 = vsub.s32 %v3700, %v3702
      %v3704 = vrot.slane %v3697, %v3703
      %v3706 = vunpack.c.l.s4 1983009808
      %v3707 = vunpack.c.0.s8 %v3706
      %v3708 = vlaneseq
      %v3709 = vshrl.u32 %v3708, 7
      %v3710 = vsub.s32 %v3707, %v3709
      %v3711 = vrot.slane %v3693, %v3710
      %v3712 = vcombine.low %v3704, %v3704
      %v3713 = vcombine.low %v3711, %v3711
      %v3714 = vcombine.low %v3694, %v3694
      %v3716 = vunpack.c.l.s4 1983009808
      %v3717 = vunpack.c.0.s8 %v3716
      %v3718 = vlaneseq
      %v3719 = vshrl.u32 %v3718, 7
      %v3720 = vsub.s32 %v3717, %v3719
      %v3721 = vrot.slane %v3714, %v3720
      %v3723 = vunpack.c.l.s4 1983009808
      %v3724 = vunpack.c.0.s8 %v3723
      %v3725 = vlaneseq
      %v3726 = vshrl.u32 %v3725, 7
      %v3727 = vsub.s32 %v3724, %v3726
      %v3728 = vrot.slane %v3694, %v3727
      %v3729 = vcombine.low %v3721, %v3721
      %v3730 = vcombine.low %v3728, %v3728
      %3731 = vrot.lane.b32.xlu0 %v3712, 44
      %v3732 = vpop.permute.xlu0 %3731
      %3733 = vrot.lane.b32.xlu0 %v3704, 44
      %v3734 = vpop.permute.xlu0 %3733
      %3735 = vrot.lane.b32.xlu0 %v3713, 44
      %v3736 = vpop.permute.xlu0 %3735
      %3737 = vrot.lane.b32.xlu0 %v3711, 44
      %v3738 = vpop.permute.xlu0 %3737
      %3739 = vrot.lane.b32.xlu0 %v3729, 44
      %v3740 = vpop.permute.xlu0 %3739
      %3741 = vrot.lane.b32.xlu0 %v3721, 44
      %v3742 = vpop.permute.xlu0 %3741
      %3743 = vrot.lane.b32.xlu0 %v3730, 44
      %v3744 = vpop.permute.xlu0 %3743
      %v3745 = vsel %vm3672, %v3732, %v3734
      %v3746 = vsel %vm3672, %v3734, %v3736
      %v3747 = vsel %vm3672, %v3736, %v3738
      %v3748 = vsel %vm3672, %v3738, %v3740
      %v3749 = vsel %vm3672, %v3740, %v3742
      %v3750 = vsel %vm3672, %v3742, %v3744
      %3758 = vst [vmem:[#allocation2 + $0x2c0] sm:$0xc0] %v3745
      %3759 = vst [vmem:[#allocation2 + $0x2c8] sm:$0xc0] %v3746
      %3760 = vst [vmem:[#allocation2 + $0x2d0] sm:$0xc0] %v3747
      %3761 = vst [vmem:[#allocation2 + $0x2d8] sm:$0xc0] %v3748
      %3762 = vst [vmem:[#allocation2 + $0x2e0] sm:$0xc0] %v3749
      %3763 = vst [vmem:[#allocation2 + $0x2e8] sm:$0xc0] %v3750
      %3764 = vst.msk [vmem:[#allocation2 + $0x2f0] sm:$0xc0] %vm533, %v3744
      %v3765 = vld [vmem:[%s268 + $0x2] sm:$0xff]
      %v3766 = vld [vmem:[%s268 + $0xa] sm:$0x3f]
      %v3769 = vcombine.high %v3765, %v3765
      %v3771 = vunpack.c.l.s4 1983009808
      %v3772 = vunpack.c.0.s8 %v3771
      %v3773 = vlaneseq
      %v3774 = vshrl.u32 %v3773, 7
      %v3775 = vsub.s32 %v3772, %v3774
      %v3776 = vrot.slane %v3765, %v3775
      %v3778 = vunpack.c.l.s4 1983009808
      %v3779 = vunpack.c.0.s8 %v3778
      %v3780 = vlaneseq
      %v3781 = vshrl.u32 %v3780, 7
      %v3782 = vsub.s32 %v3779, %v3781
      %v3783 = vrot.slane %v3769, %v3782
      %v3784 = vcombine.high %v3776, %v3776
      %v3785 = vcombine.high %v3783, %v3783
      %v3786 = vcombine.high %v3766, %v3766
      %v3788 = vunpack.c.l.s4 1983009808
      %v3789 = vunpack.c.0.s8 %v3788
      %v3790 = vlaneseq
      %v3791 = vshrl.u32 %v3790, 7
      %v3792 = vsub.s32 %v3789, %v3791
      %v3793 = vrot.slane %v3766, %v3792
      %v3795 = vunpack.c.l.s4 1983009808
      %v3796 = vunpack.c.0.s8 %v3795
      %v3797 = vlaneseq
      %v3798 = vshrl.u32 %v3797, 7
      %v3799 = vsub.s32 %v3796, %v3798
      %v3800 = vrot.slane %v3786, %v3799
      %v3801 = vcombine.high %v3793, %v3793
      %3802 = vrot.lane.b32.xlu0 %v3776, 36
      %v3803 = vpop.permute.xlu0 %3802
      %3804 = vrot.lane.b32.xlu0 %v3784, 36
      %v3805 = vpop.permute.xlu0 %3804
      %3806 = vrot.lane.b32.xlu0 %v3783, 36
      %v3807 = vpop.permute.xlu0 %3806
      %3808 = vrot.lane.b32.xlu0 %v3785, 36
      %v3809 = vpop.permute.xlu0 %3808
      %3810 = vrot.lane.b32.xlu0 %v3793, 36
      %v3811 = vpop.permute.xlu0 %3810
      %3812 = vrot.lane.b32.xlu0 %v3801, 36
      %v3813 = vpop.permute.xlu0 %3812
      %3814 = vrot.lane.b32.xlu0 %v3800, 36
      %v3815 = vpop.permute.xlu0 %3814
      %vm3816 = vcmask 293888
      %v3817 = vsel %vm3816, %v3803, %v3805
      %v3818 = vsel %vm3816, %v3805, %v3807
      %v3819 = vsel %vm3816, %v3807, %v3809
      %v3820 = vsel %vm3816, %v3809, %v3811
      %v3821 = vsel %vm3816, %v3811, %v3813
      %v3822 = vsel %vm3816, %v3813, %v3815
      %3830 = vst [vmem:[#allocation2 + $0x300] sm:$0x3] %v3817
      %3831 = vst [vmem:[#allocation2 + $0x308] sm:$0x3] %v3818
      %3832 = vst [vmem:[#allocation2 + $0x310] sm:$0x3] %v3819
      %3833 = vst [vmem:[#allocation2 + $0x318] sm:$0x3] %v3820
      %3834 = vst [vmem:[#allocation2 + $0x320] sm:$0x3] %v3821
      %3835 = vst [vmem:[#allocation2 + $0x328] sm:$0x3] %v3822
      %3836 = vst.msk [vmem:[#allocation2 + $0x330] sm:$0x3] %vm334, %v3815
      %v3837 = vld [vmem:[%s273 + $0x2] sm:$0xff]
      %v3838 = vld [vmem:[%s273 + $0xa] sm:$0x3f]
      %v3841 = vcombine.low %v3837, %v3837
      %v3843 = vunpack.c.l.s4 1983009808
      %v3844 = vunpack.c.0.s8 %v3843
      %v3845 = vlaneseq
      %v3846 = vshrl.u32 %v3845, 7
      %v3847 = vsub.s32 %v3844, %v3846
      %v3848 = vrot.slane %v3841, %v3847
      %v3850 = vunpack.c.l.s4 1983009808
      %v3851 = vunpack.c.0.s8 %v3850
      %v3852 = vlaneseq
      %v3853 = vshrl.u32 %v3852, 7
      %v3854 = vsub.s32 %v3851, %v3853
      %v3855 = vrot.slane %v3837, %v3854
      %v3856 = vcombine.high %v3848, %v3848
      %v3857 = vcombine.high %v3855, %v3855
      %v3858 = vcombine.low %v3838, %v3838
      %v3860 = vunpack.c.l.s4 1983009808
      %v3861 = vunpack.c.0.s8 %v3860
      %v3862 = vlaneseq
      %v3863 = vshrl.u32 %v3862, 7
      %v3864 = vsub.s32 %v3861, %v3863
      %v3865 = vrot.slane %v3858, %v3864
      %v3867 = vunpack.c.l.s4 1983009808
      %v3868 = vunpack.c.0.s8 %v3867
      %v3869 = vlaneseq
      %v3870 = vshrl.u32 %v3869, 7
      %v3871 = vsub.s32 %v3868, %v3870
      %v3872 = vrot.slane %v3838, %v3871
      %v3873 = vcombine.high %v3865, %v3865
      %3874 = vrot.lane.b32.xlu0 %v3848, 36
      %v3875 = vpop.permute.xlu0 %3874
      %3876 = vrot.lane.b32.xlu0 %v3856, 36
      %v3877 = vpop.permute.xlu0 %3876
      %3878 = vrot.lane.b32.xlu0 %v3855, 36
      %v3879 = vpop.permute.xlu0 %3878
      %3880 = vrot.lane.b32.xlu0 %v3857, 36
      %v3881 = vpop.permute.xlu0 %3880
      %3882 = vrot.lane.b32.xlu0 %v3865, 36
      %v3883 = vpop.permute.xlu0 %3882
      %3884 = vrot.lane.b32.xlu0 %v3873, 36
      %v3885 = vpop.permute.xlu0 %3884
      %3886 = vrot.lane.b32.xlu0 %v3872, 36
      %v3887 = vpop.permute.xlu0 %3886
      %v3888 = vsel %vm3816, %v3875, %v3877
      %v3889 = vsel %vm3816, %v3877, %v3879
      %v3890 = vsel %vm3816, %v3879, %v3881
      %v3891 = vsel %vm3816, %v3881, %v3883
      %v3892 = vsel %vm3816, %v3883, %v3885
      %v3893 = vsel %vm3816, %v3885, %v3887
      %3901 = vst [vmem:[#allocation2 + $0x300] sm:$0xc] %v3888
      %3902 = vst [vmem:[#allocation2 + $0x308] sm:$0xc] %v3889
      %3903 = vst [vmem:[#allocation2 + $0x310] sm:$0xc] %v3890
      %3904 = vst [vmem:[#allocation2 + $0x318] sm:$0xc] %v3891
      %3905 = vst [vmem:[#allocation2 + $0x320] sm:$0xc] %v3892
      %3906 = vst [vmem:[#allocation2 + $0x328] sm:$0xc] %v3893
      %3907 = vst.msk [vmem:[#allocation2 + $0x330] sm:$0xc] %vm386, %v3887
      %v3908 = vld [vmem:[%s268 + $0x2] sm:$0xff]
      %v3909 = vld [vmem:[%s268 + $0xa] sm:$0x3f]
      %v3912 = vcombine.high %v3908, %v3908
      %v3914 = vunpack.c.l.s4 1983009808
      %v3915 = vunpack.c.0.s8 %v3914
      %v3916 = vlaneseq
      %v3917 = vshrl.u32 %v3916, 7
      %v3918 = vsub.s32 %v3915, %v3917
      %v3919 = vrot.slane %v3908, %v3918
      %v3921 = vunpack.c.l.s4 1983009808
      %v3922 = vunpack.c.0.s8 %v3921
      %v3923 = vlaneseq
      %v3924 = vshrl.u32 %v3923, 7
      %v3925 = vsub.s32 %v3922, %v3924
      %v3926 = vrot.slane %v3912, %v3925
      %v3927 = vcombine.low %v3919, %v3919
      %v3928 = vcombine.low %v3926, %v3926
      %v3929 = vcombine.high %v3909, %v3909
      %v3931 = vunpack.c.l.s4 1983009808
      %v3932 = vunpack.c.0.s8 %v3931
      %v3933 = vlaneseq
      %v3934 = vshrl.u32 %v3933, 7
      %v3935 = vsub.s32 %v3932, %v3934
      %v3936 = vrot.slane %v3909, %v3935
      %v3938 = vunpack.c.l.s4 1983009808
      %v3939 = vunpack.c.0.s8 %v3938
      %v3940 = vlaneseq
      %v3941 = vshrl.u32 %v3940, 7
      %v3942 = vsub.s32 %v3939, %v3941
      %v3943 = vrot.slane %v3929, %v3942
      %v3944 = vcombine.low %v3936, %v3936
      %v3945 = vcombine.low %v3943, %v3943
      %3946 = vrot.lane.b32.xlu0 %v3927, 35
      %v3947 = vpop.permute.xlu0 %3946
      %3948 = vrot.lane.b32.xlu0 %v3919, 35
      %v3949 = vpop.permute.xlu0 %3948
      %3950 = vrot.lane.b32.xlu0 %v3928, 35
      %v3951 = vpop.permute.xlu0 %3950
      %3952 = vrot.lane.b32.xlu0 %v3926, 35
      %v3953 = vpop.permute.xlu0 %3952
      %3954 = vrot.lane.b32.xlu0 %v3944, 35
      %v3955 = vpop.permute.xlu0 %3954
      %3956 = vrot.lane.b32.xlu0 %v3936, 35
      %v3957 = vpop.permute.xlu0 %3956
      %3958 = vrot.lane.b32.xlu0 %v3945, 35
      %v3959 = vpop.permute.xlu0 %3958
      %vm3960 = vcmask 285696
      %v3961 = vsel %vm3960, %v3947, %v3949
      %v3962 = vsel %vm3960, %v3949, %v3951
      %v3963 = vsel %vm3960, %v3951, %v3953
      %v3964 = vsel %vm3960, %v3953, %v3955
      %v3965 = vsel %vm3960, %v3955, %v3957
      %v3966 = vsel %vm3960, %v3957, %v3959
      %3974 = vst [vmem:[#allocation2 + $0x300] sm:$0x30] %v3961
      %3975 = vst [vmem:[#allocation2 + $0x308] sm:$0x30] %v3962
      %3976 = vst [vmem:[#allocation2 + $0x310] sm:$0x30] %v3963
      %3977 = vst [vmem:[#allocation2 + $0x318] sm:$0x30] %v3964
      %3978 = vst [vmem:[#allocation2 + $0x320] sm:$0x30] %v3965
      %3979 = vst [vmem:[#allocation2 + $0x328] sm:$0x30] %v3966
      %3980 = vst.msk [vmem:[#allocation2 + $0x330] sm:$0x30] %vm460, %v3959
      %v3981 = vld [vmem:[%s273 + $0x2] sm:$0xff]
      %v3982 = vld [vmem:[%s273 + $0xa] sm:$0x3f]
      %v3985 = vcombine.low %v3981, %v3981
      %v3987 = vunpack.c.l.s4 1983009808
      %v3988 = vunpack.c.0.s8 %v3987
      %v3989 = vlaneseq
      %v3990 = vshrl.u32 %v3989, 7
      %v3991 = vsub.s32 %v3988, %v3990
      %v3992 = vrot.slane %v3985, %v3991
      %v3994 = vunpack.c.l.s4 1983009808
      %v3995 = vunpack.c.0.s8 %v3994
      %v3996 = vlaneseq
      %v3997 = vshrl.u32 %v3996, 7
      %v3998 = vsub.s32 %v3995, %v3997
      %v3999 = vrot.slane %v3981, %v3998
      %v4000 = vcombine.low %v3992, %v3992
      %v4001 = vcombine.low %v3999, %v3999
      %v4002 = vcombine.low %v3982, %v3982
      %v4004 = vunpack.c.l.s4 1983009808
      %v4005 = vunpack.c.0.s8 %v4004
      %v4006 = vlaneseq
      %v4007 = vshrl.u32 %v4006, 7
      %v4008 = vsub.s32 %v4005, %v4007
      %v4009 = vrot.slane %v4002, %v4008
      %v4011 = vunpack.c.l.s4 1983009808
      %v4012 = vunpack.c.0.s8 %v4011
      %v4013 = vlaneseq
      %v4014 = vshrl.u32 %v4013, 7
      %v4015 = vsub.s32 %v4012, %v4014
      %v4016 = vrot.slane %v3982, %v4015
      %v4017 = vcombine.low %v4009, %v4009
      %v4018 = vcombine.low %v4016, %v4016
      %4019 = vrot.lane.b32.xlu0 %v4000, 35
      %v4020 = vpop.permute.xlu0 %4019
      %4021 = vrot.lane.b32.xlu0 %v3992, 35
      %v4022 = vpop.permute.xlu0 %4021
      %4023 = vrot.lane.b32.xlu0 %v4001, 35
      %v4024 = vpop.permute.xlu0 %4023
      %4025 = vrot.lane.b32.xlu0 %v3999, 35
      %v4026 = vpop.permute.xlu0 %4025
      %4027 = vrot.lane.b32.xlu0 %v4017, 35
      %v4028 = vpop.permute.xlu0 %4027
      %4029 = vrot.lane.b32.xlu0 %v4009, 35
      %v4030 = vpop.permute.xlu0 %4029
      %4031 = vrot.lane.b32.xlu0 %v4018, 35
      %v4032 = vpop.permute.xlu0 %4031
      %v4033 = vsel %vm3960, %v4020, %v4022
      %v4034 = vsel %vm3960, %v4022, %v4024
      %v4035 = vsel %vm3960, %v4024, %v4026
      %v4036 = vsel %vm3960, %v4026, %v4028
      %v4037 = vsel %vm3960, %v4028, %v4030
      %v4038 = vsel %vm3960, %v4030, %v4032
      %4046 = vst [vmem:[#allocation2 + $0x300] sm:$0xc0] %v4033
      %4047 = vst [vmem:[#allocation2 + $0x308] sm:$0xc0] %v4034
      %4048 = vst [vmem:[#allocation2 + $0x310] sm:$0xc0] %v4035
      %4049 = vst [vmem:[#allocation2 + $0x318] sm:$0xc0] %v4036
      %4050 = vst [vmem:[#allocation2 + $0x320] sm:$0xc0] %v4037
      %4051 = vst [vmem:[#allocation2 + $0x328] sm:$0xc0] %v4038
      %4052 = vst.msk [vmem:[#allocation2 + $0x330] sm:$0xc0] %vm533, %v4032
      %v4053 = vld [vmem:[%s268 + $0x2] sm:$0xff]
      %v4054 = vld [vmem:[%s268 + $0xa] sm:$0x3f]
      %v4057 = vcombine.high %v4053, %v4053
      %v4059 = vunpack.c.l.s4 1983009808
      %v4060 = vunpack.c.0.s8 %v4059
      %v4061 = vlaneseq
      %v4062 = vshrl.u32 %v4061, 7
      %v4063 = vsub.s32 %v4060, %v4062
      %v4064 = vrot.slane %v4053, %v4063
      %v4066 = vunpack.c.l.s4 1983009808
      %v4067 = vunpack.c.0.s8 %v4066
      %v4068 = vlaneseq
      %v4069 = vshrl.u32 %v4068, 7
      %v4070 = vsub.s32 %v4067, %v4069
      %v4071 = vrot.slane %v4057, %v4070
      %v4072 = vcombine.high %v4064, %v4064
      %v4073 = vcombine.high %v4071, %v4071
      %v4074 = vcombine.high %v4054, %v4054
      %v4076 = vunpack.c.l.s4 1983009808
      %v4077 = vunpack.c.0.s8 %v4076
      %v4078 = vlaneseq
      %v4079 = vshrl.u32 %v4078, 7
      %v4080 = vsub.s32 %v4077, %v4079
      %v4081 = vrot.slane %v4054, %v4080
      %v4083 = vunpack.c.l.s4 1983009808
      %v4084 = vunpack.c.0.s8 %v4083
      %v4085 = vlaneseq
      %v4086 = vshrl.u32 %v4085, 7
      %v4087 = vsub.s32 %v4084, %v4086
      %v4088 = vrot.slane %v4074, %v4087
      %v4089 = vcombine.high %v4081, %v4081
      %4090 = vrot.lane.b32.xlu0 %v4064, 34
      %v4091 = vpop.permute.xlu0 %4090
      %4092 = vrot.lane.b32.xlu0 %v4072, 34
      %v4093 = vpop.permute.xlu0 %4092
      %4094 = vrot.lane.b32.xlu0 %v4071, 34
      %v4095 = vpop.permute.xlu0 %4094
      %4096 = vrot.lane.b32.xlu0 %v4073, 34
      %v4097 = vpop.permute.xlu0 %4096
      %4098 = vrot.lane.b32.xlu0 %v4081, 34
      %v4099 = vpop.permute.xlu0 %4098
      %4100 = vrot.lane.b32.xlu0 %v4089, 34
      %v4101 = vpop.permute.xlu0 %4100
      %4102 = vrot.lane.b32.xlu0 %v4088, 34
      %v4103 = vpop.permute.xlu0 %4102
      %vm4104 = vcmask 277504
      %v4105 = vsel %vm4104, %v4091, %v4093
      %v4106 = vsel %vm4104, %v4093, %v4095
      %v4107 = vsel %vm4104, %v4095, %v4097
      %v4108 = vsel %vm4104, %v4097, %v4099
      %v4109 = vsel %vm4104, %v4099, %v4101
      %v4110 = vsel %vm4104, %v4101, %v4103
      %4118 = vst [vmem:[#allocation2 + $0x340] sm:$0x3] %v4105
      %4119 = vst [vmem:[#allocation2 + $0x348] sm:$0x3] %v4106
      %4120 = vst [vmem:[#allocation2 + $0x350] sm:$0x3] %v4107
      %4121 = vst [vmem:[#allocation2 + $0x358] sm:$0x3] %v4108
      %4122 = vst [vmem:[#allocation2 + $0x360] sm:$0x3] %v4109
      %4123 = vst [vmem:[#allocation2 + $0x368] sm:$0x3] %v4110
      %4124 = vst.msk [vmem:[#allocation2 + $0x370] sm:$0x3] %vm334, %v4103
      %v4125 = vld [vmem:[%s273 + $0x2] sm:$0xff]
      %v4126 = vld [vmem:[%s273 + $0xa] sm:$0x3f]
      %v4129 = vcombine.low %v4125, %v4125
      %v4131 = vunpack.c.l.s4 1983009808
      %v4132 = vunpack.c.0.s8 %v4131
      %v4133 = vlaneseq
      %v4134 = vshrl.u32 %v4133, 7
      %v4135 = vsub.s32 %v4132, %v4134
      %v4136 = vrot.slane %v4129, %v4135
      %v4138 = vunpack.c.l.s4 1983009808
      %v4139 = vunpack.c.0.s8 %v4138
      %v4140 = vlaneseq
      %v4141 = vshrl.u32 %v4140, 7
      %v4142 = vsub.s32 %v4139, %v4141
      %v4143 = vrot.slane %v4125, %v4142
      %v4144 = vcombine.high %v4136, %v4136
      %v4145 = vcombine.high %v4143, %v4143
      %v4146 = vcombine.low %v4126, %v4126
      %v4148 = vunpack.c.l.s4 1983009808
      %v4149 = vunpack.c.0.s8 %v4148
      %v4150 = vlaneseq
      %v4151 = vshrl.u32 %v4150, 7
      %v4152 = vsub.s32 %v4149, %v4151
      %v4153 = vrot.slane %v4146, %v4152
      %v4155 = vunpack.c.l.s4 1983009808
      %v4156 = vunpack.c.0.s8 %v4155
      %v4157 = vlaneseq
      %v4158 = vshrl.u32 %v4157, 7
      %v4159 = vsub.s32 %v4156, %v4158
      %v4160 = vrot.slane %v4126, %v4159
      %v4161 = vcombine.high %v4153, %v4153
      %4162 = vrot.lane.b32.xlu0 %v4136, 34
      %v4163 = vpop.permute.xlu0 %4162
      %4164 = vrot.lane.b32.xlu0 %v4144, 34
      %v4165 = vpop.permute.xlu0 %4164
      %4166 = vrot.lane.b32.xlu0 %v4143, 34
      %v4167 = vpop.permute.xlu0 %4166
      %4168 = vrot.lane.b32.xlu0 %v4145, 34
      %v4169 = vpop.permute.xlu0 %4168
      %4170 = vrot.lane.b32.xlu0 %v4153, 34
      %v4171 = vpop.permute.xlu0 %4170
      %4172 = vrot.lane.b32.xlu0 %v4161, 34
      %v4173 = vpop.permute.xlu0 %4172
      %4174 = vrot.lane.b32.xlu0 %v4160, 34
      %v4175 = vpop.permute.xlu0 %4174
      %v4176 = vsel %vm4104, %v4163, %v4165
      %v4177 = vsel %vm4104, %v4165, %v4167
      %v4178 = vsel %vm4104, %v4167, %v4169
      %v4179 = vsel %vm4104, %v4169, %v4171
      %v4180 = vsel %vm4104, %v4171, %v4173
      %v4181 = vsel %vm4104, %v4173, %v4175
      %4189 = vst [vmem:[#allocation2 + $0x340] sm:$0xc] %v4176
      %4190 = vst [vmem:[#allocation2 + $0x348] sm:$0xc] %v4177
      %4191 = vst [vmem:[#allocation2 + $0x350] sm:$0xc] %v4178
      %4192 = vst [vmem:[#allocation2 + $0x358] sm:$0xc] %v4179
      %4193 = vst [vmem:[#allocation2 + $0x360] sm:$0xc] %v4180
      %4194 = vst [vmem:[#allocation2 + $0x368] sm:$0xc] %v4181
      %4195 = vst.msk [vmem:[#allocation2 + $0x370] sm:$0xc] %vm386, %v4175
      %4196 = vst [vmem:[#allocation2 + $0x340] sm:$0xf0] 0
      %4197 = vst [vmem:[#allocation2 + $0x348] sm:$0xf0] 0
      %4198 = vst [vmem:[#allocation2 + $0x350] sm:$0xf0] 0
      %4199 = vst [vmem:[#allocation2 + $0x358] sm:$0xf0] 0
      %4200 = vst [vmem:[#allocation2 + $0x360] sm:$0xf0] 0
      %4201 = vst [vmem:[#allocation2 + $0x368] sm:$0xf0] 0
      %4202 = vst [vmem:[#allocation2 + $0x370] sm:$0xf0] 0
      %4203 = vst [vmem:[#allocation2 + $0x378] sm:$0xf0] 0
      %4204 = vst [vmem:[#allocation2 + $0x380] sm:$0xff] 0
      %4205 = vst [vmem:[#allocation2 + $0x388] sm:$0xff] 0
      %4206 = vst [vmem:[#allocation2 + $0x390] sm:$0xff] 0
      %4207 = vst [vmem:[#allocation2 + $0x398] sm:$0xff] 0
      %4208 = vst [vmem:[#allocation2 + $0x3a0] sm:$0xff] 0
      %4209 = vst [vmem:[#allocation2 + $0x3a8] sm:$0xff] 0
      %4210 = vst [vmem:[#allocation2 + $0x3b0] sm:$0xff] 0
      %4211 = vst [vmem:[#allocation2 + $0x3b8] sm:$0xff] 0
      %4212 = vst [vmem:[#allocation2 + $0x3c0] sm:$0xff] 0
      %4213 = vst [vmem:[#allocation2 + $0x3c8] sm:$0xff] 0
      %4214 = vst [vmem:[#allocation2 + $0x3d0] sm:$0xff] 0
      %4215 = vst [vmem:[#allocation2 + $0x3d8] sm:$0xff] 0
      %4216 = vst [vmem:[#allocation2 + $0x3e0] sm:$0xff] 0
      %4217 = vst [vmem:[#allocation2 + $0x3e8] sm:$0xff] 0
      %4218 = vst [vmem:[#allocation2 + $0x3f0] sm:$0xff] 0
      %4219 = vst [vmem:[#allocation2 + $0x3f8] sm:$0xff] 0
      %v4220 = vld [vmem:[%s2] sm:$0xf]
      %v4221 = vld [vmem:[#allocation2] sm:$0xff]
      %v4222 = vld [vmem:[#allocation2 + $0x8] sm:$0xff]
      %v4223 = vld [vmem:[#allocation2 + $0x10] sm:$0xff]
      %v4224 = vld [vmem:[#allocation2 + $0x18] sm:$0xff]
      %v4225 = vld [vmem:[#allocation2 + $0x20] sm:$0xff]
      %v4226 = vld [vmem:[#allocation2 + $0x28] sm:$0xff]
      %v4227 = vld [vmem:[#allocation2 + $0x30] sm:$0xff]
      %v4228 = vld [vmem:[#allocation2 + $0x38] sm:$0xff]
      %v4229 = vld [vmem:[#allocation2 + $0x40] sm:$0xff]
      %v4230 = vld [vmem:[#allocation2 + $0x48] sm:$0xff]
      %v4231 = vld [vmem:[#allocation2 + $0x50] sm:$0xff]
      %v4232 = vld [vmem:[#allocation2 + $0x58] sm:$0xff]
      %v4233 = vld [vmem:[#allocation2 + $0x60] sm:$0xff]
      %v4234 = vld [vmem:[#allocation2 + $0x68] sm:$0xff]
      %v4235 = vld [vmem:[#allocation2 + $0x70] sm:$0xff]
      %v4236 = vld [vmem:[#allocation2 + $0x78] sm:$0xff]
      %v4237 = vld [vmem:[#allocation2 + $0x80] sm:$0xff]
      %v4238 = vld [vmem:[#allocation2 + $0x88] sm:$0xff]
      %v4239 = vld [vmem:[#allocation2 + $0x90] sm:$0xff]
      %v4240 = vld [vmem:[#allocation2 + $0x98] sm:$0xff]
      %v4241 = vld [vmem:[#allocation2 + $0xa0] sm:$0xff]
      %v4242 = vld [vmem:[#allocation2 + $0xa8] sm:$0xff]
      %v4243 = vld [vmem:[#allocation2 + $0xb0] sm:$0xff]
      %v4244 = vld [vmem:[#allocation2 + $0xb8] sm:$0xff]
      %v4245 = vld [vmem:[#allocation2 + $0xc0] sm:$0xff]
      %v4246 = vld [vmem:[#allocation2 + $0xc8] sm:$0xff]
      %v4247 = vld [vmem:[#allocation2 + $0xd0] sm:$0xff]
      %v4248 = vld [vmem:[#allocation2 + $0xd8] sm:$0xff]
      %v4249 = vld [vmem:[#allocation2 + $0xe0] sm:$0xff]
      %v4250 = vld [vmem:[#allocation2 + $0xe8] sm:$0xff]
      %v4251 = vld [vmem:[#allocation2 + $0xf0] sm:$0xff]
      %v4252 = vld [vmem:[#allocation2 + $0xf8] sm:$0xff]
      %v4253 = vld [vmem:[#allocation2 + $0x100] sm:$0xff]
      %v4254 = vld [vmem:[#allocation2 + $0x108] sm:$0xff]
      %v4255 = vld [vmem:[#allocation2 + $0x110] sm:$0xff]
      %v4256 = vld [vmem:[#allocation2 + $0x118] sm:$0xff]
      %v4257 = vld [vmem:[#allocation2 + $0x120] sm:$0xff]
      %v4258 = vld [vmem:[#allocation2 + $0x128] sm:$0xff]
      %v4259 = vld [vmem:[#allocation2 + $0x130] sm:$0xff]
      %v4260 = vld [vmem:[#allocation2 + $0x138] sm:$0xff]
      %v4261 = vld [vmem:[#allocation2 + $0x140] sm:$0xff]
      %v4262 = vld [vmem:[#allocation2 + $0x148] sm:$0xff]
      %v4263 = vld [vmem:[#allocation2 + $0x150] sm:$0xff]
      %v4264 = vld [vmem:[#allocation2 + $0x158] sm:$0xff]
      %v4265 = vld [vmem:[#allocation2 + $0x160] sm:$0xff]
      %v4266 = vld [vmem:[#allocation2 + $0x168] sm:$0xff]
      %v4267 = vld [vmem:[#allocation2 + $0x170] sm:$0xff]
      %v4268 = vld [vmem:[#allocation2 + $0x178] sm:$0xff]
      %v4269 = vld [vmem:[#allocation2 + $0x180] sm:$0xff]
      %v4270 = vld [vmem:[#allocation2 + $0x188] sm:$0xff]
      %v4271 = vld [vmem:[#allocation2 + $0x190] sm:$0xff]
      %v4272 = vld [vmem:[#allocation2 + $0x198] sm:$0xff]
      %v4273 = vld [vmem:[#allocation2 + $0x1a0] sm:$0xff]
      %v4274 = vld [vmem:[#allocation2 + $0x1a8] sm:$0xff]
      %v4275 = vld [vmem:[#allocation2 + $0x1b0] sm:$0xff]
      %v4276 = vld [vmem:[#allocation2 + $0x1b8] sm:$0xff]
      %v4277 = vld [vmem:[#allocation2 + $0x1c0] sm:$0xff]
      %v4278 = vld [vmem:[#allocation2 + $0x1c8] sm:$0xff]
      %v4279 = vld [vmem:[#allocation2 + $0x1d0] sm:$0xff]
      %v4280 = vld [vmem:[#allocation2 + $0x1d8] sm:$0xff]
      %v4281 = vld [vmem:[#allocation2 + $0x1e0] sm:$0xff]
      %v4282 = vld [vmem:[#allocation2 + $0x1e8] sm:$0xff]
      %v4283 = vld [vmem:[#allocation2 + $0x1f0] sm:$0xff]
      %v4284 = vld [vmem:[#allocation2 + $0x1f8] sm:$0xff]
      %v4285 = vld [vmem:[#allocation2 + $0x200] sm:$0xff]
      %v4286 = vld [vmem:[#allocation2 + $0x208] sm:$0xff]
      %v4287 = vld [vmem:[#allocation2 + $0x210] sm:$0xff]
      %v4288 = vld [vmem:[#allocation2 + $0x218] sm:$0xff]
      %v4289 = vld [vmem:[#allocation2 + $0x220] sm:$0xff]
      %v4290 = vld [vmem:[#allocation2 + $0x228] sm:$0xff]
      %v4291 = vld [vmem:[#allocation2 + $0x230] sm:$0xff]
      %v4292 = vld [vmem:[#allocation2 + $0x238] sm:$0xff]
      %v4293 = vld [vmem:[#allocation2 + $0x240] sm:$0xff]
      %v4294 = vld [vmem:[#allocation2 + $0x248] sm:$0xff]
      %v4295 = vld [vmem:[#allocation2 + $0x250] sm:$0xff]
      %v4296 = vld [vmem:[#allocation2 + $0x258] sm:$0xff]
      %v4297 = vld [vmem:[#allocation2 + $0x260] sm:$0xff]
      %v4298 = vld [vmem:[#allocation2 + $0x268] sm:$0xff]
      %v4299 = vld [vmem:[#allocation2 + $0x270] sm:$0xff]
      %v4300 = vld [vmem:[#allocation2 + $0x278] sm:$0xff]
      %v4301 = vld [vmem:[#allocation2 + $0x280] sm:$0xff]
      %v4302 = vld [vmem:[#allocation2 + $0x288] sm:$0xff]
      %v4303 = vld [vmem:[#allocation2 + $0x290] sm:$0xff]
      %v4304 = vld [vmem:[#allocation2 + $0x298] sm:$0xff]
      %v4305 = vld [vmem:[#allocation2 + $0x2a0] sm:$0xff]
      %v4306 = vld [vmem:[#allocation2 + $0x2a8] sm:$0xff]
      %v4307 = vld [vmem:[#allocation2 + $0x2b0] sm:$0xff]
      %v4308 = vld [vmem:[#allocation2 + $0x2b8] sm:$0xff]
      %v4309 = vld [vmem:[#allocation2 + $0x2c0] sm:$0xff]
      %v4310 = vld [vmem:[#allocation2 + $0x2c8] sm:$0xff]
      %v4311 = vld [vmem:[#allocation2 + $0x2d0] sm:$0xff]
      %v4312 = vld [vmem:[#allocation2 + $0x2d8] sm:$0xff]
      %v4313 = vld [vmem:[#allocation2 + $0x2e0] sm:$0xff]
      %v4314 = vld [vmem:[#allocation2 + $0x2e8] sm:$0xff]
      %v4315 = vld [vmem:[#allocation2 + $0x2f0] sm:$0xff]
      %v4316 = vld [vmem:[#allocation2 + $0x2f8] sm:$0xff]
      %v4317 = vld [vmem:[#allocation2 + $0x300] sm:$0xff]
      %v4318 = vld [vmem:[#allocation2 + $0x308] sm:$0xff]
      %v4319 = vld [vmem:[#allocation2 + $0x310] sm:$0xff]
      %v4320 = vld [vmem:[#allocation2 + $0x318] sm:$0xff]
      %v4321 = vld [vmem:[#allocation2 + $0x320] sm:$0xff]
      %v4322 = vld [vmem:[#allocation2 + $0x328] sm:$0xff]
      %v4323 = vld [vmem:[#allocation2 + $0x330] sm:$0xff]
      %v4324 = vld [vmem:[#allocation2 + $0x338] sm:$0xff]
      %v4325 = vld [vmem:[#allocation2 + $0x340] sm:$0xff]
      %v4326 = vld [vmem:[#allocation2 + $0x348] sm:$0xff]
      %v4327 = vld [vmem:[#allocation2 + $0x350] sm:$0xff]
      %v4328 = vld [vmem:[#allocation2 + $0x358] sm:$0xff]
      %v4329 = vld [vmem:[#allocation2 + $0x360] sm:$0xff]
      %v4330 = vld [vmem:[#allocation2 + $0x368] sm:$0xff]
      %v4331 = vld [vmem:[#allocation2 + $0x370] sm:$0xff]
      %v4332 = vld [vmem:[#allocation2 + $0x378] sm:$0xff]
      %v4333 = vld [vmem:[#allocation2 + $0x380] sm:$0xff]
      %v4334 = vld [vmem:[#allocation2 + $0x388] sm:$0xff]
      %v4335 = vld [vmem:[#allocation2 + $0x390] sm:$0xff]
      %v4336 = vld [vmem:[#allocation2 + $0x398] sm:$0xff]
      %v4337 = vld [vmem:[#allocation2 + $0x3a0] sm:$0xff]
      %v4338 = vld [vmem:[#allocation2 + $0x3a8] sm:$0xff]
      %v4339 = vld [vmem:[#allocation2 + $0x3b0] sm:$0xff]
      %v4340 = vld [vmem:[#allocation2 + $0x3b8] sm:$0xff]
      %v4341 = vld [vmem:[#allocation2 + $0x3c0] sm:$0xff]
      %v4342 = vld [vmem:[#allocation2 + $0x3c8] sm:$0xff]
      %v4343 = vld [vmem:[#allocation2 + $0x3d0] sm:$0xff]
      %v4344 = vld [vmem:[#allocation2 + $0x3d8] sm:$0xff]
      %v4345 = vld [vmem:[#allocation2 + $0x3e0] sm:$0xff]
      %v4346 = vld [vmem:[#allocation2 + $0x3e8] sm:$0xff]
      %v4347 = vld [vmem:[#allocation2 + $0x3f0] sm:$0xff]
      %v4348 = vld [vmem:[#allocation2 + $0x3f8] sm:$0xff]
      %v4351 = vunpack.c.l.s4 1983009808
      %v4352 = vunpack.c.0.s8 %v4351
      %v4353 = vlaneseq
      %v4354 = vshrl.u32 %v4353, 7
      %v4355 = vsub.s32 %v4352, %v4354
      %v4356 = vrot.slane %v4220, %v4355
      %v4357 = vcombine.high %v4356, %v4356
      %4360 = vmatprep.subr.bf16.mxu0 %v4222
      %4361 = vmatpush1.bf16.msra.mxu0 %v4221
      %4362 = vmatprep.subr.bf16.mxu0 %v4230
      %4363 = vmatpush1.bf16.msra.mxu0 %v4229
      %4364 = vmatprep.subr.bf16.mxu0 %v4238
      %4365 = vmatpush1.bf16.msra.mxu0 %v4237
      %4366 = vmatprep.subr.bf16.mxu0 %v4246
      %4367 = vmatpush1.bf16.msra.mxu0 %v4245
      %4368 = vmatprep.subr.bf16.mxu0 %v4254
      %4369 = vmatpush1.bf16.msra.mxu0 %v4253
      %4370 = vmatprep.subr.bf16.mxu0 %v4262
      %4371 = vmatpush1.bf16.msra.mxu0 %v4261
      %4372 = vmatprep.subr.bf16.mxu0 %v4270
      %4373 = vmatpush1.bf16.msra.mxu0 %v4269
      %4374 = vmatprep.subr.bf16.mxu0 %v4278
      %4375 = vmatpush1.bf16.msra.mxu0 %v4277
      %4376 = vmatprep.subr.bf16.mxu0 %v4286
      %4377 = vmatpush1.bf16.msra.mxu0 %v4285
      %4378 = vmatprep.subr.bf16.mxu0 %v4294
      %4379 = vmatpush1.bf16.msra.mxu0 %v4293
      %4380 = vmatprep.subr.bf16.mxu0 %v4302
      %4381 = vmatpush1.bf16.msra.mxu0 %v4301
      %4382 = vmatprep.subr.bf16.mxu0 %v4310
      %4383 = vmatpush1.bf16.msra.mxu0 %v4309
      %4384 = vmatprep.subr.bf16.mxu0 %v4318
      %4385 = vmatpush1.bf16.msra.mxu0 %v4317
      %4386 = vmatprep.subr.bf16.mxu0 %v4326
      %4387 = vmatpush1.bf16.msra.mxu0 %v4325
      %4388 = vmatprep.subr.bf16.mxu0 %v4334
      %4389 = vmatpush1.bf16.msra.mxu0 %v4333
      %4390 = vmatprep.subr.bf16.mxu0 %v4342
      %4391 = vmatpush1.bf16.msra.mxu0 %v4341
      %4392 = vmatprep.mubr.bf16.mxu0 %v4357
      %4393 = vmatmul.mubr.bf16.gmra.mrb[0].mxu0 %v4356
      %v4394 = vpop.f32.mrb[0].mxu0
      %v4395 = vadd.f32 0.0, %v4394
      %v4396 = vpop.f32.mrb[0].mxu0
      %v4397 = vadd.f32 0.0, %v4396
      %v4398 = vpop.f32.mrb[0].mxu0
      %v4399 = vpop.f32.mrb[0].mxu0
      %4400 = vdwg.mxu0
      %4401 = vmatprep.subr.bf16.mxu0 %v4224
      %4402 = vmatpush1.bf16.msra.mxu0 %v4223
      %4403 = vmatprep.subr.bf16.mxu0 %v4232
      %4404 = vmatpush1.bf16.msra.mxu0 %v4231
      %4405 = vmatprep.subr.bf16.mxu0 %v4240
      %4406 = vmatpush1.bf16.msra.mxu0 %v4239
      %4407 = vmatprep.subr.bf16.mxu0 %v4248
      %4408 = vmatpush1.bf16.msra.mxu0 %v4247
      %4409 = vmatprep.subr.bf16.mxu0 %v4256
      %4410 = vmatpush1.bf16.msra.mxu0 %v4255
      %4411 = vmatprep.subr.bf16.mxu0 %v4264
      %4412 = vmatpush1.bf16.msra.mxu0 %v4263
      %4413 = vmatprep.subr.bf16.mxu0 %v4272
      %4414 = vmatpush1.bf16.msra.mxu0 %v4271
      %4415 = vmatprep.subr.bf16.mxu0 %v4280
      %4416 = vmatpush1.bf16.msra.mxu0 %v4279
      %4417 = vmatprep.subr.bf16.mxu0 %v4288
      %4418 = vmatpush1.bf16.msra.mxu0 %v4287
      %4419 = vmatprep.subr.bf16.mxu0 %v4296
      %4420 = vmatpush1.bf16.msra.mxu0 %v4295
      %4421 = vmatprep.subr.bf16.mxu0 %v4304
      %4422 = vmatpush1.bf16.msra.mxu0 %v4303
      %4423 = vmatprep.subr.bf16.mxu0 %v4312
      %4424 = vmatpush1.bf16.msra.mxu0 %v4311
      %4425 = vmatprep.subr.bf16.mxu0 %v4320
      %4426 = vmatpush1.bf16.msra.mxu0 %v4319
      %4427 = vmatprep.subr.bf16.mxu0 %v4328
      %4428 = vmatpush1.bf16.msra.mxu0 %v4327
      %4429 = vmatprep.subr.bf16.mxu0 %v4336
      %4430 = vmatpush1.bf16.msra.mxu0 %v4335
      %4431 = vmatprep.subr.bf16.mxu0 %v4344
      %4432 = vmatpush1.bf16.msra.mxu0 %v4343
      %4433 = vmatprep.mubr.bf16.mxu0 %v4357
      %4434 = vmatmul.mubr.bf16.gmra.mrb[0].mxu0 %v4356
      %v4435 = vpop.f32.mrb[0].mxu0
      %v4436 = vadd.f32 0.0, %v4435
      %v4437 = vpop.f32.mrb[0].mxu0
      %v4438 = vadd.f32 0.0, %v4437
      %v4439 = vpop.f32.mrb[0].mxu0
      %v4440 = vpop.f32.mrb[0].mxu0
      %4441 = vdwg.mxu0
      %4442 = vmatprep.subr.bf16.mxu0 %v4226
      %4443 = vmatpush1.bf16.msra.mxu0 %v4225
      %4444 = vmatprep.subr.bf16.mxu0 %v4234
      %4445 = vmatpush1.bf16.msra.mxu0 %v4233
      %4446 = vmatprep.subr.bf16.mxu0 %v4242
      %4447 = vmatpush1.bf16.msra.mxu0 %v4241
      %4448 = vmatprep.subr.bf16.mxu0 %v4250
      %4449 = vmatpush1.bf16.msra.mxu0 %v4249
      %4450 = vmatprep.subr.bf16.mxu0 %v4258
      %4451 = vmatpush1.bf16.msra.mxu0 %v4257
      %4452 = vmatprep.subr.bf16.mxu0 %v4266
      %4453 = vmatpush1.bf16.msra.mxu0 %v4265
      %4454 = vmatprep.subr.bf16.mxu0 %v4274
      %4455 = vmatpush1.bf16.msra.mxu0 %v4273
      %4456 = vmatprep.subr.bf16.mxu0 %v4282
      %4457 = vmatpush1.bf16.msra.mxu0 %v4281
      %4458 = vmatprep.subr.bf16.mxu0 %v4290
      %4459 = vmatpush1.bf16.msra.mxu0 %v4289
      %4460 = vmatprep.subr.bf16.mxu0 %v4298
      %4461 = vmatpush1.bf16.msra.mxu0 %v4297
      %4462 = vmatprep.subr.bf16.mxu0 %v4306
      %4463 = vmatpush1.bf16.msra.mxu0 %v4305
      %4464 = vmatprep.subr.bf16.mxu0 %v4314
      %4465 = vmatpush1.bf16.msra.mxu0 %v4313
      %4466 = vmatprep.subr.bf16.mxu0 %v4322
      %4467 = vmatpush1.bf16.msra.mxu0 %v4321
      %4468 = vmatprep.subr.bf16.mxu0 %v4330
      %4469 = vmatpush1.bf16.msra.mxu0 %v4329
      %4470 = vmatprep.subr.bf16.mxu0 %v4338
      %4471 = vmatpush1.bf16.msra.mxu0 %v4337
      %4472 = vmatprep.subr.bf16.mxu0 %v4346
      %4473 = vmatpush1.bf16.msra.mxu0 %v4345
      %4474 = vmatprep.mubr.bf16.mxu0 %v4357
      %4475 = vmatmul.mubr.bf16.gmra.mrb[0].mxu0 %v4356
      %v4476 = vpop.f32.mrb[0].mxu0
      %v4477 = vadd.f32 0.0, %v4476
      %v4478 = vpop.f32.mrb[0].mxu0
      %v4479 = vadd.f32 0.0, %v4478
      %v4480 = vpop.f32.mrb[0].mxu0
      %v4481 = vpop.f32.mrb[0].mxu0
      %4482 = vdwg.mxu0
      %4483 = vmatprep.subr.bf16.mxu0 %v4228
      %4484 = vmatpush1.bf16.msra.mxu0 %v4227
      %4485 = vmatprep.subr.bf16.mxu0 %v4236
      %4486 = vmatpush1.bf16.msra.mxu0 %v4235
      %4487 = vmatprep.subr.bf16.mxu0 %v4244
      %4488 = vmatpush1.bf16.msra.mxu0 %v4243
      %4489 = vmatprep.subr.bf16.mxu0 %v4252
      %4490 = vmatpush1.bf16.msra.mxu0 %v4251
      %4491 = vmatprep.subr.bf16.mxu0 %v4260
      %4492 = vmatpush1.bf16.msra.mxu0 %v4259
      %4493 = vmatprep.subr.bf16.mxu0 %v4268
      %4494 = vmatpush1.bf16.msra.mxu0 %v4267
      %4495 = vmatprep.subr.bf16.mxu0 %v4276
      %4496 = vmatpush1.bf16.msra.mxu0 %v4275
      %4497 = vmatprep.subr.bf16.mxu0 %v4284
      %4498 = vmatpush1.bf16.msra.mxu0 %v4283
      %4499 = vmatprep.subr.bf16.mxu0 %v4292
      %4500 = vmatpush1.bf16.msra.mxu0 %v4291
      %4501 = vmatprep.subr.bf16.mxu0 %v4300
      %4502 = vmatpush1.bf16.msra.mxu0 %v4299
      %4503 = vmatprep.subr.bf16.mxu0 %v4308
      %4504 = vmatpush1.bf16.msra.mxu0 %v4307
      %4505 = vmatprep.subr.bf16.mxu0 %v4316
      %4506 = vmatpush1.bf16.msra.mxu0 %v4315
      %4507 = vmatprep.subr.bf16.mxu0 %v4324
      %4508 = vmatpush1.bf16.msra.mxu0 %v4323
      %4509 = vmatprep.subr.bf16.mxu0 %v4332
      %4510 = vmatpush1.bf16.msra.mxu0 %v4331
      %4511 = vmatprep.subr.bf16.mxu0 %v4340
      %4512 = vmatpush1.bf16.msra.mxu0 %v4339
      %4513 = vmatprep.subr.bf16.mxu0 %v4348
      %4514 = vmatpush1.bf16.msra.mxu0 %v4347
      %4515 = vmatprep.mubr.bf16.mxu0 %v4357
      %4516 = vmatmul.mubr.bf16.gmra.mrb[0].mxu0 %v4356
      %v4517 = vpop.f32.mrb[0].mxu0
      %v4518 = vadd.f32 0.0, %v4517
      %v4519 = vpop.f32.mrb[0].mxu0
      %v4520 = vpop.f32.mrb[0].mxu0
      %v4521 = vpop.f32.mrb[0].mxu0
      %4522 = vdwg.mxu0
      %v4523 = vld [vmem:[%s4] sm:$0xff]
      %vm4524 = vcmp.gt.f32.partialorder %v4523, 0.0
      %v4525 = vld [vmem:[%s3] sm:$0xf]
      %4527 = vset.pattern.permute.xlu0 0
      %4528 = vperm.xlu0 %4527, %v4525
      %v4529 = vpop.permute.xlu0 %4528
      %v4531 = vadd.f32 %v4395, %v4529
      %v4532 = vadd.f32 %v4397, %v4529
      %v4533 = vadd.f32 %v4436, %v4529
      %v4534 = vadd.f32 %v4438, %v4529
      %v4535 = vadd.f32 %v4477, %v4529
      %v4536 = vadd.f32 %v4479, %v4529
      %v4537 = vadd.f32 %v4518, %v4529
      %v4538 = vsel %vm4524, 1, 0
      %v4539 = vlaneseq
      %v4540 = vshrl.u32 %v4539, 7
      %v4541 = vsub.s32 0, %v4540
      %v4542 = vrot.slane %v4538, %v4541
      %v4543 = vlaneseq
      %v4544 = vshrl.u32 %v4543, 7
      %v4545 = vsub.s32 1, %v4544
      %v4546 = vrot.slane %v4538, %v4545
      %v4547 = vlaneseq
      %v4548 = vshrl.u32 %v4547, 7
      %v4549 = vsub.s32 2, %v4548
      %v4550 = vrot.slane %v4538, %v4549
      %v4551 = vlaneseq
      %v4552 = vshrl.u32 %v4551, 7
      %v4553 = vsub.s32 3, %v4552
      %v4554 = vrot.slane %v4538, %v4553
      %v4555 = vlaneseq
      %v4556 = vshrl.u32 %v4555, 7
      %v4557 = vsub.s32 4, %v4556
      %v4558 = vrot.slane %v4538, %v4557
      %v4559 = vlaneseq
      %v4560 = vshrl.u32 %v4559, 7
      %v4561 = vsub.s32 5, %v4560
      %v4562 = vrot.slane %v4538, %v4561
      %v4563 = vlaneseq
      %v4564 = vshrl.u32 %v4563, 7
      %v4565 = vsub.s32 6, %v4564
      %v4566 = vrot.slane %v4538, %v4565
      %vm4567 = vcmp.eq.s32.totalorder %v4542, 1
      %vm4568 = vcmp.eq.s32.totalorder %v4546, 1
      %vm4569 = vcmp.eq.s32.totalorder %v4550, 1
      %vm4570 = vcmp.eq.s32.totalorder %v4554, 1
      %vm4571 = vcmp.eq.s32.totalorder %v4558, 1
      %vm4572 = vcmp.eq.s32.totalorder %v4562, 1
      %vm4573 = vcmp.eq.s32.totalorder %v4566, 1
      %v4574 = vsel %vm4567, %v4531, 0.0
      %v4575 = vsel %vm4568, %v4532, 0.0
      %v4576 = vsel %vm4569, %v4533, 0.0
      %v4577 = vsel %vm4570, %v4534, 0.0
      %v4578 = vsel %vm4571, %v4535, 0.0
      %v4579 = vsel %vm4572, %v4536, 0.0
      %v4580 = vsel %vm4573, %v4537, 0.0
      %vm4581 = vcmask 1043456
      %v4582 = vsel %vm4581, %v4574, 0.0
      %v4583 = vsel %vm4581, %v4575, 0.0
      %v4584 = vadd.f32 %v4582, %v4583
      %v4585 = vsel %vm4581, %v4576, 0.0
      %v4586 = vadd.f32 %v4584, %v4585
      %v4587 = vsel %vm4581, %v4577, 0.0
      %v4588 = vadd.f32 %v4586, %v4587
      %v4589 = vsel %vm4581, %v4578, 0.0
      %v4590 = vadd.f32 %v4588, %v4589
      %v4591 = vsel %vm4581, %v4579, 0.0
      %v4592 = vadd.f32 %v4590, %v4591
      %v4593 = vsel %vm4581, %v4580, 0.0
      %v4594 = vadd.f32 %v4592, %v4593
      %4595 = vadd.xlane.f32.xlu0 %v4594
      %v4596 = vpop.xlane.xlu0 %4595
      %vm4597 = vcmask 3072
      %4598 = vst.msk [vmem:[%s282] sm:$0xf] %vm4597, %v4596
      %v4599 = vmul.f32 %v4574, %v4574
      %v4600 = vmul.f32 %v4575, %v4575
      %v4601 = vmul.f32 %v4576, %v4576
      %v4602 = vmul.f32 %v4577, %v4577
      %v4603 = vmul.f32 %v4578, %v4578
      %v4604 = vmul.f32 %v4579, %v4579
      %v4605 = vmul.f32 %v4580, %v4580
      %v4606 = vsel %vm4581, %v4599, 0.0
      %v4607 = vsel %vm4581, %v4600, 0.0
      %v4608 = vadd.f32 %v4606, %v4607
      %v4609 = vsel %vm4581, %v4601, 0.0
      %v4610 = vadd.f32 %v4608, %v4609
      %v4611 = vsel %vm4581, %v4602, 0.0
      %v4612 = vadd.f32 %v4610, %v4611
      %v4613 = vsel %vm4581, %v4603, 0.0
      %v4614 = vadd.f32 %v4612, %v4613
      %v4615 = vsel %vm4581, %v4604, 0.0
      %v4616 = vadd.f32 %v4614, %v4615
      %v4617 = vsel %vm4581, %v4605, 0.0
      %v4618 = vadd.f32 %v4616, %v4617
      %4619 = vadd.xlane.f32.xlu0 %v4618
      %v4620 = vpop.xlane.xlu0 %4619
      %vm4621 = vcmask 11272
      %4622 = vst.msk [vmem:[%s282] sm:$0xf] %vm4621, %v4620
      %v4623 = vpack.c.bf16 %v4574, %v4574
      %v4624 = vpack.c.bf16 %v4575, %v4575
      %v4625 = vpack.c.bf16 %v4576, %v4576
      %v4626 = vpack.c.bf16 %v4577, %v4577
      %v4627 = vpack.c.bf16 %v4578, %v4578
      %v4628 = vpack.c.bf16 %v4579, %v4579
      %v4629 = vpack.c.bf16 %v4580, %v4580
      %v4637 = vcombine.low %v4623, %v4624
      %v4638 = vcombine.low %v4625, %v4626
      %v4640 = vunpack.c.l.s4 1983009808
      %v4641 = vunpack.c.0.s8 %v4640
      %v4642 = vlaneseq
      %v4643 = vshrl.u32 %v4642, 7
      %v4644 = vsub.s32 %v4641, %v4643
      %v4645 = vrot.slane %v4637, %v4644
      %v4647 = vunpack.c.l.s4 1983009808
      %v4648 = vunpack.c.0.s8 %v4647
      %v4649 = vlaneseq
      %v4650 = vshrl.u32 %v4649, 7
      %v4651 = vsub.s32 %v4648, %v4650
      %v4652 = vrot.slane %v4638, %v4651
      %v4653 = vcombine.low %v4645, %v4652
      %v4654 = vcombine.low %v4627, %v4628
      %v4656 = vunpack.c.l.s4 1983009808
      %v4657 = vunpack.c.0.s8 %v4656
      %v4658 = vlaneseq
      %v4659 = vshrl.u32 %v4658, 7
      %v4660 = vsub.s32 %v4657, %v4659
      %v4661 = vrot.slane %v4654, %v4660
      %v4663 = vunpack.c.l.s4 1983009808
      %v4664 = vunpack.c.0.s8 %v4663
      %v4665 = vlaneseq
      %v4666 = vshrl.u32 %v4665, 7
      %v4667 = vsub.s32 %v4664, %v4666
      %v4668 = vrot.slane %v4629, %v4667
      %v4669 = vcombine.low %v4661, %v4668
      %4672 = vst [vmem:[%s278] sm:$0xff] %v4653
      %4673 = vst [vmem:[%s278 + $0x8] sm:$0x3f] %v4669
      %p4674 = scmp.lt.s32.totalorder %s18, 1
      %s4675 = scalar_select %p4674, %s18, 1
      %s4676 = smul.addr %s4675, 7
      %s4677 = smul.addr %s4676, 2
      %s4678 = scalar_lea.vmem %s5, %s4677
      %p4679 = scmp.lt.s32.totalorder %s18, 1
      %s4680 = scalar_select %p4679, %s18, 1
      %s4681 = smul.addr %s4680, 4
      %s4682 = scalar_lea.vmem %s6, %s4681
      // Predicated region
      $region41: #{up_forward.2} parent=39 // pred_check
        %p4683 = pneg %p151
      $region42: #{up_forward.2} parent=39 // pred_check_branch
        %4685 = sbr.rel (%p4683) target = $region44
      $region43: #{up_forward.2} parent=39 // pred_region
        _
      $region44: #{up_forward.2} parent=39 // pred_fallthru
        _
      // Predicated region
      $region45: #{up_forward.2} parent=39 // pred_check
        %p4686 = pneg %p177
      $region46: #{up_forward.2} parent=39 // pred_check_branch
        %4688 = sbr.rel (%p4686) target = $region48
      $region47: #{up_forward.2} parent=39 // pred_region
        _
      $region48: #{up_forward.2} parent=39 // pred_fallthru
        _
    $region40: #{up_forward.2} parent=5 // pred_fallthru
      _
    %p4689 = scmp.le.s32.totalorder 2, %s13
    // Predicated region
    $region49: #{up_forward.2} parent=5 // pred_check
      %p4690 = pneg %p4689
    $region50: #{up_forward.2} parent=5 // pred_check_branch
      %4692 = sbr.rel (%p4690) target = $region52
    $region51: #{up_forward.2} parent=5 // pred_region
      %s4693 = ssub.s32 %s13, 2
      // Predicated region
      $region53: #{up_forward.2} parent=51 // pred_check
        %p4694 = pneg %p157
      $region54: #{up_forward.2} parent=51 // pred_check_branch
        %4696 = sbr.rel (%p4694) target = $region56
      $region55: #{up_forward.2} parent=51 // pred_region
        %p4697 = scmp.lt.s32.totalorder %s19, 1
        %s4698 = scalar_select %p4697, %s19, 1
        %s4699 = smul.addr %s4698, 7
        %s4700 = smul.addr %s4699, 2
        %s4701 = scalar_lea.vmem %s5, %s4700
      $region56: #{up_forward.2} parent=51 // pred_fallthru
        _
      // Predicated region
      $region57: #{up_forward.2} parent=51 // pred_check
        %p4702 = pneg %p183
      $region58: #{up_forward.2} parent=51 // pred_check_branch
        %4704 = sbr.rel (%p4702) target = $region60
      $region59: #{up_forward.2} parent=51 // pred_region
        %p4705 = scmp.lt.s32.totalorder %s19, 1
        %s4706 = scalar_select %p4705, %s19, 1
        %s4707 = smul.addr %s4706, 4
        %s4708 = scalar_lea.vmem %s6, %s4707
      $region60: #{up_forward.2} parent=51 // pred_fallthru
        _
    $region52: #{up_forward.2} parent=5 // pred_fallthru
      _
  $region6: #{up_forward.2} parent=0 // loop_footer
    %s17 = sadd.s32 1, %s13
  $region7: #{up_forward.2} parent=0 // loop_footer_branch
    %12 = sbr.rel target = $region3
  $region8: #{up_forward.2} parent=0 // loop_exit
    _

</llo_original>
